<compile_context>
chip_gen: v5e
topology: v5e:2x2
jax: 0.10.0
libtpu: 0.0.40
codegen_flags: <defaults>
</compile_context>

<pallas_src>
import functools

import numpy as np

import jax
import jax.numpy as jnp
from jax.experimental import pallas as pl
from jax.experimental.pallas import tpu as pltpu


def _bcast_spec(shape):
    """Full-array block, same block for every grid step (weights/constants)."""
    nd = len(shape)
    return pl.BlockSpec(shape, lambda *_, nd=nd: (0,) * nd)


# ----------------------------------------------------------------------------
# The single fused kernel (one batch element per grid step)
# ----------------------------------------------------------------------------
def _hyperdnet_kernel(p_ref, w0_ref, s0_ref, b0_ref, selp_ref,
                      w1_ref, s1_ref, b1_ref, seldw_ref, wdw_ref, b2_ref,
                      w3_ref, wg1_ref, bg1_ref, wg2_ref, bg2_ref, o_ref,
                      *, n_taps, sp_pad, n_real):
    mo, kdim = p_ref.shape[1], p_ref.shape[2]
    n_out = w0_ref.shape[1]             # 128 = top(64) | bottom(64)
    n_stages = w1_ref.shape[0]          # 3
    nmid = w3_ref.shape[1]              # 64 = 2 * 32 mid channels
    nres = w3_ref.shape[2]              # 128 = 2 * 64 output channels

    # ---- Initial_Conv (both branches packed): 7^3 conv + folded BN + ReLU.
    a = p_ref[...].reshape(mo, kdim)                               # bf16
    y = jnp.dot(a, w0_ref[...], preferred_element_type=jnp.float32)
    y = jnp.maximum(y * s0_ref[...] + b0_ref[...], 0.0)            # (216,128)
    yb = y.astype(jnp.bfloat16)

    # ---- MaxPool3d(3,2,1): one stacked selection matmul + tap-axis VPU max.
    pooled = jnp.dot(selp_ref[...], yb, preferred_element_type=jnp.float32)
    pooled = pooled.reshape(n_taps, sp_pad, n_out).max(axis=0)     # (32,128)

    # ---- 3 fused ResNeXt bottleneck pairs (top+bottom packed on channels).
    c = pooled
    for s in range(n_stages):
        x = c.astype(jnp.bfloat16)                                 # (32,128)
        # conv1 + downsample for both branches in ONE matmul, folded BN.
        y = jnp.dot(x, w1_ref[s], preferred_element_type=jnp.float32)
        y = y * s1_ref[s] + b1_ref[s]                              # (32,192)
        res = y[:, :nres]                                          # BN(down(x))
        h = jnp.maximum(y[:, nres:nres + nmid], 0.0)               # relu(BN(conv1))
        hb = h.astype(jnp.bfloat16)                                # (32, 64)

        # Depthwise 3x3x3 conv: selection matmul -> per-tap scale -> VPU sum.
        shifted = jnp.dot(seldw_ref[...], hb,
                          preferred_element_type=jnp.float32)      # (864,64)
        shifted = shifted.reshape(n_taps, sp_pad, nmid)
        dw = jnp.sum(shifted * wdw_ref[s][:, None, :], axis=0) + b2_ref[s]

        # conv3 (block-diagonal over the two branches) + residual add.
        c = jnp.dot(dw.astype(jnp.bfloat16), w3_ref[s],
                    preferred_element_type=jnp.float32) + res      # (32,128)

    # ---- Final_conv squeeze-excite epilogue (masked over real positions).
    row = jax.lax.broadcasted_iota(jnp.int32, c.shape, 0)
    valid = (row < n_real).astype(jnp.float32)
    pooled_c = jnp.sum(c * valid, axis=0, keepdims=True) * (1.0 / n_real)
    g = jnp.dot(pooled_c, wg1_ref[...],
                preferred_element_type=jnp.float32) + bg1_ref[...]
    g = jnp.where(g > 0.0, g, 0.01 * g)                            # LeakyReLU
    g = jnp.dot(g, wg2_ref[...],
                preferred_element_type=jnp.float32) + bg2_ref[...]
    g = jax.nn.sigmoid(g)
    o_ref[...] = (c * g).reshape(o_ref.shape)


# ----------------------------------------------------------------------------
# pallas_call wrapper
# ----------------------------------------------------------------------------
def hyperdnet_call(patches, w0, s0, b0, selp, w1s, s1s, b1s, seldw, wdws,
                   b2s, w3s, wg1, bg1, wg2, bg2, *, sp_pad, n_real):
    b, mo, kdim = patches.shape
    n_out = w0.shape[1]
    n_taps = wdws.shape[1]
    n_stages = w1s.shape[0]
    nmid = w3s.shape[1]

    args = (patches, w0, s0, b0, selp, w1s, s1s, b1s, seldw, wdws,
            b2s, w3s, wg1, bg1, wg2, bg2)
    in_specs = ([pl.BlockSpec((1, mo, kdim), lambda i: (i, 0, 0))]
                + [_bcast_spec(a.shape) for a in args[1:]])

    flops = b * (2 * mo * kdim * n_out                          # 7^3 conv
                 + 2 * selp.shape[0] * mo * n_out               # pool taps
                 + n_stages * (2 * sp_pad * w1s.shape[1] * w1s.shape[2]
                               + 2 * seldw.shape[0] * seldw.shape[1] * nmid
                               + 2 * sp_pad * nmid * n_out))
    bytes_accessed = (sum(int(np.prod(a.shape)) * np.dtype(a.dtype).itemsize
                          for a in args)
                      + b * sp_pad * n_out * 4)

    kernel = functools.partial(_hyperdnet_kernel, n_taps=n_taps,
                               sp_pad=sp_pad, n_real=n_real)
    return pl.pallas_call(
        kernel,
        grid=(b,),
        in_specs=in_specs,
        out_specs=pl.BlockSpec((1, sp_pad, n_out), lambda i: (i, 0, 0)),
        out_shape=jax.ShapeDtypeStruct((b, sp_pad, n_out), jnp.float32),
        compiler_params=pltpu.CompilerParams(
            dimension_semantics=("parallel",)),
        cost_estimate=pl.CostEstimate(flops=int(flops),
                                      transcendentals=int(2 * b * n_out),
                                      bytes_accessed=int(bytes_accessed)),
    )(*args)


# ----------------------------------------------------------------------------
# Plain-JAX / numpy glue: im2col, selection matrices, BN folding, weight prep
# ----------------------------------------------------------------------------
def extract_patches(x, k, stride, pad):
    """x: (B, D, H, W, C) -> (B, Do, Ho, Wo, k^3, C), tap order (kd, kh, kw)."""
    B, D, H, W, C = x.shape
    xp = jnp.pad(x, ((0, 0), (pad, pad), (pad, pad), (pad, pad), (0, 0)))
    Do = (D + 2 * pad - k) // stride + 1
    Ho = (H + 2 * pad - k) // stride + 1
    Wo = (W + 2 * pad - k) // stride + 1
    taps = []
    for kd in range(k):
        for kh in range(k):
            for kw in range(k):
                taps.append(
                    xp[:, kd:kd + stride * Do:stride,
                          kh:kh + stride * Ho:stride,
                          kw:kw + stride * Wo:stride, :])
    return jnp.stack(taps, axis=4)


def _pool_out(n, k=3, stride=2, pad=1):
    return (n + 2 * pad - k) // stride + 1


def _build_pool_select(di, hi, wi, sp_pad, k=3, stride=2, pad=1):
    """Stacked selection matrix for MaxPool3d(3,2,1): (k^3*sp_pad, di*hi*wi).

    Row t*sp_pad + p selects the t-th tap of pooled position p (0 if the tap
    is out of bounds or p >= the number of real pooled positions)."""
    do, ho, wo = _pool_out(di), _pool_out(hi), _pool_out(wi)
    mi = di * hi * wi
    sel = np.zeros((k * k * k * sp_pad, mi), np.float32)
    for t, (kd, kh, kw) in enumerate(np.ndindex(k, k, k)):
        for p, (pd, ph, pw) in enumerate(np.ndindex(do, ho, wo)):
            sd = stride * pd + kd - pad
            sh = stride * ph + kh - pad
            sw = stride * pw + kw - pad
            if 0 <= sd < di and 0 <= sh < hi and 0 <= sw < wi:
                sel[t * sp_pad + p, (sd * hi + sh) * wi + sw] = 1.0
    return sel


def _build_dw_select(nd, nh, nw, sp_pad, k=3):
    """Stacked selection matrix for the 3x3x3 depthwise conv:
    (k^3*sp_pad, sp_pad); only real (< nd*nh*nw) rows/cols are referenced."""
    sel = np.zeros((k * k * k * sp_pad, sp_pad), np.float32)
    for t, (kd, kh, kw) in enumerate(np.ndindex(k, k, k)):
        for p, (pd, ph, pw) in enumerate(np.ndindex(nd, nh, nw)):
            sd, sh, sw = pd + kd - 1, ph + kh - 1, pw + kw - 1
            if 0 <= sd < nd and 0 <= sh < nh and 0 <= sw < nw:
                sel[t * sp_pad + p, (sd * nh + sh) * nw + sw] = 1.0
    return sel


def _fold_bn(bn, eps=1e-5):
    s = bn["gamma"] * jax.lax.rsqrt(bn["var"] + eps)
    return s, bn["beta"] - bn["mean"] * s


def _prep_initial(p_top, p_bot):
    """Combined 7^3 conv weight over the 4 raw input channels.

    top branch reads input channels (0, 3); bottom branch reads (1, 2).
    Output columns: [top 0:64 | bottom 64:128].
    NOTE: real PyTorch weights (cout, cin, kd, kh, kw) would need reordering
    to (tap, cin, cout) with tap order (kd, kh, kw); weights here are random.
    """
    kt = p_top["conv_w"].shape[0]                       # 343 taps
    w = jnp.zeros((kt, 4, 128), jnp.float32)
    w = w.at[:, 0, 0:64].set(p_top["conv_w"][:, 0])
    w = w.at[:, 3, 0:64].set(p_top["conv_w"][:, 1])
    w = w.at[:, 1, 64:128].set(p_bot["conv_w"][:, 0])
    w = w.at[:, 2, 64:128].set(p_bot["conv_w"][:, 1])
    w = w.reshape(kt * 4, 128).astype(jnp.bfloat16)
    st, bt = _fold_bn(p_top["bn"])
    sb, bb = _fold_bn(p_bot["bn"])
    s = jnp.concatenate([st, sb]).reshape(1, 128)
    b = jnp.concatenate([bt, bb]).reshape(1, 128)
    return w, s, b


def _prep_stage(p_top, p_bot):
    """Pack top+bottom bottleneck weights; fold BN; fold the bottom branch's
    [y_b, y_t] input-channel permutation into its weight rows."""
    def perm(w):                                    # swap 64/64 input halves
        half = w.shape[0] // 2
        return jnp.concatenate([w[half:], w[:half]], axis=0)

    sd_t, bd_t = _fold_bn(p_top["bn_down"])
    sd_b, bd_b = _fold_bn(p_bot["bn_down"])
    s1_t, b1_t = _fold_bn(p_top["bn1"])
    s1_b, b1_b = _fold_bn(p_bot["bn1"])
    s2_t, b2_t = _fold_bn(p_top["bn2"])
    s2_b, b2_b = _fold_bn(p_bot["bn2"])

    # columns: [down_top(64) | down_bot(64) | conv1_top(32) | conv1_bot(32)]
    w1 = jnp.concatenate([p_top["down_w"], perm(p_bot["down_w"]),
                          p_top["conv1_w"], perm(p_bot["conv1_w"])], axis=1)
    s1 = jnp.concatenate([sd_t, sd_b, s1_t, s1_b]).reshape(1, -1)
    b1 = jnp.concatenate([bd_t, bd_b, b1_t, b1_b]).reshape(1, -1)

    # depthwise weights packed along channels; bn2 scale folded into the taps
    dw = jnp.concatenate([p_top["conv2_w"], p_bot["conv2_w"]], axis=1)  # (27,64)
    s2 = jnp.concatenate([s2_t, s2_b]).reshape(1, -1)
    b2 = jnp.concatenate([b2_t, b2_b]).reshape(1, -1)
    wdw = dw * s2                                                       # (27,64)

    # block-diagonal conv3 so the kernel output is already [top | bottom]
    mid, cout = p_top["conv3_w"].shape
    w3 = jnp.zeros((2 * mid, 2 * cout), jnp.float32)
    w3 = w3.at[:mid, :cout].set(p_top["conv3_w"])
    w3 = w3.at[mid:, cout:].set(p_bot["conv3_w"])

    return dict(w1=w1.astype(jnp.bfloat16), s1=s1, b1=b1,
                wdw=wdw, b2=b2, w3=w3.astype(jnp.bfloat16))


# ----------------------------------------------------------------------------
# Parameters (deterministic random init; eval-mode BN running stats)
# ----------------------------------------------------------------------------
def _bn_params(key, c):
    k1, k2, k3, k4 = jax.random.split(key, 4)
    return dict(gamma=1.0 + 0.1 * jax.random.normal(k1, (c,), jnp.float32),
                beta=0.1 * jax.random.normal(k2, (c,), jnp.float32),
                mean=0.1 * jax.random.normal(k3, (c,), jnp.float32),
                var=0.5 + 0.5 * jax.random.uniform(k4, (c,), jnp.float32))


def _initial_params(key, cin=2, cout=64, k=7):
    k1, k2 = jax.random.split(key)
    return dict(conv_w=0.05 * jax.random.normal(k1, (k ** 3, cin, cout),
                                                jnp.float32),
                bn=_bn_params(k2, cout))


def _bottleneck_params(key, cin=128, mid=32, cout=64):
    ks = jax.random.split(key, 7)
    return dict(conv1_w=0.1 * jax.random.normal(ks[0], (cin, mid), jnp.float32),
                bn1=_bn_params(ks[1], mid),
                conv2_w=0.1 * jax.random.normal(ks[2], (27, mid), jnp.float32),
                bn2=_bn_params(ks[3], mid),
                conv3_w=0.1 * jax.random.normal(ks[4], (mid, cout), jnp.float32),
                down_w=0.1 * jax.random.normal(ks[5], (cin, cout), jnp.float32),
                bn_down=_bn_params(ks[6], cout))


def _final_params(key, cin=128, hidden=8):
    ks = jax.random.split(key, 4)
    return dict(w1=0.1 * jax.random.normal(ks[0], (cin, hidden), jnp.float32),
                b1=0.1 * jax.random.normal(ks[1], (hidden,), jnp.float32),
                w2=0.1 * jax.random.normal(ks[2], (hidden, cin), jnp.float32),
                b2=0.1 * jax.random.normal(ks[3], (cin,), jnp.float32))


def make_params(key):
    ks = jax.random.split(key, 9)
    return dict(top1=_initial_params(ks[0]), bottom1=_initial_params(ks[1]),
                top2=_bottleneck_params(ks[2]), bottom2=_bottleneck_params(ks[3]),
                top3=_bottleneck_params(ks[4]), bottom3=_bottleneck_params(ks[5]),
                top4=_bottleneck_params(ks[6]), bottom4=_bottleneck_params(ks[7]),
                final=_final_params(ks[8]))


# ----------------------------------------------------------------------------
# Forward
# ----------------------------------------------------------------------------
def hyperdnet_forward(x_ncdhw, params):
    # NDHWC, bf16 BEFORE im2col so the only large XLA intermediate is halved.
    x = jnp.transpose(x_ncdhw, (0, 2, 3, 4, 1)).astype(jnp.bfloat16)

    # ---- im2col for the 7^3 stride-2 pad-1 conv (XLA-side, bf16).
    patches = extract_patches(x, k=7, stride=2, pad=1)   # (B,Do,Ho,Wo,343,4)
    B = patches.shape[0]
    Do, Ho, Wo = patches.shape[1:4]
    patches = patches.reshape(B, Do * Ho * Wo, -1)        # (B, 216, 1372) bf16

    # ---- Pooled-volume geometry; pad S 27 -> 32 for sublane alignment.
    Pd, Ph, Pw = _pool_out(Do), _pool_out(Ho), _pool_out(Wo)
    n_real = Pd * Ph * Pw                                 # 27
    sp_pad = -(-n_real // 8) * 8                          # 32

    # ---- Constant selection matrices (0/1, exact in bf16).
    selp = jnp.asarray(_build_pool_select(Do, Ho, Wo, sp_pad), jnp.bfloat16)
    seldw = jnp.asarray(_build_dw_select(Pd, Ph, Pw, sp_pad), jnp.bfloat16)

    # ---- Fold BN + pack branch weights; stack the 3 stages on a leading dim.
    w0, s0, b0 = _prep_initial(params["top1"], params["bottom1"])
    fps = [_prep_stage(params[f"top{i}"], params[f"bottom{i}"])
           for i in (2, 3, 4)]
    w1s = jnp.stack([f["w1"] for f in fps])               # (3, 128, 192) bf16
    s1s = jnp.stack([f["s1"] for f in fps])                # (3, 1, 192)
    b1s = jnp.stack([f["b1"] for f in fps])                # (3, 1, 192)
    wdws = jnp.stack([f["wdw"] for f in fps])              # (3, 27, 64)
    b2s = jnp.stack([f["b2"] for f in fps])                # (3, 1, 64)
    w3s = jnp.stack([f["w3"] for f in fps])                # (3, 64, 128) bf16
    fin = params["final"]

    c = hyperdnet_call(
        patches, w0, s0, b0, selp, w1s, s1s, b1s, seldw, wdws, b2s, w3s,
        fin["w1"], fin["b1"].reshape(1, -1),
        fin["w2"], fin["b2"].reshape(1, -1),
        sp_pad=sp_pad, n_real=n_real)                      # (B, 32, 128) f32

    y = c[:, :n_real, :].reshape(B, Pd, Ph, Pw, 128)
    return jnp.transpose(y, (0, 4, 1, 2, 3))               # back to NCDHW


# ----------------------------------------------------------------------------
if __name__ == "__main__":
    key = jax.random.PRNGKey(0)
    pkey, xkey = jax.random.split(key)
    params = make_params(pkey)

    # Input matches PyTorch convention: (B, C=4, D, H, W)
    x = jax.random.normal(xkey, (2, 4, 16, 16, 16), jnp.float32)

    fwd = jax.jit(hyperdnet_forward)
    out = jax.block_until_ready(fwd(x, params))

    assert out.shape == (2, 128, 3, 3, 3), out.shape
    assert bool(jnp.all(jnp.isfinite(out)))
    print("KERNEL_OK")
</pallas_src>

<mosaic_0001>
module attributes {stable_mosaic.version = 11 : i64} {
  func.func @_hyperdnet_kernel(%arg0: i32, %arg1: memref<1x216x1372xbf16, #tpu.memory_space<vmem>>, %arg2: memref<1372x128xbf16, #tpu.memory_space<vmem>>, %arg3: memref<1x128xf32, #tpu.memory_space<vmem>>, %arg4: memref<1x128xf32, #tpu.memory_space<vmem>>, %arg5: memref<864x216xbf16, #tpu.memory_space<vmem>>, %arg6: memref<3x128x192xbf16, #tpu.memory_space<vmem>>, %arg7: memref<3x1x192xf32, #tpu.memory_space<vmem>>, %arg8: memref<3x1x192xf32, #tpu.memory_space<vmem>>, %arg9: memref<864x32xbf16, #tpu.memory_space<vmem>>, %arg10: memref<3x27x64xf32, #tpu.memory_space<vmem>>, %arg11: memref<3x1x64xf32, #tpu.memory_space<vmem>>, %arg12: memref<3x64x128xbf16, #tpu.memory_space<vmem>>, %arg13: memref<128x8xf32, #tpu.memory_space<vmem>>, %arg14: memref<1x8xf32, #tpu.memory_space<vmem>>, %arg15: memref<8x128xf32, #tpu.memory_space<vmem>>, %arg16: memref<1x128xf32, #tpu.memory_space<vmem>>, %arg17: memref<1x32x128xf32, #tpu.memory_space<vmem>>) attributes {dimension_semantics = [#tpu.dimension_semantics<parallel>], iteration_bounds = array<i64: 2>, scalar_prefetch = 0 : i64, scratch_operands = 0 : i64, tpu.core_type = #tpu.core_type<tc>, window_params = [{transform_indices = @transform_0, window_bounds = array<i64: 1, 216, 1372>}, {pipeline_mode = #tpu.pipeline_mode<synchronous>, transform_indices = @transform_1, window_bounds = array<i64: 1372, 128>}, {pipeline_mode = #tpu.pipeline_mode<synchronous>, transform_indices = @transform_2, window_bounds = array<i64: 1, 128>}, {pipeline_mode = #tpu.pipeline_mode<synchronous>, transform_indices = @transform_3, window_bounds = array<i64: 1, 128>}, {pipeline_mode = #tpu.pipeline_mode<synchronous>, transform_indices = @transform_4, window_bounds = array<i64: 864, 216>}, {pipeline_mode = #tpu.pipeline_mode<synchronous>, transform_indices = @transform_5, window_bounds = array<i64: 3, 128, 192>}, {pipeline_mode = #tpu.pipeline_mode<synchronous>, transform_indices = @transform_6, window_bounds = array<i64: 3, 1, 192>}, {pipeline_mode = #tpu.pipeline_mode<synchronous>, transform_indices = @transform_7, window_bounds = array<i64: 3, 1, 192>}, {pipeline_mode = #tpu.pipeline_mode<synchronous>, transform_indices = @transform_8, window_bounds = array<i64: 864, 32>}, {pipeline_mode = #tpu.pipeline_mode<synchronous>, transform_indices = @transform_9, window_bounds = array<i64: 3, 27, 64>}, {pipeline_mode = #tpu.pipeline_mode<synchronous>, transform_indices = @transform_10, window_bounds = array<i64: 3, 1, 64>}, {pipeline_mode = #tpu.pipeline_mode<synchronous>, transform_indices = @transform_11, window_bounds = array<i64: 3, 64, 128>}, {pipeline_mode = #tpu.pipeline_mode<synchronous>, transform_indices = @transform_12, window_bounds = array<i64: 128, 8>}, {pipeline_mode = #tpu.pipeline_mode<synchronous>, transform_indices = @transform_13, window_bounds = array<i64: 1, 8>}, {pipeline_mode = #tpu.pipeline_mode<synchronous>, transform_indices = @transform_14, window_bounds = array<i64: 8, 128>}, {pipeline_mode = #tpu.pipeline_mode<synchronous>, transform_indices = @transform_15, window_bounds = array<i64: 1, 128>}, {transform_indices = @transform_16, window_bounds = array<i64: 1, 32, 128>}]} {
    %c0 = arith.constant 0 : index
    %c0_0 = arith.constant 0 : index
    %c0_1 = arith.constant 0 : index
    %0 = vector.load %arg1[%c0, %c0_0, %c0_1] : memref<1x216x1372xbf16, #tpu.memory_space<vmem>>, vector<1x216x1372xbf16>
    %1 = vector.shape_cast %0 : vector<1x216x1372xbf16> to vector<216x1372xbf16>
    %c0_2 = arith.constant 0 : index
    %c0_3 = arith.constant 0 : index
    %2 = vector.load %arg2[%c0_2, %c0_3] : memref<1372x128xbf16, #tpu.memory_space<vmem>>, vector<1372x128xbf16>
    %cst = arith.constant dense<0.000000e+00> : vector<216x128xf32>
    %3 = tpu.matmul %1, %2, %cst {dimension_numbers = #tpu.dot_dimension_numbers<[1], [0], [0], [1], [0, 0, 1, 1], [], []>} : vector<216x1372xbf16>, vector<1372x128xbf16>, vector<216x128xf32> -> vector<216x128xf32>
    %c0_4 = arith.constant 0 : index
    %c0_5 = arith.constant 0 : index
    %4 = vector.load %arg3[%c0_4, %c0_5] : memref<1x128xf32, #tpu.memory_space<vmem>>, vector<1x128xf32>
    %5 = vector.broadcast %4 : vector<1x128xf32> to vector<216x128xf32>
    %6 = arith.mulf %3, %5 : vector<216x128xf32>
    %c0_6 = arith.constant 0 : index
    %c0_7 = arith.constant 0 : index
    %7 = vector.load %arg4[%c0_6, %c0_7] : memref<1x128xf32, #tpu.memory_space<vmem>>, vector<1x128xf32>
    %8 = vector.broadcast %7 : vector<1x128xf32> to vector<216x128xf32>
    %9 = arith.addf %6, %8 : vector<216x128xf32>
    %cst_8 = arith.constant 0.000000e+00 : f32
    %10 = vector.broadcast %cst_8 : f32 to vector<216x128xf32>
    %11 = arith.maximumf %9, %10 : vector<216x128xf32>
    %12 = arith.truncf %11 : vector<216x128xf32> to vector<216x128xbf16>
    %c0_9 = arith.constant 0 : index
    %c0_10 = arith.constant 0 : index
    %13 = vector.load %arg5[%c0_9, %c0_10] : memref<864x216xbf16, #tpu.memory_space<vmem>>, vector<864x216xbf16>
    %cst_11 = arith.constant dense<0.000000e+00> : vector<864x128xf32>
    %14 = tpu.matmul %13, %12, %cst_11 {dimension_numbers = #tpu.dot_dimension_numbers<[1], [0], [0], [1], [0, 0, 1, 1], [], []>} : vector<864x216xbf16>, vector<216x128xbf16>, vector<864x128xf32> -> vector<864x128xf32>
    %15 = vector.shape_cast %14 : vector<864x128xf32> to vector<27x32x128xf32>
    %cst_12 = arith.constant dense<0xFF800000> : vector<32x128xf32>
    %16 = vector.multi_reduction <maximumf>, %15, %cst_12 [0] : vector<27x32x128xf32> to vector<32x128xf32>
    %17 = arith.truncf %16 : vector<32x128xf32> to vector<32x128xbf16>
    %c0_13 = arith.constant 0 : index
    %c0_14 = arith.constant 0 : index
    %c0_15 = arith.constant 0 : index
    %18 = vector.load %arg6[%c0_13, %c0_14, %c0_15] : memref<3x128x192xbf16, #tpu.memory_space<vmem>>, vector<1x128x192xbf16>
    %19 = vector.shape_cast %18 : vector<1x128x192xbf16> to vector<128x192xbf16>
    %cst_16 = arith.constant dense<0.000000e+00> : vector<32x192xf32>
    %20 = tpu.matmul %17, %19, %cst_16 {dimension_numbers = #tpu.dot_dimension_numbers<[1], [0], [0], [1], [0, 0, 1, 1], [], []>} : vector<32x128xbf16>, vector<128x192xbf16>, vector<32x192xf32> -> vector<32x192xf32>
    %c0_17 = arith.constant 0 : index
    %c0_18 = arith.constant 0 : index
    %c0_19 = arith.constant 0 : index
    %21 = vector.load %arg7[%c0_17, %c0_18, %c0_19] : memref<3x1x192xf32, #tpu.memory_space<vmem>>, vector<1x1x192xf32>
    %22 = vector.shape_cast %21 : vector<1x1x192xf32> to vector<1x192xf32>
    %23 = vector.broadcast %22 : vector<1x192xf32> to vector<32x192xf32>
    %24 = arith.mulf %20, %23 : vector<32x192xf32>
    %c0_20 = arith.constant 0 : index
    %c0_21 = arith.constant 0 : index
    %c0_22 = arith.constant 0 : index
    %25 = vector.load %arg8[%c0_20, %c0_21, %c0_22] : memref<3x1x192xf32, #tpu.memory_space<vmem>>, vector<1x1x192xf32>
    %26 = vector.shape_cast %25 : vector<1x1x192xf32> to vector<1x192xf32>
    %27 = vector.broadcast %26 : vector<1x192xf32> to vector<32x192xf32>
    %28 = arith.addf %24, %27 : vector<32x192xf32>
    %29 = vector.extract_strided_slice %28 {offsets = [0, 0], sizes = [32, 128], strides = [1, 1]} : vector<32x192xf32> to vector<32x128xf32>
    %30 = vector.extract_strided_slice %28 {offsets = [0, 128], sizes = [32, 64], strides = [1, 1]} : vector<32x192xf32> to vector<32x64xf32>
    %cst_23 = arith.constant 0.000000e+00 : f32
    %31 = vector.broadcast %cst_23 : f32 to vector<32x64xf32>
    %32 = arith.maximumf %30, %31 : vector<32x64xf32>
    %33 = arith.truncf %32 : vector<32x64xf32> to vector<32x64xbf16>
    %c0_24 = arith.constant 0 : index
    %c0_25 = arith.constant 0 : index
    %34 = vector.load %arg9[%c0_24, %c0_25] : memref<864x32xbf16, #tpu.memory_space<vmem>>, vector<864x32xbf16>
    %cst_26 = arith.constant dense<0.000000e+00> : vector<864x64xf32>
    %35 = tpu.matmul %34, %33, %cst_26 {dimension_numbers = #tpu.dot_dimension_numbers<[1], [0], [0], [1], [0, 0, 1, 1], [], []>} : vector<864x32xbf16>, vector<32x64xbf16>, vector<864x64xf32> -> vector<864x64xf32>
    %36 = vector.shape_cast %35 : vector<864x64xf32> to vector<27x32x64xf32>
    %c0_27 = arith.constant 0 : index
    %c0_28 = arith.constant 0 : index
    %c0_29 = arith.constant 0 : index
    %37 = vector.load %arg10[%c0_27, %c0_28, %c0_29] : memref<3x27x64xf32, #tpu.memory_space<vmem>>, vector<1x27x64xf32>
    %38 = vector.shape_cast %37 : vector<1x27x64xf32> to vector<27x64xf32>
    %39 = vector.shape_cast %38 : vector<27x64xf32> to vector<27x1x64xf32>
    %40 = vector.broadcast %39 : vector<27x1x64xf32> to vector<27x32x64xf32>
    %41 = arith.mulf %36, %40 : vector<27x32x64xf32>
    %cst_30 = arith.constant dense<0.000000e+00> : vector<32x64xf32>
    %42 = vector.multi_reduction <add>, %41, %cst_30 [0] : vector<27x32x64xf32> to vector<32x64xf32>
    %c0_31 = arith.constant 0 : index
    %c0_32 = arith.constant 0 : index
    %c0_33 = arith.constant 0 : index
    %43 = vector.load %arg11[%c0_31, %c0_32, %c0_33] : memref<3x1x64xf32, #tpu.memory_space<vmem>>, vector<1x1x64xf32>
    %44 = vector.shape_cast %43 : vector<1x1x64xf32> to vector<1x64xf32>
    %45 = vector.broadcast %44 : vector<1x64xf32> to vector<32x64xf32>
    %46 = arith.addf %42, %45 : vector<32x64xf32>
    %47 = arith.truncf %46 : vector<32x64xf32> to vector<32x64xbf16>
    %c0_34 = arith.constant 0 : index
    %c0_35 = arith.constant 0 : index
    %c0_36 = arith.constant 0 : index
    %48 = vector.load %arg12[%c0_34, %c0_35, %c0_36] : memref<3x64x128xbf16, #tpu.memory_space<vmem>>, vector<1x64x128xbf16>
    %49 = vector.shape_cast %48 : vector<1x64x128xbf16> to vector<64x128xbf16>
    %cst_37 = arith.constant dense<0.000000e+00> : vector<32x128xf32>
    %50 = tpu.matmul %47, %49, %cst_37 {dimension_numbers = #tpu.dot_dimension_numbers<[1], [0], [0], [1], [0, 0, 1, 1], [], []>} : vector<32x64xbf16>, vector<64x128xbf16>, vector<32x128xf32> -> vector<32x128xf32>
    %51 = arith.addf %50, %29 : vector<32x128xf32>
    %52 = arith.truncf %51 : vector<32x128xf32> to vector<32x128xbf16>
    %c1 = arith.constant 1 : index
    %c0_38 = arith.constant 0 : index
    %c0_39 = arith.constant 0 : index
    %53 = vector.load %arg6[%c1, %c0_38, %c0_39] : memref<3x128x192xbf16, #tpu.memory_space<vmem>>, vector<1x128x192xbf16>
    %54 = vector.shape_cast %53 : vector<1x128x192xbf16> to vector<128x192xbf16>
    %cst_40 = arith.constant dense<0.000000e+00> : vector<32x192xf32>
    %55 = tpu.matmul %52, %54, %cst_40 {dimension_numbers = #tpu.dot_dimension_numbers<[1], [0], [0], [1], [0, 0, 1, 1], [], []>} : vector<32x128xbf16>, vector<128x192xbf16>, vector<32x192xf32> -> vector<32x192xf32>
    %c1_41 = arith.constant 1 : index
    %c0_42 = arith.constant 0 : index
    %c0_43 = arith.constant 0 : index
    %56 = vector.load %arg7[%c1_41, %c0_42, %c0_43] : memref<3x1x192xf32, #tpu.memory_space<vmem>>, vector<1x1x192xf32>
    %57 = vector.shape_cast %56 : vector<1x1x192xf32> to vector<1x192xf32>
    %58 = vector.broadcast %57 : vector<1x192xf32> to vector<32x192xf32>
    %59 = arith.mulf %55, %58 : vector<32x192xf32>
    %c1_44 = arith.constant 1 : index
    %c0_45 = arith.constant 0 : index
    %c0_46 = arith.constant 0 : index
    %60 = vector.load %arg8[%c1_44, %c0_45, %c0_46] : memref<3x1x192xf32, #tpu.memory_space<vmem>>, vector<1x1x192xf32>
    %61 = vector.shape_cast %60 : vector<1x1x192xf32> to vector<1x192xf32>
    %62 = vector.broadcast %61 : vector<1x192xf32> to vector<32x192xf32>
    %63 = arith.addf %59, %62 : vector<32x192xf32>
    %64 = vector.extract_strided_slice %63 {offsets = [0, 0], sizes = [32, 128], strides = [1, 1]} : vector<32x192xf32> to vector<32x128xf32>
    %65 = vector.extract_strided_slice %63 {offsets = [0, 128], sizes = [32, 64], strides = [1, 1]} : vector<32x192xf32> to vector<32x64xf32>
    %cst_47 = arith.constant 0.000000e+00 : f32
    %66 = vector.broadcast %cst_47 : f32 to vector<32x64xf32>
    %67 = arith.maximumf %65, %66 : vector<32x64xf32>
    %68 = arith.truncf %67 : vector<32x64xf32> to vector<32x64xbf16>
    %c0_48 = arith.constant 0 : index
    %c0_49 = arith.constant 0 : index
    %69 = vector.load %arg9[%c0_48, %c0_49] : memref<864x32xbf16, #tpu.memory_space<vmem>>, vector<864x32xbf16>
    %cst_50 = arith.constant dense<0.000000e+00> : vector<864x64xf32>
    %70 = tpu.matmul %69, %68, %cst_50 {dimension_numbers = #tpu.dot_dimension_numbers<[1], [0], [0], [1], [0, 0, 1, 1], [], []>} : vector<864x32xbf16>, vector<32x64xbf16>, vector<864x64xf32> -> vector<864x64xf32>
    %71 = vector.shape_cast %70 : vector<864x64xf32> to vector<27x32x64xf32>
    %c1_51 = arith.constant 1 : index
    %c0_52 = arith.constant 0 : index
    %c0_53 = arith.constant 0 : index
    %72 = vector.load %arg10[%c1_51, %c0_52, %c0_53] : memref<3x27x64xf32, #tpu.memory_space<vmem>>, vector<1x27x64xf32>
    %73 = vector.shape_cast %72 : vector<1x27x64xf32> to vector<27x64xf32>
    %74 = vector.shape_cast %73 : vector<27x64xf32> to vector<27x1x64xf32>
    %75 = vector.broadcast %74 : vector<27x1x64xf32> to vector<27x32x64xf32>
    %76 = arith.mulf %71, %75 : vector<27x32x64xf32>
    %cst_54 = arith.constant dense<0.000000e+00> : vector<32x64xf32>
    %77 = vector.multi_reduction <add>, %76, %cst_54 [0] : vector<27x32x64xf32> to vector<32x64xf32>
    %c1_55 = arith.constant 1 : index
    %c0_56 = arith.constant 0 : index
    %c0_57 = arith.constant 0 : index
    %78 = vector.load %arg11[%c1_55, %c0_56, %c0_57] : memref<3x1x64xf32, #tpu.memory_space<vmem>>, vector<1x1x64xf32>
    %79 = vector.shape_cast %78 : vector<1x1x64xf32> to vector<1x64xf32>
    %80 = vector.broadcast %79 : vector<1x64xf32> to vector<32x64xf32>
    %81 = arith.addf %77, %80 : vector<32x64xf32>
    %82 = arith.truncf %81 : vector<32x64xf32> to vector<32x64xbf16>
    %c1_58 = arith.constant 1 : index
    %c0_59 = arith.constant 0 : index
    %c0_60 = arith.constant 0 : index
    %83 = vector.load %arg12[%c1_58, %c0_59, %c0_60] : memref<3x64x128xbf16, #tpu.memory_space<vmem>>, vector<1x64x128xbf16>
    %84 = vector.shape_cast %83 : vector<1x64x128xbf16> to vector<64x128xbf16>
    %cst_61 = arith.constant dense<0.000000e+00> : vector<32x128xf32>
    %85 = tpu.matmul %82, %84, %cst_61 {dimension_numbers = #tpu.dot_dimension_numbers<[1], [0], [0], [1], [0, 0, 1, 1], [], []>} : vector<32x64xbf16>, vector<64x128xbf16>, vector<32x128xf32> -> vector<32x128xf32>
    %86 = arith.addf %85, %64 : vector<32x128xf32>
    %87 = arith.truncf %86 : vector<32x128xf32> to vector<32x128xbf16>
    %c2 = arith.constant 2 : index
    %c0_62 = arith.constant 0 : index
    %c0_63 = arith.constant 0 : index
    %88 = vector.load %arg6[%c2, %c0_62, %c0_63] : memref<3x128x192xbf16, #tpu.memory_space<vmem>>, vector<1x128x192xbf16>
    %89 = vector.shape_cast %88 : vector<1x128x192xbf16> to vector<128x192xbf16>
    %cst_64 = arith.constant dense<0.000000e+00> : vector<32x192xf32>
    %90 = tpu.matmul %87, %89, %cst_64 {dimension_numbers = #tpu.dot_dimension_numbers<[1], [0], [0], [1], [0, 0, 1, 1], [], []>} : vector<32x128xbf16>, vector<128x192xbf16>, vector<32x192xf32> -> vector<32x192xf32>
    %c2_65 = arith.constant 2 : index
    %c0_66 = arith.constant 0 : index
    %c0_67 = arith.constant 0 : index
    %91 = vector.load %arg7[%c2_65, %c0_66, %c0_67] : memref<3x1x192xf32, #tpu.memory_space<vmem>>, vector<1x1x192xf32>
    %92 = vector.shape_cast %91 : vector<1x1x192xf32> to vector<1x192xf32>
    %93 = vector.broadcast %92 : vector<1x192xf32> to vector<32x192xf32>
    %94 = arith.mulf %90, %93 : vector<32x192xf32>
    %c2_68 = arith.constant 2 : index
    %c0_69 = arith.constant 0 : index
    %c0_70 = arith.constant 0 : index
    %95 = vector.load %arg8[%c2_68, %c0_69, %c0_70] : memref<3x1x192xf32, #tpu.memory_space<vmem>>, vector<1x1x192xf32>
    %96 = vector.shape_cast %95 : vector<1x1x192xf32> to vector<1x192xf32>
    %97 = vector.broadcast %96 : vector<1x192xf32> to vector<32x192xf32>
    %98 = arith.addf %94, %97 : vector<32x192xf32>
    %99 = vector.extract_strided_slice %98 {offsets = [0, 0], sizes = [32, 128], strides = [1, 1]} : vector<32x192xf32> to vector<32x128xf32>
    %100 = vector.extract_strided_slice %98 {offsets = [0, 128], sizes = [32, 64], strides = [1, 1]} : vector<32x192xf32> to vector<32x64xf32>
    %cst_71 = arith.constant 0.000000e+00 : f32
    %101 = vector.broadcast %cst_71 : f32 to vector<32x64xf32>
    %102 = arith.maximumf %100, %101 : vector<32x64xf32>
    %103 = arith.truncf %102 : vector<32x64xf32> to vector<32x64xbf16>
    %c0_72 = arith.constant 0 : index
    %c0_73 = arith.constant 0 : index
    %104 = vector.load %arg9[%c0_72, %c0_73] : memref<864x32xbf16, #tpu.memory_space<vmem>>, vector<864x32xbf16>
    %cst_74 = arith.constant dense<0.000000e+00> : vector<864x64xf32>
    %105 = tpu.matmul %104, %103, %cst_74 {dimension_numbers = #tpu.dot_dimension_numbers<[1], [0], [0], [1], [0, 0, 1, 1], [], []>} : vector<864x32xbf16>, vector<32x64xbf16>, vector<864x64xf32> -> vector<864x64xf32>
    %106 = vector.shape_cast %105 : vector<864x64xf32> to vector<27x32x64xf32>
    %c2_75 = arith.constant 2 : index
    %c0_76 = arith.constant 0 : index
    %c0_77 = arith.constant 0 : index
    %107 = vector.load %arg10[%c2_75, %c0_76, %c0_77] : memref<3x27x64xf32, #tpu.memory_space<vmem>>, vector<1x27x64xf32>
    %108 = vector.shape_cast %107 : vector<1x27x64xf32> to vector<27x64xf32>
    %109 = vector.shape_cast %108 : vector<27x64xf32> to vector<27x1x64xf32>
    %110 = vector.broadcast %109 : vector<27x1x64xf32> to vector<27x32x64xf32>
    %111 = arith.mulf %106, %110 : vector<27x32x64xf32>
    %cst_78 = arith.constant dense<0.000000e+00> : vector<32x64xf32>
    %112 = vector.multi_reduction <add>, %111, %cst_78 [0] : vector<27x32x64xf32> to vector<32x64xf32>
    %c2_79 = arith.constant 2 : index
    %c0_80 = arith.constant 0 : index
    %c0_81 = arith.constant 0 : index
    %113 = vector.load %arg11[%c2_79, %c0_80, %c0_81] : memref<3x1x64xf32, #tpu.memory_space<vmem>>, vector<1x1x64xf32>
    %114 = vector.shape_cast %113 : vector<1x1x64xf32> to vector<1x64xf32>
    %115 = vector.broadcast %114 : vector<1x64xf32> to vector<32x64xf32>
    %116 = arith.addf %112, %115 : vector<32x64xf32>
    %117 = arith.truncf %116 : vector<32x64xf32> to vector<32x64xbf16>
    %c2_82 = arith.constant 2 : index
    %c0_83 = arith.constant 0 : index
    %c0_84 = arith.constant 0 : index
    %118 = vector.load %arg12[%c2_82, %c0_83, %c0_84] : memref<3x64x128xbf16, #tpu.memory_space<vmem>>, vector<1x64x128xbf16>
    %119 = vector.shape_cast %118 : vector<1x64x128xbf16> to vector<64x128xbf16>
    %cst_85 = arith.constant dense<0.000000e+00> : vector<32x128xf32>
    %120 = tpu.matmul %117, %119, %cst_85 {dimension_numbers = #tpu.dot_dimension_numbers<[1], [0], [0], [1], [0, 0, 1, 1], [], []>} : vector<32x64xbf16>, vector<64x128xbf16>, vector<32x128xf32> -> vector<32x128xf32>
    %121 = arith.addf %120, %99 : vector<32x128xf32>
    %122 = tpu.iota {dimensions = array<i32: 0>} : vector<32x128xi32>
    %c27_i32 = arith.constant 27 : i32
    %123 = vector.broadcast %c27_i32 : i32 to vector<32x128xi32>
    %124 = arith.cmpi slt, %122, %123 : vector<32x128xi32>
    %125 = arith.extui %124 : vector<32x128xi1> to vector<32x128xi32>
    %126 = arith.sitofp %125 : vector<32x128xi32> to vector<32x128xf32>
    %127 = arith.mulf %121, %126 : vector<32x128xf32>
    %cst_86 = arith.constant dense<0.000000e+00> : vector<128xf32>
    %128 = vector.multi_reduction <add>, %127, %cst_86 [0] : vector<32x128xf32> to vector<128xf32>
    %129 = vector.shape_cast %128 : vector<128xf32> to vector<1x128xf32>
    %cst_87 = arith.constant 0.0370370373 : f32
    %130 = vector.broadcast %cst_87 : f32 to vector<1x128xf32>
    %131 = arith.mulf %129, %130 : vector<1x128xf32>
    %c0_88 = arith.constant 0 : index
    %c0_89 = arith.constant 0 : index
    %132 = vector.load %arg13[%c0_88, %c0_89] : memref<128x8xf32, #tpu.memory_space<vmem>>, vector<128x8xf32>
    %cst_90 = arith.constant dense<0.000000e+00> : vector<1x8xf32>
    %133 = tpu.matmul %131, %132, %cst_90 {dimension_numbers = #tpu.dot_dimension_numbers<[1], [0], [0], [1], [0, 0, 1, 1], [], []>} : vector<1x128xf32>, vector<128x8xf32>, vector<1x8xf32> -> vector<1x8xf32>
    %c0_91 = arith.constant 0 : index
    %c0_92 = arith.constant 0 : index
    %134 = vector.load %arg14[%c0_91, %c0_92] : memref<1x8xf32, #tpu.memory_space<vmem>>, vector<1x8xf32>
    %135 = arith.addf %133, %134 : vector<1x8xf32>
    %cst_93 = arith.constant 0.000000e+00 : f32
    %136 = vector.broadcast %cst_93 : f32 to vector<1x8xf32>
    %137 = arith.cmpf ogt, %135, %136 : vector<1x8xf32>
    %cst_94 = arith.constant 0.00999999977 : f32
    %138 = vector.broadcast %cst_94 : f32 to vector<1x8xf32>
    %139 = arith.mulf %138, %135 : vector<1x8xf32>
    %140 = arith.select %137, %135, %139 : vector<1x8xi1>, vector<1x8xf32>
    %c0_95 = arith.constant 0 : index
    %c0_96 = arith.constant 0 : index
    %141 = vector.load %arg15[%c0_95, %c0_96] : memref<8x128xf32, #tpu.memory_space<vmem>>, vector<8x128xf32>
    %cst_97 = arith.constant dense<0.000000e+00> : vector<1x128xf32>
    %142 = tpu.matmul %140, %141, %cst_97 {dimension_numbers = #tpu.dot_dimension_numbers<[1], [0], [0], [1], [0, 0, 1, 1], [], []>} : vector<1x8xf32>, vector<8x128xf32>, vector<1x128xf32> -> vector<1x128xf32>
    %c0_98 = arith.constant 0 : index
    %c0_99 = arith.constant 0 : index
    %143 = vector.load %arg16[%c0_98, %c0_99] : memref<1x128xf32, #tpu.memory_space<vmem>>, vector<1x128xf32>
    %144 = arith.addf %142, %143 : vector<1x128xf32>
    %145 = arith.negf %144 : vector<1x128xf32>
    %146 = math.exp %145 : vector<1x128xf32>
    %cst_100 = arith.constant 1.000000e+00 : f32
    %147 = vector.broadcast %cst_100 : f32 to vector<1x128xf32>
    %148 = arith.addf %147, %146 : vector<1x128xf32>
    %149 = arith.divf %147, %148 : vector<1x128xf32>
    %150 = vector.broadcast %149 : vector<1x128xf32> to vector<32x128xf32>
    %151 = arith.mulf %121, %150 : vector<32x128xf32>
    %152 = vector.shape_cast %151 : vector<32x128xf32> to vector<1x32x128xf32>
    %c0_101 = arith.constant 0 : index
    %c0_102 = arith.constant 0 : index
    %c0_103 = arith.constant 0 : index
    %153 = vector.load %arg17[%c0_101, %c0_102, %c0_103] : memref<1x32x128xf32, #tpu.memory_space<vmem>>, vector<1x32x128xf32>
    tpu.vector_store %arg17[%c0_101, %c0_102, %c0_103], %152 {strides = array<i32>} : memref<1x32x128xf32, #tpu.memory_space<vmem>>, vector<1x32x128xf32>,
    return
  }
  func.func @transform_0(%arg0: i32) -> (i32, i32, i32) {
    %c0_i32 = arith.constant 0 : i32
    %c0_i32_0 = arith.constant 0 : i32
    %c0_i32_1 = arith.constant 0 : i32
    return %arg0, %c0_i32, %c0_i32_0 : i32, i32, i32
  }
  func.func @transform_1(%arg0: i32) -> (i32, i32) {
    %c0_i32 = arith.constant 0 : i32
    %c0_i32_0 = arith.constant 0 : i32
    %c0_i32_1 = arith.constant 0 : i32
    return %c0_i32, %c0_i32_0 : i32, i32
  }
  func.func @transform_2(%arg0: i32) -> (i32, i32) {
    %c0_i32 = arith.constant 0 : i32
    %c0_i32_0 = arith.constant 0 : i32
    %c0_i32_1 = arith.constant 0 : i32
    return %c0_i32, %c0_i32_0 : i32, i32
  }
  func.func @transform_3(%arg0: i32) -> (i32, i32) {
    %c0_i32 = arith.constant 0 : i32
    %c0_i32_0 = arith.constant 0 : i32
    %c0_i32_1 = arith.constant 0 : i32
    return %c0_i32, %c0_i32_0 : i32, i32
  }
  func.func @transform_4(%arg0: i32) -> (i32, i32) {
    %c0_i32 = arith.constant 0 : i32
    %c0_i32_0 = arith.constant 0 : i32
    %c0_i32_1 = arith.constant 0 : i32
    return %c0_i32, %c0_i32_0 : i32, i32
  }
  func.func @transform_5(%arg0: i32) -> (i32, i32, i32) {
    %c0_i32 = arith.constant 0 : i32
    %c0_i32_0 = arith.constant 0 : i32
    %c0_i32_1 = arith.constant 0 : i32
    %c0_i32_2 = arith.constant 0 : i32
    return %c0_i32, %c0_i32_0, %c0_i32_1 : i32, i32, i32
  }
  func.func @transform_6(%arg0: i32) -> (i32, i32, i32) {
    %c0_i32 = arith.constant 0 : i32
    %c0_i32_0 = arith.constant 0 : i32
    %c0_i32_1 = arith.constant 0 : i32
    %c0_i32_2 = arith.constant 0 : i32
    return %c0_i32, %c0_i32_0, %c0_i32_1 : i32, i32, i32
  }
  func.func @transform_7(%arg0: i32) -> (i32, i32, i32) {
    %c0_i32 = arith.constant 0 : i32
    %c0_i32_0 = arith.constant 0 : i32
    %c0_i32_1 = arith.constant 0 : i32
    %c0_i32_2 = arith.constant 0 : i32
    return %c0_i32, %c0_i32_0, %c0_i32_1 : i32, i32, i32
  }
  func.func @transform_8(%arg0: i32) -> (i32, i32) {
    %c0_i32 = arith.constant 0 : i32
    %c0_i32_0 = arith.constant 0 : i32
    %c0_i32_1 = arith.constant 0 : i32
    return %c0_i32, %c0_i32_0 : i32, i32
  }
  func.func @transform_9(%arg0: i32) -> (i32, i32, i32) {
    %c0_i32 = arith.constant 0 : i32
    %c0_i32_0 = arith.constant 0 : i32
    %c0_i32_1 = arith.constant 0 : i32
    %c0_i32_2 = arith.constant 0 : i32
    return %c0_i32, %c0_i32_0, %c0_i32_1 : i32, i32, i32
  }
  func.func @transform_10(%arg0: i32) -> (i32, i32, i32) {
    %c0_i32 = arith.constant 0 : i32
    %c0_i32_0 = arith.constant 0 : i32
    %c0_i32_1 = arith.constant 0 : i32
    %c0_i32_2 = arith.constant 0 : i32
    return %c0_i32, %c0_i32_0, %c0_i32_1 : i32, i32, i32
  }
  func.func @transform_11(%arg0: i32) -> (i32, i32, i32) {
    %c0_i32 = arith.constant 0 : i32
    %c0_i32_0 = arith.constant 0 : i32
    %c0_i32_1 = arith.constant 0 : i32
    %c0_i32_2 = arith.constant 0 : i32
    return %c0_i32, %c0_i32_0, %c0_i32_1 : i32, i32, i32
  }
  func.func @transform_12(%arg0: i32) -> (i32, i32) {
    %c0_i32 = arith.constant 0 : i32
    %c0_i32_0 = arith.constant 0 : i32
    %c0_i32_1 = arith.constant 0 : i32
    return %c0_i32, %c0_i32_0 : i32, i32
  }
  func.func @transform_13(%arg0: i32) -> (i32, i32) {
    %c0_i32 = arith.constant 0 : i32
    %c0_i32_0 = arith.constant 0 : i32
    %c0_i32_1 = arith.constant 0 : i32
    return %c0_i32, %c0_i32_0 : i32, i32
  }
  func.func @transform_14(%arg0: i32) -> (i32, i32) {
    %c0_i32 = arith.constant 0 : i32
    %c0_i32_0 = arith.constant 0 : i32
    %c0_i32_1 = arith.constant 0 : i32
    return %c0_i32, %c0_i32_0 : i32, i32
  }
  func.func @transform_15(%arg0: i32) -> (i32, i32) {
    %c0_i32 = arith.constant 0 : i32
    %c0_i32_0 = arith.constant 0 : i32
    %c0_i32_1 = arith.constant 0 : i32
    return %c0_i32, %c0_i32_0 : i32, i32
  }
  func.func @transform_16(%arg0: i32) -> (i32, i32, i32) {
    %c0_i32 = arith.constant 0 : i32
    %c0_i32_0 = arith.constant 0 : i32
    %c0_i32_1 = arith.constant 0 : i32
    return %arg0, %c0_i32, %c0_i32_0 : i32, i32, i32
  }
}

</mosaic_0001>

<llo_original>
// kernel: hyperdnet_forward.1
$region0: #{hyperdnet_forward.1}
  #allocation0 [shape = 'u32[]', space=smem, size = 0x4, offset = 0x4, fixed_abs, tag = 'smem constant byte address 0x4 - core index']
  #allocation1 [shape = 'u32[72,128]{1,0:T(1,128)}', space=vmem, size = 0x9000, scoped, tag = 'internal scratch']
  %s0 = inlined_call_operand.vmem [shape: bf16[2,216,1372], index: 0, kind: input, shape index: {}]
  %s1 = inlined_call_operand.vmem [shape: bf16[1372,128], index: 1, kind: input, shape index: {}]
  %s2 = inlined_call_operand.vmem [shape: f32[1,128], index: 2, kind: input, shape index: {}]
  %s3 = inlined_call_operand.vmem [shape: f32[1,128], index: 3, kind: input, shape index: {}]
  %s4 = inlined_call_operand.vmem [shape: bf16[864,216], index: 4, kind: input, shape index: {}]
  %s5 = inlined_call_operand.vmem [shape: bf16[3,128,192], index: 5, kind: input, shape index: {}]
  %s6 = inlined_call_operand.vmem [shape: f32[3,1,192], index: 6, kind: input, shape index: {}]
  %s7 = inlined_call_operand.vmem [shape: f32[3,1,192], index: 7, kind: input, shape index: {}]
  %s8 = inlined_call_operand.vmem [shape: bf16[864,32], index: 8, kind: input, shape index: {}]
  %s9 = inlined_call_operand.vmem [shape: f32[3,27,64], index: 9, kind: input, shape index: {}]
  %s10 = inlined_call_operand.vmem [shape: f32[3,1,64], index: 10, kind: input, shape index: {}]
  %s11 = inlined_call_operand.vmem [shape: bf16[3,64,128], index: 11, kind: input, shape index: {}]
  %s12 = inlined_call_operand.vmem [shape: f32[128,8], index: 12, kind: input, shape index: {}]
  %s13 = inlined_call_operand.vmem [shape: f32[1,8], index: 13, kind: input, shape index: {}]
  %s14 = inlined_call_operand.vmem [shape: f32[8,128], index: 14, kind: input, shape index: {}]
  %s15 = inlined_call_operand.vmem [shape: f32[1,128], index: 15, kind: input, shape index: {}]
  %s16 = inlined_call_operand.vmem [shape: f32[2,32,128], index: 16, kind: output, shape index: {}]
  %s17 = sld [smem:[#allocation0]]
  $region97: #{hyperdnet_forward.1} parent=0
    _
  %s19 = ssub.s32 1, %s17
  %s20 = scalar_select 0, %s19, %s17
  loop: start=0, step=1, limit=4
  $region2: #{hyperdnet_forward.1} parent=0 // loop_pre_header
    _
  $region3: #{hyperdnet_forward.1} parent=0 // loop_header
    %s22 = sphi 0, %s26
    %p23 = scmp.ge.s32.totalorder %s22, 4
    %s32 = sphi 0, %s34
    %s35 = sphi 0, %s32
    %s36 = sphi 0, %s35
    %s52 = sphi 0, %s36
    %s56 = sphi 0, %s56
    %s58 = sphi 0, %s56
    %s59 = sphi 0, %s58
    %s73 = sphi 0, %s59
    %s77 = sphi 0, %s77
    %s79 = sphi 0, %s77
    %s80 = sphi 0, %s79
    %s94 = sphi 0, %s80
    %s98 = sphi 0, %s98
    %s100 = sphi 0, %s98
    %s101 = sphi 0, %s100
    %s115 = sphi 0, %s101
    %s119 = sphi 0, %s119
    %s121 = sphi 0, %s119
    %s122 = sphi 0, %s121
    %s136 = sphi 0, %s122
    %s140 = sphi 0, %s140
    %s142 = sphi 0, %s140
    %s143 = sphi 0, %s142
    %s157 = sphi 0, %s143
    %s161 = sphi 0, %s161
    %s163 = sphi 0, %s161
    %s164 = sphi 0, %s163
    %s178 = sphi 0, %s164
    %s182 = sphi 0, %s182
    %s184 = sphi 0, %s182
    %s185 = sphi 0, %s184
    %s199 = sphi 0, %s185
    %s203 = sphi 0, %s203
    %s205 = sphi 0, %s203
    %s206 = sphi 0, %s205
    %s220 = sphi 0, %s206
    %s224 = sphi 0, %s224
    %s226 = sphi 0, %s224
    %s227 = sphi 0, %s226
    %s241 = sphi 0, %s227
    %s245 = sphi 0, %s245
    %s247 = sphi 0, %s245
    %s248 = sphi 0, %s247
    %s262 = sphi 0, %s248
    %s266 = sphi 0, %s266
    %s268 = sphi 0, %s266
    %s269 = sphi 0, %s268
    %s283 = sphi 0, %s269
    %s287 = sphi 0, %s287
    %s289 = sphi 0, %s287
    %s290 = sphi 0, %s289
    %s304 = sphi 0, %s290
    %s308 = sphi 0, %s308
    %s310 = sphi 0, %s308
    %s311 = sphi 0, %s310
    %s325 = sphi 0, %s311
    %s329 = sphi 0, %s329
    %s331 = sphi 0, %s329
    %s332 = sphi 0, %s331
    %s346 = sphi 0, %s332
    %s350 = sphi 0, %s350
    %s352 = sphi 0, %s350
    %s353 = sphi 0, %s352
    %s367 = sphi 0, %s353
    %s373 = sphi 0, %s375
    %s376 = sphi 0, %s373
    %s377 = sphi 0, %s376
    %s393 = sphi 0, %s377
  $region4: #{hyperdnet_forward.1} parent=0 // loop_header_branch
    %25 = sbr.rel (%p23) target = $region8
  $region5: #{hyperdnet_forward.1} parent=0 // loop_body
    %s27 = ssub.s32 %s22, 1
    %s28 = ssub.s32 %s22, 2
    %s29 = sadd.s32 %s22, 1
    %s30 = ssub.s32 %s22, %s29
    %p31 = scmp.eq.s32.totalorder %s30, 0
    %s33 = sadd.s32 %s32, 1
    %s34 = scalar_select %p31, %s32, %s33
    %p37 = pneg %p31
    %p38 = scmp.eq.s32.totalorder %s22, 1
    %p39 = por %p37, %p38
    %p40 = scmp.ne.s32.totalorder %s32, %s35
    %p41 = scmp.eq.s32.totalorder %s22, 0
    %p42 = por %p40, %p41
    %p43 = scmp.ne.s32.totalorder %s32, %s35
    %p44 = scmp.eq.s32.totalorder %s27, 1
    %p45 = por %p43, %p44
    %p46 = scmp.ne.s32.totalorder %s35, %s36
    %p47 = scmp.eq.s32.totalorder %s27, 0
    %p48 = por %p46, %p47
    %p49 = scmp.ne.s32.totalorder %s35, %s36
    %p50 = scmp.eq.s32.totalorder %s28, 1
    %p51 = por %p49, %p50
    %p53 = scmp.ne.s32.totalorder %s36, %s52
    %p54 = scmp.eq.s32.totalorder %s28, 0
    %p55 = por %p53, %p54
    %s57 = sadd.s32 %s56, 1
    %p60 = scmp.eq.s32.totalorder %s22, 1
    %p61 = scmp.ne.s32.totalorder %s56, %s58
    %p62 = scmp.eq.s32.totalorder %s22, 0
    %p63 = por %p61, %p62
    %p64 = scmp.ne.s32.totalorder %s56, %s58
    %p65 = scmp.eq.s32.totalorder %s27, 1
    %p66 = por %p64, %p65
    %p67 = scmp.ne.s32.totalorder %s58, %s59
    %p68 = scmp.eq.s32.totalorder %s27, 0
    %p69 = por %p67, %p68
    %p70 = scmp.ne.s32.totalorder %s58, %s59
    %p71 = scmp.eq.s32.totalorder %s28, 1
    %p72 = por %p70, %p71
    %p74 = scmp.ne.s32.totalorder %s59, %s73
    %p75 = scmp.eq.s32.totalorder %s28, 0
    %p76 = por %p74, %p75
    %s78 = sadd.s32 %s77, 1
    %p81 = scmp.eq.s32.totalorder %s22, 1
    %p82 = scmp.ne.s32.totalorder %s77, %s79
    %p83 = scmp.eq.s32.totalorder %s22, 0
    %p84 = por %p82, %p83
    %p85 = scmp.ne.s32.totalorder %s77, %s79
    %p86 = scmp.eq.s32.totalorder %s27, 1
    %p87 = por %p85, %p86
    %p88 = scmp.ne.s32.totalorder %s79, %s80
    %p89 = scmp.eq.s32.totalorder %s27, 0
    %p90 = por %p88, %p89
    %p91 = scmp.ne.s32.totalorder %s79, %s80
    %p92 = scmp.eq.s32.totalorder %s28, 1
    %p93 = por %p91, %p92
    %p95 = scmp.ne.s32.totalorder %s80, %s94
    %p96 = scmp.eq.s32.totalorder %s28, 0
    %p97 = por %p95, %p96
    %s99 = sadd.s32 %s98, 1
    %p102 = scmp.eq.s32.totalorder %s22, 1
    %p103 = scmp.ne.s32.totalorder %s98, %s100
    %p104 = scmp.eq.s32.totalorder %s22, 0
    %p105 = por %p103, %p104
    %p106 = scmp.ne.s32.totalorder %s98, %s100
    %p107 = scmp.eq.s32.totalorder %s27, 1
    %p108 = por %p106, %p107
    %p109 = scmp.ne.s32.totalorder %s100, %s101
    %p110 = scmp.eq.s32.totalorder %s27, 0
    %p111 = por %p109, %p110
    %p112 = scmp.ne.s32.totalorder %s100, %s101
    %p113 = scmp.eq.s32.totalorder %s28, 1
    %p114 = por %p112, %p113
    %p116 = scmp.ne.s32.totalorder %s101, %s115
    %p117 = scmp.eq.s32.totalorder %s28, 0
    %p118 = por %p116, %p117
    %s120 = sadd.s32 %s119, 1
    %p123 = scmp.eq.s32.totalorder %s22, 1
    %p124 = scmp.ne.s32.totalorder %s119, %s121
    %p125 = scmp.eq.s32.totalorder %s22, 0
    %p126 = por %p124, %p125
    %p127 = scmp.ne.s32.totalorder %s119, %s121
    %p128 = scmp.eq.s32.totalorder %s27, 1
    %p129 = por %p127, %p128
    %p130 = scmp.ne.s32.totalorder %s121, %s122
    %p131 = scmp.eq.s32.totalorder %s27, 0
    %p132 = por %p130, %p131
    %p133 = scmp.ne.s32.totalorder %s121, %s122
    %p134 = scmp.eq.s32.totalorder %s28, 1
    %p135 = por %p133, %p134
    %p137 = scmp.ne.s32.totalorder %s122, %s136
    %p138 = scmp.eq.s32.totalorder %s28, 0
    %p139 = por %p137, %p138
    %s141 = sadd.s32 %s140, 1
    %p144 = scmp.eq.s32.totalorder %s22, 1
    %p145 = scmp.ne.s32.totalorder %s140, %s142
    %p146 = scmp.eq.s32.totalorder %s22, 0
    %p147 = por %p145, %p146
    %p148 = scmp.ne.s32.totalorder %s140, %s142
    %p149 = scmp.eq.s32.totalorder %s27, 1
    %p150 = por %p148, %p149
    %p151 = scmp.ne.s32.totalorder %s142, %s143
    %p152 = scmp.eq.s32.totalorder %s27, 0
    %p153 = por %p151, %p152
    %p154 = scmp.ne.s32.totalorder %s142, %s143
    %p155 = scmp.eq.s32.totalorder %s28, 1
    %p156 = por %p154, %p155
    %p158 = scmp.ne.s32.totalorder %s143, %s157
    %p159 = scmp.eq.s32.totalorder %s28, 0
    %p160 = por %p158, %p159
    %s162 = sadd.s32 %s161, 1
    %p165 = scmp.eq.s32.totalorder %s22, 1
    %p166 = scmp.ne.s32.totalorder %s161, %s163
    %p167 = scmp.eq.s32.totalorder %s22, 0
    %p168 = por %p166, %p167
    %p169 = scmp.ne.s32.totalorder %s161, %s163
    %p170 = scmp.eq.s32.totalorder %s27, 1
    %p171 = por %p169, %p170
    %p172 = scmp.ne.s32.totalorder %s163, %s164
    %p173 = scmp.eq.s32.totalorder %s27, 0
    %p174 = por %p172, %p173
    %p175 = scmp.ne.s32.totalorder %s163, %s164
    %p176 = scmp.eq.s32.totalorder %s28, 1
    %p177 = por %p175, %p176
    %p179 = scmp.ne.s32.totalorder %s164, %s178
    %p180 = scmp.eq.s32.totalorder %s28, 0
    %p181 = por %p179, %p180
    %s183 = sadd.s32 %s182, 1
    %p186 = scmp.eq.s32.totalorder %s22, 1
    %p187 = scmp.ne.s32.totalorder %s182, %s184
    %p188 = scmp.eq.s32.totalorder %s22, 0
    %p189 = por %p187, %p188
    %p190 = scmp.ne.s32.totalorder %s182, %s184
    %p191 = scmp.eq.s32.totalorder %s27, 1
    %p192 = por %p190, %p191
    %p193 = scmp.ne.s32.totalorder %s184, %s185
    %p194 = scmp.eq.s32.totalorder %s27, 0
    %p195 = por %p193, %p194
    %p196 = scmp.ne.s32.totalorder %s184, %s185
    %p197 = scmp.eq.s32.totalorder %s28, 1
    %p198 = por %p196, %p197
    %p200 = scmp.ne.s32.totalorder %s185, %s199
    %p201 = scmp.eq.s32.totalorder %s28, 0
    %p202 = por %p200, %p201
    %s204 = sadd.s32 %s203, 1
    %p207 = scmp.eq.s32.totalorder %s22, 1
    %p208 = scmp.ne.s32.totalorder %s203, %s205
    %p209 = scmp.eq.s32.totalorder %s22, 0
    %p210 = por %p208, %p209
    %p211 = scmp.ne.s32.totalorder %s203, %s205
    %p212 = scmp.eq.s32.totalorder %s27, 1
    %p213 = por %p211, %p212
    %p214 = scmp.ne.s32.totalorder %s205, %s206
    %p215 = scmp.eq.s32.totalorder %s27, 0
    %p216 = por %p214, %p215
    %p217 = scmp.ne.s32.totalorder %s205, %s206
    %p218 = scmp.eq.s32.totalorder %s28, 1
    %p219 = por %p217, %p218
    %p221 = scmp.ne.s32.totalorder %s206, %s220
    %p222 = scmp.eq.s32.totalorder %s28, 0
    %p223 = por %p221, %p222
    %s225 = sadd.s32 %s224, 1
    %p228 = scmp.eq.s32.totalorder %s22, 1
    %p229 = scmp.ne.s32.totalorder %s224, %s226
    %p230 = scmp.eq.s32.totalorder %s22, 0
    %p231 = por %p229, %p230
    %p232 = scmp.ne.s32.totalorder %s224, %s226
    %p233 = scmp.eq.s32.totalorder %s27, 1
    %p234 = por %p232, %p233
    %p235 = scmp.ne.s32.totalorder %s226, %s227
    %p236 = scmp.eq.s32.totalorder %s27, 0
    %p237 = por %p235, %p236
    %p238 = scmp.ne.s32.totalorder %s226, %s227
    %p239 = scmp.eq.s32.totalorder %s28, 1
    %p240 = por %p238, %p239
    %p242 = scmp.ne.s32.totalorder %s227, %s241
    %p243 = scmp.eq.s32.totalorder %s28, 0
    %p244 = por %p242, %p243
    %s246 = sadd.s32 %s245, 1
    %p249 = scmp.eq.s32.totalorder %s22, 1
    %p250 = scmp.ne.s32.totalorder %s245, %s247
    %p251 = scmp.eq.s32.totalorder %s22, 0
    %p252 = por %p250, %p251
    %p253 = scmp.ne.s32.totalorder %s245, %s247
    %p254 = scmp.eq.s32.totalorder %s27, 1
    %p255 = por %p253, %p254
    %p256 = scmp.ne.s32.totalorder %s247, %s248
    %p257 = scmp.eq.s32.totalorder %s27, 0
    %p258 = por %p256, %p257
    %p259 = scmp.ne.s32.totalorder %s247, %s248
    %p260 = scmp.eq.s32.totalorder %s28, 1
    %p261 = por %p259, %p260
    %p263 = scmp.ne.s32.totalorder %s248, %s262
    %p264 = scmp.eq.s32.totalorder %s28, 0
    %p265 = por %p263, %p264
    %s267 = sadd.s32 %s266, 1
    %p270 = scmp.eq.s32.totalorder %s22, 1
    %p271 = scmp.ne.s32.totalorder %s266, %s268
    %p272 = scmp.eq.s32.totalorder %s22, 0
    %p273 = por %p271, %p272
    %p274 = scmp.ne.s32.totalorder %s266, %s268
    %p275 = scmp.eq.s32.totalorder %s27, 1
    %p276 = por %p274, %p275
    %p277 = scmp.ne.s32.totalorder %s268, %s269
    %p278 = scmp.eq.s32.totalorder %s27, 0
    %p279 = por %p277, %p278
    %p280 = scmp.ne.s32.totalorder %s268, %s269
    %p281 = scmp.eq.s32.totalorder %s28, 1
    %p282 = por %p280, %p281
    %p284 = scmp.ne.s32.totalorder %s269, %s283
    %p285 = scmp.eq.s32.totalorder %s28, 0
    %p286 = por %p284, %p285
    %s288 = sadd.s32 %s287, 1
    %p291 = scmp.eq.s32.totalorder %s22, 1
    %p292 = scmp.ne.s32.totalorder %s287, %s289
    %p293 = scmp.eq.s32.totalorder %s22, 0
    %p294 = por %p292, %p293
    %p295 = scmp.ne.s32.totalorder %s287, %s289
    %p296 = scmp.eq.s32.totalorder %s27, 1
    %p297 = por %p295, %p296
    %p298 = scmp.ne.s32.totalorder %s289, %s290
    %p299 = scmp.eq.s32.totalorder %s27, 0
    %p300 = por %p298, %p299
    %p301 = scmp.ne.s32.totalorder %s289, %s290
    %p302 = scmp.eq.s32.totalorder %s28, 1
    %p303 = por %p301, %p302
    %p305 = scmp.ne.s32.totalorder %s290, %s304
    %p306 = scmp.eq.s32.totalorder %s28, 0
    %p307 = por %p305, %p306
    %s309 = sadd.s32 %s308, 1
    %p312 = scmp.eq.s32.totalorder %s22, 1
    %p313 = scmp.ne.s32.totalorder %s308, %s310
    %p314 = scmp.eq.s32.totalorder %s22, 0
    %p315 = por %p313, %p314
    %p316 = scmp.ne.s32.totalorder %s308, %s310
    %p317 = scmp.eq.s32.totalorder %s27, 1
    %p318 = por %p316, %p317
    %p319 = scmp.ne.s32.totalorder %s310, %s311
    %p320 = scmp.eq.s32.totalorder %s27, 0
    %p321 = por %p319, %p320
    %p322 = scmp.ne.s32.totalorder %s310, %s311
    %p323 = scmp.eq.s32.totalorder %s28, 1
    %p324 = por %p322, %p323
    %p326 = scmp.ne.s32.totalorder %s311, %s325
    %p327 = scmp.eq.s32.totalorder %s28, 0
    %p328 = por %p326, %p327
    %s330 = sadd.s32 %s329, 1
    %p333 = scmp.eq.s32.totalorder %s22, 1
    %p334 = scmp.ne.s32.totalorder %s329, %s331
    %p335 = scmp.eq.s32.totalorder %s22, 0
    %p336 = por %p334, %p335
    %p337 = scmp.ne.s32.totalorder %s329, %s331
    %p338 = scmp.eq.s32.totalorder %s27, 1
    %p339 = por %p337, %p338
    %p340 = scmp.ne.s32.totalorder %s331, %s332
    %p341 = scmp.eq.s32.totalorder %s27, 0
    %p342 = por %p340, %p341
    %p343 = scmp.ne.s32.totalorder %s331, %s332
    %p344 = scmp.eq.s32.totalorder %s28, 1
    %p345 = por %p343, %p344
    %p347 = scmp.ne.s32.totalorder %s332, %s346
    %p348 = scmp.eq.s32.totalorder %s28, 0
    %p349 = por %p347, %p348
    %s351 = sadd.s32 %s350, 1
    %p354 = scmp.eq.s32.totalorder %s22, 1
    %p355 = scmp.ne.s32.totalorder %s350, %s352
    %p356 = scmp.eq.s32.totalorder %s22, 0
    %p357 = por %p355, %p356
    %p358 = scmp.ne.s32.totalorder %s350, %s352
    %p359 = scmp.eq.s32.totalorder %s27, 1
    %p360 = por %p358, %p359
    %p361 = scmp.ne.s32.totalorder %s352, %s353
    %p362 = scmp.eq.s32.totalorder %s27, 0
    %p363 = por %p361, %p362
    %p364 = scmp.ne.s32.totalorder %s352, %s353
    %p365 = scmp.eq.s32.totalorder %s28, 1
    %p366 = por %p364, %p365
    %p368 = scmp.ne.s32.totalorder %s353, %s367
    %p369 = scmp.eq.s32.totalorder %s28, 0
    %p370 = por %p368, %p369
    %s371 = ssub.s32 %s22, %s29
    %p372 = scmp.eq.s32.totalorder %s371, 0
    %s374 = sadd.s32 %s373, 1
    %s375 = scalar_select %p372, %s373, %s374
    %p378 = pneg %p372
    %p379 = scmp.eq.s32.totalorder %s22, 1
    %p380 = por %p378, %p379
    %p381 = scmp.ne.s32.totalorder %s373, %s376
    %p382 = scmp.eq.s32.totalorder %s22, 0
    %p383 = por %p381, %p382
    %p384 = scmp.ne.s32.totalorder %s373, %s376
    %p385 = scmp.eq.s32.totalorder %s27, 1
    %p386 = por %p384, %p385
    %p387 = scmp.ne.s32.totalorder %s376, %s377
    %p388 = scmp.eq.s32.totalorder %s27, 0
    %p389 = por %p387, %p388
    %p390 = scmp.ne.s32.totalorder %s376, %s377
    %p391 = scmp.eq.s32.totalorder %s28, 1
    %p392 = por %p390, %p391
    %p394 = scmp.ne.s32.totalorder %s377, %s393
    %p395 = scmp.eq.s32.totalorder %s28, 0
    %p396 = por %p394, %p395
    %p397 = scmp.le.s32.totalorder 1, %s22
    %p398 = scmp.lt.s32.totalorder %s22, 3
    %p399 = pnand %p397, %p398
    %p400 = pneg %p399
    // Predicated region
    $region9: #{hyperdnet_forward.1} parent=5 // pred_check
      _
    $region10: #{hyperdnet_forward.1} parent=5 // pred_check_branch
      %402 = sbr.rel (%p399) target = $region12
    $region11: #{hyperdnet_forward.1} parent=5 // pred_region
      %s403 = ssub.s32 %s22, 1
      // Predicated region
      $region13: #{hyperdnet_forward.1} parent=11 // pred_check
        %p404 = pneg %p69
      $region14: #{hyperdnet_forward.1} parent=11 // pred_check_branch
        %406 = sbr.rel (%p404) target = $region16
      $region15: #{hyperdnet_forward.1} parent=11 // pred_region
        _
      $region16: #{hyperdnet_forward.1} parent=11 // pred_fallthru
        _
      // Predicated region
      $region17: #{hyperdnet_forward.1} parent=11 // pred_check
        %p407 = pneg %p90
      $region18: #{hyperdnet_forward.1} parent=11 // pred_check_branch
        %409 = sbr.rel (%p407) target = $region20
      $region19: #{hyperdnet_forward.1} parent=11 // pred_region
        _
      $region20: #{hyperdnet_forward.1} parent=11 // pred_fallthru
        _
      // Predicated region
      $region21: #{hyperdnet_forward.1} parent=11 // pred_check
        %p410 = pneg %p111
      $region22: #{hyperdnet_forward.1} parent=11 // pred_check_branch
        %412 = sbr.rel (%p410) target = $region24
      $region23: #{hyperdnet_forward.1} parent=11 // pred_region
        _
      $region24: #{hyperdnet_forward.1} parent=11 // pred_fallthru
        _
      // Predicated region
      $region25: #{hyperdnet_forward.1} parent=11 // pred_check
        %p413 = pneg %p132
      $region26: #{hyperdnet_forward.1} parent=11 // pred_check_branch
        %415 = sbr.rel (%p413) target = $region28
      $region27: #{hyperdnet_forward.1} parent=11 // pred_region
        _
      $region28: #{hyperdnet_forward.1} parent=11 // pred_fallthru
        _
      // Predicated region
      $region29: #{hyperdnet_forward.1} parent=11 // pred_check
        %p416 = pneg %p153
      $region30: #{hyperdnet_forward.1} parent=11 // pred_check_branch
        %418 = sbr.rel (%p416) target = $region32
      $region31: #{hyperdnet_forward.1} parent=11 // pred_region
        _
      $region32: #{hyperdnet_forward.1} parent=11 // pred_fallthru
        _
      // Predicated region
      $region33: #{hyperdnet_forward.1} parent=11 // pred_check
        %p419 = pneg %p174
      $region34: #{hyperdnet_forward.1} parent=11 // pred_check_branch
        %421 = sbr.rel (%p419) target = $region36
      $region35: #{hyperdnet_forward.1} parent=11 // pred_region
        _
      $region36: #{hyperdnet_forward.1} parent=11 // pred_fallthru
        _
      // Predicated region
      $region37: #{hyperdnet_forward.1} parent=11 // pred_check
        %p422 = pneg %p195
      $region38: #{hyperdnet_forward.1} parent=11 // pred_check_branch
        %424 = sbr.rel (%p422) target = $region40
      $region39: #{hyperdnet_forward.1} parent=11 // pred_region
        _
      $region40: #{hyperdnet_forward.1} parent=11 // pred_fallthru
        _
      // Predicated region
      $region41: #{hyperdnet_forward.1} parent=11 // pred_check
        %p425 = pneg %p216
      $region42: #{hyperdnet_forward.1} parent=11 // pred_check_branch
        %427 = sbr.rel (%p425) target = $region44
      $region43: #{hyperdnet_forward.1} parent=11 // pred_region
        _
      $region44: #{hyperdnet_forward.1} parent=11 // pred_fallthru
        _
      // Predicated region
      $region45: #{hyperdnet_forward.1} parent=11 // pred_check
        %p428 = pneg %p237
      $region46: #{hyperdnet_forward.1} parent=11 // pred_check_branch
        %430 = sbr.rel (%p428) target = $region48
      $region47: #{hyperdnet_forward.1} parent=11 // pred_region
        _
      $region48: #{hyperdnet_forward.1} parent=11 // pred_fallthru
        _
      // Predicated region
      $region49: #{hyperdnet_forward.1} parent=11 // pred_check
        %p431 = pneg %p258
      $region50: #{hyperdnet_forward.1} parent=11 // pred_check_branch
        %433 = sbr.rel (%p431) target = $region52
      $region51: #{hyperdnet_forward.1} parent=11 // pred_region
        _
      $region52: #{hyperdnet_forward.1} parent=11 // pred_fallthru
        _
      // Predicated region
      $region53: #{hyperdnet_forward.1} parent=11 // pred_check
        %p434 = pneg %p279
      $region54: #{hyperdnet_forward.1} parent=11 // pred_check_branch
        %436 = sbr.rel (%p434) target = $region56
      $region55: #{hyperdnet_forward.1} parent=11 // pred_region
        _
      $region56: #{hyperdnet_forward.1} parent=11 // pred_fallthru
        _
      // Predicated region
      $region57: #{hyperdnet_forward.1} parent=11 // pred_check
        %p437 = pneg %p300
      $region58: #{hyperdnet_forward.1} parent=11 // pred_check_branch
        %439 = sbr.rel (%p437) target = $region60
      $region59: #{hyperdnet_forward.1} parent=11 // pred_region
        _
      $region60: #{hyperdnet_forward.1} parent=11 // pred_fallthru
        _
      // Predicated region
      $region61: #{hyperdnet_forward.1} parent=11 // pred_check
        %p440 = pneg %p321
      $region62: #{hyperdnet_forward.1} parent=11 // pred_check_branch
        %442 = sbr.rel (%p440) target = $region64
      $region63: #{hyperdnet_forward.1} parent=11 // pred_region
        _
      $region64: #{hyperdnet_forward.1} parent=11 // pred_fallthru
        _
      // Predicated region
      $region65: #{hyperdnet_forward.1} parent=11 // pred_check
        %p443 = pneg %p342
      $region66: #{hyperdnet_forward.1} parent=11 // pred_check_branch
        %445 = sbr.rel (%p443) target = $region68
      $region67: #{hyperdnet_forward.1} parent=11 // pred_region
        _
      $region68: #{hyperdnet_forward.1} parent=11 // pred_fallthru
        _
      // Predicated region
      $region69: #{hyperdnet_forward.1} parent=11 // pred_check
        %p446 = pneg %p363
      $region70: #{hyperdnet_forward.1} parent=11 // pred_check_branch
        %448 = sbr.rel (%p446) target = $region72
      $region71: #{hyperdnet_forward.1} parent=11 // pred_region
        _
      $region72: #{hyperdnet_forward.1} parent=11 // pred_fallthru
        _
    $region12: #{hyperdnet_forward.1} parent=5 // pred_fallthru
      _
    %p449 = scmp.lt.s32.totalorder %s22, 2
    // Predicated region
    $region73: #{hyperdnet_forward.1} parent=5 // pred_check
      %p450 = pneg %p449
    $region74: #{hyperdnet_forward.1} parent=5 // pred_check_branch
      %452 = sbr.rel (%p450) target = $region76
    $region75: #{hyperdnet_forward.1} parent=5 // pred_region
      // Predicated region
      $region77: #{hyperdnet_forward.1} parent=75 // pred_check
        %p453 = pneg %p42
      $region78: #{hyperdnet_forward.1} parent=75 // pred_check_branch
        %455 = sbr.rel (%p453) target = $region80
      $region79: #{hyperdnet_forward.1} parent=75 // pred_region
        %p456 = scmp.lt.s32.totalorder %s22, 1
        %s457 = scalar_select %p456, %s22, 1
        %s458 = smul.addr %s457, 297
        %s459 = smul.addr %s458, 4
        %s460 = scalar_lea.vmem %s0, %s459
      $region80: #{hyperdnet_forward.1} parent=75 // pred_fallthru
        _
    $region76: #{hyperdnet_forward.1} parent=5 // pred_fallthru
      _
    %p461 = scmp.le.s32.totalorder 1, %s22
    %p462 = scmp.lt.s32.totalorder %s22, 3
    %p463 = pnand %p461, %p462
    %p464 = pneg %p463
    // Predicated region
    $region81: #{hyperdnet_forward.1} parent=5 // pred_check
      _
    $region82: #{hyperdnet_forward.1} parent=5 // pred_check_branch
      %466 = sbr.rel (%p463) target = $region84
    $region83: #{hyperdnet_forward.1} parent=5 // pred_region
      %s467 = ssub.s32 %s22, 1
      %p468 = scmp.lt.s32.totalorder %s27, 1
      %s469 = scalar_select %p468, %s27, 1
      %s470 = smul.addr %s469, 297
      %s471 = smul.addr %s470, 4
      %s472 = scalar_lea.vmem %s0, %s471
      %p473 = pneg %p48
      %p474 = pneg %p45
      %p475 = pneg %p69
      %p476 = pneg %p66
      %p477 = pneg %p90
      %p478 = pneg %p87
      %p479 = pneg %p111
      %p480 = pneg %p108
      %p481 = pneg %p132
      %p482 = pneg %p129
      %p483 = pneg %p153
      %p484 = pneg %p150
      %p485 = pneg %p174
      %p486 = pneg %p171
      %p487 = pneg %p195
      %p488 = pneg %p192
      %p489 = pneg %p216
      %p490 = pneg %p213
      %p491 = pneg %p237
      %p492 = pneg %p234
      %p493 = pneg %p258
      %p494 = pneg %p255
      %p495 = pneg %p279
      %p496 = pneg %p276
      %p497 = pneg %p300
      %p498 = pneg %p297
      %p499 = pneg %p321
      %p500 = pneg %p318
      %p501 = pneg %p342
      %p502 = pneg %p339
      %p503 = pneg %p363
      %p504 = pneg %p360
      %p505 = pneg %p389
      %p506 = pneg %p386
      %p507 = scmp.lt.s32.totalorder %s27, 1
      %s508 = scalar_select %p507, %s27, 1
      %s509 = smul.addr %s508, 4
      %s510 = smul.addr %s509, 8
      %s511 = scalar_lea.vmem %s16, %s510
      %p512 = scmp.lt.s32.totalorder %s27, 1
      %s513 = scalar_select %p512, %s27, 1
      %s514 = smul.addr %s513, 297
      %s515 = smul.addr %s514, 4
      %s516 = scalar_lea.vmem %s0, %s515
      %p517 = scmp.lt.s32.totalorder %s27, 1
      %s518 = scalar_select %p517, %s27, 1
      %s519 = smul.addr %s518, 4
      %s520 = smul.addr %s519, 8
      %s521 = scalar_lea.vmem %s16, %s520
      %v523 = vld [vmem:[%s516] sm:$0xff]
      %v524 = vld [vmem:[%s516 + $0x8] sm:$0xff]
      %v525 = vld [vmem:[%s516 + $0x10] sm:$0xff]
      %v526 = vld [vmem:[%s516 + $0x18] sm:$0xff]
      %v527 = vld [vmem:[%s516 + $0x20] sm:$0xff]
      %v528 = vld [vmem:[%s516 + $0x28] sm:$0xf]
      %v529 = vld [vmem:[%s516 + $0x2c] sm:$0xff]
      %v530 = vld [vmem:[%s516 + $0x34] sm:$0xff]
      %v531 = vld [vmem:[%s516 + $0x3c] sm:$0xff]
      %v532 = vld [vmem:[%s516 + $0x44] sm:$0xff]
      %v533 = vld [vmem:[%s516 + $0x4c] sm:$0xff]
      %v534 = vld [vmem:[%s516 + $0x54] sm:$0xf]
      %v535 = vld [vmem:[%s516 + $0x58] sm:$0xff]
      %v536 = vld [vmem:[%s516 + $0x60] sm:$0xff]
      %v537 = vld [vmem:[%s516 + $0x68] sm:$0xff]
      %v538 = vld [vmem:[%s516 + $0x70] sm:$0xff]
      %v539 = vld [vmem:[%s516 + $0x78] sm:$0xff]
      %v540 = vld [vmem:[%s516 + $0x80] sm:$0xf]
      %v541 = vld [vmem:[%s516 + $0x84] sm:$0xff]
      %v542 = vld [vmem:[%s516 + $0x8c] sm:$0xff]
      %v543 = vld [vmem:[%s516 + $0x94] sm:$0xff]
      %v544 = vld [vmem:[%s516 + $0x9c] sm:$0xff]
      %v545 = vld [vmem:[%s516 + $0xa4] sm:$0xff]
      %v546 = vld [vmem:[%s516 + $0xac] sm:$0xf]
      %v547 = vld [vmem:[%s516 + $0xb0] sm:$0xff]
      %v548 = vld [vmem:[%s516 + $0xb8] sm:$0xff]
      %v549 = vld [vmem:[%s516 + $0xc0] sm:$0xff]
      %v550 = vld [vmem:[%s516 + $0xc8] sm:$0xff]
      %v551 = vld [vmem:[%s516 + $0xd0] sm:$0xff]
      %v552 = vld [vmem:[%s516 + $0xd8] sm:$0xf]
      %v553 = vld [vmem:[%s516 + $0xdc] sm:$0xff]
      %v554 = vld [vmem:[%s516 + $0xe4] sm:$0xff]
      %v555 = vld [vmem:[%s516 + $0xec] sm:$0xff]
      %v556 = vld [vmem:[%s516 + $0xf4] sm:$0xff]
      %v557 = vld [vmem:[%s516 + $0xfc] sm:$0xff]
      %v558 = vld [vmem:[%s516 + $0x104] sm:$0xf]
      %v559 = vld [vmem:[%s516 + $0x108] sm:$0xff]
      %v560 = vld [vmem:[%s516 + $0x110] sm:$0xff]
      %v561 = vld [vmem:[%s516 + $0x118] sm:$0xff]
      %v562 = vld [vmem:[%s516 + $0x120] sm:$0xff]
      %v563 = vld [vmem:[%s516 + $0x128] sm:$0xff]
      %v564 = vld [vmem:[%s516 + $0x130] sm:$0xf]
      %v565 = vld [vmem:[%s516 + $0x134] sm:$0xff]
      %v566 = vld [vmem:[%s516 + $0x13c] sm:$0xff]
      %v567 = vld [vmem:[%s516 + $0x144] sm:$0xff]
      %v568 = vld [vmem:[%s516 + $0x14c] sm:$0xff]
      %v569 = vld [vmem:[%s516 + $0x154] sm:$0xff]
      %v570 = vld [vmem:[%s516 + $0x15c] sm:$0xf]
      %v571 = vld [vmem:[%s516 + $0x160] sm:$0xff]
      %v572 = vld [vmem:[%s516 + $0x168] sm:$0xff]
      %v573 = vld [vmem:[%s516 + $0x170] sm:$0xff]
      %v574 = vld [vmem:[%s516 + $0x178] sm:$0xff]
      %v575 = vld [vmem:[%s516 + $0x180] sm:$0xff]
      %v576 = vld [vmem:[%s516 + $0x188] sm:$0xf]
      %v577 = vld [vmem:[%s516 + $0x18c] sm:$0xff]
      %v578 = vld [vmem:[%s516 + $0x194] sm:$0xff]
      %v579 = vld [vmem:[%s516 + $0x19c] sm:$0xff]
      %v580 = vld [vmem:[%s516 + $0x1a4] sm:$0xff]
      %v581 = vld [vmem:[%s516 + $0x1ac] sm:$0xff]
      %v582 = vld [vmem:[%s516 + $0x1b4] sm:$0xf]
      %v583 = vld [vmem:[%s516 + $0x1b8] sm:$0xff]
      %v584 = vld [vmem:[%s516 + $0x1c0] sm:$0xff]
      %v585 = vld [vmem:[%s516 + $0x1c8] sm:$0xff]
      %v586 = vld [vmem:[%s516 + $0x1d0] sm:$0xff]
      %v587 = vld [vmem:[%s516 + $0x1d8] sm:$0xff]
      %v588 = vld [vmem:[%s516 + $0x1e0] sm:$0xf]
      %v589 = vld [vmem:[%s516 + $0x1e4] sm:$0xff]
      %v590 = vld [vmem:[%s516 + $0x1ec] sm:$0xff]
      %v591 = vld [vmem:[%s516 + $0x1f4] sm:$0xff]
      %v592 = vld [vmem:[%s516 + $0x1fc] sm:$0xff]
      %v593 = vld [vmem:[%s516 + $0x204] sm:$0xff]
      %v594 = vld [vmem:[%s516 + $0x20c] sm:$0xf]
      %v595 = vld [vmem:[%s516 + $0x210] sm:$0xff]
      %v596 = vld [vmem:[%s516 + $0x218] sm:$0xff]
      %v597 = vld [vmem:[%s516 + $0x220] sm:$0xff]
      %v598 = vld [vmem:[%s516 + $0x228] sm:$0xff]
      %v599 = vld [vmem:[%s516 + $0x230] sm:$0xff]
      %v600 = vld [vmem:[%s516 + $0x238] sm:$0xf]
      %v601 = vld [vmem:[%s516 + $0x23c] sm:$0xff]
      %v602 = vld [vmem:[%s516 + $0x244] sm:$0xff]
      %v603 = vld [vmem:[%s516 + $0x24c] sm:$0xff]
      %v604 = vld [vmem:[%s516 + $0x254] sm:$0xff]
      %v605 = vld [vmem:[%s516 + $0x25c] sm:$0xff]
      %v606 = vld [vmem:[%s516 + $0x264] sm:$0xf]
      %v607 = vld [vmem:[%s516 + $0x268] sm:$0xff]
      %v608 = vld [vmem:[%s516 + $0x270] sm:$0xff]
      %v609 = vld [vmem:[%s516 + $0x278] sm:$0xff]
      %v610 = vld [vmem:[%s516 + $0x280] sm:$0xff]
      %v611 = vld [vmem:[%s516 + $0x288] sm:$0xff]
      %v612 = vld [vmem:[%s516 + $0x290] sm:$0xf]
      %v613 = vld [vmem:[%s516 + $0x294] sm:$0xff]
      %v614 = vld [vmem:[%s516 + $0x29c] sm:$0xff]
      %v615 = vld [vmem:[%s516 + $0x2a4] sm:$0xff]
      %v616 = vld [vmem:[%s516 + $0x2ac] sm:$0xff]
      %v617 = vld [vmem:[%s516 + $0x2b4] sm:$0xff]
      %v618 = vld [vmem:[%s516 + $0x2bc] sm:$0xf]
      %v619 = vld [vmem:[%s516 + $0x2c0] sm:$0xff]
      %v620 = vld [vmem:[%s516 + $0x2c8] sm:$0xff]
      %v621 = vld [vmem:[%s516 + $0x2d0] sm:$0xff]
      %v622 = vld [vmem:[%s516 + $0x2d8] sm:$0xff]
      %v623 = vld [vmem:[%s516 + $0x2e0] sm:$0xff]
      %v624 = vld [vmem:[%s516 + $0x2e8] sm:$0xf]
      %v625 = vld [vmem:[%s516 + $0x2ec] sm:$0xff]
      %v626 = vld [vmem:[%s516 + $0x2f4] sm:$0xff]
      %v627 = vld [vmem:[%s516 + $0x2fc] sm:$0xff]
      %v628 = vld [vmem:[%s516 + $0x304] sm:$0xff]
      %v629 = vld [vmem:[%s516 + $0x30c] sm:$0xff]
      %v630 = vld [vmem:[%s516 + $0x314] sm:$0xf]
      %v631 = vld [vmem:[%s516 + $0x318] sm:$0xff]
      %v632 = vld [vmem:[%s516 + $0x320] sm:$0xff]
      %v633 = vld [vmem:[%s516 + $0x328] sm:$0xff]
      %v634 = vld [vmem:[%s516 + $0x330] sm:$0xff]
      %v635 = vld [vmem:[%s516 + $0x338] sm:$0xff]
      %v636 = vld [vmem:[%s516 + $0x340] sm:$0xf]
      %v637 = vld [vmem:[%s516 + $0x344] sm:$0xff]
      %v638 = vld [vmem:[%s516 + $0x34c] sm:$0xff]
      %v639 = vld [vmem:[%s516 + $0x354] sm:$0xff]
      %v640 = vld [vmem:[%s516 + $0x35c] sm:$0xff]
      %v641 = vld [vmem:[%s516 + $0x364] sm:$0xff]
      %v642 = vld [vmem:[%s516 + $0x36c] sm:$0xf]
      %v643 = vld [vmem:[%s516 + $0x370] sm:$0xff]
      %v644 = vld [vmem:[%s516 + $0x378] sm:$0xff]
      %v645 = vld [vmem:[%s516 + $0x380] sm:$0xff]
      %v646 = vld [vmem:[%s516 + $0x388] sm:$0xff]
      %v647 = vld [vmem:[%s516 + $0x390] sm:$0xff]
      %v648 = vld [vmem:[%s516 + $0x398] sm:$0xf]
      %v649 = vld [vmem:[%s516 + $0x39c] sm:$0xff]
      %v650 = vld [vmem:[%s516 + $0x3a4] sm:$0xff]
      %v651 = vld [vmem:[%s516 + $0x3ac] sm:$0xff]
      %v652 = vld [vmem:[%s516 + $0x3b4] sm:$0xff]
      %v653 = vld [vmem:[%s516 + $0x3bc] sm:$0xff]
      %v654 = vld [vmem:[%s516 + $0x3c4] sm:$0xf]
      %v655 = vld [vmem:[%s516 + $0x3c8] sm:$0xff]
      %v656 = vld [vmem:[%s516 + $0x3d0] sm:$0xff]
      %v657 = vld [vmem:[%s516 + $0x3d8] sm:$0xff]
      %v658 = vld [vmem:[%s516 + $0x3e0] sm:$0xff]
      %v659 = vld [vmem:[%s516 + $0x3e8] sm:$0xff]
      %v660 = vld [vmem:[%s516 + $0x3f0] sm:$0xf]
      %v661 = vld [vmem:[%s516 + $0x3f4] sm:$0xff]
      %v662 = vld [vmem:[%s516 + $0x3fc] sm:$0xff]
      %v663 = vld [vmem:[%s516 + $0x404] sm:$0xff]
      %v664 = vld [vmem:[%s516 + $0x40c] sm:$0xff]
      %v665 = vld [vmem:[%s516 + $0x414] sm:$0xff]
      %v666 = vld [vmem:[%s516 + $0x41c] sm:$0xf]
      %v667 = vld [vmem:[%s516 + $0x420] sm:$0xff]
      %v668 = vld [vmem:[%s516 + $0x428] sm:$0xff]
      %v669 = vld [vmem:[%s516 + $0x430] sm:$0xff]
      %v670 = vld [vmem:[%s516 + $0x438] sm:$0xff]
      %v671 = vld [vmem:[%s516 + $0x440] sm:$0xff]
      %v672 = vld [vmem:[%s516 + $0x448] sm:$0xf]
      %v673 = vld [vmem:[%s516 + $0x44c] sm:$0xff]
      %v674 = vld [vmem:[%s516 + $0x454] sm:$0xff]
      %v675 = vld [vmem:[%s516 + $0x45c] sm:$0xff]
      %v676 = vld [vmem:[%s516 + $0x464] sm:$0xff]
      %v677 = vld [vmem:[%s516 + $0x46c] sm:$0xff]
      %v678 = vld [vmem:[%s516 + $0x474] sm:$0xf]
      %v679 = vld [vmem:[%s516 + $0x478] sm:$0xff]
      %v680 = vld [vmem:[%s516 + $0x480] sm:$0xff]
      %v681 = vld [vmem:[%s516 + $0x488] sm:$0xff]
      %v682 = vld [vmem:[%s516 + $0x490] sm:$0xff]
      %v683 = vld [vmem:[%s516 + $0x498] sm:$0xff]
      %v684 = vld [vmem:[%s516 + $0x4a0] sm:$0xf]
      %v685 = vld [vmem:[%s1] sm:$0xf]
      %v686 = vld [vmem:[%s1 + $0x4] sm:$0xf]
      %v687 = vld [vmem:[%s1 + $0x8] sm:$0xf]
      %v688 = vld [vmem:[%s1 + $0xc] sm:$0xf]
      %v689 = vld [vmem:[%s1 + $0x10] sm:$0xf]
      %v690 = vld [vmem:[%s1 + $0x14] sm:$0xf]
      %v691 = vld [vmem:[%s1 + $0x18] sm:$0xf]
      %v692 = vld [vmem:[%s1 + $0x1c] sm:$0xf]
      %v693 = vld [vmem:[%s1 + $0x20] sm:$0xf]
      %v694 = vld [vmem:[%s1 + $0x24] sm:$0xf]
      %v695 = vld [vmem:[%s1 + $0x28] sm:$0xf]
      %v696 = vld [vmem:[%s1 + $0x2c] sm:$0xf]
      %v697 = vld [vmem:[%s1 + $0x30] sm:$0xf]
      %v698 = vld [vmem:[%s1 + $0x34] sm:$0xf]
      %v699 = vld [vmem:[%s1 + $0x38] sm:$0xf]
      %v700 = vld [vmem:[%s1 + $0x3c] sm:$0xf]
      %v701 = vld [vmem:[%s1 + $0x40] sm:$0xf]
      %v702 = vld [vmem:[%s1 + $0x44] sm:$0xf]
      %v703 = vld [vmem:[%s1 + $0x48] sm:$0xf]
      %v704 = vld [vmem:[%s1 + $0x4c] sm:$0xf]
      %v705 = vld [vmem:[%s1 + $0x50] sm:$0xf]
      %v706 = vld [vmem:[%s1 + $0x54] sm:$0xf]
      %v707 = vld [vmem:[%s1 + $0x58] sm:$0xf]
      %v708 = vld [vmem:[%s1 + $0x5c] sm:$0xf]
      %v709 = vld [vmem:[%s1 + $0x60] sm:$0xf]
      %v710 = vld [vmem:[%s1 + $0x64] sm:$0xf]
      %v711 = vld [vmem:[%s1 + $0x68] sm:$0xf]
      %v712 = vld [vmem:[%s1 + $0x6c] sm:$0xf]
      %v713 = vld [vmem:[%s1 + $0x70] sm:$0xf]
      %v714 = vld [vmem:[%s1 + $0x74] sm:$0xf]
      %v715 = vld [vmem:[%s1 + $0x78] sm:$0xf]
      %v716 = vld [vmem:[%s1 + $0x7c] sm:$0xf]
      %v717 = vld [vmem:[%s1 + $0x80] sm:$0xf]
      %v718 = vld [vmem:[%s1 + $0x84] sm:$0xf]
      %v719 = vld [vmem:[%s1 + $0x88] sm:$0xf]
      %v720 = vld [vmem:[%s1 + $0x8c] sm:$0xf]
      %v721 = vld [vmem:[%s1 + $0x90] sm:$0xf]
      %v722 = vld [vmem:[%s1 + $0x94] sm:$0xf]
      %v723 = vld [vmem:[%s1 + $0x98] sm:$0xf]
      %v724 = vld [vmem:[%s1 + $0x9c] sm:$0xf]
      %v725 = vld [vmem:[%s1 + $0xa0] sm:$0xf]
      %v726 = vld [vmem:[%s1 + $0xa4] sm:$0xf]
      %v727 = vld [vmem:[%s1 + $0xa8] sm:$0xf]
      %v728 = vld [vmem:[%s1 + $0xac] sm:$0xf]
      %v729 = vld [vmem:[%s1 + $0xb0] sm:$0xf]
      %v730 = vld [vmem:[%s1 + $0xb4] sm:$0xf]
      %v731 = vld [vmem:[%s1 + $0xb8] sm:$0xf]
      %v732 = vld [vmem:[%s1 + $0xbc] sm:$0xf]
      %v733 = vld [vmem:[%s1 + $0xc0] sm:$0xf]
      %v734 = vld [vmem:[%s1 + $0xc4] sm:$0xf]
      %v735 = vld [vmem:[%s1 + $0xc8] sm:$0xf]
      %v736 = vld [vmem:[%s1 + $0xcc] sm:$0xf]
      %v737 = vld [vmem:[%s1 + $0xd0] sm:$0xf]
      %v738 = vld [vmem:[%s1 + $0xd4] sm:$0xf]
      %v739 = vld [vmem:[%s1 + $0xd8] sm:$0xf]
      %v740 = vld [vmem:[%s1 + $0xdc] sm:$0xf]
      %v741 = vld [vmem:[%s1 + $0xe0] sm:$0xf]
      %v742 = vld [vmem:[%s1 + $0xe4] sm:$0xf]
      %v743 = vld [vmem:[%s1 + $0xe8] sm:$0xf]
      %v744 = vld [vmem:[%s1 + $0xec] sm:$0xf]
      %v745 = vld [vmem:[%s1 + $0xf0] sm:$0xf]
      %v746 = vld [vmem:[%s1 + $0xf4] sm:$0xf]
      %v747 = vld [vmem:[%s1 + $0xf8] sm:$0xf]
      %v748 = vld [vmem:[%s1 + $0xfc] sm:$0xf]
      %v749 = vld [vmem:[%s1 + $0x100] sm:$0xf]
      %v750 = vld [vmem:[%s1 + $0x104] sm:$0xf]
      %v751 = vld [vmem:[%s1 + $0x108] sm:$0xf]
      %v752 = vld [vmem:[%s1 + $0x10c] sm:$0xf]
      %v753 = vld [vmem:[%s1 + $0x110] sm:$0xf]
      %v754 = vld [vmem:[%s1 + $0x114] sm:$0xf]
      %v755 = vld [vmem:[%s1 + $0x118] sm:$0xf]
      %v756 = vld [vmem:[%s1 + $0x11c] sm:$0xf]
      %v757 = vld [vmem:[%s1 + $0x120] sm:$0xf]
      %v758 = vld [vmem:[%s1 + $0x124] sm:$0xf]
      %v759 = vld [vmem:[%s1 + $0x128] sm:$0xf]
      %v760 = vld [vmem:[%s1 + $0x12c] sm:$0xf]
      %v761 = vld [vmem:[%s1 + $0x130] sm:$0xf]
      %v762 = vld [vmem:[%s1 + $0x134] sm:$0xf]
      %v763 = vld [vmem:[%s1 + $0x138] sm:$0xf]
      %v764 = vld [vmem:[%s1 + $0x13c] sm:$0xf]
      %v765 = vld [vmem:[%s1 + $0x140] sm:$0xf]
      %v766 = vld [vmem:[%s1 + $0x144] sm:$0xf]
      %v767 = vld [vmem:[%s1 + $0x148] sm:$0xf]
      %v768 = vld [vmem:[%s1 + $0x14c] sm:$0xf]
      %v769 = vld [vmem:[%s1 + $0x150] sm:$0xf]
      %v770 = vld [vmem:[%s1 + $0x154] sm:$0xf]
      %v771 = vld [vmem:[%s1 + $0x158] sm:$0xf]
      %v772 = vld [vmem:[%s1 + $0x15c] sm:$0xf]
      %v773 = vld [vmem:[%s1 + $0x160] sm:$0xf]
      %v774 = vld [vmem:[%s1 + $0x164] sm:$0xf]
      %v775 = vld [vmem:[%s1 + $0x168] sm:$0xf]
      %v776 = vld [vmem:[%s1 + $0x16c] sm:$0xf]
      %v777 = vld [vmem:[%s1 + $0x170] sm:$0xf]
      %v778 = vld [vmem:[%s1 + $0x174] sm:$0xf]
      %v779 = vld [vmem:[%s1 + $0x178] sm:$0xf]
      %v780 = vld [vmem:[%s1 + $0x17c] sm:$0xf]
      %v781 = vld [vmem:[%s1 + $0x180] sm:$0xf]
      %v782 = vld [vmem:[%s1 + $0x184] sm:$0xf]
      %v783 = vld [vmem:[%s1 + $0x188] sm:$0xf]
      %v784 = vld [vmem:[%s1 + $0x18c] sm:$0xf]
      %v785 = vld [vmem:[%s1 + $0x190] sm:$0xf]
      %v786 = vld [vmem:[%s1 + $0x194] sm:$0xf]
      %v787 = vld [vmem:[%s1 + $0x198] sm:$0xf]
      %v788 = vld [vmem:[%s1 + $0x19c] sm:$0xf]
      %v789 = vld [vmem:[%s1 + $0x1a0] sm:$0xf]
      %v790 = vld [vmem:[%s1 + $0x1a4] sm:$0xf]
      %v791 = vld [vmem:[%s1 + $0x1a8] sm:$0xf]
      %v792 = vld [vmem:[%s1 + $0x1ac] sm:$0xf]
      %v793 = vld [vmem:[%s1 + $0x1b0] sm:$0xf]
      %v794 = vld [vmem:[%s1 + $0x1b4] sm:$0xf]
      %v795 = vld [vmem:[%s1 + $0x1b8] sm:$0xf]
      %v796 = vld [vmem:[%s1 + $0x1bc] sm:$0xf]
      %v797 = vld [vmem:[%s1 + $0x1c0] sm:$0xf]
      %v798 = vld [vmem:[%s1 + $0x1c4] sm:$0xf]
      %v799 = vld [vmem:[%s1 + $0x1c8] sm:$0xf]
      %v800 = vld [vmem:[%s1 + $0x1cc] sm:$0xf]
      %v801 = vld [vmem:[%s1 + $0x1d0] sm:$0xf]
      %v802 = vld [vmem:[%s1 + $0x1d4] sm:$0xf]
      %v803 = vld [vmem:[%s1 + $0x1d8] sm:$0xf]
      %v804 = vld [vmem:[%s1 + $0x1dc] sm:$0xf]
      %v805 = vld [vmem:[%s1 + $0x1e0] sm:$0xf]
      %v806 = vld [vmem:[%s1 + $0x1e4] sm:$0xf]
      %v807 = vld [vmem:[%s1 + $0x1e8] sm:$0xf]
      %v808 = vld [vmem:[%s1 + $0x1ec] sm:$0xf]
      %v809 = vld [vmem:[%s1 + $0x1f0] sm:$0xf]
      %v810 = vld [vmem:[%s1 + $0x1f4] sm:$0xf]
      %v811 = vld [vmem:[%s1 + $0x1f8] sm:$0xf]
      %v812 = vld [vmem:[%s1 + $0x1fc] sm:$0xf]
      %v813 = vld [vmem:[%s1 + $0x200] sm:$0xf]
      %v814 = vld [vmem:[%s1 + $0x204] sm:$0xf]
      %v815 = vld [vmem:[%s1 + $0x208] sm:$0xf]
      %v816 = vld [vmem:[%s1 + $0x20c] sm:$0xf]
      %v817 = vld [vmem:[%s1 + $0x210] sm:$0xf]
      %v818 = vld [vmem:[%s1 + $0x214] sm:$0xf]
      %v819 = vld [vmem:[%s1 + $0x218] sm:$0xf]
      %v820 = vld [vmem:[%s1 + $0x21c] sm:$0xf]
      %v821 = vld [vmem:[%s1 + $0x220] sm:$0xf]
      %v822 = vld [vmem:[%s1 + $0x224] sm:$0xf]
      %v823 = vld [vmem:[%s1 + $0x228] sm:$0xf]
      %v824 = vld [vmem:[%s1 + $0x22c] sm:$0xf]
      %v825 = vld [vmem:[%s1 + $0x230] sm:$0xf]
      %v826 = vld [vmem:[%s1 + $0x234] sm:$0xf]
      %v827 = vld [vmem:[%s1 + $0x238] sm:$0xf]
      %v828 = vld [vmem:[%s1 + $0x23c] sm:$0xf]
      %v829 = vld [vmem:[%s1 + $0x240] sm:$0xf]
      %v830 = vld [vmem:[%s1 + $0x244] sm:$0xf]
      %v831 = vld [vmem:[%s1 + $0x248] sm:$0xf]
      %v832 = vld [vmem:[%s1 + $0x24c] sm:$0xf]
      %v833 = vld [vmem:[%s1 + $0x250] sm:$0xf]
      %v834 = vld [vmem:[%s1 + $0x254] sm:$0xf]
      %v835 = vld [vmem:[%s1 + $0x258] sm:$0xf]
      %v836 = vld [vmem:[%s1 + $0x25c] sm:$0xf]
      %v837 = vld [vmem:[%s1 + $0x260] sm:$0xf]
      %v838 = vld [vmem:[%s1 + $0x264] sm:$0xf]
      %v839 = vld [vmem:[%s1 + $0x268] sm:$0xf]
      %v840 = vld [vmem:[%s1 + $0x26c] sm:$0xf]
      %v841 = vld [vmem:[%s1 + $0x270] sm:$0xf]
      %v842 = vld [vmem:[%s1 + $0x274] sm:$0xf]
      %v843 = vld [vmem:[%s1 + $0x278] sm:$0xf]
      %v844 = vld [vmem:[%s1 + $0x27c] sm:$0xf]
      %v845 = vld [vmem:[%s1 + $0x280] sm:$0xf]
      %v846 = vld [vmem:[%s1 + $0x284] sm:$0xf]
      %v847 = vld [vmem:[%s1 + $0x288] sm:$0xf]
      %v848 = vld [vmem:[%s1 + $0x28c] sm:$0xf]
      %v849 = vld [vmem:[%s1 + $0x290] sm:$0xf]
      %v850 = vld [vmem:[%s1 + $0x294] sm:$0xf]
      %v851 = vld [vmem:[%s1 + $0x298] sm:$0xf]
      %v852 = vld [vmem:[%s1 + $0x29c] sm:$0xf]
      %v853 = vld [vmem:[%s1 + $0x2a0] sm:$0xf]
      %v854 = vld [vmem:[%s1 + $0x2a4] sm:$0xf]
      %v855 = vld [vmem:[%s1 + $0x2a8] sm:$0xf]
      %v856 = vld [vmem:[%s1 + $0x2ac] sm:$0x3]
      %v1019 = vunpack.c.l.b16 %v523
      %v1020 = vunpack.c.h.b16 %v523
      %v1021 = vunpack.c.l.b16 %v524
      %v1022 = vunpack.c.h.b16 %v524
      %v1023 = vunpack.c.l.b16 %v525
      %v1024 = vunpack.c.h.b16 %v525
      %v1025 = vunpack.c.l.b16 %v526
      %v1026 = vunpack.c.h.b16 %v526
      %v1027 = vunpack.c.l.b16 %v527
      %v1028 = vunpack.c.h.b16 %v527
      %v1029 = vunpack.c.l.b16 %v528
      %v1030 = vunpack.c.l.b16 %v529
      %v1031 = vunpack.c.h.b16 %v529
      %v1032 = vunpack.c.l.b16 %v530
      %v1033 = vunpack.c.h.b16 %v530
      %v1034 = vunpack.c.l.b16 %v531
      %v1035 = vunpack.c.h.b16 %v531
      %v1036 = vunpack.c.l.b16 %v532
      %v1037 = vunpack.c.h.b16 %v532
      %v1038 = vunpack.c.l.b16 %v533
      %v1039 = vunpack.c.h.b16 %v533
      %v1040 = vunpack.c.l.b16 %v534
      %v1041 = vunpack.c.l.b16 %v535
      %v1042 = vunpack.c.h.b16 %v535
      %v1043 = vunpack.c.l.b16 %v536
      %v1044 = vunpack.c.h.b16 %v536
      %v1045 = vunpack.c.l.b16 %v537
      %v1046 = vunpack.c.h.b16 %v537
      %v1047 = vunpack.c.l.b16 %v538
      %v1048 = vunpack.c.h.b16 %v538
      %v1049 = vunpack.c.l.b16 %v539
      %v1050 = vunpack.c.h.b16 %v539
      %v1051 = vunpack.c.l.b16 %v540
      %v1052 = vunpack.c.l.b16 %v541
      %v1053 = vunpack.c.h.b16 %v541
      %v1054 = vunpack.c.l.b16 %v542
      %v1055 = vunpack.c.h.b16 %v542
      %v1056 = vunpack.c.l.b16 %v543
      %v1057 = vunpack.c.h.b16 %v543
      %v1058 = vunpack.c.l.b16 %v544
      %v1059 = vunpack.c.h.b16 %v544
      %v1060 = vunpack.c.l.b16 %v545
      %v1061 = vunpack.c.h.b16 %v545
      %v1062 = vunpack.c.l.b16 %v546
      %v1063 = vunpack.c.l.b16 %v547
      %v1064 = vunpack.c.h.b16 %v547
      %v1065 = vunpack.c.l.b16 %v548
      %v1066 = vunpack.c.h.b16 %v548
      %v1067 = vunpack.c.l.b16 %v549
      %v1068 = vunpack.c.h.b16 %v549
      %v1069 = vunpack.c.l.b16 %v550
      %v1070 = vunpack.c.h.b16 %v550
      %v1071 = vunpack.c.l.b16 %v551
      %v1072 = vunpack.c.h.b16 %v551
      %v1073 = vunpack.c.l.b16 %v552
      %v1074 = vunpack.c.l.b16 %v553
      %v1075 = vunpack.c.h.b16 %v553
      %v1076 = vunpack.c.l.b16 %v554
      %v1077 = vunpack.c.h.b16 %v554
      %v1078 = vunpack.c.l.b16 %v555
      %v1079 = vunpack.c.h.b16 %v555
      %v1080 = vunpack.c.l.b16 %v556
      %v1081 = vunpack.c.h.b16 %v556
      %v1082 = vunpack.c.l.b16 %v557
      %v1083 = vunpack.c.h.b16 %v557
      %v1084 = vunpack.c.l.b16 %v558
      %v1085 = vunpack.c.l.b16 %v559
      %v1086 = vunpack.c.h.b16 %v559
      %v1087 = vunpack.c.l.b16 %v560
      %v1088 = vunpack.c.h.b16 %v560
      %v1089 = vunpack.c.l.b16 %v561
      %v1090 = vunpack.c.h.b16 %v561
      %v1091 = vunpack.c.l.b16 %v562
      %v1092 = vunpack.c.h.b16 %v562
      %v1093 = vunpack.c.l.b16 %v563
      %v1094 = vunpack.c.h.b16 %v563
      %v1095 = vunpack.c.l.b16 %v564
      %v1096 = vunpack.c.l.b16 %v565
      %v1097 = vunpack.c.h.b16 %v565
      %v1098 = vunpack.c.l.b16 %v566
      %v1099 = vunpack.c.h.b16 %v566
      %v1100 = vunpack.c.l.b16 %v567
      %v1101 = vunpack.c.h.b16 %v567
      %v1102 = vunpack.c.l.b16 %v568
      %v1103 = vunpack.c.h.b16 %v568
      %v1104 = vunpack.c.l.b16 %v569
      %v1105 = vunpack.c.h.b16 %v569
      %v1106 = vunpack.c.l.b16 %v570
      %v1107 = vunpack.c.l.b16 %v571
      %v1108 = vunpack.c.h.b16 %v571
      %v1109 = vunpack.c.l.b16 %v572
      %v1110 = vunpack.c.h.b16 %v572
      %v1111 = vunpack.c.l.b16 %v573
      %v1112 = vunpack.c.h.b16 %v573
      %v1113 = vunpack.c.l.b16 %v574
      %v1114 = vunpack.c.h.b16 %v574
      %v1115 = vunpack.c.l.b16 %v575
      %v1116 = vunpack.c.h.b16 %v575
      %v1117 = vunpack.c.l.b16 %v576
      %v1118 = vunpack.c.l.b16 %v577
      %v1119 = vunpack.c.h.b16 %v577
      %v1120 = vunpack.c.l.b16 %v578
      %v1121 = vunpack.c.h.b16 %v578
      %v1122 = vunpack.c.l.b16 %v579
      %v1123 = vunpack.c.h.b16 %v579
      %v1124 = vunpack.c.l.b16 %v580
      %v1125 = vunpack.c.h.b16 %v580
      %v1126 = vunpack.c.l.b16 %v581
      %v1127 = vunpack.c.h.b16 %v581
      %v1128 = vunpack.c.l.b16 %v582
      %v1129 = vunpack.c.l.b16 %v583
      %v1130 = vunpack.c.h.b16 %v583
      %v1131 = vunpack.c.l.b16 %v584
      %v1132 = vunpack.c.h.b16 %v584
      %v1133 = vunpack.c.l.b16 %v585
      %v1134 = vunpack.c.h.b16 %v585
      %v1135 = vunpack.c.l.b16 %v586
      %v1136 = vunpack.c.h.b16 %v586
      %v1137 = vunpack.c.l.b16 %v587
      %v1138 = vunpack.c.h.b16 %v587
      %v1139 = vunpack.c.l.b16 %v588
      %v1140 = vunpack.c.l.b16 %v589
      %v1141 = vunpack.c.h.b16 %v589
      %v1142 = vunpack.c.l.b16 %v590
      %v1143 = vunpack.c.h.b16 %v590
      %v1144 = vunpack.c.l.b16 %v591
      %v1145 = vunpack.c.h.b16 %v591
      %v1146 = vunpack.c.l.b16 %v592
      %v1147 = vunpack.c.h.b16 %v592
      %v1148 = vunpack.c.l.b16 %v593
      %v1149 = vunpack.c.h.b16 %v593
      %v1150 = vunpack.c.l.b16 %v594
      %v1151 = vunpack.c.l.b16 %v595
      %v1152 = vunpack.c.h.b16 %v595
      %v1153 = vunpack.c.l.b16 %v596
      %v1154 = vunpack.c.h.b16 %v596
      %v1155 = vunpack.c.l.b16 %v597
      %v1156 = vunpack.c.h.b16 %v597
      %v1157 = vunpack.c.l.b16 %v598
      %v1158 = vunpack.c.h.b16 %v598
      %v1159 = vunpack.c.l.b16 %v599
      %v1160 = vunpack.c.h.b16 %v599
      %v1161 = vunpack.c.l.b16 %v600
      %v1162 = vunpack.c.l.b16 %v601
      %v1163 = vunpack.c.h.b16 %v601
      %v1164 = vunpack.c.l.b16 %v602
      %v1165 = vunpack.c.h.b16 %v602
      %v1166 = vunpack.c.l.b16 %v603
      %v1167 = vunpack.c.h.b16 %v603
      %v1168 = vunpack.c.l.b16 %v604
      %v1169 = vunpack.c.h.b16 %v604
      %v1170 = vunpack.c.l.b16 %v605
      %v1171 = vunpack.c.h.b16 %v605
      %v1172 = vunpack.c.l.b16 %v606
      %v1173 = vunpack.c.l.b16 %v607
      %v1174 = vunpack.c.h.b16 %v607
      %v1175 = vunpack.c.l.b16 %v608
      %v1176 = vunpack.c.h.b16 %v608
      %v1177 = vunpack.c.l.b16 %v609
      %v1178 = vunpack.c.h.b16 %v609
      %v1179 = vunpack.c.l.b16 %v610
      %v1180 = vunpack.c.h.b16 %v610
      %v1181 = vunpack.c.l.b16 %v611
      %v1182 = vunpack.c.h.b16 %v611
      %v1183 = vunpack.c.l.b16 %v612
      %v1184 = vunpack.c.l.b16 %v613
      %v1185 = vunpack.c.h.b16 %v613
      %v1186 = vunpack.c.l.b16 %v614
      %v1187 = vunpack.c.h.b16 %v614
      %v1188 = vunpack.c.l.b16 %v615
      %v1189 = vunpack.c.h.b16 %v615
      %v1190 = vunpack.c.l.b16 %v616
      %v1191 = vunpack.c.h.b16 %v616
      %v1192 = vunpack.c.l.b16 %v617
      %v1193 = vunpack.c.h.b16 %v617
      %v1194 = vunpack.c.l.b16 %v618
      %v1195 = vunpack.c.l.b16 %v619
      %v1196 = vunpack.c.h.b16 %v619
      %v1197 = vunpack.c.l.b16 %v620
      %v1198 = vunpack.c.h.b16 %v620
      %v1199 = vunpack.c.l.b16 %v621
      %v1200 = vunpack.c.h.b16 %v621
      %v1201 = vunpack.c.l.b16 %v622
      %v1202 = vunpack.c.h.b16 %v622
      %v1203 = vunpack.c.l.b16 %v623
      %v1204 = vunpack.c.h.b16 %v623
      %v1205 = vunpack.c.l.b16 %v624
      %v1206 = vunpack.c.l.b16 %v625
      %v1207 = vunpack.c.h.b16 %v625
      %v1208 = vunpack.c.l.b16 %v626
      %v1209 = vunpack.c.h.b16 %v626
      %v1210 = vunpack.c.l.b16 %v627
      %v1211 = vunpack.c.h.b16 %v627
      %v1212 = vunpack.c.l.b16 %v628
      %v1213 = vunpack.c.h.b16 %v628
      %v1214 = vunpack.c.l.b16 %v629
      %v1215 = vunpack.c.h.b16 %v629
      %v1216 = vunpack.c.l.b16 %v630
      %v1217 = vunpack.c.l.b16 %v631
      %v1218 = vunpack.c.h.b16 %v631
      %v1219 = vunpack.c.l.b16 %v632
      %v1220 = vunpack.c.h.b16 %v632
      %v1221 = vunpack.c.l.b16 %v633
      %v1222 = vunpack.c.h.b16 %v633
      %v1223 = vunpack.c.l.b16 %v634
      %v1224 = vunpack.c.h.b16 %v634
      %v1225 = vunpack.c.l.b16 %v635
      %v1226 = vunpack.c.h.b16 %v635
      %v1227 = vunpack.c.l.b16 %v636
      %v1228 = vunpack.c.l.b16 %v637
      %v1229 = vunpack.c.h.b16 %v637
      %v1230 = vunpack.c.l.b16 %v638
      %v1231 = vunpack.c.h.b16 %v638
      %v1232 = vunpack.c.l.b16 %v639
      %v1233 = vunpack.c.h.b16 %v639
      %v1234 = vunpack.c.l.b16 %v640
      %v1235 = vunpack.c.h.b16 %v640
      %v1236 = vunpack.c.l.b16 %v641
      %v1237 = vunpack.c.h.b16 %v641
      %v1238 = vunpack.c.l.b16 %v642
      %v1239 = vunpack.c.l.b16 %v643
      %v1240 = vunpack.c.h.b16 %v643
      %v1241 = vunpack.c.l.b16 %v644
      %v1242 = vunpack.c.h.b16 %v644
      %v1243 = vunpack.c.l.b16 %v645
      %v1244 = vunpack.c.h.b16 %v645
      %v1245 = vunpack.c.l.b16 %v646
      %v1246 = vunpack.c.h.b16 %v646
      %v1247 = vunpack.c.l.b16 %v647
      %v1248 = vunpack.c.h.b16 %v647
      %v1249 = vunpack.c.l.b16 %v648
      %v1250 = vunpack.c.l.b16 %v649
      %v1251 = vunpack.c.h.b16 %v649
      %v1252 = vunpack.c.l.b16 %v650
      %v1253 = vunpack.c.h.b16 %v650
      %v1254 = vunpack.c.l.b16 %v651
      %v1255 = vunpack.c.h.b16 %v651
      %v1256 = vunpack.c.l.b16 %v652
      %v1257 = vunpack.c.h.b16 %v652
      %v1258 = vunpack.c.l.b16 %v653
      %v1259 = vunpack.c.h.b16 %v653
      %v1260 = vunpack.c.l.b16 %v654
      %v1261 = vunpack.c.l.b16 %v655
      %v1262 = vunpack.c.h.b16 %v655
      %v1263 = vunpack.c.l.b16 %v656
      %v1264 = vunpack.c.h.b16 %v656
      %v1265 = vunpack.c.l.b16 %v657
      %v1266 = vunpack.c.h.b16 %v657
      %v1267 = vunpack.c.l.b16 %v658
      %v1268 = vunpack.c.h.b16 %v658
      %v1269 = vunpack.c.l.b16 %v659
      %v1270 = vunpack.c.h.b16 %v659
      %v1271 = vunpack.c.l.b16 %v660
      %v1272 = vunpack.c.l.b16 %v661
      %v1273 = vunpack.c.h.b16 %v661
      %v1274 = vunpack.c.l.b16 %v662
      %v1275 = vunpack.c.h.b16 %v662
      %v1276 = vunpack.c.l.b16 %v663
      %v1277 = vunpack.c.h.b16 %v663
      %v1278 = vunpack.c.l.b16 %v664
      %v1279 = vunpack.c.h.b16 %v664
      %v1280 = vunpack.c.l.b16 %v665
      %v1281 = vunpack.c.h.b16 %v665
      %v1282 = vunpack.c.l.b16 %v666
      %v1283 = vunpack.c.l.b16 %v667
      %v1284 = vunpack.c.h.b16 %v667
      %v1285 = vunpack.c.l.b16 %v668
      %v1286 = vunpack.c.h.b16 %v668
      %v1287 = vunpack.c.l.b16 %v669
      %v1288 = vunpack.c.h.b16 %v669
      %v1289 = vunpack.c.l.b16 %v670
      %v1290 = vunpack.c.h.b16 %v670
      %v1291 = vunpack.c.l.b16 %v671
      %v1292 = vunpack.c.h.b16 %v671
      %v1293 = vunpack.c.l.b16 %v672
      %v1294 = vunpack.c.l.b16 %v673
      %v1295 = vunpack.c.h.b16 %v673
      %v1296 = vunpack.c.l.b16 %v674
      %v1297 = vunpack.c.h.b16 %v674
      %v1298 = vunpack.c.l.b16 %v675
      %v1299 = vunpack.c.h.b16 %v675
      %v1300 = vunpack.c.l.b16 %v676
      %v1301 = vunpack.c.h.b16 %v676
      %v1302 = vunpack.c.l.b16 %v677
      %v1303 = vunpack.c.h.b16 %v677
      %v1304 = vunpack.c.l.b16 %v678
      %v1305 = vunpack.c.l.b16 %v679
      %v1306 = vunpack.c.h.b16 %v679
      %v1307 = vunpack.c.l.b16 %v680
      %v1308 = vunpack.c.h.b16 %v680
      %v1309 = vunpack.c.l.b16 %v681
      %v1310 = vunpack.c.h.b16 %v681
      %v1311 = vunpack.c.l.b16 %v682
      %v1312 = vunpack.c.h.b16 %v682
      %v1313 = vunpack.c.l.b16 %v683
      %v1314 = vunpack.c.h.b16 %v683
      %v1315 = vunpack.c.l.b16 %v684
      %v1316 = vpack.c.b16 %v1030, %v1019
      %v1317 = vpack.c.b16 %v1031, %v1020
      %v1318 = vpack.c.b16 %v1032, %v1021
      %v1319 = vpack.c.b16 %v1033, %v1022
      %v1320 = vpack.c.b16 %v1034, %v1023
      %v1321 = vpack.c.b16 %v1035, %v1024
      %v1322 = vpack.c.b16 %v1036, %v1025
      %v1323 = vpack.c.b16 %v1037, %v1026
      %v1324 = vpack.c.b16 %v1038, %v1027
      %v1325 = vpack.c.b16 %v1039, %v1028
      %v1326 = vpack.c.b16 %v1040, %v1029
      %v1327 = vpack.c.b16 %v1052, %v1041
      %v1328 = vpack.c.b16 %v1053, %v1042
      %v1329 = vpack.c.b16 %v1054, %v1043
      %v1330 = vpack.c.b16 %v1055, %v1044
      %v1331 = vpack.c.b16 %v1056, %v1045
      %v1332 = vpack.c.b16 %v1057, %v1046
      %v1333 = vpack.c.b16 %v1058, %v1047
      %v1334 = vpack.c.b16 %v1059, %v1048
      %v1335 = vpack.c.b16 %v1060, %v1049
      %v1336 = vpack.c.b16 %v1061, %v1050
      %v1337 = vpack.c.b16 %v1062, %v1051
      %v1338 = vpack.c.b16 %v1074, %v1063
      %v1339 = vpack.c.b16 %v1075, %v1064
      %v1340 = vpack.c.b16 %v1076, %v1065
      %v1341 = vpack.c.b16 %v1077, %v1066
      %v1342 = vpack.c.b16 %v1078, %v1067
      %v1343 = vpack.c.b16 %v1079, %v1068
      %v1344 = vpack.c.b16 %v1080, %v1069
      %v1345 = vpack.c.b16 %v1081, %v1070
      %v1346 = vpack.c.b16 %v1082, %v1071
      %v1347 = vpack.c.b16 %v1083, %v1072
      %v1348 = vpack.c.b16 %v1084, %v1073
      %v1349 = vpack.c.b16 %v1096, %v1085
      %v1350 = vpack.c.b16 %v1097, %v1086
      %v1351 = vpack.c.b16 %v1098, %v1087
      %v1352 = vpack.c.b16 %v1099, %v1088
      %v1353 = vpack.c.b16 %v1100, %v1089
      %v1354 = vpack.c.b16 %v1101, %v1090
      %v1355 = vpack.c.b16 %v1102, %v1091
      %v1356 = vpack.c.b16 %v1103, %v1092
      %v1357 = vpack.c.b16 %v1104, %v1093
      %v1358 = vpack.c.b16 %v1105, %v1094
      %v1359 = vpack.c.b16 %v1106, %v1095
      %v1360 = vpack.c.b16 %v1118, %v1107
      %v1361 = vpack.c.b16 %v1119, %v1108
      %v1362 = vpack.c.b16 %v1120, %v1109
      %v1363 = vpack.c.b16 %v1121, %v1110
      %v1364 = vpack.c.b16 %v1122, %v1111
      %v1365 = vpack.c.b16 %v1123, %v1112
      %v1366 = vpack.c.b16 %v1124, %v1113
      %v1367 = vpack.c.b16 %v1125, %v1114
      %v1368 = vpack.c.b16 %v1126, %v1115
      %v1369 = vpack.c.b16 %v1127, %v1116
      %v1370 = vpack.c.b16 %v1128, %v1117
      %v1371 = vpack.c.b16 %v1140, %v1129
      %v1372 = vpack.c.b16 %v1141, %v1130
      %v1373 = vpack.c.b16 %v1142, %v1131
      %v1374 = vpack.c.b16 %v1143, %v1132
      %v1375 = vpack.c.b16 %v1144, %v1133
      %v1376 = vpack.c.b16 %v1145, %v1134
      %v1377 = vpack.c.b16 %v1146, %v1135
      %v1378 = vpack.c.b16 %v1147, %v1136
      %v1379 = vpack.c.b16 %v1148, %v1137
      %v1380 = vpack.c.b16 %v1149, %v1138
      %v1381 = vpack.c.b16 %v1150, %v1139
      %v1382 = vpack.c.b16 %v1162, %v1151
      %v1383 = vpack.c.b16 %v1163, %v1152
      %v1384 = vpack.c.b16 %v1164, %v1153
      %v1385 = vpack.c.b16 %v1165, %v1154
      %v1386 = vpack.c.b16 %v1166, %v1155
      %v1387 = vpack.c.b16 %v1167, %v1156
      %v1388 = vpack.c.b16 %v1168, %v1157
      %v1389 = vpack.c.b16 %v1169, %v1158
      %v1390 = vpack.c.b16 %v1170, %v1159
      %v1391 = vpack.c.b16 %v1171, %v1160
      %v1392 = vpack.c.b16 %v1172, %v1161
      %v1393 = vpack.c.b16 %v1184, %v1173
      %v1394 = vpack.c.b16 %v1185, %v1174
      %v1395 = vpack.c.b16 %v1186, %v1175
      %v1396 = vpack.c.b16 %v1187, %v1176
      %v1397 = vpack.c.b16 %v1188, %v1177
      %v1398 = vpack.c.b16 %v1189, %v1178
      %v1399 = vpack.c.b16 %v1190, %v1179
      %v1400 = vpack.c.b16 %v1191, %v1180
      %v1401 = vpack.c.b16 %v1192, %v1181
      %v1402 = vpack.c.b16 %v1193, %v1182
      %v1403 = vpack.c.b16 %v1194, %v1183
      %v1404 = vpack.c.b16 %v1206, %v1195
      %v1405 = vpack.c.b16 %v1207, %v1196
      %v1406 = vpack.c.b16 %v1208, %v1197
      %v1407 = vpack.c.b16 %v1209, %v1198
      %v1408 = vpack.c.b16 %v1210, %v1199
      %v1409 = vpack.c.b16 %v1211, %v1200
      %v1410 = vpack.c.b16 %v1212, %v1201
      %v1411 = vpack.c.b16 %v1213, %v1202
      %v1412 = vpack.c.b16 %v1214, %v1203
      %v1413 = vpack.c.b16 %v1215, %v1204
      %v1414 = vpack.c.b16 %v1216, %v1205
      %v1415 = vpack.c.b16 %v1228, %v1217
      %v1416 = vpack.c.b16 %v1229, %v1218
      %v1417 = vpack.c.b16 %v1230, %v1219
      %v1418 = vpack.c.b16 %v1231, %v1220
      %v1419 = vpack.c.b16 %v1232, %v1221
      %v1420 = vpack.c.b16 %v1233, %v1222
      %v1421 = vpack.c.b16 %v1234, %v1223
      %v1422 = vpack.c.b16 %v1235, %v1224
      %v1423 = vpack.c.b16 %v1236, %v1225
      %v1424 = vpack.c.b16 %v1237, %v1226
      %v1425 = vpack.c.b16 %v1238, %v1227
      %v1426 = vpack.c.b16 %v1250, %v1239
      %v1427 = vpack.c.b16 %v1251, %v1240
      %v1428 = vpack.c.b16 %v1252, %v1241
      %v1429 = vpack.c.b16 %v1253, %v1242
      %v1430 = vpack.c.b16 %v1254, %v1243
      %v1431 = vpack.c.b16 %v1255, %v1244
      %v1432 = vpack.c.b16 %v1256, %v1245
      %v1433 = vpack.c.b16 %v1257, %v1246
      %v1434 = vpack.c.b16 %v1258, %v1247
      %v1435 = vpack.c.b16 %v1259, %v1248
      %v1436 = vpack.c.b16 %v1260, %v1249
      %v1437 = vpack.c.b16 %v1272, %v1261
      %v1438 = vpack.c.b16 %v1273, %v1262
      %v1439 = vpack.c.b16 %v1274, %v1263
      %v1440 = vpack.c.b16 %v1275, %v1264
      %v1441 = vpack.c.b16 %v1276, %v1265
      %v1442 = vpack.c.b16 %v1277, %v1266
      %v1443 = vpack.c.b16 %v1278, %v1267
      %v1444 = vpack.c.b16 %v1279, %v1268
      %v1445 = vpack.c.b16 %v1280, %v1269
      %v1446 = vpack.c.b16 %v1281, %v1270
      %v1447 = vpack.c.b16 %v1282, %v1271
      %v1448 = vpack.c.b16 %v1294, %v1283
      %v1449 = vpack.c.b16 %v1295, %v1284
      %v1450 = vpack.c.b16 %v1296, %v1285
      %v1451 = vpack.c.b16 %v1297, %v1286
      %v1452 = vpack.c.b16 %v1298, %v1287
      %v1453 = vpack.c.b16 %v1299, %v1288
      %v1454 = vpack.c.b16 %v1300, %v1289
      %v1455 = vpack.c.b16 %v1301, %v1290
      %v1456 = vpack.c.b16 %v1302, %v1291
      %v1457 = vpack.c.b16 %v1303, %v1292
      %v1458 = vpack.c.b16 %v1304, %v1293
      %v1459 = vpack.c.b16 %v1305, %v1305
      %v1460 = vpack.c.b16 %v1306, %v1306
      %v1461 = vpack.c.b16 %v1307, %v1307
      %v1462 = vpack.c.b16 %v1308, %v1308
      %v1463 = vpack.c.b16 %v1309, %v1309
      %v1464 = vpack.c.b16 %v1310, %v1310
      %v1465 = vpack.c.b16 %v1311, %v1311
      %v1466 = vpack.c.b16 %v1312, %v1312
      %v1467 = vpack.c.b16 %v1313, %v1313
      %v1468 = vpack.c.b16 %v1314, %v1314
      %v1469 = vpack.c.b16 %v1315, %v1315
      %v1782 = vunpack.c.l.b16 %v685
      %v1783 = vunpack.c.l.b16 %v686
      %v1784 = vunpack.c.l.b16 %v687
      %v1785 = vunpack.c.l.b16 %v688
      %v1786 = vunpack.c.l.b16 %v689
      %v1787 = vunpack.c.l.b16 %v690
      %v1788 = vunpack.c.l.b16 %v691
      %v1789 = vunpack.c.l.b16 %v692
      %v1790 = vunpack.c.l.b16 %v693
      %v1791 = vunpack.c.l.b16 %v694
      %v1792 = vunpack.c.l.b16 %v695
      %v1793 = vunpack.c.l.b16 %v696
      %v1794 = vunpack.c.l.b16 %v697
      %v1795 = vunpack.c.l.b16 %v698
      %v1796 = vunpack.c.l.b16 %v699
      %v1797 = vunpack.c.l.b16 %v700
      %v1798 = vunpack.c.l.b16 %v701
      %v1799 = vunpack.c.l.b16 %v702
      %v1800 = vunpack.c.l.b16 %v703
      %v1801 = vunpack.c.l.b16 %v704
      %v1802 = vunpack.c.l.b16 %v705
      %v1803 = vunpack.c.l.b16 %v706
      %v1804 = vunpack.c.l.b16 %v707
      %v1805 = vunpack.c.l.b16 %v708
      %v1806 = vunpack.c.l.b16 %v709
      %v1807 = vunpack.c.l.b16 %v710
      %v1808 = vunpack.c.l.b16 %v711
      %v1809 = vunpack.c.l.b16 %v712
      %v1810 = vunpack.c.l.b16 %v713
      %v1811 = vunpack.c.l.b16 %v714
      %v1812 = vunpack.c.l.b16 %v715
      %v1813 = vunpack.c.l.b16 %v716
      %v1814 = vunpack.c.l.b16 %v717
      %v1815 = vunpack.c.l.b16 %v718
      %v1816 = vunpack.c.l.b16 %v719
      %v1817 = vunpack.c.l.b16 %v720
      %v1818 = vunpack.c.l.b16 %v721
      %v1819 = vunpack.c.l.b16 %v722
      %v1820 = vunpack.c.l.b16 %v723
      %v1821 = vunpack.c.l.b16 %v724
      %v1822 = vunpack.c.l.b16 %v725
      %v1823 = vunpack.c.l.b16 %v726
      %v1824 = vunpack.c.l.b16 %v727
      %v1825 = vunpack.c.l.b16 %v728
      %v1826 = vunpack.c.l.b16 %v729
      %v1827 = vunpack.c.l.b16 %v730
      %v1828 = vunpack.c.l.b16 %v731
      %v1829 = vunpack.c.l.b16 %v732
      %v1830 = vunpack.c.l.b16 %v733
      %v1831 = vunpack.c.l.b16 %v734
      %v1832 = vunpack.c.l.b16 %v735
      %v1833 = vunpack.c.l.b16 %v736
      %v1834 = vunpack.c.l.b16 %v737
      %v1835 = vunpack.c.l.b16 %v738
      %v1836 = vunpack.c.l.b16 %v739
      %v1837 = vunpack.c.l.b16 %v740
      %v1838 = vunpack.c.l.b16 %v741
      %v1839 = vunpack.c.l.b16 %v742
      %v1840 = vunpack.c.l.b16 %v743
      %v1841 = vunpack.c.l.b16 %v744
      %v1842 = vunpack.c.l.b16 %v745
      %v1843 = vunpack.c.l.b16 %v746
      %v1844 = vunpack.c.l.b16 %v747
      %v1845 = vunpack.c.l.b16 %v748
      %v1846 = vunpack.c.l.b16 %v749
      %v1847 = vunpack.c.l.b16 %v750
      %v1848 = vunpack.c.l.b16 %v751
      %v1849 = vunpack.c.l.b16 %v752
      %v1850 = vunpack.c.l.b16 %v753
      %v1851 = vunpack.c.l.b16 %v754
      %v1852 = vunpack.c.l.b16 %v755
      %v1853 = vunpack.c.l.b16 %v756
      %v1854 = vunpack.c.l.b16 %v757
      %v1855 = vunpack.c.l.b16 %v758
      %v1856 = vunpack.c.l.b16 %v759
      %v1857 = vunpack.c.l.b16 %v760
      %v1858 = vunpack.c.l.b16 %v761
      %v1859 = vunpack.c.l.b16 %v762
      %v1860 = vunpack.c.l.b16 %v763
      %v1861 = vunpack.c.l.b16 %v764
      %v1862 = vunpack.c.l.b16 %v765
      %v1863 = vunpack.c.l.b16 %v766
      %v1864 = vunpack.c.l.b16 %v767
      %v1865 = vunpack.c.l.b16 %v768
      %v1866 = vunpack.c.l.b16 %v769
      %v1867 = vunpack.c.l.b16 %v770
      %v1868 = vunpack.c.l.b16 %v771
      %v1869 = vunpack.c.l.b16 %v772
      %v1870 = vunpack.c.l.b16 %v773
      %v1871 = vunpack.c.l.b16 %v774
      %v1872 = vunpack.c.l.b16 %v775
      %v1873 = vunpack.c.l.b16 %v776
      %v1874 = vunpack.c.l.b16 %v777
      %v1875 = vunpack.c.l.b16 %v778
      %v1876 = vunpack.c.l.b16 %v779
      %v1877 = vunpack.c.l.b16 %v780
      %v1878 = vunpack.c.l.b16 %v781
      %v1879 = vunpack.c.l.b16 %v782
      %v1880 = vunpack.c.l.b16 %v783
      %v1881 = vunpack.c.l.b16 %v784
      %v1882 = vunpack.c.l.b16 %v785
      %v1883 = vunpack.c.l.b16 %v786
      %v1884 = vunpack.c.l.b16 %v787
      %v1885 = vunpack.c.l.b16 %v788
      %v1886 = vunpack.c.l.b16 %v789
      %v1887 = vunpack.c.l.b16 %v790
      %v1888 = vunpack.c.l.b16 %v791
      %v1889 = vunpack.c.l.b16 %v792
      %v1890 = vunpack.c.l.b16 %v793
      %v1891 = vunpack.c.l.b16 %v794
      %v1892 = vunpack.c.l.b16 %v795
      %v1893 = vunpack.c.l.b16 %v796
      %v1894 = vunpack.c.l.b16 %v797
      %v1895 = vunpack.c.l.b16 %v798
      %v1896 = vunpack.c.l.b16 %v799
      %v1897 = vunpack.c.l.b16 %v800
      %v1898 = vunpack.c.l.b16 %v801
      %v1899 = vunpack.c.l.b16 %v802
      %v1900 = vunpack.c.l.b16 %v803
      %v1901 = vunpack.c.l.b16 %v804
      %v1902 = vunpack.c.l.b16 %v805
      %v1903 = vunpack.c.l.b16 %v806
      %v1904 = vunpack.c.l.b16 %v807
      %v1905 = vunpack.c.l.b16 %v808
      %v1906 = vunpack.c.l.b16 %v809
      %v1907 = vunpack.c.l.b16 %v810
      %v1908 = vunpack.c.l.b16 %v811
      %v1909 = vunpack.c.l.b16 %v812
      %v1910 = vunpack.c.l.b16 %v813
      %v1911 = vunpack.c.l.b16 %v814
      %v1912 = vunpack.c.l.b16 %v815
      %v1913 = vunpack.c.l.b16 %v816
      %v1914 = vunpack.c.l.b16 %v817
      %v1915 = vunpack.c.l.b16 %v818
      %v1916 = vunpack.c.l.b16 %v819
      %v1917 = vunpack.c.l.b16 %v820
      %v1918 = vunpack.c.l.b16 %v821
      %v1919 = vunpack.c.l.b16 %v822
      %v1920 = vunpack.c.l.b16 %v823
      %v1921 = vunpack.c.l.b16 %v824
      %v1922 = vunpack.c.l.b16 %v825
      %v1923 = vunpack.c.l.b16 %v826
      %v1924 = vunpack.c.l.b16 %v827
      %v1925 = vunpack.c.l.b16 %v828
      %v1926 = vunpack.c.l.b16 %v829
      %v1927 = vunpack.c.l.b16 %v830
      %v1928 = vunpack.c.l.b16 %v831
      %v1929 = vunpack.c.l.b16 %v832
      %v1930 = vunpack.c.l.b16 %v833
      %v1931 = vunpack.c.l.b16 %v834
      %v1932 = vunpack.c.l.b16 %v835
      %v1933 = vunpack.c.l.b16 %v836
      %v1934 = vunpack.c.l.b16 %v837
      %v1935 = vunpack.c.l.b16 %v838
      %v1936 = vunpack.c.l.b16 %v839
      %v1937 = vunpack.c.l.b16 %v840
      %v1938 = vunpack.c.l.b16 %v841
      %v1939 = vunpack.c.l.b16 %v842
      %v1940 = vunpack.c.l.b16 %v843
      %v1941 = vunpack.c.l.b16 %v844
      %v1942 = vunpack.c.l.b16 %v845
      %v1943 = vunpack.c.l.b16 %v846
      %v1944 = vunpack.c.l.b16 %v847
      %v1945 = vunpack.c.l.b16 %v848
      %v1946 = vunpack.c.l.b16 %v849
      %v1947 = vunpack.c.l.b16 %v850
      %v1948 = vunpack.c.l.b16 %v851
      %v1949 = vunpack.c.l.b16 %v852
      %v1950 = vunpack.c.l.b16 %v853
      %v1951 = vunpack.c.l.b16 %v854
      %v1952 = vunpack.c.l.b16 %v855
      %v1953 = vunpack.c.l.b16 %v856
      %v1954 = vpack.c.b16 %v1783, %v1782
      %v1955 = vpack.c.b16 %v1785, %v1784
      %v1956 = vpack.c.b16 %v1787, %v1786
      %v1957 = vpack.c.b16 %v1789, %v1788
      %v1958 = vpack.c.b16 %v1791, %v1790
      %v1959 = vpack.c.b16 %v1793, %v1792
      %v1960 = vpack.c.b16 %v1795, %v1794
      %v1961 = vpack.c.b16 %v1797, %v1796
      %v1962 = vpack.c.b16 %v1799, %v1798
      %v1963 = vpack.c.b16 %v1801, %v1800
      %v1964 = vpack.c.b16 %v1803, %v1802
      %v1965 = vpack.c.b16 %v1805, %v1804
      %v1966 = vpack.c.b16 %v1807, %v1806
      %v1967 = vpack.c.b16 %v1809, %v1808
      %v1968 = vpack.c.b16 %v1811, %v1810
      %v1969 = vpack.c.b16 %v1813, %v1812
      %v1970 = vpack.c.b16 %v1815, %v1814
      %v1971 = vpack.c.b16 %v1817, %v1816
      %v1972 = vpack.c.b16 %v1819, %v1818
      %v1973 = vpack.c.b16 %v1821, %v1820
      %v1974 = vpack.c.b16 %v1823, %v1822
      %v1975 = vpack.c.b16 %v1825, %v1824
      %v1976 = vpack.c.b16 %v1827, %v1826
      %v1977 = vpack.c.b16 %v1829, %v1828
      %v1978 = vpack.c.b16 %v1831, %v1830
      %v1979 = vpack.c.b16 %v1833, %v1832
      %v1980 = vpack.c.b16 %v1835, %v1834
      %v1981 = vpack.c.b16 %v1837, %v1836
      %v1982 = vpack.c.b16 %v1839, %v1838
      %v1983 = vpack.c.b16 %v1841, %v1840
      %v1984 = vpack.c.b16 %v1843, %v1842
      %v1985 = vpack.c.b16 %v1845, %v1844
      %v1986 = vpack.c.b16 %v1847, %v1846
      %v1987 = vpack.c.b16 %v1849, %v1848
      %v1988 = vpack.c.b16 %v1851, %v1850
      %v1989 = vpack.c.b16 %v1853, %v1852
      %v1990 = vpack.c.b16 %v1855, %v1854
      %v1991 = vpack.c.b16 %v1857, %v1856
      %v1992 = vpack.c.b16 %v1859, %v1858
      %v1993 = vpack.c.b16 %v1861, %v1860
      %v1994 = vpack.c.b16 %v1863, %v1862
      %v1995 = vpack.c.b16 %v1865, %v1864
      %v1996 = vpack.c.b16 %v1867, %v1866
      %v1997 = vpack.c.b16 %v1869, %v1868
      %v1998 = vpack.c.b16 %v1871, %v1870
      %v1999 = vpack.c.b16 %v1873, %v1872
      %v2000 = vpack.c.b16 %v1875, %v1874
      %v2001 = vpack.c.b16 %v1877, %v1876
      %v2002 = vpack.c.b16 %v1879, %v1878
      %v2003 = vpack.c.b16 %v1881, %v1880
      %v2004 = vpack.c.b16 %v1883, %v1882
      %v2005 = vpack.c.b16 %v1885, %v1884
      %v2006 = vpack.c.b16 %v1887, %v1886
      %v2007 = vpack.c.b16 %v1889, %v1888
      %v2008 = vpack.c.b16 %v1891, %v1890
      %v2009 = vpack.c.b16 %v1893, %v1892
      %v2010 = vpack.c.b16 %v1895, %v1894
      %v2011 = vpack.c.b16 %v1897, %v1896
      %v2012 = vpack.c.b16 %v1899, %v1898
      %v2013 = vpack.c.b16 %v1901, %v1900
      %v2014 = vpack.c.b16 %v1903, %v1902
      %v2015 = vpack.c.b16 %v1905, %v1904
      %v2016 = vpack.c.b16 %v1907, %v1906
      %v2017 = vpack.c.b16 %v1909, %v1908
      %v2018 = vpack.c.b16 %v1911, %v1910
      %v2019 = vpack.c.b16 %v1913, %v1912
      %v2020 = vpack.c.b16 %v1915, %v1914
      %v2021 = vpack.c.b16 %v1917, %v1916
      %v2022 = vpack.c.b16 %v1919, %v1918
      %v2023 = vpack.c.b16 %v1921, %v1920
      %v2024 = vpack.c.b16 %v1923, %v1922
      %v2025 = vpack.c.b16 %v1925, %v1924
      %v2026 = vpack.c.b16 %v1927, %v1926
      %v2027 = vpack.c.b16 %v1929, %v1928
      %v2028 = vpack.c.b16 %v1931, %v1930
      %v2029 = vpack.c.b16 %v1933, %v1932
      %v2030 = vpack.c.b16 %v1935, %v1934
      %v2031 = vpack.c.b16 %v1937, %v1936
      %v2032 = vpack.c.b16 %v1939, %v1938
      %v2033 = vpack.c.b16 %v1941, %v1940
      %v2034 = vpack.c.b16 %v1943, %v1942
      %v2035 = vpack.c.b16 %v1945, %v1944
      %v2036 = vpack.c.b16 %v1947, %v1946
      %v2037 = vpack.c.b16 %v1949, %v1948
      %v2038 = vpack.c.b16 %v1951, %v1950
      %v2039 = vpack.c.b16 %v1953, %v1952
      %vm2125 = vcmask 752640
      %v2127 = vsel %vm2125, %v1326, 0
      %v2130 = vsel %vm2125, %v1337, 0
      %v2133 = vsel %vm2125, %v1348, 0
      %v2136 = vsel %vm2125, %v1359, 0
      %v2139 = vsel %vm2125, %v1370, 0
      %v2142 = vsel %vm2125, %v1381, 0
      %v2145 = vsel %vm2125, %v1392, 0
      %v2148 = vsel %vm2125, %v1403, 0
      %v2151 = vsel %vm2125, %v1414, 0
      %v2154 = vsel %vm2125, %v1425, 0
      %v2157 = vsel %vm2125, %v1436, 0
      %v2160 = vsel %vm2125, %v1447, 0
      %v2163 = vsel %vm2125, %v1458, 0
      %v2166 = vsel %vm2125, %v1469, 0
      %vm2168 = vcmask 1045504
      %v2170 = vsel %vm2168, %v2039, 0
      %2172 = vmatpush.bf16.msra.mxu0 %v1961
      %2173 = vmatpush.bf16.msra.mxu0 %v1960
      %2174 = vmatpush.bf16.msra.mxu0 %v1959
      %2175 = vmatpush.bf16.msra.mxu0 %v1958
      %2176 = vmatpush.bf16.msra.mxu0 %v1957
      %2177 = vmatpush.bf16.msra.mxu0 %v1956
      %2178 = vmatpush.bf16.msra.mxu0 %v1955
      %2179 = vmatpush.bf16.msra.mxu0 %v1954
      %2180 = vmatmul.bf16.gmra.mxu0 %v1316
      %v2181 = vpop.f32.mrf.mxu0
      %v2182 = vadd.f32 0.0, %v2181
      %v2183 = vpop.f32.mrf.mxu0
      %v2184 = vadd.f32 0.0, %v2183
      %2185 = vmatmul.bf16.gmra.mxu0 %v1327
      %v2186 = vpop.f32.mrf.mxu0
      %v2187 = vadd.f32 0.0, %v2186
      %v2188 = vpop.f32.mrf.mxu0
      %v2189 = vadd.f32 0.0, %v2188
      %2190 = vmatmul.bf16.gmra.mxu0 %v1338
      %v2191 = vpop.f32.mrf.mxu0
      %v2192 = vadd.f32 0.0, %v2191
      %v2193 = vpop.f32.mrf.mxu0
      %v2194 = vadd.f32 0.0, %v2193
      %2195 = vmatmul.bf16.gmra.mxu0 %v1349
      %v2196 = vpop.f32.mrf.mxu0
      %v2197 = vadd.f32 0.0, %v2196
      %v2198 = vpop.f32.mrf.mxu0
      %v2199 = vadd.f32 0.0, %v2198
      %2200 = vmatmul.bf16.gmra.mxu0 %v1360
      %v2201 = vpop.f32.mrf.mxu0
      %v2202 = vadd.f32 0.0, %v2201
      %v2203 = vpop.f32.mrf.mxu0
      %v2204 = vadd.f32 0.0, %v2203
      %2205 = vmatmul.bf16.gmra.mxu0 %v1371
      %v2206 = vpop.f32.mrf.mxu0
      %v2207 = vadd.f32 0.0, %v2206
      %v2208 = vpop.f32.mrf.mxu0
      %v2209 = vadd.f32 0.0, %v2208
      %2210 = vmatmul.bf16.gmra.mxu0 %v1382
      %v2211 = vpop.f32.mrf.mxu0
      %v2212 = vadd.f32 0.0, %v2211
      %v2213 = vpop.f32.mrf.mxu0
      %v2214 = vadd.f32 0.0, %v2213
      %2215 = vmatmul.bf16.gmra.mxu0 %v1393
      %v2216 = vpop.f32.mrf.mxu0
      %v2217 = vadd.f32 0.0, %v2216
      %v2218 = vpop.f32.mrf.mxu0
      %v2219 = vadd.f32 0.0, %v2218
      %2220 = vmatmul.bf16.gmra.mxu0 %v1404
      %v2221 = vpop.f32.mrf.mxu0
      %v2222 = vadd.f32 0.0, %v2221
      %v2223 = vpop.f32.mrf.mxu0
      %v2224 = vadd.f32 0.0, %v2223
      %2225 = vmatmul.bf16.gmra.mxu0 %v1415
      %v2226 = vpop.f32.mrf.mxu0
      %v2227 = vadd.f32 0.0, %v2226
      %v2228 = vpop.f32.mrf.mxu0
      %v2229 = vadd.f32 0.0, %v2228
      %2230 = vmatmul.bf16.gmra.mxu0 %v1426
      %v2231 = vpop.f32.mrf.mxu0
      %v2232 = vadd.f32 0.0, %v2231
      %v2233 = vpop.f32.mrf.mxu0
      %v2234 = vadd.f32 0.0, %v2233
      %2235 = vmatmul.bf16.gmra.mxu0 %v1437
      %v2236 = vpop.f32.mrf.mxu0
      %v2237 = vadd.f32 0.0, %v2236
      %v2238 = vpop.f32.mrf.mxu0
      %v2239 = vadd.f32 0.0, %v2238
      %2240 = vmatmul.bf16.gmra.mxu0 %v1448
      %v2241 = vpop.f32.mrf.mxu0
      %v2242 = vadd.f32 0.0, %v2241
      %v2243 = vpop.f32.mrf.mxu0
      %v2244 = vadd.f32 0.0, %v2243
      %2245 = vmatmul.bf16.gmra.mxu0 %v1459
      %v2246 = vpop.f32.mrf.mxu0
      %v2247 = vadd.f32 0.0, %v2246
      %v2248 = vpop.f32.mrf.mxu0
      %2249 = vdwg.mxu0
      %2250 = vmatpush.bf16.msra.mxu0 %v1969
      %2251 = vmatpush.bf16.msra.mxu0 %v1968
      %2252 = vmatpush.bf16.msra.mxu0 %v1967
      %2253 = vmatpush.bf16.msra.mxu0 %v1966
      %2254 = vmatpush.bf16.msra.mxu0 %v1965
      %2255 = vmatpush.bf16.msra.mxu0 %v1964
      %2256 = vmatpush.bf16.msra.mxu0 %v1963
      %2257 = vmatpush.bf16.msra.mxu0 %v1962
      %2258 = vmatmul.bf16.gmra.mxu0 %v1317
      %v2259 = vpop.f32.mrf.mxu0
      %v2260 = vadd.f32 %v2182, %v2259
      %v2261 = vpop.f32.mrf.mxu0
      %v2262 = vadd.f32 %v2184, %v2261
      %2263 = vmatmul.bf16.gmra.mxu0 %v1328
      %v2264 = vpop.f32.mrf.mxu0
      %v2265 = vadd.f32 %v2187, %v2264
      %v2266 = vpop.f32.mrf.mxu0
      %v2267 = vadd.f32 %v2189, %v2266
      %2268 = vmatmul.bf16.gmra.mxu0 %v1339
      %v2269 = vpop.f32.mrf.mxu0
      %v2270 = vadd.f32 %v2192, %v2269
      %v2271 = vpop.f32.mrf.mxu0
      %v2272 = vadd.f32 %v2194, %v2271
      %2273 = vmatmul.bf16.gmra.mxu0 %v1350
      %v2274 = vpop.f32.mrf.mxu0
      %v2275 = vadd.f32 %v2197, %v2274
      %v2276 = vpop.f32.mrf.mxu0
      %v2277 = vadd.f32 %v2199, %v2276
      %2278 = vmatmul.bf16.gmra.mxu0 %v1361
      %v2279 = vpop.f32.mrf.mxu0
      %v2280 = vadd.f32 %v2202, %v2279
      %v2281 = vpop.f32.mrf.mxu0
      %v2282 = vadd.f32 %v2204, %v2281
      %2283 = vmatmul.bf16.gmra.mxu0 %v1372
      %v2284 = vpop.f32.mrf.mxu0
      %v2285 = vadd.f32 %v2207, %v2284
      %v2286 = vpop.f32.mrf.mxu0
      %v2287 = vadd.f32 %v2209, %v2286
      %2288 = vmatmul.bf16.gmra.mxu0 %v1383
      %v2289 = vpop.f32.mrf.mxu0
      %v2290 = vadd.f32 %v2212, %v2289
      %v2291 = vpop.f32.mrf.mxu0
      %v2292 = vadd.f32 %v2214, %v2291
      %2293 = vmatmul.bf16.gmra.mxu0 %v1394
      %v2294 = vpop.f32.mrf.mxu0
      %v2295 = vadd.f32 %v2217, %v2294
      %v2296 = vpop.f32.mrf.mxu0
      %v2297 = vadd.f32 %v2219, %v2296
      %2298 = vmatmul.bf16.gmra.mxu0 %v1405
      %v2299 = vpop.f32.mrf.mxu0
      %v2300 = vadd.f32 %v2222, %v2299
      %v2301 = vpop.f32.mrf.mxu0
      %v2302 = vadd.f32 %v2224, %v2301
      %2303 = vmatmul.bf16.gmra.mxu0 %v1416
      %v2304 = vpop.f32.mrf.mxu0
      %v2305 = vadd.f32 %v2227, %v2304
      %v2306 = vpop.f32.mrf.mxu0
      %v2307 = vadd.f32 %v2229, %v2306
      %2308 = vmatmul.bf16.gmra.mxu0 %v1427
      %v2309 = vpop.f32.mrf.mxu0
      %v2310 = vadd.f32 %v2232, %v2309
      %v2311 = vpop.f32.mrf.mxu0
      %v2312 = vadd.f32 %v2234, %v2311
      %2313 = vmatmul.bf16.gmra.mxu0 %v1438
      %v2314 = vpop.f32.mrf.mxu0
      %v2315 = vadd.f32 %v2237, %v2314
      %v2316 = vpop.f32.mrf.mxu0
      %v2317 = vadd.f32 %v2239, %v2316
      %2318 = vmatmul.bf16.gmra.mxu0 %v1449
      %v2319 = vpop.f32.mrf.mxu0
      %v2320 = vadd.f32 %v2242, %v2319
      %v2321 = vpop.f32.mrf.mxu0
      %v2322 = vadd.f32 %v2244, %v2321
      %2323 = vmatmul.bf16.gmra.mxu0 %v1460
      %v2324 = vpop.f32.mrf.mxu0
      %v2325 = vadd.f32 %v2247, %v2324
      %v2326 = vpop.f32.mrf.mxu0
      %2327 = vdwg.mxu0
      %2328 = vmatpush.bf16.msra.mxu0 %v1977
      %2329 = vmatpush.bf16.msra.mxu0 %v1976
      %2330 = vmatpush.bf16.msra.mxu0 %v1975
      %2331 = vmatpush.bf16.msra.mxu0 %v1974
      %2332 = vmatpush.bf16.msra.mxu0 %v1973
      %2333 = vmatpush.bf16.msra.mxu0 %v1972
      %2334 = vmatpush.bf16.msra.mxu0 %v1971
      %2335 = vmatpush.bf16.msra.mxu0 %v1970
      %2336 = vmatmul.bf16.gmra.mxu0 %v1318
      %v2337 = vpop.f32.mrf.mxu0
      %v2338 = vadd.f32 %v2260, %v2337
      %v2339 = vpop.f32.mrf.mxu0
      %v2340 = vadd.f32 %v2262, %v2339
      %2341 = vmatmul.bf16.gmra.mxu0 %v1329
      %v2342 = vpop.f32.mrf.mxu0
      %v2343 = vadd.f32 %v2265, %v2342
      %v2344 = vpop.f32.mrf.mxu0
      %v2345 = vadd.f32 %v2267, %v2344
      %2346 = vmatmul.bf16.gmra.mxu0 %v1340
      %v2347 = vpop.f32.mrf.mxu0
      %v2348 = vadd.f32 %v2270, %v2347
      %v2349 = vpop.f32.mrf.mxu0
      %v2350 = vadd.f32 %v2272, %v2349
      %2351 = vmatmul.bf16.gmra.mxu0 %v1351
      %v2352 = vpop.f32.mrf.mxu0
      %v2353 = vadd.f32 %v2275, %v2352
      %v2354 = vpop.f32.mrf.mxu0
      %v2355 = vadd.f32 %v2277, %v2354
      %2356 = vmatmul.bf16.gmra.mxu0 %v1362
      %v2357 = vpop.f32.mrf.mxu0
      %v2358 = vadd.f32 %v2280, %v2357
      %v2359 = vpop.f32.mrf.mxu0
      %v2360 = vadd.f32 %v2282, %v2359
      %2361 = vmatmul.bf16.gmra.mxu0 %v1373
      %v2362 = vpop.f32.mrf.mxu0
      %v2363 = vadd.f32 %v2285, %v2362
      %v2364 = vpop.f32.mrf.mxu0
      %v2365 = vadd.f32 %v2287, %v2364
      %2366 = vmatmul.bf16.gmra.mxu0 %v1384
      %v2367 = vpop.f32.mrf.mxu0
      %v2368 = vadd.f32 %v2290, %v2367
      %v2369 = vpop.f32.mrf.mxu0
      %v2370 = vadd.f32 %v2292, %v2369
      %2371 = vmatmul.bf16.gmra.mxu0 %v1395
      %v2372 = vpop.f32.mrf.mxu0
      %v2373 = vadd.f32 %v2295, %v2372
      %v2374 = vpop.f32.mrf.mxu0
      %v2375 = vadd.f32 %v2297, %v2374
      %2376 = vmatmul.bf16.gmra.mxu0 %v1406
      %v2377 = vpop.f32.mrf.mxu0
      %v2378 = vadd.f32 %v2300, %v2377
      %v2379 = vpop.f32.mrf.mxu0
      %v2380 = vadd.f32 %v2302, %v2379
      %2381 = vmatmul.bf16.gmra.mxu0 %v1417
      %v2382 = vpop.f32.mrf.mxu0
      %v2383 = vadd.f32 %v2305, %v2382
      %v2384 = vpop.f32.mrf.mxu0
      %v2385 = vadd.f32 %v2307, %v2384
      %2386 = vmatmul.bf16.gmra.mxu0 %v1428
      %v2387 = vpop.f32.mrf.mxu0
      %v2388 = vadd.f32 %v2310, %v2387
      %v2389 = vpop.f32.mrf.mxu0
      %v2390 = vadd.f32 %v2312, %v2389
      %2391 = vmatmul.bf16.gmra.mxu0 %v1439
      %v2392 = vpop.f32.mrf.mxu0
      %v2393 = vadd.f32 %v2315, %v2392
      %v2394 = vpop.f32.mrf.mxu0
      %v2395 = vadd.f32 %v2317, %v2394
      %2396 = vmatmul.bf16.gmra.mxu0 %v1450
      %v2397 = vpop.f32.mrf.mxu0
      %v2398 = vadd.f32 %v2320, %v2397
      %v2399 = vpop.f32.mrf.mxu0
      %v2400 = vadd.f32 %v2322, %v2399
      %2401 = vmatmul.bf16.gmra.mxu0 %v1461
      %v2402 = vpop.f32.mrf.mxu0
      %v2403 = vadd.f32 %v2325, %v2402
      %v2404 = vpop.f32.mrf.mxu0
      %2405 = vdwg.mxu0
      %2406 = vmatpush.bf16.msra.mxu0 %v1985
      %2407 = vmatpush.bf16.msra.mxu0 %v1984
      %2408 = vmatpush.bf16.msra.mxu0 %v1983
      %2409 = vmatpush.bf16.msra.mxu0 %v1982
      %2410 = vmatpush.bf16.msra.mxu0 %v1981
      %2411 = vmatpush.bf16.msra.mxu0 %v1980
      %2412 = vmatpush.bf16.msra.mxu0 %v1979
      %2413 = vmatpush.bf16.msra.mxu0 %v1978
      %2414 = vmatmul.bf16.gmra.mxu0 %v1319
      %v2415 = vpop.f32.mrf.mxu0
      %v2416 = vadd.f32 %v2338, %v2415
      %v2417 = vpop.f32.mrf.mxu0
      %v2418 = vadd.f32 %v2340, %v2417
      %2419 = vmatmul.bf16.gmra.mxu0 %v1330
      %v2420 = vpop.f32.mrf.mxu0
      %v2421 = vadd.f32 %v2343, %v2420
      %v2422 = vpop.f32.mrf.mxu0
      %v2423 = vadd.f32 %v2345, %v2422
      %2424 = vmatmul.bf16.gmra.mxu0 %v1341
      %v2425 = vpop.f32.mrf.mxu0
      %v2426 = vadd.f32 %v2348, %v2425
      %v2427 = vpop.f32.mrf.mxu0
      %v2428 = vadd.f32 %v2350, %v2427
      %2429 = vmatmul.bf16.gmra.mxu0 %v1352
      %v2430 = vpop.f32.mrf.mxu0
      %v2431 = vadd.f32 %v2353, %v2430
      %v2432 = vpop.f32.mrf.mxu0
      %v2433 = vadd.f32 %v2355, %v2432
      %2434 = vmatmul.bf16.gmra.mxu0 %v1363
      %v2435 = vpop.f32.mrf.mxu0
      %v2436 = vadd.f32 %v2358, %v2435
      %v2437 = vpop.f32.mrf.mxu0
      %v2438 = vadd.f32 %v2360, %v2437
      %2439 = vmatmul.bf16.gmra.mxu0 %v1374
      %v2440 = vpop.f32.mrf.mxu0
      %v2441 = vadd.f32 %v2363, %v2440
      %v2442 = vpop.f32.mrf.mxu0
      %v2443 = vadd.f32 %v2365, %v2442
      %2444 = vmatmul.bf16.gmra.mxu0 %v1385
      %v2445 = vpop.f32.mrf.mxu0
      %v2446 = vadd.f32 %v2368, %v2445
      %v2447 = vpop.f32.mrf.mxu0
      %v2448 = vadd.f32 %v2370, %v2447
      %2449 = vmatmul.bf16.gmra.mxu0 %v1396
      %v2450 = vpop.f32.mrf.mxu0
      %v2451 = vadd.f32 %v2373, %v2450
      %v2452 = vpop.f32.mrf.mxu0
      %v2453 = vadd.f32 %v2375, %v2452
      %2454 = vmatmul.bf16.gmra.mxu0 %v1407
      %v2455 = vpop.f32.mrf.mxu0
      %v2456 = vadd.f32 %v2378, %v2455
      %v2457 = vpop.f32.mrf.mxu0
      %v2458 = vadd.f32 %v2380, %v2457
      %2459 = vmatmul.bf16.gmra.mxu0 %v1418
      %v2460 = vpop.f32.mrf.mxu0
      %v2461 = vadd.f32 %v2383, %v2460
      %v2462 = vpop.f32.mrf.mxu0
      %v2463 = vadd.f32 %v2385, %v2462
      %2464 = vmatmul.bf16.gmra.mxu0 %v1429
      %v2465 = vpop.f32.mrf.mxu0
      %v2466 = vadd.f32 %v2388, %v2465
      %v2467 = vpop.f32.mrf.mxu0
      %v2468 = vadd.f32 %v2390, %v2467
      %2469 = vmatmul.bf16.gmra.mxu0 %v1440
      %v2470 = vpop.f32.mrf.mxu0
      %v2471 = vadd.f32 %v2393, %v2470
      %v2472 = vpop.f32.mrf.mxu0
      %v2473 = vadd.f32 %v2395, %v2472
      %2474 = vmatmul.bf16.gmra.mxu0 %v1451
      %v2475 = vpop.f32.mrf.mxu0
      %v2476 = vadd.f32 %v2398, %v2475
      %v2477 = vpop.f32.mrf.mxu0
      %v2478 = vadd.f32 %v2400, %v2477
      %2479 = vmatmul.bf16.gmra.mxu0 %v1462
      %v2480 = vpop.f32.mrf.mxu0
      %v2481 = vadd.f32 %v2403, %v2480
      %v2482 = vpop.f32.mrf.mxu0
      %2483 = vdwg.mxu0
      %2484 = vmatpush.bf16.msra.mxu0 %v1993
      %2485 = vmatpush.bf16.msra.mxu0 %v1992
      %2486 = vmatpush.bf16.msra.mxu0 %v1991
      %2487 = vmatpush.bf16.msra.mxu0 %v1990
      %2488 = vmatpush.bf16.msra.mxu0 %v1989
      %2489 = vmatpush.bf16.msra.mxu0 %v1988
      %2490 = vmatpush.bf16.msra.mxu0 %v1987
      %2491 = vmatpush.bf16.msra.mxu0 %v1986
      %2492 = vmatmul.bf16.gmra.mxu0 %v1320
      %v2493 = vpop.f32.mrf.mxu0
      %v2494 = vadd.f32 %v2416, %v2493
      %v2495 = vpop.f32.mrf.mxu0
      %v2496 = vadd.f32 %v2418, %v2495
      %2497 = vmatmul.bf16.gmra.mxu0 %v1331
      %v2498 = vpop.f32.mrf.mxu0
      %v2499 = vadd.f32 %v2421, %v2498
      %v2500 = vpop.f32.mrf.mxu0
      %v2501 = vadd.f32 %v2423, %v2500
      %2502 = vmatmul.bf16.gmra.mxu0 %v1342
      %v2503 = vpop.f32.mrf.mxu0
      %v2504 = vadd.f32 %v2426, %v2503
      %v2505 = vpop.f32.mrf.mxu0
      %v2506 = vadd.f32 %v2428, %v2505
      %2507 = vmatmul.bf16.gmra.mxu0 %v1353
      %v2508 = vpop.f32.mrf.mxu0
      %v2509 = vadd.f32 %v2431, %v2508
      %v2510 = vpop.f32.mrf.mxu0
      %v2511 = vadd.f32 %v2433, %v2510
      %2512 = vmatmul.bf16.gmra.mxu0 %v1364
      %v2513 = vpop.f32.mrf.mxu0
      %v2514 = vadd.f32 %v2436, %v2513
      %v2515 = vpop.f32.mrf.mxu0
      %v2516 = vadd.f32 %v2438, %v2515
      %2517 = vmatmul.bf16.gmra.mxu0 %v1375
      %v2518 = vpop.f32.mrf.mxu0
      %v2519 = vadd.f32 %v2441, %v2518
      %v2520 = vpop.f32.mrf.mxu0
      %v2521 = vadd.f32 %v2443, %v2520
      %2522 = vmatmul.bf16.gmra.mxu0 %v1386
      %v2523 = vpop.f32.mrf.mxu0
      %v2524 = vadd.f32 %v2446, %v2523
      %v2525 = vpop.f32.mrf.mxu0
      %v2526 = vadd.f32 %v2448, %v2525
      %2527 = vmatmul.bf16.gmra.mxu0 %v1397
      %v2528 = vpop.f32.mrf.mxu0
      %v2529 = vadd.f32 %v2451, %v2528
      %v2530 = vpop.f32.mrf.mxu0
      %v2531 = vadd.f32 %v2453, %v2530
      %2532 = vmatmul.bf16.gmra.mxu0 %v1408
      %v2533 = vpop.f32.mrf.mxu0
      %v2534 = vadd.f32 %v2456, %v2533
      %v2535 = vpop.f32.mrf.mxu0
      %v2536 = vadd.f32 %v2458, %v2535
      %2537 = vmatmul.bf16.gmra.mxu0 %v1419
      %v2538 = vpop.f32.mrf.mxu0
      %v2539 = vadd.f32 %v2461, %v2538
      %v2540 = vpop.f32.mrf.mxu0
      %v2541 = vadd.f32 %v2463, %v2540
      %2542 = vmatmul.bf16.gmra.mxu0 %v1430
      %v2543 = vpop.f32.mrf.mxu0
      %v2544 = vadd.f32 %v2466, %v2543
      %v2545 = vpop.f32.mrf.mxu0
      %v2546 = vadd.f32 %v2468, %v2545
      %2547 = vmatmul.bf16.gmra.mxu0 %v1441
      %v2548 = vpop.f32.mrf.mxu0
      %v2549 = vadd.f32 %v2471, %v2548
      %v2550 = vpop.f32.mrf.mxu0
      %v2551 = vadd.f32 %v2473, %v2550
      %2552 = vmatmul.bf16.gmra.mxu0 %v1452
      %v2553 = vpop.f32.mrf.mxu0
      %v2554 = vadd.f32 %v2476, %v2553
      %v2555 = vpop.f32.mrf.mxu0
      %v2556 = vadd.f32 %v2478, %v2555
      %2557 = vmatmul.bf16.gmra.mxu0 %v1463
      %v2558 = vpop.f32.mrf.mxu0
      %v2559 = vadd.f32 %v2481, %v2558
      %v2560 = vpop.f32.mrf.mxu0
      %2561 = vdwg.mxu0
      %2562 = vmatpush.bf16.msra.mxu0 %v2001
      %2563 = vmatpush.bf16.msra.mxu0 %v2000
      %2564 = vmatpush.bf16.msra.mxu0 %v1999
      %2565 = vmatpush.bf16.msra.mxu0 %v1998
      %2566 = vmatpush.bf16.msra.mxu0 %v1997
      %2567 = vmatpush.bf16.msra.mxu0 %v1996
      %2568 = vmatpush.bf16.msra.mxu0 %v1995
      %2569 = vmatpush.bf16.msra.mxu0 %v1994
      %2570 = vmatmul.bf16.gmra.mxu0 %v1321
      %v2571 = vpop.f32.mrf.mxu0
      %v2572 = vadd.f32 %v2494, %v2571
      %v2573 = vpop.f32.mrf.mxu0
      %v2574 = vadd.f32 %v2496, %v2573
      %2575 = vmatmul.bf16.gmra.mxu0 %v1332
      %v2576 = vpop.f32.mrf.mxu0
      %v2577 = vadd.f32 %v2499, %v2576
      %v2578 = vpop.f32.mrf.mxu0
      %v2579 = vadd.f32 %v2501, %v2578
      %2580 = vmatmul.bf16.gmra.mxu0 %v1343
      %v2581 = vpop.f32.mrf.mxu0
      %v2582 = vadd.f32 %v2504, %v2581
      %v2583 = vpop.f32.mrf.mxu0
      %v2584 = vadd.f32 %v2506, %v2583
      %2585 = vmatmul.bf16.gmra.mxu0 %v1354
      %v2586 = vpop.f32.mrf.mxu0
      %v2587 = vadd.f32 %v2509, %v2586
      %v2588 = vpop.f32.mrf.mxu0
      %v2589 = vadd.f32 %v2511, %v2588
      %2590 = vmatmul.bf16.gmra.mxu0 %v1365
      %v2591 = vpop.f32.mrf.mxu0
      %v2592 = vadd.f32 %v2514, %v2591
      %v2593 = vpop.f32.mrf.mxu0
      %v2594 = vadd.f32 %v2516, %v2593
      %2595 = vmatmul.bf16.gmra.mxu0 %v1376
      %v2596 = vpop.f32.mrf.mxu0
      %v2597 = vadd.f32 %v2519, %v2596
      %v2598 = vpop.f32.mrf.mxu0
      %v2599 = vadd.f32 %v2521, %v2598
      %2600 = vmatmul.bf16.gmra.mxu0 %v1387
      %v2601 = vpop.f32.mrf.mxu0
      %v2602 = vadd.f32 %v2524, %v2601
      %v2603 = vpop.f32.mrf.mxu0
      %v2604 = vadd.f32 %v2526, %v2603
      %2605 = vmatmul.bf16.gmra.mxu0 %v1398
      %v2606 = vpop.f32.mrf.mxu0
      %v2607 = vadd.f32 %v2529, %v2606
      %v2608 = vpop.f32.mrf.mxu0
      %v2609 = vadd.f32 %v2531, %v2608
      %2610 = vmatmul.bf16.gmra.mxu0 %v1409
      %v2611 = vpop.f32.mrf.mxu0
      %v2612 = vadd.f32 %v2534, %v2611
      %v2613 = vpop.f32.mrf.mxu0
      %v2614 = vadd.f32 %v2536, %v2613
      %2615 = vmatmul.bf16.gmra.mxu0 %v1420
      %v2616 = vpop.f32.mrf.mxu0
      %v2617 = vadd.f32 %v2539, %v2616
      %v2618 = vpop.f32.mrf.mxu0
      %v2619 = vadd.f32 %v2541, %v2618
      %2620 = vmatmul.bf16.gmra.mxu0 %v1431
      %v2621 = vpop.f32.mrf.mxu0
      %v2622 = vadd.f32 %v2544, %v2621
      %v2623 = vpop.f32.mrf.mxu0
      %v2624 = vadd.f32 %v2546, %v2623
      %2625 = vmatmul.bf16.gmra.mxu0 %v1442
      %v2626 = vpop.f32.mrf.mxu0
      %v2627 = vadd.f32 %v2549, %v2626
      %v2628 = vpop.f32.mrf.mxu0
      %v2629 = vadd.f32 %v2551, %v2628
      %2630 = vmatmul.bf16.gmra.mxu0 %v1453
      %v2631 = vpop.f32.mrf.mxu0
      %v2632 = vadd.f32 %v2554, %v2631
      %v2633 = vpop.f32.mrf.mxu0
      %v2634 = vadd.f32 %v2556, %v2633
      %2635 = vmatmul.bf16.gmra.mxu0 %v1464
      %v2636 = vpop.f32.mrf.mxu0
      %v2637 = vadd.f32 %v2559, %v2636
      %v2638 = vpop.f32.mrf.mxu0
      %2639 = vdwg.mxu0
      %2640 = vmatpush.bf16.msra.mxu0 %v2009
      %2641 = vmatpush.bf16.msra.mxu0 %v2008
      %2642 = vmatpush.bf16.msra.mxu0 %v2007
      %2643 = vmatpush.bf16.msra.mxu0 %v2006
      %2644 = vmatpush.bf16.msra.mxu0 %v2005
      %2645 = vmatpush.bf16.msra.mxu0 %v2004
      %2646 = vmatpush.bf16.msra.mxu0 %v2003
      %2647 = vmatpush.bf16.msra.mxu0 %v2002
      %2648 = vmatmul.bf16.gmra.mxu0 %v1322
      %v2649 = vpop.f32.mrf.mxu0
      %v2650 = vadd.f32 %v2572, %v2649
      %v2651 = vpop.f32.mrf.mxu0
      %v2652 = vadd.f32 %v2574, %v2651
      %2653 = vmatmul.bf16.gmra.mxu0 %v1333
      %v2654 = vpop.f32.mrf.mxu0
      %v2655 = vadd.f32 %v2577, %v2654
      %v2656 = vpop.f32.mrf.mxu0
      %v2657 = vadd.f32 %v2579, %v2656
      %2658 = vmatmul.bf16.gmra.mxu0 %v1344
      %v2659 = vpop.f32.mrf.mxu0
      %v2660 = vadd.f32 %v2582, %v2659
      %v2661 = vpop.f32.mrf.mxu0
      %v2662 = vadd.f32 %v2584, %v2661
      %2663 = vmatmul.bf16.gmra.mxu0 %v1355
      %v2664 = vpop.f32.mrf.mxu0
      %v2665 = vadd.f32 %v2587, %v2664
      %v2666 = vpop.f32.mrf.mxu0
      %v2667 = vadd.f32 %v2589, %v2666
      %2668 = vmatmul.bf16.gmra.mxu0 %v1366
      %v2669 = vpop.f32.mrf.mxu0
      %v2670 = vadd.f32 %v2592, %v2669
      %v2671 = vpop.f32.mrf.mxu0
      %v2672 = vadd.f32 %v2594, %v2671
      %2673 = vmatmul.bf16.gmra.mxu0 %v1377
      %v2674 = vpop.f32.mrf.mxu0
      %v2675 = vadd.f32 %v2597, %v2674
      %v2676 = vpop.f32.mrf.mxu0
      %v2677 = vadd.f32 %v2599, %v2676
      %2678 = vmatmul.bf16.gmra.mxu0 %v1388
      %v2679 = vpop.f32.mrf.mxu0
      %v2680 = vadd.f32 %v2602, %v2679
      %v2681 = vpop.f32.mrf.mxu0
      %v2682 = vadd.f32 %v2604, %v2681
      %2683 = vmatmul.bf16.gmra.mxu0 %v1399
      %v2684 = vpop.f32.mrf.mxu0
      %v2685 = vadd.f32 %v2607, %v2684
      %v2686 = vpop.f32.mrf.mxu0
      %v2687 = vadd.f32 %v2609, %v2686
      %2688 = vmatmul.bf16.gmra.mxu0 %v1410
      %v2689 = vpop.f32.mrf.mxu0
      %v2690 = vadd.f32 %v2612, %v2689
      %v2691 = vpop.f32.mrf.mxu0
      %v2692 = vadd.f32 %v2614, %v2691
      %2693 = vmatmul.bf16.gmra.mxu0 %v1421
      %v2694 = vpop.f32.mrf.mxu0
      %v2695 = vadd.f32 %v2617, %v2694
      %v2696 = vpop.f32.mrf.mxu0
      %v2697 = vadd.f32 %v2619, %v2696
      %2698 = vmatmul.bf16.gmra.mxu0 %v1432
      %v2699 = vpop.f32.mrf.mxu0
      %v2700 = vadd.f32 %v2622, %v2699
      %v2701 = vpop.f32.mrf.mxu0
      %v2702 = vadd.f32 %v2624, %v2701
      %2703 = vmatmul.bf16.gmra.mxu0 %v1443
      %v2704 = vpop.f32.mrf.mxu0
      %v2705 = vadd.f32 %v2627, %v2704
      %v2706 = vpop.f32.mrf.mxu0
      %v2707 = vadd.f32 %v2629, %v2706
      %2708 = vmatmul.bf16.gmra.mxu0 %v1454
      %v2709 = vpop.f32.mrf.mxu0
      %v2710 = vadd.f32 %v2632, %v2709
      %v2711 = vpop.f32.mrf.mxu0
      %v2712 = vadd.f32 %v2634, %v2711
      %2713 = vmatmul.bf16.gmra.mxu0 %v1465
      %v2714 = vpop.f32.mrf.mxu0
      %v2715 = vadd.f32 %v2637, %v2714
      %v2716 = vpop.f32.mrf.mxu0
      %2717 = vdwg.mxu0
      %2718 = vmatpush.bf16.msra.mxu0 %v2017
      %2719 = vmatpush.bf16.msra.mxu0 %v2016
      %2720 = vmatpush.bf16.msra.mxu0 %v2015
      %2721 = vmatpush.bf16.msra.mxu0 %v2014
      %2722 = vmatpush.bf16.msra.mxu0 %v2013
      %2723 = vmatpush.bf16.msra.mxu0 %v2012
      %2724 = vmatpush.bf16.msra.mxu0 %v2011
      %2725 = vmatpush.bf16.msra.mxu0 %v2010
      %2726 = vmatmul.bf16.gmra.mxu0 %v1323
      %v2727 = vpop.f32.mrf.mxu0
      %v2728 = vadd.f32 %v2650, %v2727
      %v2729 = vpop.f32.mrf.mxu0
      %v2730 = vadd.f32 %v2652, %v2729
      %2731 = vmatmul.bf16.gmra.mxu0 %v1334
      %v2732 = vpop.f32.mrf.mxu0
      %v2733 = vadd.f32 %v2655, %v2732
      %v2734 = vpop.f32.mrf.mxu0
      %v2735 = vadd.f32 %v2657, %v2734
      %2736 = vmatmul.bf16.gmra.mxu0 %v1345
      %v2737 = vpop.f32.mrf.mxu0
      %v2738 = vadd.f32 %v2660, %v2737
      %v2739 = vpop.f32.mrf.mxu0
      %v2740 = vadd.f32 %v2662, %v2739
      %2741 = vmatmul.bf16.gmra.mxu0 %v1356
      %v2742 = vpop.f32.mrf.mxu0
      %v2743 = vadd.f32 %v2665, %v2742
      %v2744 = vpop.f32.mrf.mxu0
      %v2745 = vadd.f32 %v2667, %v2744
      %2746 = vmatmul.bf16.gmra.mxu0 %v1367
      %v2747 = vpop.f32.mrf.mxu0
      %v2748 = vadd.f32 %v2670, %v2747
      %v2749 = vpop.f32.mrf.mxu0
      %v2750 = vadd.f32 %v2672, %v2749
      %2751 = vmatmul.bf16.gmra.mxu0 %v1378
      %v2752 = vpop.f32.mrf.mxu0
      %v2753 = vadd.f32 %v2675, %v2752
      %v2754 = vpop.f32.mrf.mxu0
      %v2755 = vadd.f32 %v2677, %v2754
      %2756 = vmatmul.bf16.gmra.mxu0 %v1389
      %v2757 = vpop.f32.mrf.mxu0
      %v2758 = vadd.f32 %v2680, %v2757
      %v2759 = vpop.f32.mrf.mxu0
      %v2760 = vadd.f32 %v2682, %v2759
      %2761 = vmatmul.bf16.gmra.mxu0 %v1400
      %v2762 = vpop.f32.mrf.mxu0
      %v2763 = vadd.f32 %v2685, %v2762
      %v2764 = vpop.f32.mrf.mxu0
      %v2765 = vadd.f32 %v2687, %v2764
      %2766 = vmatmul.bf16.gmra.mxu0 %v1411
      %v2767 = vpop.f32.mrf.mxu0
      %v2768 = vadd.f32 %v2690, %v2767
      %v2769 = vpop.f32.mrf.mxu0
      %v2770 = vadd.f32 %v2692, %v2769
      %2771 = vmatmul.bf16.gmra.mxu0 %v1422
      %v2772 = vpop.f32.mrf.mxu0
      %v2773 = vadd.f32 %v2695, %v2772
      %v2774 = vpop.f32.mrf.mxu0
      %v2775 = vadd.f32 %v2697, %v2774
      %2776 = vmatmul.bf16.gmra.mxu0 %v1433
      %v2777 = vpop.f32.mrf.mxu0
      %v2778 = vadd.f32 %v2700, %v2777
      %v2779 = vpop.f32.mrf.mxu0
      %v2780 = vadd.f32 %v2702, %v2779
      %2781 = vmatmul.bf16.gmra.mxu0 %v1444
      %v2782 = vpop.f32.mrf.mxu0
      %v2783 = vadd.f32 %v2705, %v2782
      %v2784 = vpop.f32.mrf.mxu0
      %v2785 = vadd.f32 %v2707, %v2784
      %2786 = vmatmul.bf16.gmra.mxu0 %v1455
      %v2787 = vpop.f32.mrf.mxu0
      %v2788 = vadd.f32 %v2710, %v2787
      %v2789 = vpop.f32.mrf.mxu0
      %v2790 = vadd.f32 %v2712, %v2789
      %2791 = vmatmul.bf16.gmra.mxu0 %v1466
      %v2792 = vpop.f32.mrf.mxu0
      %v2793 = vadd.f32 %v2715, %v2792
      %v2794 = vpop.f32.mrf.mxu0
      %2795 = vdwg.mxu0
      %2796 = vmatpush.bf16.msra.mxu0 %v2025
      %2797 = vmatpush.bf16.msra.mxu0 %v2024
      %2798 = vmatpush.bf16.msra.mxu0 %v2023
      %2799 = vmatpush.bf16.msra.mxu0 %v2022
      %2800 = vmatpush.bf16.msra.mxu0 %v2021
      %2801 = vmatpush.bf16.msra.mxu0 %v2020
      %2802 = vmatpush.bf16.msra.mxu0 %v2019
      %2803 = vmatpush.bf16.msra.mxu0 %v2018
      %2804 = vmatmul.bf16.gmra.mxu0 %v1324
      %v2805 = vpop.f32.mrf.mxu0
      %v2806 = vadd.f32 %v2728, %v2805
      %v2807 = vpop.f32.mrf.mxu0
      %v2808 = vadd.f32 %v2730, %v2807
      %2809 = vmatmul.bf16.gmra.mxu0 %v1335
      %v2810 = vpop.f32.mrf.mxu0
      %v2811 = vadd.f32 %v2733, %v2810
      %v2812 = vpop.f32.mrf.mxu0
      %v2813 = vadd.f32 %v2735, %v2812
      %2814 = vmatmul.bf16.gmra.mxu0 %v1346
      %v2815 = vpop.f32.mrf.mxu0
      %v2816 = vadd.f32 %v2738, %v2815
      %v2817 = vpop.f32.mrf.mxu0
      %v2818 = vadd.f32 %v2740, %v2817
      %2819 = vmatmul.bf16.gmra.mxu0 %v1357
      %v2820 = vpop.f32.mrf.mxu0
      %v2821 = vadd.f32 %v2743, %v2820
      %v2822 = vpop.f32.mrf.mxu0
      %v2823 = vadd.f32 %v2745, %v2822
      %2824 = vmatmul.bf16.gmra.mxu0 %v1368
      %v2825 = vpop.f32.mrf.mxu0
      %v2826 = vadd.f32 %v2748, %v2825
      %v2827 = vpop.f32.mrf.mxu0
      %v2828 = vadd.f32 %v2750, %v2827
      %2829 = vmatmul.bf16.gmra.mxu0 %v1379
      %v2830 = vpop.f32.mrf.mxu0
      %v2831 = vadd.f32 %v2753, %v2830
      %v2832 = vpop.f32.mrf.mxu0
      %v2833 = vadd.f32 %v2755, %v2832
      %2834 = vmatmul.bf16.gmra.mxu0 %v1390
      %v2835 = vpop.f32.mrf.mxu0
      %v2836 = vadd.f32 %v2758, %v2835
      %v2837 = vpop.f32.mrf.mxu0
      %v2838 = vadd.f32 %v2760, %v2837
      %2839 = vmatmul.bf16.gmra.mxu0 %v1401
      %v2840 = vpop.f32.mrf.mxu0
      %v2841 = vadd.f32 %v2763, %v2840
      %v2842 = vpop.f32.mrf.mxu0
      %v2843 = vadd.f32 %v2765, %v2842
      %2844 = vmatmul.bf16.gmra.mxu0 %v1412
      %v2845 = vpop.f32.mrf.mxu0
      %v2846 = vadd.f32 %v2768, %v2845
      %v2847 = vpop.f32.mrf.mxu0
      %v2848 = vadd.f32 %v2770, %v2847
      %2849 = vmatmul.bf16.gmra.mxu0 %v1423
      %v2850 = vpop.f32.mrf.mxu0
      %v2851 = vadd.f32 %v2773, %v2850
      %v2852 = vpop.f32.mrf.mxu0
      %v2853 = vadd.f32 %v2775, %v2852
      %2854 = vmatmul.bf16.gmra.mxu0 %v1434
      %v2855 = vpop.f32.mrf.mxu0
      %v2856 = vadd.f32 %v2778, %v2855
      %v2857 = vpop.f32.mrf.mxu0
      %v2858 = vadd.f32 %v2780, %v2857
      %2859 = vmatmul.bf16.gmra.mxu0 %v1445
      %v2860 = vpop.f32.mrf.mxu0
      %v2861 = vadd.f32 %v2783, %v2860
      %v2862 = vpop.f32.mrf.mxu0
      %v2863 = vadd.f32 %v2785, %v2862
      %2864 = vmatmul.bf16.gmra.mxu0 %v1456
      %v2865 = vpop.f32.mrf.mxu0
      %v2866 = vadd.f32 %v2788, %v2865
      %v2867 = vpop.f32.mrf.mxu0
      %v2868 = vadd.f32 %v2790, %v2867
      %2869 = vmatmul.bf16.gmra.mxu0 %v1467
      %v2870 = vpop.f32.mrf.mxu0
      %v2871 = vadd.f32 %v2793, %v2870
      %v2872 = vpop.f32.mrf.mxu0
      %2873 = vdwg.mxu0
      %2874 = vmatpush.bf16.msra.mxu0 %v2033
      %2875 = vmatpush.bf16.msra.mxu0 %v2032
      %2876 = vmatpush.bf16.msra.mxu0 %v2031
      %2877 = vmatpush.bf16.msra.mxu0 %v2030
      %2878 = vmatpush.bf16.msra.mxu0 %v2029
      %2879 = vmatpush.bf16.msra.mxu0 %v2028
      %2880 = vmatpush.bf16.msra.mxu0 %v2027
      %2881 = vmatpush.bf16.msra.mxu0 %v2026
      %2882 = vmatmul.bf16.gmra.mxu0 %v1325
      %v2883 = vpop.f32.mrf.mxu0
      %v2884 = vadd.f32 %v2806, %v2883
      %v2885 = vpop.f32.mrf.mxu0
      %v2886 = vadd.f32 %v2808, %v2885
      %2887 = vmatmul.bf16.gmra.mxu0 %v1336
      %v2888 = vpop.f32.mrf.mxu0
      %v2889 = vadd.f32 %v2811, %v2888
      %v2890 = vpop.f32.mrf.mxu0
      %v2891 = vadd.f32 %v2813, %v2890
      %2892 = vmatmul.bf16.gmra.mxu0 %v1347
      %v2893 = vpop.f32.mrf.mxu0
      %v2894 = vadd.f32 %v2816, %v2893
      %v2895 = vpop.f32.mrf.mxu0
      %v2896 = vadd.f32 %v2818, %v2895
      %2897 = vmatmul.bf16.gmra.mxu0 %v1358
      %v2898 = vpop.f32.mrf.mxu0
      %v2899 = vadd.f32 %v2821, %v2898
      %v2900 = vpop.f32.mrf.mxu0
      %v2901 = vadd.f32 %v2823, %v2900
      %2902 = vmatmul.bf16.gmra.mxu0 %v1369
      %v2903 = vpop.f32.mrf.mxu0
      %v2904 = vadd.f32 %v2826, %v2903
      %v2905 = vpop.f32.mrf.mxu0
      %v2906 = vadd.f32 %v2828, %v2905
      %2907 = vmatmul.bf16.gmra.mxu0 %v1380
      %v2908 = vpop.f32.mrf.mxu0
      %v2909 = vadd.f32 %v2831, %v2908
      %v2910 = vpop.f32.mrf.mxu0
      %v2911 = vadd.f32 %v2833, %v2910
      %2912 = vmatmul.bf16.gmra.mxu0 %v1391
      %v2913 = vpop.f32.mrf.mxu0
      %v2914 = vadd.f32 %v2836, %v2913
      %v2915 = vpop.f32.mrf.mxu0
      %v2916 = vadd.f32 %v2838, %v2915
      %2917 = vmatmul.bf16.gmra.mxu0 %v1402
      %v2918 = vpop.f32.mrf.mxu0
      %v2919 = vadd.f32 %v2841, %v2918
      %v2920 = vpop.f32.mrf.mxu0
      %v2921 = vadd.f32 %v2843, %v2920
      %2922 = vmatmul.bf16.gmra.mxu0 %v1413
      %v2923 = vpop.f32.mrf.mxu0
      %v2924 = vadd.f32 %v2846, %v2923
      %v2925 = vpop.f32.mrf.mxu0
      %v2926 = vadd.f32 %v2848, %v2925
      %2927 = vmatmul.bf16.gmra.mxu0 %v1424
      %v2928 = vpop.f32.mrf.mxu0
      %v2929 = vadd.f32 %v2851, %v2928
      %v2930 = vpop.f32.mrf.mxu0
      %v2931 = vadd.f32 %v2853, %v2930
      %2932 = vmatmul.bf16.gmra.mxu0 %v1435
      %v2933 = vpop.f32.mrf.mxu0
      %v2934 = vadd.f32 %v2856, %v2933
      %v2935 = vpop.f32.mrf.mxu0
      %v2936 = vadd.f32 %v2858, %v2935
      %2937 = vmatmul.bf16.gmra.mxu0 %v1446
      %v2938 = vpop.f32.mrf.mxu0
      %v2939 = vadd.f32 %v2861, %v2938
      %v2940 = vpop.f32.mrf.mxu0
      %v2941 = vadd.f32 %v2863, %v2940
      %2942 = vmatmul.bf16.gmra.mxu0 %v1457
      %v2943 = vpop.f32.mrf.mxu0
      %v2944 = vadd.f32 %v2866, %v2943
      %v2945 = vpop.f32.mrf.mxu0
      %v2946 = vadd.f32 %v2868, %v2945
      %2947 = vmatmul.bf16.gmra.mxu0 %v1468
      %v2948 = vpop.f32.mrf.mxu0
      %v2949 = vadd.f32 %v2871, %v2948
      %v2950 = vpop.f32.mrf.mxu0
      %2951 = vdwg.mxu0
      %2952 = vmatpush.bf16.msra.mxu0 0
      %2953 = vmatpush.bf16.msra.mxu0 0
      %2954 = vmatpush.bf16.msra.mxu0 %v2170
      %2955 = vmatpush.bf16.msra.mxu0 %v2038
      %2956 = vmatpush.bf16.msra.mxu0 %v2037
      %2957 = vmatpush.bf16.msra.mxu0 %v2036
      %2958 = vmatpush.bf16.msra.mxu0 %v2035
      %2959 = vmatpush.bf16.msra.mxu0 %v2034
      %2960 = vmatmul.bf16.gmra.mxu0 %v2127
      %v2961 = vpop.f32.mrf.mxu0
      %v2962 = vadd.f32 %v2884, %v2961
      %v2963 = vpop.f32.mrf.mxu0
      %v2964 = vadd.f32 %v2886, %v2963
      %2965 = vmatmul.bf16.gmra.mxu0 %v2130
      %v2966 = vpop.f32.mrf.mxu0
      %v2967 = vadd.f32 %v2889, %v2966
      %v2968 = vpop.f32.mrf.mxu0
      %v2969 = vadd.f32 %v2891, %v2968
      %2970 = vmatmul.bf16.gmra.mxu0 %v2133
      %v2971 = vpop.f32.mrf.mxu0
      %v2972 = vadd.f32 %v2894, %v2971
      %v2973 = vpop.f32.mrf.mxu0
      %v2974 = vadd.f32 %v2896, %v2973
      %2975 = vmatmul.bf16.gmra.mxu0 %v2136
      %v2976 = vpop.f32.mrf.mxu0
      %v2977 = vadd.f32 %v2899, %v2976
      %v2978 = vpop.f32.mrf.mxu0
      %v2979 = vadd.f32 %v2901, %v2978
      %2980 = vmatmul.bf16.gmra.mxu0 %v2139
      %v2981 = vpop.f32.mrf.mxu0
      %v2982 = vadd.f32 %v2904, %v2981
      %v2983 = vpop.f32.mrf.mxu0
      %v2984 = vadd.f32 %v2906, %v2983
      %2985 = vmatmul.bf16.gmra.mxu0 %v2142
      %v2986 = vpop.f32.mrf.mxu0
      %v2987 = vadd.f32 %v2909, %v2986
      %v2988 = vpop.f32.mrf.mxu0
      %v2989 = vadd.f32 %v2911, %v2988
      %2990 = vmatmul.bf16.gmra.mxu0 %v2145
      %v2991 = vpop.f32.mrf.mxu0
      %v2992 = vadd.f32 %v2914, %v2991
      %v2993 = vpop.f32.mrf.mxu0
      %v2994 = vadd.f32 %v2916, %v2993
      %2995 = vmatmul.bf16.gmra.mxu0 %v2148
      %v2996 = vpop.f32.mrf.mxu0
      %v2997 = vadd.f32 %v2919, %v2996
      %v2998 = vpop.f32.mrf.mxu0
      %v2999 = vadd.f32 %v2921, %v2998
      %3000 = vmatmul.bf16.gmra.mxu0 %v2151
      %v3001 = vpop.f32.mrf.mxu0
      %v3002 = vadd.f32 %v2924, %v3001
      %v3003 = vpop.f32.mrf.mxu0
      %v3004 = vadd.f32 %v2926, %v3003
      %3005 = vmatmul.bf16.gmra.mxu0 %v2154
      %v3006 = vpop.f32.mrf.mxu0
      %v3007 = vadd.f32 %v2929, %v3006
      %v3008 = vpop.f32.mrf.mxu0
      %v3009 = vadd.f32 %v2931, %v3008
      %3010 = vmatmul.bf16.gmra.mxu0 %v2157
      %v3011 = vpop.f32.mrf.mxu0
      %v3012 = vadd.f32 %v2934, %v3011
      %v3013 = vpop.f32.mrf.mxu0
      %v3014 = vadd.f32 %v2936, %v3013
      %3015 = vmatmul.bf16.gmra.mxu0 %v2160
      %v3016 = vpop.f32.mrf.mxu0
      %v3017 = vadd.f32 %v2939, %v3016
      %v3018 = vpop.f32.mrf.mxu0
      %v3019 = vadd.f32 %v2941, %v3018
      %3020 = vmatmul.bf16.gmra.mxu0 %v2163
      %v3021 = vpop.f32.mrf.mxu0
      %v3022 = vadd.f32 %v2944, %v3021
      %v3023 = vpop.f32.mrf.mxu0
      %v3024 = vadd.f32 %v2946, %v3023
      %3025 = vmatmul.bf16.gmra.mxu0 %v2166
      %v3026 = vpop.f32.mrf.mxu0
      %v3027 = vadd.f32 %v2949, %v3026
      %v3028 = vpop.f32.mrf.mxu0
      %3029 = vdwg.mxu0
      %v3030 = vld [vmem:[%s2] sm:$0x1]
      %v3032 = vperm.slane %v3030, 0
      %v3034 = vmul.f32 %v2962, %v3032
      %v3035 = vmul.f32 %v2964, %v3032
      %v3036 = vmul.f32 %v2967, %v3032
      %v3037 = vmul.f32 %v2969, %v3032
      %v3038 = vmul.f32 %v2972, %v3032
      %v3039 = vmul.f32 %v2974, %v3032
      %v3040 = vmul.f32 %v2977, %v3032
      %v3041 = vmul.f32 %v2979, %v3032
      %v3042 = vmul.f32 %v2982, %v3032
      %v3043 = vmul.f32 %v2984, %v3032
      %v3044 = vmul.f32 %v2987, %v3032
      %v3045 = vmul.f32 %v2989, %v3032
      %v3046 = vmul.f32 %v2992, %v3032
      %v3047 = vmul.f32 %v2994, %v3032
      %v3048 = vmul.f32 %v2997, %v3032
      %v3049 = vmul.f32 %v2999, %v3032
      %v3050 = vmul.f32 %v3002, %v3032
      %v3051 = vmul.f32 %v3004, %v3032
      %v3052 = vmul.f32 %v3007, %v3032
      %v3053 = vmul.f32 %v3009, %v3032
      %v3054 = vmul.f32 %v3012, %v3032
      %v3055 = vmul.f32 %v3014, %v3032
      %v3056 = vmul.f32 %v3017, %v3032
      %v3057 = vmul.f32 %v3019, %v3032
      %v3058 = vmul.f32 %v3022, %v3032
      %v3059 = vmul.f32 %v3024, %v3032
      %v3060 = vmul.f32 %v3027, %v3032
      %v3061 = vld [vmem:[%s3] sm:$0x1]
      %v3063 = vperm.slane %v3061, 0
      %v3065 = vadd.f32 %v3034, %v3063
      %v3066 = vadd.f32 %v3035, %v3063
      %v3067 = vadd.f32 %v3036, %v3063
      %v3068 = vadd.f32 %v3037, %v3063
      %v3069 = vadd.f32 %v3038, %v3063
      %v3070 = vadd.f32 %v3039, %v3063
      %v3071 = vadd.f32 %v3040, %v3063
      %v3072 = vadd.f32 %v3041, %v3063
      %v3073 = vadd.f32 %v3042, %v3063
      %v3074 = vadd.f32 %v3043, %v3063
      %v3075 = vadd.f32 %v3044, %v3063
      %v3076 = vadd.f32 %v3045, %v3063
      %v3077 = vadd.f32 %v3046, %v3063
      %v3078 = vadd.f32 %v3047, %v3063
      %v3079 = vadd.f32 %v3048, %v3063
      %v3080 = vadd.f32 %v3049, %v3063
      %v3081 = vadd.f32 %v3050, %v3063
      %v3082 = vadd.f32 %v3051, %v3063
      %v3083 = vadd.f32 %v3052, %v3063
      %v3084 = vadd.f32 %v3053, %v3063
      %v3085 = vadd.f32 %v3054, %v3063
      %v3086 = vadd.f32 %v3055, %v3063
      %v3087 = vadd.f32 %v3056, %v3063
      %v3088 = vadd.f32 %v3057, %v3063
      %v3089 = vadd.f32 %v3058, %v3063
      %v3090 = vadd.f32 %v3059, %v3063
      %v3091 = vadd.f32 %v3060, %v3063
      %v3092 = vmax.f32 %v3065, 0.0
      %v3093 = vmax.f32 %v3066, 0.0
      %v3094 = vmax.f32 %v3067, 0.0
      %v3095 = vmax.f32 %v3068, 0.0
      %v3096 = vmax.f32 %v3069, 0.0
      %v3097 = vmax.f32 %v3070, 0.0
      %v3098 = vmax.f32 %v3071, 0.0
      %v3099 = vmax.f32 %v3072, 0.0
      %v3100 = vmax.f32 %v3073, 0.0
      %v3101 = vmax.f32 %v3074, 0.0
      %v3102 = vmax.f32 %v3075, 0.0
      %v3103 = vmax.f32 %v3076, 0.0
      %v3104 = vmax.f32 %v3077, 0.0
      %v3105 = vmax.f32 %v3078, 0.0
      %v3106 = vmax.f32 %v3079, 0.0
      %v3107 = vmax.f32 %v3080, 0.0
      %v3108 = vmax.f32 %v3081, 0.0
      %v3109 = vmax.f32 %v3082, 0.0
      %v3110 = vmax.f32 %v3083, 0.0
      %v3111 = vmax.f32 %v3084, 0.0
      %v3112 = vmax.f32 %v3085, 0.0
      %v3113 = vmax.f32 %v3086, 0.0
      %v3114 = vmax.f32 %v3087, 0.0
      %v3115 = vmax.f32 %v3088, 0.0
      %v3116 = vmax.f32 %v3089, 0.0
      %v3117 = vmax.f32 %v3090, 0.0
      %v3118 = vmax.f32 %v3091, 0.0
      %v3119 = vpack.c.bf16 %v3093, %v3092
      %v3120 = vpack.c.bf16 %v3095, %v3094
      %v3121 = vpack.c.bf16 %v3097, %v3096
      %v3122 = vpack.c.bf16 %v3099, %v3098
      %v3123 = vpack.c.bf16 %v3101, %v3100
      %v3124 = vpack.c.bf16 %v3103, %v3102
      %v3125 = vpack.c.bf16 %v3105, %v3104
      %v3126 = vpack.c.bf16 %v3107, %v3106
      %v3127 = vpack.c.bf16 %v3109, %v3108
      %v3128 = vpack.c.bf16 %v3111, %v3110
      %v3129 = vpack.c.bf16 %v3113, %v3112
      %v3130 = vpack.c.bf16 %v3115, %v3114
      %v3131 = vpack.c.bf16 %v3117, %v3116
      %v3132 = vpack.c.bf16 %v3118, %v3118
      %v3133 = vld [vmem:[%s4] sm:$0xff]
      %v3134 = vld [vmem:[%s4 + $0x8] sm:$0xff]
      %v3135 = vld [vmem:[%s4 + $0x10] sm:$0xff]
      %v3136 = vld [vmem:[%s4 + $0x18] sm:$0xff]
      %v3137 = vld [vmem:[%s4 + $0x20] sm:$0xff]
      %v3138 = vld [vmem:[%s4 + $0x28] sm:$0xff]
      %v3139 = vld [vmem:[%s4 + $0x30] sm:$0xff]
      %v3140 = vld [vmem:[%s4 + $0x38] sm:$0xff]
      %v3141 = vld [vmem:[%s4 + $0x40] sm:$0xff]
      %v3142 = vld [vmem:[%s4 + $0x48] sm:$0xff]
      %v3143 = vld [vmem:[%s4 + $0x50] sm:$0xff]
      %v3144 = vld [vmem:[%s4 + $0x58] sm:$0xff]
      %v3145 = vld [vmem:[%s4 + $0x60] sm:$0xff]
      %v3146 = vld [vmem:[%s4 + $0x68] sm:$0xff]
      %v3147 = vld [vmem:[%s4 + $0x70] sm:$0xff]
      %v3148 = vld [vmem:[%s4 + $0x78] sm:$0xff]
      %v3149 = vld [vmem:[%s4 + $0x80] sm:$0xff]
      %v3150 = vld [vmem:[%s4 + $0x88] sm:$0xff]
      %v3151 = vld [vmem:[%s4 + $0x90] sm:$0xff]
      %v3152 = vld [vmem:[%s4 + $0x98] sm:$0xff]
      %v3153 = vld [vmem:[%s4 + $0xa0] sm:$0xff]
      %v3154 = vld [vmem:[%s4 + $0xa8] sm:$0xff]
      %v3155 = vld [vmem:[%s4 + $0xb0] sm:$0xff]
      %v3156 = vld [vmem:[%s4 + $0xb8] sm:$0xff]
      %v3157 = vld [vmem:[%s4 + $0xc0] sm:$0xff]
      %v3158 = vld [vmem:[%s4 + $0xc8] sm:$0xff]
      %v3159 = vld [vmem:[%s4 + $0xd0] sm:$0xff]
      %v3160 = vld [vmem:[%s4 + $0xd8] sm:$0xff]
      %v3161 = vld [vmem:[%s4 + $0xe0] sm:$0xff]
      %v3162 = vld [vmem:[%s4 + $0xe8] sm:$0xff]
      %v3163 = vld [vmem:[%s4 + $0xf0] sm:$0xff]
      %v3164 = vld [vmem:[%s4 + $0xf8] sm:$0xff]
      %v3165 = vld [vmem:[%s4 + $0x100] sm:$0xff]
      %v3166 = vld [vmem:[%s4 + $0x108] sm:$0xff]
      %v3167 = vld [vmem:[%s4 + $0x110] sm:$0xff]
      %v3168 = vld [vmem:[%s4 + $0x118] sm:$0xff]
      %v3169 = vld [vmem:[%s4 + $0x120] sm:$0xff]
      %v3170 = vld [vmem:[%s4 + $0x128] sm:$0xff]
      %v3171 = vld [vmem:[%s4 + $0x130] sm:$0xff]
      %v3172 = vld [vmem:[%s4 + $0x138] sm:$0xff]
      %v3173 = vld [vmem:[%s4 + $0x140] sm:$0xff]
      %v3174 = vld [vmem:[%s4 + $0x148] sm:$0xff]
      %v3175 = vld [vmem:[%s4 + $0x150] sm:$0xff]
      %v3176 = vld [vmem:[%s4 + $0x158] sm:$0xff]
      %v3177 = vld [vmem:[%s4 + $0x160] sm:$0xff]
      %v3178 = vld [vmem:[%s4 + $0x168] sm:$0xff]
      %v3179 = vld [vmem:[%s4 + $0x170] sm:$0xff]
      %v3180 = vld [vmem:[%s4 + $0x178] sm:$0xff]
      %v3181 = vld [vmem:[%s4 + $0x180] sm:$0xff]
      %v3182 = vld [vmem:[%s4 + $0x188] sm:$0xff]
      %v3183 = vld [vmem:[%s4 + $0x190] sm:$0xff]
      %v3184 = vld [vmem:[%s4 + $0x198] sm:$0xff]
      %v3185 = vld [vmem:[%s4 + $0x1a0] sm:$0xff]
      %v3186 = vld [vmem:[%s4 + $0x1a8] sm:$0xff]
      %v3187 = vld [vmem:[%s4 + $0x1b0] sm:$0xff]
      %v3188 = vld [vmem:[%s4 + $0x1b8] sm:$0xff]
      %v3189 = vld [vmem:[%s4 + $0x1c0] sm:$0xff]
      %v3190 = vld [vmem:[%s4 + $0x1c8] sm:$0xff]
      %v3191 = vld [vmem:[%s4 + $0x1d0] sm:$0xff]
      %v3192 = vld [vmem:[%s4 + $0x1d8] sm:$0xff]
      %v3193 = vld [vmem:[%s4 + $0x1e0] sm:$0xff]
      %v3194 = vld [vmem:[%s4 + $0x1e8] sm:$0xff]
      %v3195 = vld [vmem:[%s4 + $0x1f0] sm:$0xff]
      %v3196 = vld [vmem:[%s4 + $0x1f8] sm:$0xff]
      %v3197 = vld [vmem:[%s4 + $0x200] sm:$0xff]
      %v3198 = vld [vmem:[%s4 + $0x208] sm:$0xff]
      %v3199 = vld [vmem:[%s4 + $0x210] sm:$0xff]
      %v3200 = vld [vmem:[%s4 + $0x218] sm:$0xff]
      %v3201 = vld [vmem:[%s4 + $0x220] sm:$0xff]
      %v3202 = vld [vmem:[%s4 + $0x228] sm:$0xff]
      %v3203 = vld [vmem:[%s4 + $0x230] sm:$0xff]
      %v3204 = vld [vmem:[%s4 + $0x238] sm:$0xff]
      %v3205 = vld [vmem:[%s4 + $0x240] sm:$0xff]
      %v3206 = vld [vmem:[%s4 + $0x248] sm:$0xff]
      %v3207 = vld [vmem:[%s4 + $0x250] sm:$0xff]
      %v3208 = vld [vmem:[%s4 + $0x258] sm:$0xff]
      %v3209 = vld [vmem:[%s4 + $0x260] sm:$0xff]
      %v3210 = vld [vmem:[%s4 + $0x268] sm:$0xff]
      %v3211 = vld [vmem:[%s4 + $0x270] sm:$0xff]
      %v3212 = vld [vmem:[%s4 + $0x278] sm:$0xff]
      %v3213 = vld [vmem:[%s4 + $0x280] sm:$0xff]
      %v3214 = vld [vmem:[%s4 + $0x288] sm:$0xff]
      %v3215 = vld [vmem:[%s4 + $0x290] sm:$0xff]
      %v3216 = vld [vmem:[%s4 + $0x298] sm:$0xff]
      %v3217 = vld [vmem:[%s4 + $0x2a0] sm:$0xff]
      %v3218 = vld [vmem:[%s4 + $0x2a8] sm:$0xff]
      %v3219 = vld [vmem:[%s4 + $0x2b0] sm:$0xff]
      %v3220 = vld [vmem:[%s4 + $0x2b8] sm:$0xff]
      %v3221 = vld [vmem:[%s4 + $0x2c0] sm:$0xff]
      %v3222 = vld [vmem:[%s4 + $0x2c8] sm:$0xff]
      %v3223 = vld [vmem:[%s4 + $0x2d0] sm:$0xff]
      %v3224 = vld [vmem:[%s4 + $0x2d8] sm:$0xff]
      %v3225 = vld [vmem:[%s4 + $0x2e0] sm:$0xff]
      %v3226 = vld [vmem:[%s4 + $0x2e8] sm:$0xff]
      %v3227 = vld [vmem:[%s4 + $0x2f0] sm:$0xff]
      %v3228 = vld [vmem:[%s4 + $0x2f8] sm:$0xff]
      %v3229 = vld [vmem:[%s4 + $0x300] sm:$0xff]
      %v3230 = vld [vmem:[%s4 + $0x308] sm:$0xff]
      %v3231 = vld [vmem:[%s4 + $0x310] sm:$0xff]
      %v3232 = vld [vmem:[%s4 + $0x318] sm:$0xff]
      %v3233 = vld [vmem:[%s4 + $0x320] sm:$0xff]
      %v3234 = vld [vmem:[%s4 + $0x328] sm:$0xff]
      %v3235 = vld [vmem:[%s4 + $0x330] sm:$0xff]
      %v3236 = vld [vmem:[%s4 + $0x338] sm:$0xff]
      %v3237 = vld [vmem:[%s4 + $0x340] sm:$0xff]
      %v3238 = vld [vmem:[%s4 + $0x348] sm:$0xff]
      %v3239 = vld [vmem:[%s4 + $0x350] sm:$0xff]
      %v3240 = vld [vmem:[%s4 + $0x358] sm:$0xff]
      %v3349 = vunpack.c.l.b16 %v3133
      %v3350 = vunpack.c.h.b16 %v3133
      %v3351 = vunpack.c.l.b16 %v3134
      %v3352 = vunpack.c.h.b16 %v3134
      %v3353 = vunpack.c.l.b16 %v3135
      %v3354 = vunpack.c.h.b16 %v3135
      %v3355 = vunpack.c.l.b16 %v3136
      %v3356 = vunpack.c.h.b16 %v3136
      %v3357 = vunpack.c.l.b16 %v3137
      %v3358 = vunpack.c.h.b16 %v3137
      %v3359 = vunpack.c.l.b16 %v3138
      %v3360 = vunpack.c.h.b16 %v3138
      %v3361 = vunpack.c.l.b16 %v3139
      %v3362 = vunpack.c.h.b16 %v3139
      %v3363 = vunpack.c.l.b16 %v3140
      %v3364 = vunpack.c.h.b16 %v3140
      %v3365 = vunpack.c.l.b16 %v3141
      %v3366 = vunpack.c.h.b16 %v3141
      %v3367 = vunpack.c.l.b16 %v3142
      %v3368 = vunpack.c.h.b16 %v3142
      %v3369 = vunpack.c.l.b16 %v3143
      %v3370 = vunpack.c.h.b16 %v3143
      %v3371 = vunpack.c.l.b16 %v3144
      %v3372 = vunpack.c.h.b16 %v3144
      %v3373 = vunpack.c.l.b16 %v3145
      %v3374 = vunpack.c.h.b16 %v3145
      %v3375 = vunpack.c.l.b16 %v3146
      %v3376 = vunpack.c.h.b16 %v3146
      %v3377 = vunpack.c.l.b16 %v3147
      %v3378 = vunpack.c.h.b16 %v3147
      %v3379 = vunpack.c.l.b16 %v3148
      %v3380 = vunpack.c.h.b16 %v3148
      %v3381 = vunpack.c.l.b16 %v3149
      %v3382 = vunpack.c.h.b16 %v3149
      %v3383 = vunpack.c.l.b16 %v3150
      %v3384 = vunpack.c.h.b16 %v3150
      %v3385 = vunpack.c.l.b16 %v3151
      %v3386 = vunpack.c.h.b16 %v3151
      %v3387 = vunpack.c.l.b16 %v3152
      %v3388 = vunpack.c.h.b16 %v3152
      %v3389 = vunpack.c.l.b16 %v3153
      %v3390 = vunpack.c.h.b16 %v3153
      %v3391 = vunpack.c.l.b16 %v3154
      %v3392 = vunpack.c.h.b16 %v3154
      %v3393 = vunpack.c.l.b16 %v3155
      %v3394 = vunpack.c.h.b16 %v3155
      %v3395 = vunpack.c.l.b16 %v3156
      %v3396 = vunpack.c.h.b16 %v3156
      %v3397 = vunpack.c.l.b16 %v3157
      %v3398 = vunpack.c.h.b16 %v3157
      %v3399 = vunpack.c.l.b16 %v3158
      %v3400 = vunpack.c.h.b16 %v3158
      %v3401 = vunpack.c.l.b16 %v3159
      %v3402 = vunpack.c.h.b16 %v3159
      %v3403 = vunpack.c.l.b16 %v3160
      %v3404 = vunpack.c.h.b16 %v3160
      %v3405 = vunpack.c.l.b16 %v3161
      %v3406 = vunpack.c.h.b16 %v3161
      %v3407 = vunpack.c.l.b16 %v3162
      %v3408 = vunpack.c.h.b16 %v3162
      %v3409 = vunpack.c.l.b16 %v3163
      %v3410 = vunpack.c.h.b16 %v3163
      %v3411 = vunpack.c.l.b16 %v3164
      %v3412 = vunpack.c.h.b16 %v3164
      %v3413 = vunpack.c.l.b16 %v3165
      %v3414 = vunpack.c.h.b16 %v3165
      %v3415 = vunpack.c.l.b16 %v3166
      %v3416 = vunpack.c.h.b16 %v3166
      %v3417 = vunpack.c.l.b16 %v3167
      %v3418 = vunpack.c.h.b16 %v3167
      %v3419 = vunpack.c.l.b16 %v3168
      %v3420 = vunpack.c.h.b16 %v3168
      %v3421 = vunpack.c.l.b16 %v3169
      %v3422 = vunpack.c.h.b16 %v3169
      %v3423 = vunpack.c.l.b16 %v3170
      %v3424 = vunpack.c.h.b16 %v3170
      %v3425 = vunpack.c.l.b16 %v3171
      %v3426 = vunpack.c.h.b16 %v3171
      %v3427 = vunpack.c.l.b16 %v3172
      %v3428 = vunpack.c.h.b16 %v3172
      %v3429 = vunpack.c.l.b16 %v3173
      %v3430 = vunpack.c.h.b16 %v3173
      %v3431 = vunpack.c.l.b16 %v3174
      %v3432 = vunpack.c.h.b16 %v3174
      %v3433 = vunpack.c.l.b16 %v3175
      %v3434 = vunpack.c.h.b16 %v3175
      %v3435 = vunpack.c.l.b16 %v3176
      %v3436 = vunpack.c.h.b16 %v3176
      %v3437 = vunpack.c.l.b16 %v3177
      %v3438 = vunpack.c.h.b16 %v3177
      %v3439 = vunpack.c.l.b16 %v3178
      %v3440 = vunpack.c.h.b16 %v3178
      %v3441 = vunpack.c.l.b16 %v3179
      %v3442 = vunpack.c.h.b16 %v3179
      %v3443 = vunpack.c.l.b16 %v3180
      %v3444 = vunpack.c.h.b16 %v3180
      %v3445 = vunpack.c.l.b16 %v3181
      %v3446 = vunpack.c.h.b16 %v3181
      %v3447 = vunpack.c.l.b16 %v3182
      %v3448 = vunpack.c.h.b16 %v3182
      %v3449 = vunpack.c.l.b16 %v3183
      %v3450 = vunpack.c.h.b16 %v3183
      %v3451 = vunpack.c.l.b16 %v3184
      %v3452 = vunpack.c.h.b16 %v3184
      %v3453 = vunpack.c.l.b16 %v3185
      %v3454 = vunpack.c.h.b16 %v3185
      %v3455 = vunpack.c.l.b16 %v3186
      %v3456 = vunpack.c.h.b16 %v3186
      %v3457 = vunpack.c.l.b16 %v3187
      %v3458 = vunpack.c.h.b16 %v3187
      %v3459 = vunpack.c.l.b16 %v3188
      %v3460 = vunpack.c.h.b16 %v3188
      %v3461 = vunpack.c.l.b16 %v3189
      %v3462 = vunpack.c.h.b16 %v3189
      %v3463 = vunpack.c.l.b16 %v3190
      %v3464 = vunpack.c.h.b16 %v3190
      %v3465 = vunpack.c.l.b16 %v3191
      %v3466 = vunpack.c.h.b16 %v3191
      %v3467 = vunpack.c.l.b16 %v3192
      %v3468 = vunpack.c.h.b16 %v3192
      %v3469 = vunpack.c.l.b16 %v3193
      %v3470 = vunpack.c.h.b16 %v3193
      %v3471 = vunpack.c.l.b16 %v3194
      %v3472 = vunpack.c.h.b16 %v3194
      %v3473 = vunpack.c.l.b16 %v3195
      %v3474 = vunpack.c.h.b16 %v3195
      %v3475 = vunpack.c.l.b16 %v3196
      %v3476 = vunpack.c.h.b16 %v3196
      %v3477 = vunpack.c.l.b16 %v3197
      %v3478 = vunpack.c.h.b16 %v3197
      %v3479 = vunpack.c.l.b16 %v3198
      %v3480 = vunpack.c.h.b16 %v3198
      %v3481 = vunpack.c.l.b16 %v3199
      %v3482 = vunpack.c.h.b16 %v3199
      %v3483 = vunpack.c.l.b16 %v3200
      %v3484 = vunpack.c.h.b16 %v3200
      %v3485 = vunpack.c.l.b16 %v3201
      %v3486 = vunpack.c.h.b16 %v3201
      %v3487 = vunpack.c.l.b16 %v3202
      %v3488 = vunpack.c.h.b16 %v3202
      %v3489 = vunpack.c.l.b16 %v3203
      %v3490 = vunpack.c.h.b16 %v3203
      %v3491 = vunpack.c.l.b16 %v3204
      %v3492 = vunpack.c.h.b16 %v3204
      %v3493 = vunpack.c.l.b16 %v3205
      %v3494 = vunpack.c.h.b16 %v3205
      %v3495 = vunpack.c.l.b16 %v3206
      %v3496 = vunpack.c.h.b16 %v3206
      %v3497 = vunpack.c.l.b16 %v3207
      %v3498 = vunpack.c.h.b16 %v3207
      %v3499 = vunpack.c.l.b16 %v3208
      %v3500 = vunpack.c.h.b16 %v3208
      %v3501 = vunpack.c.l.b16 %v3209
      %v3502 = vunpack.c.h.b16 %v3209
      %v3503 = vunpack.c.l.b16 %v3210
      %v3504 = vunpack.c.h.b16 %v3210
      %v3505 = vunpack.c.l.b16 %v3211
      %v3506 = vunpack.c.h.b16 %v3211
      %v3507 = vunpack.c.l.b16 %v3212
      %v3508 = vunpack.c.h.b16 %v3212
      %v3509 = vunpack.c.l.b16 %v3213
      %v3510 = vunpack.c.h.b16 %v3213
      %v3511 = vunpack.c.l.b16 %v3214
      %v3512 = vunpack.c.h.b16 %v3214
      %v3513 = vunpack.c.l.b16 %v3215
      %v3514 = vunpack.c.h.b16 %v3215
      %v3515 = vunpack.c.l.b16 %v3216
      %v3516 = vunpack.c.h.b16 %v3216
      %v3517 = vunpack.c.l.b16 %v3217
      %v3518 = vunpack.c.h.b16 %v3217
      %v3519 = vunpack.c.l.b16 %v3218
      %v3520 = vunpack.c.h.b16 %v3218
      %v3521 = vunpack.c.l.b16 %v3219
      %v3522 = vunpack.c.h.b16 %v3219
      %v3523 = vunpack.c.l.b16 %v3220
      %v3524 = vunpack.c.h.b16 %v3220
      %v3525 = vunpack.c.l.b16 %v3221
      %v3526 = vunpack.c.h.b16 %v3221
      %v3527 = vunpack.c.l.b16 %v3222
      %v3528 = vunpack.c.h.b16 %v3222
      %v3529 = vunpack.c.l.b16 %v3223
      %v3530 = vunpack.c.h.b16 %v3223
      %v3531 = vunpack.c.l.b16 %v3224
      %v3532 = vunpack.c.h.b16 %v3224
      %v3533 = vunpack.c.l.b16 %v3225
      %v3534 = vunpack.c.h.b16 %v3225
      %v3535 = vunpack.c.l.b16 %v3226
      %v3536 = vunpack.c.h.b16 %v3226
      %v3537 = vunpack.c.l.b16 %v3227
      %v3538 = vunpack.c.h.b16 %v3227
      %v3539 = vunpack.c.l.b16 %v3228
      %v3540 = vunpack.c.h.b16 %v3228
      %v3541 = vunpack.c.l.b16 %v3229
      %v3542 = vunpack.c.h.b16 %v3229
      %v3543 = vunpack.c.l.b16 %v3230
      %v3544 = vunpack.c.h.b16 %v3230
      %v3545 = vunpack.c.l.b16 %v3231
      %v3546 = vunpack.c.h.b16 %v3231
      %v3547 = vunpack.c.l.b16 %v3232
      %v3548 = vunpack.c.h.b16 %v3232
      %v3549 = vunpack.c.l.b16 %v3233
      %v3550 = vunpack.c.h.b16 %v3233
      %v3551 = vunpack.c.l.b16 %v3234
      %v3552 = vunpack.c.h.b16 %v3234
      %v3553 = vunpack.c.l.b16 %v3235
      %v3554 = vunpack.c.h.b16 %v3235
      %v3555 = vunpack.c.l.b16 %v3236
      %v3556 = vunpack.c.h.b16 %v3236
      %v3557 = vunpack.c.l.b16 %v3237
      %v3558 = vunpack.c.h.b16 %v3237
      %v3559 = vunpack.c.l.b16 %v3238
      %v3560 = vunpack.c.h.b16 %v3238
      %v3561 = vunpack.c.l.b16 %v3239
      %v3562 = vunpack.c.h.b16 %v3239
      %v3563 = vunpack.c.l.b16 %v3240
      %v3564 = vunpack.c.h.b16 %v3240
      %v3565 = vpack.c.b16 %v3351, %v3349
      %v3566 = vpack.c.b16 %v3352, %v3350
      %v3567 = vpack.c.b16 %v3355, %v3353
      %v3568 = vpack.c.b16 %v3356, %v3354
      %v3569 = vpack.c.b16 %v3359, %v3357
      %v3570 = vpack.c.b16 %v3360, %v3358
      %v3571 = vpack.c.b16 %v3363, %v3361
      %v3572 = vpack.c.b16 %v3364, %v3362
      %v3573 = vpack.c.b16 %v3367, %v3365
      %v3574 = vpack.c.b16 %v3368, %v3366
      %v3575 = vpack.c.b16 %v3371, %v3369
      %v3576 = vpack.c.b16 %v3372, %v3370
      %v3577 = vpack.c.b16 %v3375, %v3373
      %v3578 = vpack.c.b16 %v3376, %v3374
      %v3579 = vpack.c.b16 %v3379, %v3377
      %v3580 = vpack.c.b16 %v3380, %v3378
      %v3581 = vpack.c.b16 %v3383, %v3381
      %v3582 = vpack.c.b16 %v3384, %v3382
      %v3583 = vpack.c.b16 %v3387, %v3385
      %v3584 = vpack.c.b16 %v3388, %v3386
      %v3585 = vpack.c.b16 %v3391, %v3389
      %v3586 = vpack.c.b16 %v3392, %v3390
      %v3587 = vpack.c.b16 %v3395, %v3393
      %v3588 = vpack.c.b16 %v3396, %v3394
      %v3589 = vpack.c.b16 %v3399, %v3397
      %v3590 = vpack.c.b16 %v3400, %v3398
      %v3591 = vpack.c.b16 %v3403, %v3401
      %v3592 = vpack.c.b16 %v3404, %v3402
      %v3593 = vpack.c.b16 %v3407, %v3405
      %v3594 = vpack.c.b16 %v3408, %v3406
      %v3595 = vpack.c.b16 %v3411, %v3409
      %v3596 = vpack.c.b16 %v3412, %v3410
      %v3597 = vpack.c.b16 %v3415, %v3413
      %v3598 = vpack.c.b16 %v3416, %v3414
      %v3599 = vpack.c.b16 %v3419, %v3417
      %v3600 = vpack.c.b16 %v3420, %v3418
      %v3601 = vpack.c.b16 %v3423, %v3421
      %v3602 = vpack.c.b16 %v3424, %v3422
      %v3603 = vpack.c.b16 %v3427, %v3425
      %v3604 = vpack.c.b16 %v3428, %v3426
      %v3605 = vpack.c.b16 %v3431, %v3429
      %v3606 = vpack.c.b16 %v3432, %v3430
      %v3607 = vpack.c.b16 %v3435, %v3433
      %v3608 = vpack.c.b16 %v3436, %v3434
      %v3609 = vpack.c.b16 %v3439, %v3437
      %v3610 = vpack.c.b16 %v3440, %v3438
      %v3611 = vpack.c.b16 %v3443, %v3441
      %v3612 = vpack.c.b16 %v3444, %v3442
      %v3613 = vpack.c.b16 %v3447, %v3445
      %v3614 = vpack.c.b16 %v3448, %v3446
      %v3615 = vpack.c.b16 %v3451, %v3449
      %v3616 = vpack.c.b16 %v3452, %v3450
      %v3617 = vpack.c.b16 %v3455, %v3453
      %v3618 = vpack.c.b16 %v3456, %v3454
      %v3619 = vpack.c.b16 %v3459, %v3457
      %v3620 = vpack.c.b16 %v3460, %v3458
      %v3621 = vpack.c.b16 %v3463, %v3461
      %v3622 = vpack.c.b16 %v3464, %v3462
      %v3623 = vpack.c.b16 %v3467, %v3465
      %v3624 = vpack.c.b16 %v3468, %v3466
      %v3625 = vpack.c.b16 %v3471, %v3469
      %v3626 = vpack.c.b16 %v3472, %v3470
      %v3627 = vpack.c.b16 %v3475, %v3473
      %v3628 = vpack.c.b16 %v3476, %v3474
      %v3629 = vpack.c.b16 %v3479, %v3477
      %v3630 = vpack.c.b16 %v3480, %v3478
      %v3631 = vpack.c.b16 %v3483, %v3481
      %v3632 = vpack.c.b16 %v3484, %v3482
      %v3633 = vpack.c.b16 %v3487, %v3485
      %v3634 = vpack.c.b16 %v3488, %v3486
      %v3635 = vpack.c.b16 %v3491, %v3489
      %v3636 = vpack.c.b16 %v3492, %v3490
      %v3637 = vpack.c.b16 %v3495, %v3493
      %v3638 = vpack.c.b16 %v3496, %v3494
      %v3639 = vpack.c.b16 %v3499, %v3497
      %v3640 = vpack.c.b16 %v3500, %v3498
      %v3641 = vpack.c.b16 %v3503, %v3501
      %v3642 = vpack.c.b16 %v3504, %v3502
      %v3643 = vpack.c.b16 %v3507, %v3505
      %v3644 = vpack.c.b16 %v3508, %v3506
      %v3645 = vpack.c.b16 %v3511, %v3509
      %v3646 = vpack.c.b16 %v3512, %v3510
      %v3647 = vpack.c.b16 %v3515, %v3513
      %v3648 = vpack.c.b16 %v3516, %v3514
      %v3649 = vpack.c.b16 %v3519, %v3517
      %v3650 = vpack.c.b16 %v3520, %v3518
      %v3651 = vpack.c.b16 %v3523, %v3521
      %v3652 = vpack.c.b16 %v3524, %v3522
      %v3653 = vpack.c.b16 %v3527, %v3525
      %v3654 = vpack.c.b16 %v3528, %v3526
      %v3655 = vpack.c.b16 %v3531, %v3529
      %v3656 = vpack.c.b16 %v3532, %v3530
      %v3657 = vpack.c.b16 %v3535, %v3533
      %v3658 = vpack.c.b16 %v3536, %v3534
      %v3659 = vpack.c.b16 %v3539, %v3537
      %v3660 = vpack.c.b16 %v3540, %v3538
      %v3661 = vpack.c.b16 %v3543, %v3541
      %v3662 = vpack.c.b16 %v3544, %v3542
      %v3663 = vpack.c.b16 %v3547, %v3545
      %v3664 = vpack.c.b16 %v3548, %v3546
      %v3665 = vpack.c.b16 %v3551, %v3549
      %v3666 = vpack.c.b16 %v3552, %v3550
      %v3667 = vpack.c.b16 %v3555, %v3553
      %v3668 = vpack.c.b16 %v3556, %v3554
      %v3669 = vpack.c.b16 %v3559, %v3557
      %v3670 = vpack.c.b16 %v3560, %v3558
      %v3671 = vpack.c.b16 %v3563, %v3561
      %v3672 = vpack.c.b16 %v3564, %v3562
      %vm3727 = vcmask 719872
      %v3729 = vsel %vm3727, %v3566, 0
      %v3732 = vsel %vm3727, %v3568, 0
      %v3735 = vsel %vm3727, %v3570, 0
      %v3738 = vsel %vm3727, %v3572, 0
      %v3741 = vsel %vm3727, %v3574, 0
      %v3744 = vsel %vm3727, %v3576, 0
      %v3747 = vsel %vm3727, %v3578, 0
      %v3750 = vsel %vm3727, %v3580, 0
      %v3753 = vsel %vm3727, %v3582, 0
      %v3756 = vsel %vm3727, %v3584, 0
      %v3759 = vsel %vm3727, %v3586, 0
      %v3762 = vsel %vm3727, %v3588, 0
      %v3765 = vsel %vm3727, %v3590, 0
      %v3768 = vsel %vm3727, %v3592, 0
      %v3771 = vsel %vm3727, %v3594, 0
      %v3774 = vsel %vm3727, %v3596, 0
      %v3777 = vsel %vm3727, %v3598, 0
      %v3780 = vsel %vm3727, %v3600, 0
      %v3783 = vsel %vm3727, %v3602, 0
      %v3786 = vsel %vm3727, %v3604, 0
      %v3789 = vsel %vm3727, %v3606, 0
      %v3792 = vsel %vm3727, %v3608, 0
      %v3795 = vsel %vm3727, %v3610, 0
      %v3798 = vsel %vm3727, %v3612, 0
      %v3801 = vsel %vm3727, %v3614, 0
      %v3804 = vsel %vm3727, %v3616, 0
      %v3807 = vsel %vm3727, %v3618, 0
      %v3810 = vsel %vm3727, %v3620, 0
      %v3813 = vsel %vm3727, %v3622, 0
      %v3816 = vsel %vm3727, %v3624, 0
      %v3819 = vsel %vm3727, %v3626, 0
      %v3822 = vsel %vm3727, %v3628, 0
      %v3825 = vsel %vm3727, %v3630, 0
      %v3828 = vsel %vm3727, %v3632, 0
      %v3831 = vsel %vm3727, %v3634, 0
      %v3834 = vsel %vm3727, %v3636, 0
      %v3837 = vsel %vm3727, %v3638, 0
      %v3840 = vsel %vm3727, %v3640, 0
      %v3843 = vsel %vm3727, %v3642, 0
      %v3846 = vsel %vm3727, %v3644, 0
      %v3849 = vsel %vm3727, %v3646, 0
      %v3852 = vsel %vm3727, %v3648, 0
      %v3855 = vsel %vm3727, %v3650, 0
      %v3858 = vsel %vm3727, %v3652, 0
      %v3861 = vsel %vm3727, %v3654, 0
      %v3864 = vsel %vm3727, %v3656, 0
      %v3867 = vsel %vm3727, %v3658, 0
      %v3870 = vsel %vm3727, %v3660, 0
      %v3873 = vsel %vm3727, %v3662, 0
      %v3876 = vsel %vm3727, %v3664, 0
      %v3879 = vsel %vm3727, %v3666, 0
      %v3882 = vsel %vm3727, %v3668, 0
      %v3885 = vsel %vm3727, %v3670, 0
      %v3888 = vsel %vm3727, %v3672, 0
      %vm3890 = vcmask 1043456
      %v3892 = vsel %vm3890, %v3132, 0
      %3894 = vmatpush.bf16.msra.mxu0 %v3126
      %3895 = vmatpush.bf16.msra.mxu0 %v3125
      %3896 = vmatpush.bf16.msra.mxu0 %v3124
      %3897 = vmatpush.bf16.msra.mxu0 %v3123
      %3898 = vmatpush.bf16.msra.mxu0 %v3122
      %3899 = vmatpush.bf16.msra.mxu0 %v3121
      %3900 = vmatpush.bf16.msra.mxu0 %v3120
      %3901 = vmatpush.bf16.msra.mxu0 %v3119
      %3902 = vmatmul.bf16.gmra.mxu0 %v3565
      %v3903 = vpop.f32.mrf.mxu0
      %v3904 = vadd.f32 0.0, %v3903
      %v3905 = vpop.f32.mrf.mxu0
      %v3906 = vadd.f32 0.0, %v3905
      %3907 = vmatmul.bf16.gmra.mxu0 %v3567
      %v3908 = vpop.f32.mrf.mxu0
      %v3909 = vadd.f32 0.0, %v3908
      %v3910 = vpop.f32.mrf.mxu0
      %v3911 = vadd.f32 0.0, %v3910
      %3912 = vmatmul.bf16.gmra.mxu0 %v3569
      %v3913 = vpop.f32.mrf.mxu0
      %v3914 = vadd.f32 0.0, %v3913
      %v3915 = vpop.f32.mrf.mxu0
      %v3916 = vadd.f32 0.0, %v3915
      %3917 = vmatmul.bf16.gmra.mxu0 %v3571
      %v3918 = vpop.f32.mrf.mxu0
      %v3919 = vadd.f32 0.0, %v3918
      %v3920 = vpop.f32.mrf.mxu0
      %v3921 = vadd.f32 0.0, %v3920
      %3922 = vmatmul.bf16.gmra.mxu0 %v3573
      %v3923 = vpop.f32.mrf.mxu0
      %v3924 = vadd.f32 0.0, %v3923
      %v3925 = vpop.f32.mrf.mxu0
      %v3926 = vadd.f32 0.0, %v3925
      %3927 = vmatmul.bf16.gmra.mxu0 %v3575
      %v3928 = vpop.f32.mrf.mxu0
      %v3929 = vadd.f32 0.0, %v3928
      %v3930 = vpop.f32.mrf.mxu0
      %v3931 = vadd.f32 0.0, %v3930
      %3932 = vmatmul.bf16.gmra.mxu0 %v3577
      %v3933 = vpop.f32.mrf.mxu0
      %v3934 = vadd.f32 0.0, %v3933
      %v3935 = vpop.f32.mrf.mxu0
      %v3936 = vadd.f32 0.0, %v3935
      %3937 = vmatmul.bf16.gmra.mxu0 %v3579
      %v3938 = vpop.f32.mrf.mxu0
      %v3939 = vadd.f32 0.0, %v3938
      %v3940 = vpop.f32.mrf.mxu0
      %v3941 = vadd.f32 0.0, %v3940
      %3942 = vmatmul.bf16.gmra.mxu0 %v3581
      %v3943 = vpop.f32.mrf.mxu0
      %v3944 = vadd.f32 0.0, %v3943
      %v3945 = vpop.f32.mrf.mxu0
      %v3946 = vadd.f32 0.0, %v3945
      %3947 = vmatmul.bf16.gmra.mxu0 %v3583
      %v3948 = vpop.f32.mrf.mxu0
      %v3949 = vadd.f32 0.0, %v3948
      %v3950 = vpop.f32.mrf.mxu0
      %v3951 = vadd.f32 0.0, %v3950
      %3952 = vmatmul.bf16.gmra.mxu0 %v3585
      %v3953 = vpop.f32.mrf.mxu0
      %v3954 = vadd.f32 0.0, %v3953
      %v3955 = vpop.f32.mrf.mxu0
      %v3956 = vadd.f32 0.0, %v3955
      %3957 = vmatmul.bf16.gmra.mxu0 %v3587
      %v3958 = vpop.f32.mrf.mxu0
      %v3959 = vadd.f32 0.0, %v3958
      %v3960 = vpop.f32.mrf.mxu0
      %v3961 = vadd.f32 0.0, %v3960
      %3962 = vmatmul.bf16.gmra.mxu0 %v3589
      %v3963 = vpop.f32.mrf.mxu0
      %v3964 = vadd.f32 0.0, %v3963
      %v3965 = vpop.f32.mrf.mxu0
      %v3966 = vadd.f32 0.0, %v3965
      %3967 = vmatmul.bf16.gmra.mxu0 %v3591
      %v3968 = vpop.f32.mrf.mxu0
      %v3969 = vadd.f32 0.0, %v3968
      %v3970 = vpop.f32.mrf.mxu0
      %v3971 = vadd.f32 0.0, %v3970
      %3972 = vmatmul.bf16.gmra.mxu0 %v3593
      %v3973 = vpop.f32.mrf.mxu0
      %v3974 = vadd.f32 0.0, %v3973
      %v3975 = vpop.f32.mrf.mxu0
      %v3976 = vadd.f32 0.0, %v3975
      %3977 = vmatmul.bf16.gmra.mxu0 %v3595
      %v3978 = vpop.f32.mrf.mxu0
      %v3979 = vadd.f32 0.0, %v3978
      %v3980 = vpop.f32.mrf.mxu0
      %v3981 = vadd.f32 0.0, %v3980
      %3982 = vmatmul.bf16.gmra.mxu0 %v3597
      %v3983 = vpop.f32.mrf.mxu0
      %v3984 = vadd.f32 0.0, %v3983
      %v3985 = vpop.f32.mrf.mxu0
      %v3986 = vadd.f32 0.0, %v3985
      %3987 = vmatmul.bf16.gmra.mxu0 %v3599
      %v3988 = vpop.f32.mrf.mxu0
      %v3989 = vadd.f32 0.0, %v3988
      %v3990 = vpop.f32.mrf.mxu0
      %v3991 = vadd.f32 0.0, %v3990
      %3992 = vmatmul.bf16.gmra.mxu0 %v3601
      %v3993 = vpop.f32.mrf.mxu0
      %v3994 = vadd.f32 0.0, %v3993
      %v3995 = vpop.f32.mrf.mxu0
      %v3996 = vadd.f32 0.0, %v3995
      %3997 = vmatmul.bf16.gmra.mxu0 %v3603
      %v3998 = vpop.f32.mrf.mxu0
      %v3999 = vadd.f32 0.0, %v3998
      %v4000 = vpop.f32.mrf.mxu0
      %v4001 = vadd.f32 0.0, %v4000
      %4002 = vmatmul.bf16.gmra.mxu0 %v3605
      %v4003 = vpop.f32.mrf.mxu0
      %v4004 = vadd.f32 0.0, %v4003
      %v4005 = vpop.f32.mrf.mxu0
      %v4006 = vadd.f32 0.0, %v4005
      %4007 = vmatmul.bf16.gmra.mxu0 %v3607
      %v4008 = vpop.f32.mrf.mxu0
      %v4009 = vadd.f32 0.0, %v4008
      %v4010 = vpop.f32.mrf.mxu0
      %v4011 = vadd.f32 0.0, %v4010
      %4012 = vmatmul.bf16.gmra.mxu0 %v3609
      %v4013 = vpop.f32.mrf.mxu0
      %v4014 = vadd.f32 0.0, %v4013
      %v4015 = vpop.f32.mrf.mxu0
      %v4016 = vadd.f32 0.0, %v4015
      %4017 = vmatmul.bf16.gmra.mxu0 %v3611
      %v4018 = vpop.f32.mrf.mxu0
      %v4019 = vadd.f32 0.0, %v4018
      %v4020 = vpop.f32.mrf.mxu0
      %v4021 = vadd.f32 0.0, %v4020
      %4022 = vmatmul.bf16.gmra.mxu0 %v3613
      %v4023 = vpop.f32.mrf.mxu0
      %v4024 = vadd.f32 0.0, %v4023
      %v4025 = vpop.f32.mrf.mxu0
      %v4026 = vadd.f32 0.0, %v4025
      %4027 = vmatmul.bf16.gmra.mxu0 %v3615
      %v4028 = vpop.f32.mrf.mxu0
      %v4029 = vadd.f32 0.0, %v4028
      %v4030 = vpop.f32.mrf.mxu0
      %v4031 = vadd.f32 0.0, %v4030
      %4032 = vmatmul.bf16.gmra.mxu0 %v3617
      %v4033 = vpop.f32.mrf.mxu0
      %v4034 = vadd.f32 0.0, %v4033
      %v4035 = vpop.f32.mrf.mxu0
      %v4036 = vadd.f32 0.0, %v4035
      %4037 = vmatmul.bf16.gmra.mxu0 %v3619
      %v4038 = vpop.f32.mrf.mxu0
      %v4039 = vadd.f32 0.0, %v4038
      %v4040 = vpop.f32.mrf.mxu0
      %v4041 = vadd.f32 0.0, %v4040
      %4042 = vmatmul.bf16.gmra.mxu0 %v3621
      %v4043 = vpop.f32.mrf.mxu0
      %v4044 = vadd.f32 0.0, %v4043
      %v4045 = vpop.f32.mrf.mxu0
      %v4046 = vadd.f32 0.0, %v4045
      %4047 = vmatmul.bf16.gmra.mxu0 %v3623
      %v4048 = vpop.f32.mrf.mxu0
      %v4049 = vadd.f32 0.0, %v4048
      %v4050 = vpop.f32.mrf.mxu0
      %v4051 = vadd.f32 0.0, %v4050
      %4052 = vmatmul.bf16.gmra.mxu0 %v3625
      %v4053 = vpop.f32.mrf.mxu0
      %v4054 = vadd.f32 0.0, %v4053
      %v4055 = vpop.f32.mrf.mxu0
      %v4056 = vadd.f32 0.0, %v4055
      %4057 = vmatmul.bf16.gmra.mxu0 %v3627
      %v4058 = vpop.f32.mrf.mxu0
      %v4059 = vadd.f32 0.0, %v4058
      %v4060 = vpop.f32.mrf.mxu0
      %v4061 = vadd.f32 0.0, %v4060
      %4062 = vmatmul.bf16.gmra.mxu0 %v3629
      %v4063 = vpop.f32.mrf.mxu0
      %v4064 = vadd.f32 0.0, %v4063
      %v4065 = vpop.f32.mrf.mxu0
      %v4066 = vadd.f32 0.0, %v4065
      %4067 = vmatmul.bf16.gmra.mxu0 %v3631
      %v4068 = vpop.f32.mrf.mxu0
      %v4069 = vadd.f32 0.0, %v4068
      %v4070 = vpop.f32.mrf.mxu0
      %v4071 = vadd.f32 0.0, %v4070
      %4072 = vmatmul.bf16.gmra.mxu0 %v3633
      %v4073 = vpop.f32.mrf.mxu0
      %v4074 = vadd.f32 0.0, %v4073
      %v4075 = vpop.f32.mrf.mxu0
      %v4076 = vadd.f32 0.0, %v4075
      %4077 = vmatmul.bf16.gmra.mxu0 %v3635
      %v4078 = vpop.f32.mrf.mxu0
      %v4079 = vadd.f32 0.0, %v4078
      %v4080 = vpop.f32.mrf.mxu0
      %v4081 = vadd.f32 0.0, %v4080
      %4082 = vmatmul.bf16.gmra.mxu0 %v3637
      %v4083 = vpop.f32.mrf.mxu0
      %v4084 = vadd.f32 0.0, %v4083
      %v4085 = vpop.f32.mrf.mxu0
      %v4086 = vadd.f32 0.0, %v4085
      %4087 = vmatmul.bf16.gmra.mxu0 %v3639
      %v4088 = vpop.f32.mrf.mxu0
      %v4089 = vadd.f32 0.0, %v4088
      %v4090 = vpop.f32.mrf.mxu0
      %v4091 = vadd.f32 0.0, %v4090
      %4092 = vmatmul.bf16.gmra.mxu0 %v3641
      %v4093 = vpop.f32.mrf.mxu0
      %v4094 = vadd.f32 0.0, %v4093
      %v4095 = vpop.f32.mrf.mxu0
      %v4096 = vadd.f32 0.0, %v4095
      %4097 = vmatmul.bf16.gmra.mxu0 %v3643
      %v4098 = vpop.f32.mrf.mxu0
      %v4099 = vadd.f32 0.0, %v4098
      %v4100 = vpop.f32.mrf.mxu0
      %v4101 = vadd.f32 0.0, %v4100
      %4102 = vmatmul.bf16.gmra.mxu0 %v3645
      %v4103 = vpop.f32.mrf.mxu0
      %v4104 = vadd.f32 0.0, %v4103
      %v4105 = vpop.f32.mrf.mxu0
      %v4106 = vadd.f32 0.0, %v4105
      %4107 = vmatmul.bf16.gmra.mxu0 %v3647
      %v4108 = vpop.f32.mrf.mxu0
      %v4109 = vadd.f32 0.0, %v4108
      %v4110 = vpop.f32.mrf.mxu0
      %v4111 = vadd.f32 0.0, %v4110
      %4112 = vmatmul.bf16.gmra.mxu0 %v3649
      %v4113 = vpop.f32.mrf.mxu0
      %v4114 = vadd.f32 0.0, %v4113
      %v4115 = vpop.f32.mrf.mxu0
      %v4116 = vadd.f32 0.0, %v4115
      %4117 = vmatmul.bf16.gmra.mxu0 %v3651
      %v4118 = vpop.f32.mrf.mxu0
      %v4119 = vadd.f32 0.0, %v4118
      %v4120 = vpop.f32.mrf.mxu0
      %v4121 = vadd.f32 0.0, %v4120
      %4122 = vmatmul.bf16.gmra.mxu0 %v3653
      %v4123 = vpop.f32.mrf.mxu0
      %v4124 = vadd.f32 0.0, %v4123
      %v4125 = vpop.f32.mrf.mxu0
      %v4126 = vadd.f32 0.0, %v4125
      %4127 = vmatmul.bf16.gmra.mxu0 %v3655
      %v4128 = vpop.f32.mrf.mxu0
      %v4129 = vadd.f32 0.0, %v4128
      %v4130 = vpop.f32.mrf.mxu0
      %v4131 = vadd.f32 0.0, %v4130
      %4132 = vmatmul.bf16.gmra.mxu0 %v3657
      %v4133 = vpop.f32.mrf.mxu0
      %v4134 = vadd.f32 0.0, %v4133
      %v4135 = vpop.f32.mrf.mxu0
      %v4136 = vadd.f32 0.0, %v4135
      %4137 = vmatmul.bf16.gmra.mxu0 %v3659
      %v4138 = vpop.f32.mrf.mxu0
      %v4139 = vadd.f32 0.0, %v4138
      %v4140 = vpop.f32.mrf.mxu0
      %v4141 = vadd.f32 0.0, %v4140
      %4142 = vmatmul.bf16.gmra.mxu0 %v3661
      %v4143 = vpop.f32.mrf.mxu0
      %v4144 = vadd.f32 0.0, %v4143
      %v4145 = vpop.f32.mrf.mxu0
      %v4146 = vadd.f32 0.0, %v4145
      %4147 = vmatmul.bf16.gmra.mxu0 %v3663
      %v4148 = vpop.f32.mrf.mxu0
      %v4149 = vadd.f32 0.0, %v4148
      %v4150 = vpop.f32.mrf.mxu0
      %v4151 = vadd.f32 0.0, %v4150
      %4152 = vmatmul.bf16.gmra.mxu0 %v3665
      %v4153 = vpop.f32.mrf.mxu0
      %v4154 = vadd.f32 0.0, %v4153
      %v4155 = vpop.f32.mrf.mxu0
      %v4156 = vadd.f32 0.0, %v4155
      %4157 = vmatmul.bf16.gmra.mxu0 %v3667
      %v4158 = vpop.f32.mrf.mxu0
      %v4159 = vadd.f32 0.0, %v4158
      %v4160 = vpop.f32.mrf.mxu0
      %v4161 = vadd.f32 0.0, %v4160
      %4162 = vmatmul.bf16.gmra.mxu0 %v3669
      %v4163 = vpop.f32.mrf.mxu0
      %v4164 = vadd.f32 0.0, %v4163
      %v4165 = vpop.f32.mrf.mxu0
      %v4166 = vadd.f32 0.0, %v4165
      %4167 = vmatmul.bf16.gmra.mxu0 %v3671
      %v4168 = vpop.f32.mrf.mxu0
      %v4169 = vadd.f32 0.0, %v4168
      %v4170 = vpop.f32.mrf.mxu0
      %v4171 = vadd.f32 0.0, %v4170
      %4172 = vdwg.mxu0
      %4173 = vmatpush.bf16.msra.mxu0 0
      %4174 = vmatpush.bf16.msra.mxu0 0
      %4175 = vmatpush.bf16.msra.mxu0 %v3892
      %4176 = vmatpush.bf16.msra.mxu0 %v3131
      %4177 = vmatpush.bf16.msra.mxu0 %v3130
      %4178 = vmatpush.bf16.msra.mxu0 %v3129
      %4179 = vmatpush.bf16.msra.mxu0 %v3128
      %4180 = vmatpush.bf16.msra.mxu0 %v3127
      %4181 = vmatmul.bf16.gmra.mxu0 %v3729
      %v4182 = vpop.f32.mrf.mxu0
      %v4183 = vadd.f32 %v3904, %v4182
      %v4184 = vpop.f32.mrf.mxu0
      %v4185 = vadd.f32 %v3906, %v4184
      %4186 = vmatmul.bf16.gmra.mxu0 %v3732
      %v4187 = vpop.f32.mrf.mxu0
      %v4188 = vadd.f32 %v3909, %v4187
      %v4189 = vpop.f32.mrf.mxu0
      %v4190 = vadd.f32 %v3911, %v4189
      %4191 = vmatmul.bf16.gmra.mxu0 %v3735
      %v4192 = vpop.f32.mrf.mxu0
      %v4193 = vadd.f32 %v3914, %v4192
      %v4194 = vpop.f32.mrf.mxu0
      %v4195 = vadd.f32 %v3916, %v4194
      %4196 = vmatmul.bf16.gmra.mxu0 %v3738
      %v4197 = vpop.f32.mrf.mxu0
      %v4198 = vadd.f32 %v3919, %v4197
      %v4199 = vpop.f32.mrf.mxu0
      %v4200 = vadd.f32 %v3921, %v4199
      %4201 = vmatmul.bf16.gmra.mxu0 %v3741
      %v4202 = vpop.f32.mrf.mxu0
      %v4203 = vadd.f32 %v3924, %v4202
      %v4204 = vpop.f32.mrf.mxu0
      %v4205 = vadd.f32 %v3926, %v4204
      %4206 = vmatmul.bf16.gmra.mxu0 %v3744
      %v4207 = vpop.f32.mrf.mxu0
      %v4208 = vadd.f32 %v3929, %v4207
      %v4209 = vpop.f32.mrf.mxu0
      %v4210 = vadd.f32 %v3931, %v4209
      %4211 = vmatmul.bf16.gmra.mxu0 %v3747
      %v4212 = vpop.f32.mrf.mxu0
      %v4213 = vadd.f32 %v3934, %v4212
      %v4214 = vpop.f32.mrf.mxu0
      %v4215 = vadd.f32 %v3936, %v4214
      %4216 = vmatmul.bf16.gmra.mxu0 %v3750
      %v4217 = vpop.f32.mrf.mxu0
      %v4218 = vadd.f32 %v3939, %v4217
      %v4219 = vpop.f32.mrf.mxu0
      %v4220 = vadd.f32 %v3941, %v4219
      %4221 = vmatmul.bf16.gmra.mxu0 %v3753
      %v4222 = vpop.f32.mrf.mxu0
      %v4223 = vadd.f32 %v3944, %v4222
      %v4224 = vpop.f32.mrf.mxu0
      %v4225 = vadd.f32 %v3946, %v4224
      %4226 = vmatmul.bf16.gmra.mxu0 %v3756
      %v4227 = vpop.f32.mrf.mxu0
      %v4228 = vadd.f32 %v3949, %v4227
      %v4229 = vpop.f32.mrf.mxu0
      %v4230 = vadd.f32 %v3951, %v4229
      %4231 = vmatmul.bf16.gmra.mxu0 %v3759
      %v4232 = vpop.f32.mrf.mxu0
      %v4233 = vadd.f32 %v3954, %v4232
      %v4234 = vpop.f32.mrf.mxu0
      %v4235 = vadd.f32 %v3956, %v4234
      %4236 = vmatmul.bf16.gmra.mxu0 %v3762
      %v4237 = vpop.f32.mrf.mxu0
      %v4238 = vadd.f32 %v3959, %v4237
      %v4239 = vpop.f32.mrf.mxu0
      %v4240 = vadd.f32 %v3961, %v4239
      %4241 = vmatmul.bf16.gmra.mxu0 %v3765
      %v4242 = vpop.f32.mrf.mxu0
      %v4243 = vadd.f32 %v3964, %v4242
      %v4244 = vpop.f32.mrf.mxu0
      %v4245 = vadd.f32 %v3966, %v4244
      %4246 = vmatmul.bf16.gmra.mxu0 %v3768
      %v4247 = vpop.f32.mrf.mxu0
      %v4248 = vadd.f32 %v3969, %v4247
      %v4249 = vpop.f32.mrf.mxu0
      %v4250 = vadd.f32 %v3971, %v4249
      %4251 = vmatmul.bf16.gmra.mxu0 %v3771
      %v4252 = vpop.f32.mrf.mxu0
      %v4253 = vadd.f32 %v3974, %v4252
      %v4254 = vpop.f32.mrf.mxu0
      %v4255 = vadd.f32 %v3976, %v4254
      %4256 = vmatmul.bf16.gmra.mxu0 %v3774
      %v4257 = vpop.f32.mrf.mxu0
      %v4258 = vadd.f32 %v3979, %v4257
      %v4259 = vpop.f32.mrf.mxu0
      %v4260 = vadd.f32 %v3981, %v4259
      %4261 = vmatmul.bf16.gmra.mxu0 %v3777
      %v4262 = vpop.f32.mrf.mxu0
      %v4263 = vadd.f32 %v3984, %v4262
      %v4264 = vpop.f32.mrf.mxu0
      %v4265 = vadd.f32 %v3986, %v4264
      %4266 = vmatmul.bf16.gmra.mxu0 %v3780
      %v4267 = vpop.f32.mrf.mxu0
      %v4268 = vadd.f32 %v3989, %v4267
      %v4269 = vpop.f32.mrf.mxu0
      %v4270 = vadd.f32 %v3991, %v4269
      %4271 = vmatmul.bf16.gmra.mxu0 %v3783
      %v4272 = vpop.f32.mrf.mxu0
      %v4273 = vadd.f32 %v3994, %v4272
      %v4274 = vpop.f32.mrf.mxu0
      %v4275 = vadd.f32 %v3996, %v4274
      %4276 = vmatmul.bf16.gmra.mxu0 %v3786
      %v4277 = vpop.f32.mrf.mxu0
      %v4278 = vadd.f32 %v3999, %v4277
      %v4279 = vpop.f32.mrf.mxu0
      %v4280 = vadd.f32 %v4001, %v4279
      %4281 = vmatmul.bf16.gmra.mxu0 %v3789
      %v4282 = vpop.f32.mrf.mxu0
      %v4283 = vadd.f32 %v4004, %v4282
      %v4284 = vpop.f32.mrf.mxu0
      %v4285 = vadd.f32 %v4006, %v4284
      %4286 = vmatmul.bf16.gmra.mxu0 %v3792
      %v4287 = vpop.f32.mrf.mxu0
      %v4288 = vadd.f32 %v4009, %v4287
      %v4289 = vpop.f32.mrf.mxu0
      %v4290 = vadd.f32 %v4011, %v4289
      %4291 = vmatmul.bf16.gmra.mxu0 %v3795
      %v4292 = vpop.f32.mrf.mxu0
      %v4293 = vadd.f32 %v4014, %v4292
      %v4294 = vpop.f32.mrf.mxu0
      %v4295 = vadd.f32 %v4016, %v4294
      %4296 = vmatmul.bf16.gmra.mxu0 %v3798
      %v4297 = vpop.f32.mrf.mxu0
      %v4298 = vadd.f32 %v4019, %v4297
      %v4299 = vpop.f32.mrf.mxu0
      %v4300 = vadd.f32 %v4021, %v4299
      %4301 = vmatmul.bf16.gmra.mxu0 %v3801
      %v4302 = vpop.f32.mrf.mxu0
      %v4303 = vadd.f32 %v4024, %v4302
      %v4304 = vpop.f32.mrf.mxu0
      %v4305 = vadd.f32 %v4026, %v4304
      %4306 = vmatmul.bf16.gmra.mxu0 %v3804
      %v4307 = vpop.f32.mrf.mxu0
      %v4308 = vadd.f32 %v4029, %v4307
      %v4309 = vpop.f32.mrf.mxu0
      %v4310 = vadd.f32 %v4031, %v4309
      %4311 = vmatmul.bf16.gmra.mxu0 %v3807
      %v4312 = vpop.f32.mrf.mxu0
      %v4313 = vadd.f32 %v4034, %v4312
      %v4314 = vpop.f32.mrf.mxu0
      %v4315 = vadd.f32 %v4036, %v4314
      %4316 = vmatmul.bf16.gmra.mxu0 %v3810
      %v4317 = vpop.f32.mrf.mxu0
      %v4318 = vadd.f32 %v4039, %v4317
      %v4319 = vpop.f32.mrf.mxu0
      %v4320 = vadd.f32 %v4041, %v4319
      %4321 = vmatmul.bf16.gmra.mxu0 %v3813
      %v4322 = vpop.f32.mrf.mxu0
      %v4323 = vadd.f32 %v4044, %v4322
      %v4324 = vpop.f32.mrf.mxu0
      %v4325 = vadd.f32 %v4046, %v4324
      %4326 = vmatmul.bf16.gmra.mxu0 %v3816
      %v4327 = vpop.f32.mrf.mxu0
      %v4328 = vadd.f32 %v4049, %v4327
      %v4329 = vpop.f32.mrf.mxu0
      %v4330 = vadd.f32 %v4051, %v4329
      %4331 = vmatmul.bf16.gmra.mxu0 %v3819
      %v4332 = vpop.f32.mrf.mxu0
      %v4333 = vadd.f32 %v4054, %v4332
      %v4334 = vpop.f32.mrf.mxu0
      %v4335 = vadd.f32 %v4056, %v4334
      %4336 = vmatmul.bf16.gmra.mxu0 %v3822
      %v4337 = vpop.f32.mrf.mxu0
      %v4338 = vadd.f32 %v4059, %v4337
      %v4339 = vpop.f32.mrf.mxu0
      %v4340 = vadd.f32 %v4061, %v4339
      %4341 = vmatmul.bf16.gmra.mxu0 %v3825
      %v4342 = vpop.f32.mrf.mxu0
      %v4343 = vadd.f32 %v4064, %v4342
      %v4344 = vpop.f32.mrf.mxu0
      %v4345 = vadd.f32 %v4066, %v4344
      %4346 = vmatmul.bf16.gmra.mxu0 %v3828
      %v4347 = vpop.f32.mrf.mxu0
      %v4348 = vadd.f32 %v4069, %v4347
      %v4349 = vpop.f32.mrf.mxu0
      %v4350 = vadd.f32 %v4071, %v4349
      %4351 = vmatmul.bf16.gmra.mxu0 %v3831
      %v4352 = vpop.f32.mrf.mxu0
      %v4353 = vadd.f32 %v4074, %v4352
      %v4354 = vpop.f32.mrf.mxu0
      %v4355 = vadd.f32 %v4076, %v4354
      %4356 = vmatmul.bf16.gmra.mxu0 %v3834
      %v4357 = vpop.f32.mrf.mxu0
      %v4358 = vadd.f32 %v4079, %v4357
      %v4359 = vpop.f32.mrf.mxu0
      %v4360 = vadd.f32 %v4081, %v4359
      %4361 = vmatmul.bf16.gmra.mxu0 %v3837
      %v4362 = vpop.f32.mrf.mxu0
      %v4363 = vadd.f32 %v4084, %v4362
      %v4364 = vpop.f32.mrf.mxu0
      %v4365 = vadd.f32 %v4086, %v4364
      %4366 = vmatmul.bf16.gmra.mxu0 %v3840
      %v4367 = vpop.f32.mrf.mxu0
      %v4368 = vadd.f32 %v4089, %v4367
      %v4369 = vpop.f32.mrf.mxu0
      %v4370 = vadd.f32 %v4091, %v4369
      %4371 = vmatmul.bf16.gmra.mxu0 %v3843
      %v4372 = vpop.f32.mrf.mxu0
      %v4373 = vadd.f32 %v4094, %v4372
      %v4374 = vpop.f32.mrf.mxu0
      %v4375 = vadd.f32 %v4096, %v4374
      %4376 = vmatmul.bf16.gmra.mxu0 %v3846
      %v4377 = vpop.f32.mrf.mxu0
      %v4378 = vadd.f32 %v4099, %v4377
      %v4379 = vpop.f32.mrf.mxu0
      %v4380 = vadd.f32 %v4101, %v4379
      %4381 = vmatmul.bf16.gmra.mxu0 %v3849
      %v4382 = vpop.f32.mrf.mxu0
      %v4383 = vadd.f32 %v4104, %v4382
      %v4384 = vpop.f32.mrf.mxu0
      %v4385 = vadd.f32 %v4106, %v4384
      %4386 = vmatmul.bf16.gmra.mxu0 %v3852
      %v4387 = vpop.f32.mrf.mxu0
      %v4388 = vadd.f32 %v4109, %v4387
      %v4389 = vpop.f32.mrf.mxu0
      %v4390 = vadd.f32 %v4111, %v4389
      %4391 = vmatmul.bf16.gmra.mxu0 %v3855
      %v4392 = vpop.f32.mrf.mxu0
      %v4393 = vadd.f32 %v4114, %v4392
      %v4394 = vpop.f32.mrf.mxu0
      %v4395 = vadd.f32 %v4116, %v4394
      %4396 = vmatmul.bf16.gmra.mxu0 %v3858
      %v4397 = vpop.f32.mrf.mxu0
      %v4398 = vadd.f32 %v4119, %v4397
      %v4399 = vpop.f32.mrf.mxu0
      %v4400 = vadd.f32 %v4121, %v4399
      %4401 = vmatmul.bf16.gmra.mxu0 %v3861
      %v4402 = vpop.f32.mrf.mxu0
      %v4403 = vadd.f32 %v4124, %v4402
      %v4404 = vpop.f32.mrf.mxu0
      %v4405 = vadd.f32 %v4126, %v4404
      %4406 = vmatmul.bf16.gmra.mxu0 %v3864
      %v4407 = vpop.f32.mrf.mxu0
      %v4408 = vadd.f32 %v4129, %v4407
      %v4409 = vpop.f32.mrf.mxu0
      %v4410 = vadd.f32 %v4131, %v4409
      %4411 = vmatmul.bf16.gmra.mxu0 %v3867
      %v4412 = vpop.f32.mrf.mxu0
      %v4413 = vadd.f32 %v4134, %v4412
      %v4414 = vpop.f32.mrf.mxu0
      %v4415 = vadd.f32 %v4136, %v4414
      %4416 = vmatmul.bf16.gmra.mxu0 %v3870
      %v4417 = vpop.f32.mrf.mxu0
      %v4418 = vadd.f32 %v4139, %v4417
      %v4419 = vpop.f32.mrf.mxu0
      %v4420 = vadd.f32 %v4141, %v4419
      %4421 = vmatmul.bf16.gmra.mxu0 %v3873
      %v4422 = vpop.f32.mrf.mxu0
      %v4423 = vadd.f32 %v4144, %v4422
      %v4424 = vpop.f32.mrf.mxu0
      %v4425 = vadd.f32 %v4146, %v4424
      %4426 = vmatmul.bf16.gmra.mxu0 %v3876
      %v4427 = vpop.f32.mrf.mxu0
      %v4428 = vadd.f32 %v4149, %v4427
      %v4429 = vpop.f32.mrf.mxu0
      %v4430 = vadd.f32 %v4151, %v4429
      %4431 = vmatmul.bf16.gmra.mxu0 %v3879
      %v4432 = vpop.f32.mrf.mxu0
      %v4433 = vadd.f32 %v4154, %v4432
      %v4434 = vpop.f32.mrf.mxu0
      %v4435 = vadd.f32 %v4156, %v4434
      %4436 = vmatmul.bf16.gmra.mxu0 %v3882
      %v4437 = vpop.f32.mrf.mxu0
      %v4438 = vadd.f32 %v4159, %v4437
      %v4439 = vpop.f32.mrf.mxu0
      %v4440 = vadd.f32 %v4161, %v4439
      %4441 = vmatmul.bf16.gmra.mxu0 %v3885
      %v4442 = vpop.f32.mrf.mxu0
      %v4443 = vadd.f32 %v4164, %v4442
      %v4444 = vpop.f32.mrf.mxu0
      %v4445 = vadd.f32 %v4166, %v4444
      %4446 = vmatmul.bf16.gmra.mxu0 %v3888
      %v4447 = vpop.f32.mrf.mxu0
      %v4448 = vadd.f32 %v4169, %v4447
      %v4449 = vpop.f32.mrf.mxu0
      %v4450 = vadd.f32 %v4171, %v4449
      %4451 = vdwg.mxu0
      %v4452 = vmax.f32 %v4183, %v4193
      %v4453 = vmax.f32 %v4452, %v4203
      %v4454 = vmax.f32 %v4453, %v4213
      %v4455 = vmax.f32 %v4454, %v4223
      %v4456 = vmax.f32 %v4455, %v4233
      %v4457 = vmax.f32 %v4456, %v4243
      %v4458 = vmax.f32 %v4457, %v4253
      %v4459 = vmax.f32 %v4458, %v4263
      %v4460 = vmax.f32 %v4459, %v4273
      %v4461 = vmax.f32 %v4460, %v4283
      %v4462 = vmax.f32 %v4461, %v4293
      %v4463 = vmax.f32 %v4462, %v4303
      %v4464 = vmax.f32 %v4463, %v4313
      %v4465 = vmax.f32 %v4464, %v4323
      %v4466 = vmax.f32 %v4465, %v4333
      %v4467 = vmax.f32 %v4466, %v4343
      %v4468 = vmax.f32 %v4467, %v4353
      %v4469 = vmax.f32 %v4468, %v4363
      %v4470 = vmax.f32 %v4469, %v4373
      %v4471 = vmax.f32 %v4470, %v4383
      %v4472 = vmax.f32 %v4471, %v4393
      %v4473 = vmax.f32 %v4472, %v4403
      %v4474 = vmax.f32 %v4473, %v4413
      %v4475 = vmax.f32 %v4474, %v4423
      %v4476 = vmax.f32 %v4475, %v4433
      %v4477 = vmax.f32 %v4476, %v4443
      %v4478 = vmax.f32 %v4185, %v4195
      %v4479 = vmax.f32 %v4478, %v4205
      %v4480 = vmax.f32 %v4479, %v4215
      %v4481 = vmax.f32 %v4480, %v4225
      %v4482 = vmax.f32 %v4481, %v4235
      %v4483 = vmax.f32 %v4482, %v4245
      %v4484 = vmax.f32 %v4483, %v4255
      %v4485 = vmax.f32 %v4484, %v4265
      %v4486 = vmax.f32 %v4485, %v4275
      %v4487 = vmax.f32 %v4486, %v4285
      %v4488 = vmax.f32 %v4487, %v4295
      %v4489 = vmax.f32 %v4488, %v4305
      %v4490 = vmax.f32 %v4489, %v4315
      %v4491 = vmax.f32 %v4490, %v4325
      %v4492 = vmax.f32 %v4491, %v4335
      %v4493 = vmax.f32 %v4492, %v4345
      %v4494 = vmax.f32 %v4493, %v4355
      %v4495 = vmax.f32 %v4494, %v4365
      %v4496 = vmax.f32 %v4495, %v4375
      %v4497 = vmax.f32 %v4496, %v4385
      %v4498 = vmax.f32 %v4497, %v4395
      %v4499 = vmax.f32 %v4498, %v4405
      %v4500 = vmax.f32 %v4499, %v4415
      %v4501 = vmax.f32 %v4500, %v4425
      %v4502 = vmax.f32 %v4501, %v4435
      %v4503 = vmax.f32 %v4502, %v4445
      %v4504 = vmax.f32 %v4188, %v4198
      %v4505 = vmax.f32 %v4504, %v4208
      %v4506 = vmax.f32 %v4505, %v4218
      %v4507 = vmax.f32 %v4506, %v4228
      %v4508 = vmax.f32 %v4507, %v4238
      %v4509 = vmax.f32 %v4508, %v4248
      %v4510 = vmax.f32 %v4509, %v4258
      %v4511 = vmax.f32 %v4510, %v4268
      %v4512 = vmax.f32 %v4511, %v4278
      %v4513 = vmax.f32 %v4512, %v4288
      %v4514 = vmax.f32 %v4513, %v4298
      %v4515 = vmax.f32 %v4514, %v4308
      %v4516 = vmax.f32 %v4515, %v4318
      %v4517 = vmax.f32 %v4516, %v4328
      %v4518 = vmax.f32 %v4517, %v4338
      %v4519 = vmax.f32 %v4518, %v4348
      %v4520 = vmax.f32 %v4519, %v4358
      %v4521 = vmax.f32 %v4520, %v4368
      %v4522 = vmax.f32 %v4521, %v4378
      %v4523 = vmax.f32 %v4522, %v4388
      %v4524 = vmax.f32 %v4523, %v4398
      %v4525 = vmax.f32 %v4524, %v4408
      %v4526 = vmax.f32 %v4525, %v4418
      %v4527 = vmax.f32 %v4526, %v4428
      %v4528 = vmax.f32 %v4527, %v4438
      %v4529 = vmax.f32 %v4528, %v4448
      %v4530 = vmax.f32 %v4190, %v4200
      %v4531 = vmax.f32 %v4530, %v4210
      %v4532 = vmax.f32 %v4531, %v4220
      %v4533 = vmax.f32 %v4532, %v4230
      %v4534 = vmax.f32 %v4533, %v4240
      %v4535 = vmax.f32 %v4534, %v4250
      %v4536 = vmax.f32 %v4535, %v4260
      %v4537 = vmax.f32 %v4536, %v4270
      %v4538 = vmax.f32 %v4537, %v4280
      %v4539 = vmax.f32 %v4538, %v4290
      %v4540 = vmax.f32 %v4539, %v4300
      %v4541 = vmax.f32 %v4540, %v4310
      %v4542 = vmax.f32 %v4541, %v4320
      %v4543 = vmax.f32 %v4542, %v4330
      %v4544 = vmax.f32 %v4543, %v4340
      %v4545 = vmax.f32 %v4544, %v4350
      %v4546 = vmax.f32 %v4545, %v4360
      %v4547 = vmax.f32 %v4546, %v4370
      %v4548 = vmax.f32 %v4547, %v4380
      %v4549 = vmax.f32 %v4548, %v4390
      %v4550 = vmax.f32 %v4549, %v4400
      %v4551 = vmax.f32 %v4550, %v4410
      %v4552 = vmax.f32 %v4551, %v4420
      %v4553 = vmax.f32 %v4552, %v4430
      %v4554 = vmax.f32 %v4553, %v4440
      %v4555 = vmax.f32 %v4554, %v4450
      %v4556 = vpack.c.bf16 %v4503, %v4477
      %v4557 = vpack.c.bf16 %v4555, %v4529
      %v4558 = vld [vmem:[%s5] sm:$0xff]
      %v4559 = vld [vmem:[%s5 + $0x8] sm:$0xff]
      %v4560 = vld [vmem:[%s5 + $0x10] sm:$0xff]
      %v4561 = vld [vmem:[%s5 + $0x18] sm:$0xff]
      %v4562 = vld [vmem:[%s5 + $0x20] sm:$0xff]
      %v4563 = vld [vmem:[%s5 + $0x28] sm:$0xff]
      %v4564 = vld [vmem:[%s5 + $0x30] sm:$0xff]
      %v4565 = vld [vmem:[%s5 + $0x38] sm:$0xff]
      %v4566 = vld [vmem:[%s5 + $0x40] sm:$0xff]
      %v4567 = vld [vmem:[%s5 + $0x48] sm:$0xff]
      %v4568 = vld [vmem:[%s5 + $0x50] sm:$0xff]
      %v4569 = vld [vmem:[%s5 + $0x58] sm:$0xff]
      %v4570 = vld [vmem:[%s5 + $0x60] sm:$0xff]
      %v4571 = vld [vmem:[%s5 + $0x68] sm:$0xff]
      %v4572 = vld [vmem:[%s5 + $0x70] sm:$0xff]
      %v4573 = vld [vmem:[%s5 + $0x78] sm:$0xff]
      %v4590 = vunpack.c.l.b16 %v4558
      %v4591 = vunpack.c.h.b16 %v4558
      %v4592 = vunpack.c.l.b16 %v4559
      %v4593 = vunpack.c.h.b16 %v4559
      %v4594 = vunpack.c.l.b16 %v4560
      %v4595 = vunpack.c.h.b16 %v4560
      %v4596 = vunpack.c.l.b16 %v4561
      %v4597 = vunpack.c.h.b16 %v4561
      %v4598 = vunpack.c.l.b16 %v4562
      %v4599 = vunpack.c.h.b16 %v4562
      %v4600 = vunpack.c.l.b16 %v4563
      %v4601 = vunpack.c.h.b16 %v4563
      %v4602 = vunpack.c.l.b16 %v4564
      %v4603 = vunpack.c.h.b16 %v4564
      %v4604 = vunpack.c.l.b16 %v4565
      %v4605 = vunpack.c.h.b16 %v4565
      %v4606 = vunpack.c.l.b16 %v4566
      %v4607 = vunpack.c.h.b16 %v4566
      %v4608 = vunpack.c.l.b16 %v4567
      %v4609 = vunpack.c.h.b16 %v4567
      %v4610 = vunpack.c.l.b16 %v4568
      %v4611 = vunpack.c.h.b16 %v4568
      %v4612 = vunpack.c.l.b16 %v4569
      %v4613 = vunpack.c.h.b16 %v4569
      %v4614 = vunpack.c.l.b16 %v4570
      %v4615 = vunpack.c.h.b16 %v4570
      %v4616 = vunpack.c.l.b16 %v4571
      %v4617 = vunpack.c.h.b16 %v4571
      %v4618 = vunpack.c.l.b16 %v4572
      %v4619 = vunpack.c.h.b16 %v4572
      %v4620 = vunpack.c.l.b16 %v4573
      %v4621 = vunpack.c.h.b16 %v4573
      %v4622 = vpack.c.b16 %v4592, %v4590
      %v4623 = vpack.c.b16 %v4593, %v4591
      %v4624 = vpack.c.b16 %v4596, %v4594
      %v4625 = vpack.c.b16 %v4597, %v4595
      %v4626 = vpack.c.b16 %v4600, %v4598
      %v4627 = vpack.c.b16 %v4601, %v4599
      %v4628 = vpack.c.b16 %v4604, %v4602
      %v4629 = vpack.c.b16 %v4605, %v4603
      %v4630 = vpack.c.b16 %v4608, %v4606
      %v4631 = vpack.c.b16 %v4609, %v4607
      %v4632 = vpack.c.b16 %v4612, %v4610
      %v4633 = vpack.c.b16 %v4613, %v4611
      %v4634 = vpack.c.b16 %v4616, %v4614
      %v4635 = vpack.c.b16 %v4617, %v4615
      %v4636 = vpack.c.b16 %v4620, %v4618
      %v4637 = vpack.c.b16 %v4621, %v4619
      %4654 = vmatpush.bf16.msra.mxu0 %v4636
      %4655 = vmatpush.bf16.msra.mxu0 %v4634
      %4656 = vmatpush.bf16.msra.mxu0 %v4632
      %4657 = vmatpush.bf16.msra.mxu0 %v4630
      %4658 = vmatpush.bf16.msra.mxu0 %v4628
      %4659 = vmatpush.bf16.msra.mxu0 %v4626
      %4660 = vmatpush.bf16.msra.mxu0 %v4624
      %4661 = vmatpush.bf16.msra.mxu0 %v4622
      %4662 = vmatmul.bf16.gmra.mxu0 %v4556
      %v4663 = vpop.f32.mrf.mxu0
      %v4664 = vadd.f32 0.0, %v4663
      %v4665 = vpop.f32.mrf.mxu0
      %v4666 = vadd.f32 0.0, %v4665
      %4667 = vmatmul.bf16.gmra.mxu0 %v4557
      %v4668 = vpop.f32.mrf.mxu0
      %v4669 = vadd.f32 0.0, %v4668
      %v4670 = vpop.f32.mrf.mxu0
      %v4671 = vadd.f32 0.0, %v4670
      %4672 = vdwg.mxu0
      %4673 = vmatpush.bf16.msra.mxu0 %v4637
      %4674 = vmatpush.bf16.msra.mxu0 %v4635
      %4675 = vmatpush.bf16.msra.mxu0 %v4633
      %4676 = vmatpush.bf16.msra.mxu0 %v4631
      %4677 = vmatpush.bf16.msra.mxu0 %v4629
      %4678 = vmatpush.bf16.msra.mxu0 %v4627
      %4679 = vmatpush.bf16.msra.mxu0 %v4625
      %4680 = vmatpush.bf16.msra.mxu0 %v4623
      %4681 = vmatmul.bf16.gmra.mxu0 %v4556
      %v4682 = vpop.f32.mrf.mxu0
      %v4683 = vadd.f32 0.0, %v4682
      %v4684 = vpop.f32.mrf.mxu0
      %v4685 = vadd.f32 0.0, %v4684
      %4686 = vmatmul.bf16.gmra.mxu0 %v4557
      %v4687 = vpop.f32.mrf.mxu0
      %v4688 = vadd.f32 0.0, %v4687
      %v4689 = vpop.f32.mrf.mxu0
      %v4690 = vadd.f32 0.0, %v4689
      %4691 = vdwg.mxu0
      %v4692 = vld [vmem:[%s6] sm:$0x3]
      %v4694 = vperm.slane %v4692, 0
      %v4695 = vperm.slane %v4692, 1
      %v4698 = vmul.f32 %v4664, %v4694
      %v4699 = vmul.f32 %v4683, %v4695
      %v4700 = vmul.f32 %v4666, %v4694
      %v4701 = vmul.f32 %v4685, %v4695
      %v4702 = vmul.f32 %v4669, %v4694
      %v4703 = vmul.f32 %v4688, %v4695
      %v4704 = vmul.f32 %v4671, %v4694
      %v4705 = vmul.f32 %v4690, %v4695
      %v4706 = vld [vmem:[%s7] sm:$0x3]
      %v4708 = vperm.slane %v4706, 0
      %v4709 = vperm.slane %v4706, 1
      %v4712 = vadd.f32 %v4698, %v4708
      %v4713 = vadd.f32 %v4699, %v4709
      %v4714 = vadd.f32 %v4700, %v4708
      %v4715 = vadd.f32 %v4701, %v4709
      %v4716 = vadd.f32 %v4702, %v4708
      %v4717 = vadd.f32 %v4703, %v4709
      %v4718 = vadd.f32 %v4704, %v4708
      %v4719 = vadd.f32 %v4705, %v4709
      %v4720 = vmax.f32 %v4713, 0.0
      %v4721 = vmax.f32 %v4715, 0.0
      %v4722 = vmax.f32 %v4717, 0.0
      %v4723 = vmax.f32 %v4719, 0.0
      %v4724 = vpack.c.bf16 %v4721, %v4720
      %v4725 = vpack.c.bf16 %v4723, %v4722
      %v4726 = vld [vmem:[%s8] sm:$0xf]
      %v4727 = vld [vmem:[%s8 + $0x4] sm:$0xf]
      %v4728 = vld [vmem:[%s8 + $0x8] sm:$0xf]
      %v4729 = vld [vmem:[%s8 + $0xc] sm:$0xf]
      %v4730 = vld [vmem:[%s8 + $0x10] sm:$0xf]
      %v4731 = vld [vmem:[%s8 + $0x14] sm:$0xf]
      %v4732 = vld [vmem:[%s8 + $0x18] sm:$0xf]
      %v4733 = vld [vmem:[%s8 + $0x1c] sm:$0xf]
      %v4734 = vld [vmem:[%s8 + $0x20] sm:$0xf]
      %v4735 = vld [vmem:[%s8 + $0x24] sm:$0xf]
      %v4736 = vld [vmem:[%s8 + $0x28] sm:$0xf]
      %v4737 = vld [vmem:[%s8 + $0x2c] sm:$0xf]
      %v4738 = vld [vmem:[%s8 + $0x30] sm:$0xf]
      %v4739 = vld [vmem:[%s8 + $0x34] sm:$0xf]
      %v4740 = vld [vmem:[%s8 + $0x38] sm:$0xf]
      %v4741 = vld [vmem:[%s8 + $0x3c] sm:$0xf]
      %v4742 = vld [vmem:[%s8 + $0x40] sm:$0xf]
      %v4743 = vld [vmem:[%s8 + $0x44] sm:$0xf]
      %v4744 = vld [vmem:[%s8 + $0x48] sm:$0xf]
      %v4745 = vld [vmem:[%s8 + $0x4c] sm:$0xf]
      %v4746 = vld [vmem:[%s8 + $0x50] sm:$0xf]
      %v4747 = vld [vmem:[%s8 + $0x54] sm:$0xf]
      %v4748 = vld [vmem:[%s8 + $0x58] sm:$0xf]
      %v4749 = vld [vmem:[%s8 + $0x5c] sm:$0xf]
      %v4750 = vld [vmem:[%s8 + $0x60] sm:$0xf]
      %v4751 = vld [vmem:[%s8 + $0x64] sm:$0xf]
      %v4752 = vld [vmem:[%s8 + $0x68] sm:$0xf]
      %v4753 = vld [vmem:[%s8 + $0x6c] sm:$0xf]
      %v4754 = vld [vmem:[%s8 + $0x70] sm:$0xf]
      %v4755 = vld [vmem:[%s8 + $0x74] sm:$0xf]
      %v4756 = vld [vmem:[%s8 + $0x78] sm:$0xf]
      %v4757 = vld [vmem:[%s8 + $0x7c] sm:$0xf]
      %v4758 = vld [vmem:[%s8 + $0x80] sm:$0xf]
      %v4759 = vld [vmem:[%s8 + $0x84] sm:$0xf]
      %v4760 = vld [vmem:[%s8 + $0x88] sm:$0xf]
      %v4761 = vld [vmem:[%s8 + $0x8c] sm:$0xf]
      %v4762 = vld [vmem:[%s8 + $0x90] sm:$0xf]
      %v4763 = vld [vmem:[%s8 + $0x94] sm:$0xf]
      %v4764 = vld [vmem:[%s8 + $0x98] sm:$0xf]
      %v4765 = vld [vmem:[%s8 + $0x9c] sm:$0xf]
      %v4766 = vld [vmem:[%s8 + $0xa0] sm:$0xf]
      %v4767 = vld [vmem:[%s8 + $0xa4] sm:$0xf]
      %v4768 = vld [vmem:[%s8 + $0xa8] sm:$0xf]
      %v4769 = vld [vmem:[%s8 + $0xac] sm:$0xf]
      %v4770 = vld [vmem:[%s8 + $0xb0] sm:$0xf]
      %v4771 = vld [vmem:[%s8 + $0xb4] sm:$0xf]
      %v4772 = vld [vmem:[%s8 + $0xb8] sm:$0xf]
      %v4773 = vld [vmem:[%s8 + $0xbc] sm:$0xf]
      %v4774 = vld [vmem:[%s8 + $0xc0] sm:$0xf]
      %v4775 = vld [vmem:[%s8 + $0xc4] sm:$0xf]
      %v4776 = vld [vmem:[%s8 + $0xc8] sm:$0xf]
      %v4777 = vld [vmem:[%s8 + $0xcc] sm:$0xf]
      %v4778 = vld [vmem:[%s8 + $0xd0] sm:$0xf]
      %v4779 = vld [vmem:[%s8 + $0xd4] sm:$0xf]
      %v4780 = vld [vmem:[%s8 + $0xd8] sm:$0xf]
      %v4781 = vld [vmem:[%s8 + $0xdc] sm:$0xf]
      %v4782 = vld [vmem:[%s8 + $0xe0] sm:$0xf]
      %v4783 = vld [vmem:[%s8 + $0xe4] sm:$0xf]
      %v4784 = vld [vmem:[%s8 + $0xe8] sm:$0xf]
      %v4785 = vld [vmem:[%s8 + $0xec] sm:$0xf]
      %v4786 = vld [vmem:[%s8 + $0xf0] sm:$0xf]
      %v4787 = vld [vmem:[%s8 + $0xf4] sm:$0xf]
      %v4788 = vld [vmem:[%s8 + $0xf8] sm:$0xf]
      %v4789 = vld [vmem:[%s8 + $0xfc] sm:$0xf]
      %v4790 = vld [vmem:[%s8 + $0x100] sm:$0xf]
      %v4791 = vld [vmem:[%s8 + $0x104] sm:$0xf]
      %v4792 = vld [vmem:[%s8 + $0x108] sm:$0xf]
      %v4793 = vld [vmem:[%s8 + $0x10c] sm:$0xf]
      %v4794 = vld [vmem:[%s8 + $0x110] sm:$0xf]
      %v4795 = vld [vmem:[%s8 + $0x114] sm:$0xf]
      %v4796 = vld [vmem:[%s8 + $0x118] sm:$0xf]
      %v4797 = vld [vmem:[%s8 + $0x11c] sm:$0xf]
      %v4798 = vld [vmem:[%s8 + $0x120] sm:$0xf]
      %v4799 = vld [vmem:[%s8 + $0x124] sm:$0xf]
      %v4800 = vld [vmem:[%s8 + $0x128] sm:$0xf]
      %v4801 = vld [vmem:[%s8 + $0x12c] sm:$0xf]
      %v4802 = vld [vmem:[%s8 + $0x130] sm:$0xf]
      %v4803 = vld [vmem:[%s8 + $0x134] sm:$0xf]
      %v4804 = vld [vmem:[%s8 + $0x138] sm:$0xf]
      %v4805 = vld [vmem:[%s8 + $0x13c] sm:$0xf]
      %v4806 = vld [vmem:[%s8 + $0x140] sm:$0xf]
      %v4807 = vld [vmem:[%s8 + $0x144] sm:$0xf]
      %v4808 = vld [vmem:[%s8 + $0x148] sm:$0xf]
      %v4809 = vld [vmem:[%s8 + $0x14c] sm:$0xf]
      %v4810 = vld [vmem:[%s8 + $0x150] sm:$0xf]
      %v4811 = vld [vmem:[%s8 + $0x154] sm:$0xf]
      %v4812 = vld [vmem:[%s8 + $0x158] sm:$0xf]
      %v4813 = vld [vmem:[%s8 + $0x15c] sm:$0xf]
      %v4814 = vld [vmem:[%s8 + $0x160] sm:$0xf]
      %v4815 = vld [vmem:[%s8 + $0x164] sm:$0xf]
      %v4816 = vld [vmem:[%s8 + $0x168] sm:$0xf]
      %v4817 = vld [vmem:[%s8 + $0x16c] sm:$0xf]
      %v4818 = vld [vmem:[%s8 + $0x170] sm:$0xf]
      %v4819 = vld [vmem:[%s8 + $0x174] sm:$0xf]
      %v4820 = vld [vmem:[%s8 + $0x178] sm:$0xf]
      %v4821 = vld [vmem:[%s8 + $0x17c] sm:$0xf]
      %v4822 = vld [vmem:[%s8 + $0x180] sm:$0xf]
      %v4823 = vld [vmem:[%s8 + $0x184] sm:$0xf]
      %v4824 = vld [vmem:[%s8 + $0x188] sm:$0xf]
      %v4825 = vld [vmem:[%s8 + $0x18c] sm:$0xf]
      %v4826 = vld [vmem:[%s8 + $0x190] sm:$0xf]
      %v4827 = vld [vmem:[%s8 + $0x194] sm:$0xf]
      %v4828 = vld [vmem:[%s8 + $0x198] sm:$0xf]
      %v4829 = vld [vmem:[%s8 + $0x19c] sm:$0xf]
      %v4830 = vld [vmem:[%s8 + $0x1a0] sm:$0xf]
      %v4831 = vld [vmem:[%s8 + $0x1a4] sm:$0xf]
      %v4832 = vld [vmem:[%s8 + $0x1a8] sm:$0xf]
      %v4833 = vld [vmem:[%s8 + $0x1ac] sm:$0xf]
      %v4942 = vunpack.c.l.b16 %v4726
      %v4943 = vunpack.c.l.b16 %v4727
      %v4944 = vunpack.c.l.b16 %v4728
      %v4945 = vunpack.c.l.b16 %v4729
      %v4946 = vunpack.c.l.b16 %v4730
      %v4947 = vunpack.c.l.b16 %v4731
      %v4948 = vunpack.c.l.b16 %v4732
      %v4949 = vunpack.c.l.b16 %v4733
      %v4950 = vunpack.c.l.b16 %v4734
      %v4951 = vunpack.c.l.b16 %v4735
      %v4952 = vunpack.c.l.b16 %v4736
      %v4953 = vunpack.c.l.b16 %v4737
      %v4954 = vunpack.c.l.b16 %v4738
      %v4955 = vunpack.c.l.b16 %v4739
      %v4956 = vunpack.c.l.b16 %v4740
      %v4957 = vunpack.c.l.b16 %v4741
      %v4958 = vunpack.c.l.b16 %v4742
      %v4959 = vunpack.c.l.b16 %v4743
      %v4960 = vunpack.c.l.b16 %v4744
      %v4961 = vunpack.c.l.b16 %v4745
      %v4962 = vunpack.c.l.b16 %v4746
      %v4963 = vunpack.c.l.b16 %v4747
      %v4964 = vunpack.c.l.b16 %v4748
      %v4965 = vunpack.c.l.b16 %v4749
      %v4966 = vunpack.c.l.b16 %v4750
      %v4967 = vunpack.c.l.b16 %v4751
      %v4968 = vunpack.c.l.b16 %v4752
      %v4969 = vunpack.c.l.b16 %v4753
      %v4970 = vunpack.c.l.b16 %v4754
      %v4971 = vunpack.c.l.b16 %v4755
      %v4972 = vunpack.c.l.b16 %v4756
      %v4973 = vunpack.c.l.b16 %v4757
      %v4974 = vunpack.c.l.b16 %v4758
      %v4975 = vunpack.c.l.b16 %v4759
      %v4976 = vunpack.c.l.b16 %v4760
      %v4977 = vunpack.c.l.b16 %v4761
      %v4978 = vunpack.c.l.b16 %v4762
      %v4979 = vunpack.c.l.b16 %v4763
      %v4980 = vunpack.c.l.b16 %v4764
      %v4981 = vunpack.c.l.b16 %v4765
      %v4982 = vunpack.c.l.b16 %v4766
      %v4983 = vunpack.c.l.b16 %v4767
      %v4984 = vunpack.c.l.b16 %v4768
      %v4985 = vunpack.c.l.b16 %v4769
      %v4986 = vunpack.c.l.b16 %v4770
      %v4987 = vunpack.c.l.b16 %v4771
      %v4988 = vunpack.c.l.b16 %v4772
      %v4989 = vunpack.c.l.b16 %v4773
      %v4990 = vunpack.c.l.b16 %v4774
      %v4991 = vunpack.c.l.b16 %v4775
      %v4992 = vunpack.c.l.b16 %v4776
      %v4993 = vunpack.c.l.b16 %v4777
      %v4994 = vunpack.c.l.b16 %v4778
      %v4995 = vunpack.c.l.b16 %v4779
      %v4996 = vunpack.c.l.b16 %v4780
      %v4997 = vunpack.c.l.b16 %v4781
      %v4998 = vunpack.c.l.b16 %v4782
      %v4999 = vunpack.c.l.b16 %v4783
      %v5000 = vunpack.c.l.b16 %v4784
      %v5001 = vunpack.c.l.b16 %v4785
      %v5002 = vunpack.c.l.b16 %v4786
      %v5003 = vunpack.c.l.b16 %v4787
      %v5004 = vunpack.c.l.b16 %v4788
      %v5005 = vunpack.c.l.b16 %v4789
      %v5006 = vunpack.c.l.b16 %v4790
      %v5007 = vunpack.c.l.b16 %v4791
      %v5008 = vunpack.c.l.b16 %v4792
      %v5009 = vunpack.c.l.b16 %v4793
      %v5010 = vunpack.c.l.b16 %v4794
      %v5011 = vunpack.c.l.b16 %v4795
      %v5012 = vunpack.c.l.b16 %v4796
      %v5013 = vunpack.c.l.b16 %v4797
      %v5014 = vunpack.c.l.b16 %v4798
      %v5015 = vunpack.c.l.b16 %v4799
      %v5016 = vunpack.c.l.b16 %v4800
      %v5017 = vunpack.c.l.b16 %v4801
      %v5018 = vunpack.c.l.b16 %v4802
      %v5019 = vunpack.c.l.b16 %v4803
      %v5020 = vunpack.c.l.b16 %v4804
      %v5021 = vunpack.c.l.b16 %v4805
      %v5022 = vunpack.c.l.b16 %v4806
      %v5023 = vunpack.c.l.b16 %v4807
      %v5024 = vunpack.c.l.b16 %v4808
      %v5025 = vunpack.c.l.b16 %v4809
      %v5026 = vunpack.c.l.b16 %v4810
      %v5027 = vunpack.c.l.b16 %v4811
      %v5028 = vunpack.c.l.b16 %v4812
      %v5029 = vunpack.c.l.b16 %v4813
      %v5030 = vunpack.c.l.b16 %v4814
      %v5031 = vunpack.c.l.b16 %v4815
      %v5032 = vunpack.c.l.b16 %v4816
      %v5033 = vunpack.c.l.b16 %v4817
      %v5034 = vunpack.c.l.b16 %v4818
      %v5035 = vunpack.c.l.b16 %v4819
      %v5036 = vunpack.c.l.b16 %v4820
      %v5037 = vunpack.c.l.b16 %v4821
      %v5038 = vunpack.c.l.b16 %v4822
      %v5039 = vunpack.c.l.b16 %v4823
      %v5040 = vunpack.c.l.b16 %v4824
      %v5041 = vunpack.c.l.b16 %v4825
      %v5042 = vunpack.c.l.b16 %v4826
      %v5043 = vunpack.c.l.b16 %v4827
      %v5044 = vunpack.c.l.b16 %v4828
      %v5045 = vunpack.c.l.b16 %v4829
      %v5046 = vunpack.c.l.b16 %v4830
      %v5047 = vunpack.c.l.b16 %v4831
      %v5048 = vunpack.c.l.b16 %v4832
      %v5049 = vunpack.c.l.b16 %v4833
      %v5050 = vpack.c.b16 %v4943, %v4942
      %v5051 = vpack.c.b16 %v4945, %v4944
      %v5052 = vpack.c.b16 %v4947, %v4946
      %v5053 = vpack.c.b16 %v4949, %v4948
      %v5054 = vpack.c.b16 %v4951, %v4950
      %v5055 = vpack.c.b16 %v4953, %v4952
      %v5056 = vpack.c.b16 %v4955, %v4954
      %v5057 = vpack.c.b16 %v4957, %v4956
      %v5058 = vpack.c.b16 %v4959, %v4958
      %v5059 = vpack.c.b16 %v4961, %v4960
      %v5060 = vpack.c.b16 %v4963, %v4962
      %v5061 = vpack.c.b16 %v4965, %v4964
      %v5062 = vpack.c.b16 %v4967, %v4966
      %v5063 = vpack.c.b16 %v4969, %v4968
      %v5064 = vpack.c.b16 %v4971, %v4970
      %v5065 = vpack.c.b16 %v4973, %v4972
      %v5066 = vpack.c.b16 %v4975, %v4974
      %v5067 = vpack.c.b16 %v4977, %v4976
      %v5068 = vpack.c.b16 %v4979, %v4978
      %v5069 = vpack.c.b16 %v4981, %v4980
      %v5070 = vpack.c.b16 %v4983, %v4982
      %v5071 = vpack.c.b16 %v4985, %v4984
      %v5072 = vpack.c.b16 %v4987, %v4986
      %v5073 = vpack.c.b16 %v4989, %v4988
      %v5074 = vpack.c.b16 %v4991, %v4990
      %v5075 = vpack.c.b16 %v4993, %v4992
      %v5076 = vpack.c.b16 %v4995, %v4994
      %v5077 = vpack.c.b16 %v4997, %v4996
      %v5078 = vpack.c.b16 %v4999, %v4998
      %v5079 = vpack.c.b16 %v5001, %v5000
      %v5080 = vpack.c.b16 %v5003, %v5002
      %v5081 = vpack.c.b16 %v5005, %v5004
      %v5082 = vpack.c.b16 %v5007, %v5006
      %v5083 = vpack.c.b16 %v5009, %v5008
      %v5084 = vpack.c.b16 %v5011, %v5010
      %v5085 = vpack.c.b16 %v5013, %v5012
      %v5086 = vpack.c.b16 %v5015, %v5014
      %v5087 = vpack.c.b16 %v5017, %v5016
      %v5088 = vpack.c.b16 %v5019, %v5018
      %v5089 = vpack.c.b16 %v5021, %v5020
      %v5090 = vpack.c.b16 %v5023, %v5022
      %v5091 = vpack.c.b16 %v5025, %v5024
      %v5092 = vpack.c.b16 %v5027, %v5026
      %v5093 = vpack.c.b16 %v5029, %v5028
      %v5094 = vpack.c.b16 %v5031, %v5030
      %v5095 = vpack.c.b16 %v5033, %v5032
      %v5096 = vpack.c.b16 %v5035, %v5034
      %v5097 = vpack.c.b16 %v5037, %v5036
      %v5098 = vpack.c.b16 %v5039, %v5038
      %v5099 = vpack.c.b16 %v5041, %v5040
      %v5100 = vpack.c.b16 %v5043, %v5042
      %v5101 = vpack.c.b16 %v5045, %v5044
      %v5102 = vpack.c.b16 %v5047, %v5046
      %v5103 = vpack.c.b16 %v5049, %v5048
      %vm5104 = vcmask 261120
      %v5106 = vsel %vm5104, %v5050, 0
      %v5109 = vsel %vm5104, %v5051, 0
      %v5112 = vsel %vm5104, %v5052, 0
      %v5115 = vsel %vm5104, %v5053, 0
      %v5118 = vsel %vm5104, %v5054, 0
      %v5121 = vsel %vm5104, %v5055, 0
      %v5124 = vsel %vm5104, %v5056, 0
      %v5127 = vsel %vm5104, %v5057, 0
      %v5130 = vsel %vm5104, %v5058, 0
      %v5133 = vsel %vm5104, %v5059, 0
      %v5136 = vsel %vm5104, %v5060, 0
      %v5139 = vsel %vm5104, %v5061, 0
      %v5142 = vsel %vm5104, %v5062, 0
      %v5145 = vsel %vm5104, %v5063, 0
      %v5148 = vsel %vm5104, %v5064, 0
      %v5151 = vsel %vm5104, %v5065, 0
      %v5154 = vsel %vm5104, %v5066, 0
      %v5157 = vsel %vm5104, %v5067, 0
      %v5160 = vsel %vm5104, %v5068, 0
      %v5163 = vsel %vm5104, %v5069, 0
      %v5166 = vsel %vm5104, %v5070, 0
      %v5169 = vsel %vm5104, %v5071, 0
      %v5172 = vsel %vm5104, %v5072, 0
      %v5175 = vsel %vm5104, %v5073, 0
      %v5178 = vsel %vm5104, %v5074, 0
      %v5181 = vsel %vm5104, %v5075, 0
      %v5184 = vsel %vm5104, %v5076, 0
      %v5187 = vsel %vm5104, %v5077, 0
      %v5190 = vsel %vm5104, %v5078, 0
      %v5193 = vsel %vm5104, %v5079, 0
      %v5196 = vsel %vm5104, %v5080, 0
      %v5199 = vsel %vm5104, %v5081, 0
      %v5202 = vsel %vm5104, %v5082, 0
      %v5205 = vsel %vm5104, %v5083, 0
      %v5208 = vsel %vm5104, %v5084, 0
      %v5211 = vsel %vm5104, %v5085, 0
      %v5214 = vsel %vm5104, %v5086, 0
      %v5217 = vsel %vm5104, %v5087, 0
      %v5220 = vsel %vm5104, %v5088, 0
      %v5223 = vsel %vm5104, %v5089, 0
      %v5226 = vsel %vm5104, %v5090, 0
      %v5229 = vsel %vm5104, %v5091, 0
      %v5232 = vsel %vm5104, %v5092, 0
      %v5235 = vsel %vm5104, %v5093, 0
      %v5238 = vsel %vm5104, %v5094, 0
      %v5241 = vsel %vm5104, %v5095, 0
      %v5244 = vsel %vm5104, %v5096, 0
      %v5247 = vsel %vm5104, %v5097, 0
      %v5250 = vsel %vm5104, %v5098, 0
      %v5253 = vsel %vm5104, %v5099, 0
      %v5256 = vsel %vm5104, %v5100, 0
      %v5259 = vsel %vm5104, %v5101, 0
      %v5262 = vsel %vm5104, %v5102, 0
      %v5265 = vsel %vm5104, %v5103, 0
      %5267 = vmatpush.bf16.msra.mxu0 0
      %5268 = vmatpush.bf16.msra.mxu0 0
      %5269 = vmatpush.bf16.msra.mxu0 0
      %5270 = vmatpush.bf16.msra.mxu0 0
      %5271 = vmatpush.bf16.msra.mxu0 0
      %5272 = vmatpush.bf16.msra.mxu0 0
      %5273 = vmatpush.bf16.msra.mxu0 %v4725
      %5274 = vmatpush.bf16.msra.mxu0 %v4724
      %5275 = vmatmul.bf16.gmra.mxu0 %v5106
      %v5276 = vpop.f32.mrf.mxu0
      %v5277 = vadd.f32 0.0, %v5276
      %v5278 = vpop.f32.mrf.mxu0
      %v5279 = vadd.f32 0.0, %v5278
      %5280 = vmatmul.bf16.gmra.mxu0 %v5109
      %v5281 = vpop.f32.mrf.mxu0
      %v5282 = vadd.f32 0.0, %v5281
      %v5283 = vpop.f32.mrf.mxu0
      %v5284 = vadd.f32 0.0, %v5283
      %5285 = vmatmul.bf16.gmra.mxu0 %v5112
      %v5286 = vpop.f32.mrf.mxu0
      %v5287 = vadd.f32 0.0, %v5286
      %v5288 = vpop.f32.mrf.mxu0
      %v5289 = vadd.f32 0.0, %v5288
      %5290 = vmatmul.bf16.gmra.mxu0 %v5115
      %v5291 = vpop.f32.mrf.mxu0
      %v5292 = vadd.f32 0.0, %v5291
      %v5293 = vpop.f32.mrf.mxu0
      %v5294 = vadd.f32 0.0, %v5293
      %5295 = vmatmul.bf16.gmra.mxu0 %v5118
      %v5296 = vpop.f32.mrf.mxu0
      %v5297 = vadd.f32 0.0, %v5296
      %v5298 = vpop.f32.mrf.mxu0
      %v5299 = vadd.f32 0.0, %v5298
      %5300 = vmatmul.bf16.gmra.mxu0 %v5121
      %v5301 = vpop.f32.mrf.mxu0
      %v5302 = vadd.f32 0.0, %v5301
      %v5303 = vpop.f32.mrf.mxu0
      %v5304 = vadd.f32 0.0, %v5303
      %5305 = vmatmul.bf16.gmra.mxu0 %v5124
      %v5306 = vpop.f32.mrf.mxu0
      %v5307 = vadd.f32 0.0, %v5306
      %v5308 = vpop.f32.mrf.mxu0
      %v5309 = vadd.f32 0.0, %v5308
      %5310 = vmatmul.bf16.gmra.mxu0 %v5127
      %v5311 = vpop.f32.mrf.mxu0
      %v5312 = vadd.f32 0.0, %v5311
      %v5313 = vpop.f32.mrf.mxu0
      %v5314 = vadd.f32 0.0, %v5313
      %5315 = vmatmul.bf16.gmra.mxu0 %v5130
      %v5316 = vpop.f32.mrf.mxu0
      %v5317 = vadd.f32 0.0, %v5316
      %v5318 = vpop.f32.mrf.mxu0
      %v5319 = vadd.f32 0.0, %v5318
      %5320 = vmatmul.bf16.gmra.mxu0 %v5133
      %v5321 = vpop.f32.mrf.mxu0
      %v5322 = vadd.f32 0.0, %v5321
      %v5323 = vpop.f32.mrf.mxu0
      %v5324 = vadd.f32 0.0, %v5323
      %5325 = vmatmul.bf16.gmra.mxu0 %v5136
      %v5326 = vpop.f32.mrf.mxu0
      %v5327 = vadd.f32 0.0, %v5326
      %v5328 = vpop.f32.mrf.mxu0
      %v5329 = vadd.f32 0.0, %v5328
      %5330 = vmatmul.bf16.gmra.mxu0 %v5139
      %v5331 = vpop.f32.mrf.mxu0
      %v5332 = vadd.f32 0.0, %v5331
      %v5333 = vpop.f32.mrf.mxu0
      %v5334 = vadd.f32 0.0, %v5333
      %5335 = vmatmul.bf16.gmra.mxu0 %v5142
      %v5336 = vpop.f32.mrf.mxu0
      %v5337 = vadd.f32 0.0, %v5336
      %v5338 = vpop.f32.mrf.mxu0
      %v5339 = vadd.f32 0.0, %v5338
      %5340 = vmatmul.bf16.gmra.mxu0 %v5145
      %v5341 = vpop.f32.mrf.mxu0
      %v5342 = vadd.f32 0.0, %v5341
      %v5343 = vpop.f32.mrf.mxu0
      %v5344 = vadd.f32 0.0, %v5343
      %5345 = vmatmul.bf16.gmra.mxu0 %v5148
      %v5346 = vpop.f32.mrf.mxu0
      %v5347 = vadd.f32 0.0, %v5346
      %v5348 = vpop.f32.mrf.mxu0
      %v5349 = vadd.f32 0.0, %v5348
      %5350 = vmatmul.bf16.gmra.mxu0 %v5151
      %v5351 = vpop.f32.mrf.mxu0
      %v5352 = vadd.f32 0.0, %v5351
      %v5353 = vpop.f32.mrf.mxu0
      %v5354 = vadd.f32 0.0, %v5353
      %5355 = vmatmul.bf16.gmra.mxu0 %v5154
      %v5356 = vpop.f32.mrf.mxu0
      %v5357 = vadd.f32 0.0, %v5356
      %v5358 = vpop.f32.mrf.mxu0
      %v5359 = vadd.f32 0.0, %v5358
      %5360 = vmatmul.bf16.gmra.mxu0 %v5157
      %v5361 = vpop.f32.mrf.mxu0
      %v5362 = vadd.f32 0.0, %v5361
      %v5363 = vpop.f32.mrf.mxu0
      %v5364 = vadd.f32 0.0, %v5363
      %5365 = vmatmul.bf16.gmra.mxu0 %v5160
      %v5366 = vpop.f32.mrf.mxu0
      %v5367 = vadd.f32 0.0, %v5366
      %v5368 = vpop.f32.mrf.mxu0
      %v5369 = vadd.f32 0.0, %v5368
      %5370 = vmatmul.bf16.gmra.mxu0 %v5163
      %v5371 = vpop.f32.mrf.mxu0
      %v5372 = vadd.f32 0.0, %v5371
      %v5373 = vpop.f32.mrf.mxu0
      %v5374 = vadd.f32 0.0, %v5373
      %5375 = vmatmul.bf16.gmra.mxu0 %v5166
      %v5376 = vpop.f32.mrf.mxu0
      %v5377 = vadd.f32 0.0, %v5376
      %v5378 = vpop.f32.mrf.mxu0
      %v5379 = vadd.f32 0.0, %v5378
      %5380 = vmatmul.bf16.gmra.mxu0 %v5169
      %v5381 = vpop.f32.mrf.mxu0
      %v5382 = vadd.f32 0.0, %v5381
      %v5383 = vpop.f32.mrf.mxu0
      %v5384 = vadd.f32 0.0, %v5383
      %5385 = vmatmul.bf16.gmra.mxu0 %v5172
      %v5386 = vpop.f32.mrf.mxu0
      %v5387 = vadd.f32 0.0, %v5386
      %v5388 = vpop.f32.mrf.mxu0
      %v5389 = vadd.f32 0.0, %v5388
      %5390 = vmatmul.bf16.gmra.mxu0 %v5175
      %v5391 = vpop.f32.mrf.mxu0
      %v5392 = vadd.f32 0.0, %v5391
      %v5393 = vpop.f32.mrf.mxu0
      %v5394 = vadd.f32 0.0, %v5393
      %5395 = vmatmul.bf16.gmra.mxu0 %v5178
      %v5396 = vpop.f32.mrf.mxu0
      %v5397 = vadd.f32 0.0, %v5396
      %v5398 = vpop.f32.mrf.mxu0
      %v5399 = vadd.f32 0.0, %v5398
      %5400 = vmatmul.bf16.gmra.mxu0 %v5181
      %v5401 = vpop.f32.mrf.mxu0
      %v5402 = vadd.f32 0.0, %v5401
      %v5403 = vpop.f32.mrf.mxu0
      %v5404 = vadd.f32 0.0, %v5403
      %5405 = vmatmul.bf16.gmra.mxu0 %v5184
      %v5406 = vpop.f32.mrf.mxu0
      %v5407 = vadd.f32 0.0, %v5406
      %v5408 = vpop.f32.mrf.mxu0
      %v5409 = vadd.f32 0.0, %v5408
      %5410 = vmatmul.bf16.gmra.mxu0 %v5187
      %v5411 = vpop.f32.mrf.mxu0
      %v5412 = vadd.f32 0.0, %v5411
      %v5413 = vpop.f32.mrf.mxu0
      %v5414 = vadd.f32 0.0, %v5413
      %5415 = vmatmul.bf16.gmra.mxu0 %v5190
      %v5416 = vpop.f32.mrf.mxu0
      %v5417 = vadd.f32 0.0, %v5416
      %v5418 = vpop.f32.mrf.mxu0
      %v5419 = vadd.f32 0.0, %v5418
      %5420 = vmatmul.bf16.gmra.mxu0 %v5193
      %v5421 = vpop.f32.mrf.mxu0
      %v5422 = vadd.f32 0.0, %v5421
      %v5423 = vpop.f32.mrf.mxu0
      %v5424 = vadd.f32 0.0, %v5423
      %5425 = vmatmul.bf16.gmra.mxu0 %v5196
      %v5426 = vpop.f32.mrf.mxu0
      %v5427 = vadd.f32 0.0, %v5426
      %v5428 = vpop.f32.mrf.mxu0
      %v5429 = vadd.f32 0.0, %v5428
      %5430 = vmatmul.bf16.gmra.mxu0 %v5199
      %v5431 = vpop.f32.mrf.mxu0
      %v5432 = vadd.f32 0.0, %v5431
      %v5433 = vpop.f32.mrf.mxu0
      %v5434 = vadd.f32 0.0, %v5433
      %5435 = vmatmul.bf16.gmra.mxu0 %v5202
      %v5436 = vpop.f32.mrf.mxu0
      %v5437 = vadd.f32 0.0, %v5436
      %v5438 = vpop.f32.mrf.mxu0
      %v5439 = vadd.f32 0.0, %v5438
      %5440 = vmatmul.bf16.gmra.mxu0 %v5205
      %v5441 = vpop.f32.mrf.mxu0
      %v5442 = vadd.f32 0.0, %v5441
      %v5443 = vpop.f32.mrf.mxu0
      %v5444 = vadd.f32 0.0, %v5443
      %5445 = vmatmul.bf16.gmra.mxu0 %v5208
      %v5446 = vpop.f32.mrf.mxu0
      %v5447 = vadd.f32 0.0, %v5446
      %v5448 = vpop.f32.mrf.mxu0
      %v5449 = vadd.f32 0.0, %v5448
      %5450 = vmatmul.bf16.gmra.mxu0 %v5211
      %v5451 = vpop.f32.mrf.mxu0
      %v5452 = vadd.f32 0.0, %v5451
      %v5453 = vpop.f32.mrf.mxu0
      %v5454 = vadd.f32 0.0, %v5453
      %5455 = vmatmul.bf16.gmra.mxu0 %v5214
      %v5456 = vpop.f32.mrf.mxu0
      %v5457 = vadd.f32 0.0, %v5456
      %v5458 = vpop.f32.mrf.mxu0
      %v5459 = vadd.f32 0.0, %v5458
      %5460 = vmatmul.bf16.gmra.mxu0 %v5217
      %v5461 = vpop.f32.mrf.mxu0
      %v5462 = vadd.f32 0.0, %v5461
      %v5463 = vpop.f32.mrf.mxu0
      %v5464 = vadd.f32 0.0, %v5463
      %5465 = vmatmul.bf16.gmra.mxu0 %v5220
      %v5466 = vpop.f32.mrf.mxu0
      %v5467 = vadd.f32 0.0, %v5466
      %v5468 = vpop.f32.mrf.mxu0
      %v5469 = vadd.f32 0.0, %v5468
      %5470 = vmatmul.bf16.gmra.mxu0 %v5223
      %v5471 = vpop.f32.mrf.mxu0
      %v5472 = vadd.f32 0.0, %v5471
      %v5473 = vpop.f32.mrf.mxu0
      %v5474 = vadd.f32 0.0, %v5473
      %5475 = vmatmul.bf16.gmra.mxu0 %v5226
      %v5476 = vpop.f32.mrf.mxu0
      %v5477 = vadd.f32 0.0, %v5476
      %v5478 = vpop.f32.mrf.mxu0
      %v5479 = vadd.f32 0.0, %v5478
      %5480 = vmatmul.bf16.gmra.mxu0 %v5229
      %v5481 = vpop.f32.mrf.mxu0
      %v5482 = vadd.f32 0.0, %v5481
      %v5483 = vpop.f32.mrf.mxu0
      %v5484 = vadd.f32 0.0, %v5483
      %5485 = vmatmul.bf16.gmra.mxu0 %v5232
      %v5486 = vpop.f32.mrf.mxu0
      %v5487 = vadd.f32 0.0, %v5486
      %v5488 = vpop.f32.mrf.mxu0
      %v5489 = vadd.f32 0.0, %v5488
      %5490 = vmatmul.bf16.gmra.mxu0 %v5235
      %v5491 = vpop.f32.mrf.mxu0
      %v5492 = vadd.f32 0.0, %v5491
      %v5493 = vpop.f32.mrf.mxu0
      %v5494 = vadd.f32 0.0, %v5493
      %5495 = vmatmul.bf16.gmra.mxu0 %v5238
      %v5496 = vpop.f32.mrf.mxu0
      %v5497 = vadd.f32 0.0, %v5496
      %v5498 = vpop.f32.mrf.mxu0
      %v5499 = vadd.f32 0.0, %v5498
      %5500 = vmatmul.bf16.gmra.mxu0 %v5241
      %v5501 = vpop.f32.mrf.mxu0
      %v5502 = vadd.f32 0.0, %v5501
      %v5503 = vpop.f32.mrf.mxu0
      %v5504 = vadd.f32 0.0, %v5503
      %5505 = vmatmul.bf16.gmra.mxu0 %v5244
      %v5506 = vpop.f32.mrf.mxu0
      %v5507 = vadd.f32 0.0, %v5506
      %v5508 = vpop.f32.mrf.mxu0
      %v5509 = vadd.f32 0.0, %v5508
      %5510 = vmatmul.bf16.gmra.mxu0 %v5247
      %v5511 = vpop.f32.mrf.mxu0
      %v5512 = vadd.f32 0.0, %v5511
      %v5513 = vpop.f32.mrf.mxu0
      %v5514 = vadd.f32 0.0, %v5513
      %5515 = vmatmul.bf16.gmra.mxu0 %v5250
      %v5516 = vpop.f32.mrf.mxu0
      %v5517 = vadd.f32 0.0, %v5516
      %v5518 = vpop.f32.mrf.mxu0
      %v5519 = vadd.f32 0.0, %v5518
      %5520 = vmatmul.bf16.gmra.mxu0 %v5253
      %v5521 = vpop.f32.mrf.mxu0
      %v5522 = vadd.f32 0.0, %v5521
      %v5523 = vpop.f32.mrf.mxu0
      %v5524 = vadd.f32 0.0, %v5523
      %5525 = vmatmul.bf16.gmra.mxu0 %v5256
      %v5526 = vpop.f32.mrf.mxu0
      %v5527 = vadd.f32 0.0, %v5526
      %v5528 = vpop.f32.mrf.mxu0
      %v5529 = vadd.f32 0.0, %v5528
      %5530 = vmatmul.bf16.gmra.mxu0 %v5259
      %v5531 = vpop.f32.mrf.mxu0
      %v5532 = vadd.f32 0.0, %v5531
      %v5533 = vpop.f32.mrf.mxu0
      %v5534 = vadd.f32 0.0, %v5533
      %5535 = vmatmul.bf16.gmra.mxu0 %v5262
      %v5536 = vpop.f32.mrf.mxu0
      %v5537 = vadd.f32 0.0, %v5536
      %v5538 = vpop.f32.mrf.mxu0
      %v5539 = vadd.f32 0.0, %v5538
      %5540 = vmatmul.bf16.gmra.mxu0 %v5265
      %v5541 = vpop.f32.mrf.mxu0
      %v5542 = vadd.f32 0.0, %v5541
      %v5543 = vpop.f32.mrf.mxu0
      %v5544 = vadd.f32 0.0, %v5543
      %5545 = vdwg.mxu0
      %v5546 = vld [vmem:[%s9] sm:$0xff]
      %v5547 = vld [vmem:[%s9 + $0x8] sm:$0xff]
      %v5548 = vld [vmem:[%s9 + $0x10] sm:$0xff]
      %v5549 = vld [vmem:[%s9 + $0x18] sm:$0x7]
      %v5554 = vrot.slane %v5546, 1
      %v5555 = vrot.slane %v5546, 2
      %v5556 = vrot.slane %v5546, 3
      %v5557 = vrot.slane %v5546, 4
      %v5558 = vrot.slane %v5546, 5
      %v5559 = vrot.slane %v5546, 6
      %v5560 = vrot.slane %v5546, 7
      %v5561 = vrot.slane %v5547, 1
      %v5562 = vrot.slane %v5547, 2
      %v5563 = vrot.slane %v5547, 3
      %v5564 = vrot.slane %v5547, 4
      %v5565 = vrot.slane %v5547, 5
      %v5566 = vrot.slane %v5547, 6
      %v5567 = vrot.slane %v5547, 7
      %v5568 = vrot.slane %v5548, 1
      %v5569 = vrot.slane %v5548, 2
      %v5570 = vrot.slane %v5548, 3
      %v5571 = vrot.slane %v5548, 4
      %v5572 = vrot.slane %v5548, 5
      %v5573 = vrot.slane %v5548, 6
      %v5574 = vrot.slane %v5548, 7
      %v5575 = vrot.slane %v5549, 1
      %v5576 = vrot.slane %v5549, 2
      %v5577 = vperm.slane %v5546, 0
      %v5578 = vperm.slane %v5554, 0
      %v5579 = vperm.slane %v5555, 0
      %v5580 = vperm.slane %v5556, 0
      %v5581 = vperm.slane %v5557, 0
      %v5582 = vperm.slane %v5558, 0
      %v5583 = vperm.slane %v5559, 0
      %v5584 = vperm.slane %v5560, 0
      %v5585 = vperm.slane %v5547, 0
      %v5586 = vperm.slane %v5561, 0
      %v5587 = vperm.slane %v5562, 0
      %v5588 = vperm.slane %v5563, 0
      %v5589 = vperm.slane %v5564, 0
      %v5590 = vperm.slane %v5565, 0
      %v5591 = vperm.slane %v5566, 0
      %v5592 = vperm.slane %v5567, 0
      %v5593 = vperm.slane %v5548, 0
      %v5594 = vperm.slane %v5568, 0
      %v5595 = vperm.slane %v5569, 0
      %v5596 = vperm.slane %v5570, 0
      %v5597 = vperm.slane %v5571, 0
      %v5598 = vperm.slane %v5572, 0
      %v5599 = vperm.slane %v5573, 0
      %v5600 = vperm.slane %v5574, 0
      %v5601 = vperm.slane %v5549, 0
      %v5602 = vperm.slane %v5575, 0
      %v5603 = vperm.slane %v5576, 0
      %v5631 = vmul.f32 %v5277, %v5577
      %v5632 = vmul.f32 %v5279, %v5577
      %v5633 = vmul.f32 %v5282, %v5577
      %v5634 = vmul.f32 %v5284, %v5577
      %v5635 = vmul.f32 %v5287, %v5578
      %v5636 = vmul.f32 %v5289, %v5578
      %v5637 = vmul.f32 %v5292, %v5578
      %v5638 = vmul.f32 %v5294, %v5578
      %v5639 = vmul.f32 %v5297, %v5579
      %v5640 = vmul.f32 %v5299, %v5579
      %v5641 = vmul.f32 %v5302, %v5579
      %v5642 = vmul.f32 %v5304, %v5579
      %v5643 = vmul.f32 %v5307, %v5580
      %v5644 = vmul.f32 %v5309, %v5580
      %v5645 = vmul.f32 %v5312, %v5580
      %v5646 = vmul.f32 %v5314, %v5580
      %v5647 = vmul.f32 %v5317, %v5581
      %v5648 = vmul.f32 %v5319, %v5581
      %v5649 = vmul.f32 %v5322, %v5581
      %v5650 = vmul.f32 %v5324, %v5581
      %v5651 = vmul.f32 %v5327, %v5582
      %v5652 = vmul.f32 %v5329, %v5582
      %v5653 = vmul.f32 %v5332, %v5582
      %v5654 = vmul.f32 %v5334, %v5582
      %v5655 = vmul.f32 %v5337, %v5583
      %v5656 = vmul.f32 %v5339, %v5583
      %v5657 = vmul.f32 %v5342, %v5583
      %v5658 = vmul.f32 %v5344, %v5583
      %v5659 = vmul.f32 %v5347, %v5584
      %v5660 = vmul.f32 %v5349, %v5584
      %v5661 = vmul.f32 %v5352, %v5584
      %v5662 = vmul.f32 %v5354, %v5584
      %v5663 = vmul.f32 %v5357, %v5585
      %v5664 = vmul.f32 %v5359, %v5585
      %v5665 = vmul.f32 %v5362, %v5585
      %v5666 = vmul.f32 %v5364, %v5585
      %v5667 = vmul.f32 %v5367, %v5586
      %v5668 = vmul.f32 %v5369, %v5586
      %v5669 = vmul.f32 %v5372, %v5586
      %v5670 = vmul.f32 %v5374, %v5586
      %v5671 = vmul.f32 %v5377, %v5587
      %v5672 = vmul.f32 %v5379, %v5587
      %v5673 = vmul.f32 %v5382, %v5587
      %v5674 = vmul.f32 %v5384, %v5587
      %v5675 = vmul.f32 %v5387, %v5588
      %v5676 = vmul.f32 %v5389, %v5588
      %v5677 = vmul.f32 %v5392, %v5588
      %v5678 = vmul.f32 %v5394, %v5588
      %v5679 = vmul.f32 %v5397, %v5589
      %v5680 = vmul.f32 %v5399, %v5589
      %v5681 = vmul.f32 %v5402, %v5589
      %v5682 = vmul.f32 %v5404, %v5589
      %v5683 = vmul.f32 %v5407, %v5590
      %v5684 = vmul.f32 %v5409, %v5590
      %v5685 = vmul.f32 %v5412, %v5590
      %v5686 = vmul.f32 %v5414, %v5590
      %v5687 = vmul.f32 %v5417, %v5591
      %v5688 = vmul.f32 %v5419, %v5591
      %v5689 = vmul.f32 %v5422, %v5591
      %v5690 = vmul.f32 %v5424, %v5591
      %v5691 = vmul.f32 %v5427, %v5592
      %v5692 = vmul.f32 %v5429, %v5592
      %v5693 = vmul.f32 %v5432, %v5592
      %v5694 = vmul.f32 %v5434, %v5592
      %v5695 = vmul.f32 %v5437, %v5593
      %v5696 = vmul.f32 %v5439, %v5593
      %v5697 = vmul.f32 %v5442, %v5593
      %v5698 = vmul.f32 %v5444, %v5593
      %v5699 = vmul.f32 %v5447, %v5594
      %v5700 = vmul.f32 %v5449, %v5594
      %v5701 = vmul.f32 %v5452, %v5594
      %v5702 = vmul.f32 %v5454, %v5594
      %v5703 = vmul.f32 %v5457, %v5595
      %v5704 = vmul.f32 %v5459, %v5595
      %v5705 = vmul.f32 %v5462, %v5595
      %v5706 = vmul.f32 %v5464, %v5595
      %v5707 = vmul.f32 %v5467, %v5596
      %v5708 = vmul.f32 %v5469, %v5596
      %v5709 = vmul.f32 %v5472, %v5596
      %v5710 = vmul.f32 %v5474, %v5596
      %v5711 = vmul.f32 %v5477, %v5597
      %v5712 = vmul.f32 %v5479, %v5597
      %v5713 = vmul.f32 %v5482, %v5597
      %v5714 = vmul.f32 %v5484, %v5597
      %v5715 = vmul.f32 %v5487, %v5598
      %v5716 = vmul.f32 %v5489, %v5598
      %v5717 = vmul.f32 %v5492, %v5598
      %v5718 = vmul.f32 %v5494, %v5598
      %v5719 = vmul.f32 %v5497, %v5599
      %v5720 = vmul.f32 %v5499, %v5599
      %v5721 = vmul.f32 %v5502, %v5599
      %v5722 = vmul.f32 %v5504, %v5599
      %v5723 = vmul.f32 %v5507, %v5600
      %v5724 = vmul.f32 %v5509, %v5600
      %v5725 = vmul.f32 %v5512, %v5600
      %v5726 = vmul.f32 %v5514, %v5600
      %v5727 = vmul.f32 %v5517, %v5601
      %v5728 = vmul.f32 %v5519, %v5601
      %v5729 = vmul.f32 %v5522, %v5601
      %v5730 = vmul.f32 %v5524, %v5601
      %v5731 = vmul.f32 %v5527, %v5602
      %v5732 = vmul.f32 %v5529, %v5602
      %v5733 = vmul.f32 %v5532, %v5602
      %v5734 = vmul.f32 %v5534, %v5602
      %v5735 = vmul.f32 %v5537, %v5603
      %v5736 = vmul.f32 %v5539, %v5603
      %v5737 = vmul.f32 %v5542, %v5603
      %v5738 = vmul.f32 %v5544, %v5603
      %vm5739 = vcmask 523264
      %v5740 = vsel %vm5739, %v5631, 0.0
      %v5741 = vsel %vm5739, %v5635, 0.0
      %v5742 = vadd.f32 %v5740, %v5741
      %v5743 = vsel %vm5739, %v5639, 0.0
      %v5744 = vadd.f32 %v5742, %v5743
      %v5745 = vsel %vm5739, %v5643, 0.0
      %v5746 = vadd.f32 %v5744, %v5745
      %v5747 = vsel %vm5739, %v5647, 0.0
      %v5748 = vadd.f32 %v5746, %v5747
      %v5749 = vsel %vm5739, %v5651, 0.0
      %v5750 = vadd.f32 %v5748, %v5749
      %v5751 = vsel %vm5739, %v5655, 0.0
      %v5752 = vadd.f32 %v5750, %v5751
      %v5753 = vsel %vm5739, %v5659, 0.0
      %v5754 = vadd.f32 %v5752, %v5753
      %v5755 = vsel %vm5739, %v5663, 0.0
      %v5756 = vadd.f32 %v5754, %v5755
      %v5757 = vsel %vm5739, %v5667, 0.0
      %v5758 = vadd.f32 %v5756, %v5757
      %v5759 = vsel %vm5739, %v5671, 0.0
      %v5760 = vadd.f32 %v5758, %v5759
      %v5761 = vsel %vm5739, %v5675, 0.0
      %v5762 = vadd.f32 %v5760, %v5761
      %v5763 = vsel %vm5739, %v5679, 0.0
      %v5764 = vadd.f32 %v5762, %v5763
      %v5765 = vsel %vm5739, %v5683, 0.0
      %v5766 = vadd.f32 %v5764, %v5765
      %v5767 = vsel %vm5739, %v5687, 0.0
      %v5768 = vadd.f32 %v5766, %v5767
      %v5769 = vsel %vm5739, %v5691, 0.0
      %v5770 = vadd.f32 %v5768, %v5769
      %v5771 = vsel %vm5739, %v5695, 0.0
      %v5772 = vadd.f32 %v5770, %v5771
      %v5773 = vsel %vm5739, %v5699, 0.0
      %v5774 = vadd.f32 %v5772, %v5773
      %v5775 = vsel %vm5739, %v5703, 0.0
      %v5776 = vadd.f32 %v5774, %v5775
      %v5777 = vsel %vm5739, %v5707, 0.0
      %v5778 = vadd.f32 %v5776, %v5777
      %v5779 = vsel %vm5739, %v5711, 0.0
      %v5780 = vadd.f32 %v5778, %v5779
      %v5781 = vsel %vm5739, %v5715, 0.0
      %v5782 = vadd.f32 %v5780, %v5781
      %v5783 = vsel %vm5739, %v5719, 0.0
      %v5784 = vadd.f32 %v5782, %v5783
      %v5785 = vsel %vm5739, %v5723, 0.0
      %v5786 = vadd.f32 %v5784, %v5785
      %v5787 = vsel %vm5739, %v5727, 0.0
      %v5788 = vadd.f32 %v5786, %v5787
      %v5789 = vsel %vm5739, %v5731, 0.0
      %v5790 = vadd.f32 %v5788, %v5789
      %v5791 = vsel %vm5739, %v5735, 0.0
      %v5792 = vadd.f32 %v5790, %v5791
      %v5793 = vsel %vm5739, %v5632, 0.0
      %v5794 = vsel %vm5739, %v5636, 0.0
      %v5795 = vadd.f32 %v5793, %v5794
      %v5796 = vsel %vm5739, %v5640, 0.0
      %v5797 = vadd.f32 %v5795, %v5796
      %v5798 = vsel %vm5739, %v5644, 0.0
      %v5799 = vadd.f32 %v5797, %v5798
      %v5800 = vsel %vm5739, %v5648, 0.0
      %v5801 = vadd.f32 %v5799, %v5800
      %v5802 = vsel %vm5739, %v5652, 0.0
      %v5803 = vadd.f32 %v5801, %v5802
      %v5804 = vsel %vm5739, %v5656, 0.0
      %v5805 = vadd.f32 %v5803, %v5804
      %v5806 = vsel %vm5739, %v5660, 0.0
      %v5807 = vadd.f32 %v5805, %v5806
      %v5808 = vsel %vm5739, %v5664, 0.0
      %v5809 = vadd.f32 %v5807, %v5808
      %v5810 = vsel %vm5739, %v5668, 0.0
      %v5811 = vadd.f32 %v5809, %v5810
      %v5812 = vsel %vm5739, %v5672, 0.0
      %v5813 = vadd.f32 %v5811, %v5812
      %v5814 = vsel %vm5739, %v5676, 0.0
      %v5815 = vadd.f32 %v5813, %v5814
      %v5816 = vsel %vm5739, %v5680, 0.0
      %v5817 = vadd.f32 %v5815, %v5816
      %v5818 = vsel %vm5739, %v5684, 0.0
      %v5819 = vadd.f32 %v5817, %v5818
      %v5820 = vsel %vm5739, %v5688, 0.0
      %v5821 = vadd.f32 %v5819, %v5820
      %v5822 = vsel %vm5739, %v5692, 0.0
      %v5823 = vadd.f32 %v5821, %v5822
      %v5824 = vsel %vm5739, %v5696, 0.0
      %v5825 = vadd.f32 %v5823, %v5824
      %v5826 = vsel %vm5739, %v5700, 0.0
      %v5827 = vadd.f32 %v5825, %v5826
      %v5828 = vsel %vm5739, %v5704, 0.0
      %v5829 = vadd.f32 %v5827, %v5828
      %v5830 = vsel %vm5739, %v5708, 0.0
      %v5831 = vadd.f32 %v5829, %v5830
      %v5832 = vsel %vm5739, %v5712, 0.0
      %v5833 = vadd.f32 %v5831, %v5832
      %v5834 = vsel %vm5739, %v5716, 0.0
      %v5835 = vadd.f32 %v5833, %v5834
      %v5836 = vsel %vm5739, %v5720, 0.0
      %v5837 = vadd.f32 %v5835, %v5836
      %v5838 = vsel %vm5739, %v5724, 0.0
      %v5839 = vadd.f32 %v5837, %v5838
      %v5840 = vsel %vm5739, %v5728, 0.0
      %v5841 = vadd.f32 %v5839, %v5840
      %v5842 = vsel %vm5739, %v5732, 0.0
      %v5843 = vadd.f32 %v5841, %v5842
      %v5844 = vsel %vm5739, %v5736, 0.0
      %v5845 = vadd.f32 %v5843, %v5844
      %v5846 = vsel %vm5739, %v5633, 0.0
      %v5847 = vsel %vm5739, %v5637, 0.0
      %v5848 = vadd.f32 %v5846, %v5847
      %v5849 = vsel %vm5739, %v5641, 0.0
      %v5850 = vadd.f32 %v5848, %v5849
      %v5851 = vsel %vm5739, %v5645, 0.0
      %v5852 = vadd.f32 %v5850, %v5851
      %v5853 = vsel %vm5739, %v5649, 0.0
      %v5854 = vadd.f32 %v5852, %v5853
      %v5855 = vsel %vm5739, %v5653, 0.0
      %v5856 = vadd.f32 %v5854, %v5855
      %v5857 = vsel %vm5739, %v5657, 0.0
      %v5858 = vadd.f32 %v5856, %v5857
      %v5859 = vsel %vm5739, %v5661, 0.0
      %v5860 = vadd.f32 %v5858, %v5859
      %v5861 = vsel %vm5739, %v5665, 0.0
      %v5862 = vadd.f32 %v5860, %v5861
      %v5863 = vsel %vm5739, %v5669, 0.0
      %v5864 = vadd.f32 %v5862, %v5863
      %v5865 = vsel %vm5739, %v5673, 0.0
      %v5866 = vadd.f32 %v5864, %v5865
      %v5867 = vsel %vm5739, %v5677, 0.0
      %v5868 = vadd.f32 %v5866, %v5867
      %v5869 = vsel %vm5739, %v5681, 0.0
      %v5870 = vadd.f32 %v5868, %v5869
      %v5871 = vsel %vm5739, %v5685, 0.0
      %v5872 = vadd.f32 %v5870, %v5871
      %v5873 = vsel %vm5739, %v5689, 0.0
      %v5874 = vadd.f32 %v5872, %v5873
      %v5875 = vsel %vm5739, %v5693, 0.0
      %v5876 = vadd.f32 %v5874, %v5875
      %v5877 = vsel %vm5739, %v5697, 0.0
      %v5878 = vadd.f32 %v5876, %v5877
      %v5879 = vsel %vm5739, %v5701, 0.0
      %v5880 = vadd.f32 %v5878, %v5879
      %v5881 = vsel %vm5739, %v5705, 0.0
      %v5882 = vadd.f32 %v5880, %v5881
      %v5883 = vsel %vm5739, %v5709, 0.0
      %v5884 = vadd.f32 %v5882, %v5883
      %v5885 = vsel %vm5739, %v5713, 0.0
      %v5886 = vadd.f32 %v5884, %v5885
      %v5887 = vsel %vm5739, %v5717, 0.0
      %v5888 = vadd.f32 %v5886, %v5887
      %v5889 = vsel %vm5739, %v5721, 0.0
      %v5890 = vadd.f32 %v5888, %v5889
      %v5891 = vsel %vm5739, %v5725, 0.0
      %v5892 = vadd.f32 %v5890, %v5891
      %v5893 = vsel %vm5739, %v5729, 0.0
      %v5894 = vadd.f32 %v5892, %v5893
      %v5895 = vsel %vm5739, %v5733, 0.0
      %v5896 = vadd.f32 %v5894, %v5895
      %v5897 = vsel %vm5739, %v5737, 0.0
      %v5898 = vadd.f32 %v5896, %v5897
      %v5899 = vsel %vm5739, %v5634, 0.0
      %v5900 = vsel %vm5739, %v5638, 0.0
      %v5901 = vadd.f32 %v5899, %v5900
      %v5902 = vsel %vm5739, %v5642, 0.0
      %v5903 = vadd.f32 %v5901, %v5902
      %v5904 = vsel %vm5739, %v5646, 0.0
      %v5905 = vadd.f32 %v5903, %v5904
      %v5906 = vsel %vm5739, %v5650, 0.0
      %v5907 = vadd.f32 %v5905, %v5906
      %v5908 = vsel %vm5739, %v5654, 0.0
      %v5909 = vadd.f32 %v5907, %v5908
      %v5910 = vsel %vm5739, %v5658, 0.0
      %v5911 = vadd.f32 %v5909, %v5910
      %v5912 = vsel %vm5739, %v5662, 0.0
      %v5913 = vadd.f32 %v5911, %v5912
      %v5914 = vsel %vm5739, %v5666, 0.0
      %v5915 = vadd.f32 %v5913, %v5914
      %v5916 = vsel %vm5739, %v5670, 0.0
      %v5917 = vadd.f32 %v5915, %v5916
      %v5918 = vsel %vm5739, %v5674, 0.0
      %v5919 = vadd.f32 %v5917, %v5918
      %v5920 = vsel %vm5739, %v5678, 0.0
      %v5921 = vadd.f32 %v5919, %v5920
      %v5922 = vsel %vm5739, %v5682, 0.0
      %v5923 = vadd.f32 %v5921, %v5922
      %v5924 = vsel %vm5739, %v5686, 0.0
      %v5925 = vadd.f32 %v5923, %v5924
      %v5926 = vsel %vm5739, %v5690, 0.0
      %v5927 = vadd.f32 %v5925, %v5926
      %v5928 = vsel %vm5739, %v5694, 0.0
      %v5929 = vadd.f32 %v5927, %v5928
      %v5930 = vsel %vm5739, %v5698, 0.0
      %v5931 = vadd.f32 %v5929, %v5930
      %v5932 = vsel %vm5739, %v5702, 0.0
      %v5933 = vadd.f32 %v5931, %v5932
      %v5934 = vsel %vm5739, %v5706, 0.0
      %v5935 = vadd.f32 %v5933, %v5934
      %v5936 = vsel %vm5739, %v5710, 0.0
      %v5937 = vadd.f32 %v5935, %v5936
      %v5938 = vsel %vm5739, %v5714, 0.0
      %v5939 = vadd.f32 %v5937, %v5938
      %v5940 = vsel %vm5739, %v5718, 0.0
      %v5941 = vadd.f32 %v5939, %v5940
      %v5942 = vsel %vm5739, %v5722, 0.0
      %v5943 = vadd.f32 %v5941, %v5942
      %v5944 = vsel %vm5739, %v5726, 0.0
      %v5945 = vadd.f32 %v5943, %v5944
      %v5946 = vsel %vm5739, %v5730, 0.0
      %v5947 = vadd.f32 %v5945, %v5946
      %v5948 = vsel %vm5739, %v5734, 0.0
      %v5949 = vadd.f32 %v5947, %v5948
      %v5950 = vsel %vm5739, %v5738, 0.0
      %v5951 = vadd.f32 %v5949, %v5950
      %v5952 = vld [vmem:[%s10] sm:$0x1]
      %v5954 = vperm.slane %v5952, 0
      %v5956 = vadd.f32 %v5792, %v5954
      %v5957 = vadd.f32 %v5845, %v5954
      %v5958 = vadd.f32 %v5898, %v5954
      %v5959 = vadd.f32 %v5951, %v5954
      %v5960 = vpack.c.bf16 %v5957, %v5956
      %v5961 = vpack.c.bf16 %v5959, %v5958
      %v5962 = vld [vmem:[%s11] sm:$0xf]
      %v5963 = vld [vmem:[%s11 + $0x4] sm:$0xf]
      %v5964 = vld [vmem:[%s11 + $0x8] sm:$0xf]
      %v5965 = vld [vmem:[%s11 + $0xc] sm:$0xf]
      %v5966 = vld [vmem:[%s11 + $0x10] sm:$0xf]
      %v5967 = vld [vmem:[%s11 + $0x14] sm:$0xf]
      %v5968 = vld [vmem:[%s11 + $0x18] sm:$0xf]
      %v5969 = vld [vmem:[%s11 + $0x1c] sm:$0xf]
      %v5978 = vunpack.c.l.b16 %v5962
      %v5979 = vunpack.c.l.b16 %v5963
      %v5980 = vunpack.c.l.b16 %v5964
      %v5981 = vunpack.c.l.b16 %v5965
      %v5982 = vunpack.c.l.b16 %v5966
      %v5983 = vunpack.c.l.b16 %v5967
      %v5984 = vunpack.c.l.b16 %v5968
      %v5985 = vunpack.c.l.b16 %v5969
      %v5986 = vpack.c.b16 %v5979, %v5978
      %v5987 = vpack.c.b16 %v5981, %v5980
      %v5988 = vpack.c.b16 %v5983, %v5982
      %v5989 = vpack.c.b16 %v5985, %v5984
      %v5995 = vsel %vm5739, %v5960, 0
      %v5998 = vsel %vm5739, %v5961, 0
      %6000 = vmatpush.bf16.msra.mxu0 0
      %6001 = vmatpush.bf16.msra.mxu0 0
      %6002 = vmatpush.bf16.msra.mxu0 0
      %6003 = vmatpush.bf16.msra.mxu0 0
      %6004 = vmatpush.bf16.msra.mxu0 %v5989
      %6005 = vmatpush.bf16.msra.mxu0 %v5988
      %6006 = vmatpush.bf16.msra.mxu0 %v5987
      %6007 = vmatpush.bf16.msra.mxu0 %v5986
      %6008 = vmatmul.bf16.gmra.mxu0 %v5995
      %v6009 = vpop.f32.mrf.mxu0
      %v6010 = vadd.f32 %v4712, %v6009
      %v6011 = vpop.f32.mrf.mxu0
      %v6012 = vadd.f32 %v4714, %v6011
      %6013 = vmatmul.bf16.gmra.mxu0 %v5998
      %v6014 = vpop.f32.mrf.mxu0
      %v6015 = vadd.f32 %v4716, %v6014
      %v6016 = vpop.f32.mrf.mxu0
      %v6017 = vadd.f32 %v4718, %v6016
      %6018 = vdwg.mxu0
      %v6019 = vpack.c.bf16 %v6012, %v6010
      %v6020 = vpack.c.bf16 %v6017, %v6015
      %s6021 = scalar_lea.vmem %s5, 128
      %v6022 = vld [vmem:[%s6021] sm:$0xff]
      %v6023 = vld [vmem:[%s6021 + $0x8] sm:$0xff]
      %v6024 = vld [vmem:[%s6021 + $0x10] sm:$0xff]
      %v6025 = vld [vmem:[%s6021 + $0x18] sm:$0xff]
      %v6026 = vld [vmem:[%s6021 + $0x20] sm:$0xff]
      %v6027 = vld [vmem:[%s6021 + $0x28] sm:$0xff]
      %v6028 = vld [vmem:[%s6021 + $0x30] sm:$0xff]
      %v6029 = vld [vmem:[%s6021 + $0x38] sm:$0xff]
      %v6030 = vld [vmem:[%s6021 + $0x40] sm:$0xff]
      %v6031 = vld [vmem:[%s6021 + $0x48] sm:$0xff]
      %v6032 = vld [vmem:[%s6021 + $0x50] sm:$0xff]
      %v6033 = vld [vmem:[%s6021 + $0x58] sm:$0xff]
      %v6034 = vld [vmem:[%s6021 + $0x60] sm:$0xff]
      %v6035 = vld [vmem:[%s6021 + $0x68] sm:$0xff]
      %v6036 = vld [vmem:[%s6021 + $0x70] sm:$0xff]
      %v6037 = vld [vmem:[%s6021 + $0x78] sm:$0xff]
      %v6054 = vunpack.c.l.b16 %v6022
      %v6055 = vunpack.c.h.b16 %v6022
      %v6056 = vunpack.c.l.b16 %v6023
      %v6057 = vunpack.c.h.b16 %v6023
      %v6058 = vunpack.c.l.b16 %v6024
      %v6059 = vunpack.c.h.b16 %v6024
      %v6060 = vunpack.c.l.b16 %v6025
      %v6061 = vunpack.c.h.b16 %v6025
      %v6062 = vunpack.c.l.b16 %v6026
      %v6063 = vunpack.c.h.b16 %v6026
      %v6064 = vunpack.c.l.b16 %v6027
      %v6065 = vunpack.c.h.b16 %v6027
      %v6066 = vunpack.c.l.b16 %v6028
      %v6067 = vunpack.c.h.b16 %v6028
      %v6068 = vunpack.c.l.b16 %v6029
      %v6069 = vunpack.c.h.b16 %v6029
      %v6070 = vunpack.c.l.b16 %v6030
      %v6071 = vunpack.c.h.b16 %v6030
      %v6072 = vunpack.c.l.b16 %v6031
      %v6073 = vunpack.c.h.b16 %v6031
      %v6074 = vunpack.c.l.b16 %v6032
      %v6075 = vunpack.c.h.b16 %v6032
      %v6076 = vunpack.c.l.b16 %v6033
      %v6077 = vunpack.c.h.b16 %v6033
      %v6078 = vunpack.c.l.b16 %v6034
      %v6079 = vunpack.c.h.b16 %v6034
      %v6080 = vunpack.c.l.b16 %v6035
      %v6081 = vunpack.c.h.b16 %v6035
      %v6082 = vunpack.c.l.b16 %v6036
      %v6083 = vunpack.c.h.b16 %v6036
      %v6084 = vunpack.c.l.b16 %v6037
      %v6085 = vunpack.c.h.b16 %v6037
      %v6086 = vpack.c.b16 %v6056, %v6054
      %v6087 = vpack.c.b16 %v6057, %v6055
      %v6088 = vpack.c.b16 %v6060, %v6058
      %v6089 = vpack.c.b16 %v6061, %v6059
      %v6090 = vpack.c.b16 %v6064, %v6062
      %v6091 = vpack.c.b16 %v6065, %v6063
      %v6092 = vpack.c.b16 %v6068, %v6066
      %v6093 = vpack.c.b16 %v6069, %v6067
      %v6094 = vpack.c.b16 %v6072, %v6070
      %v6095 = vpack.c.b16 %v6073, %v6071
      %v6096 = vpack.c.b16 %v6076, %v6074
      %v6097 = vpack.c.b16 %v6077, %v6075
      %v6098 = vpack.c.b16 %v6080, %v6078
      %v6099 = vpack.c.b16 %v6081, %v6079
      %v6100 = vpack.c.b16 %v6084, %v6082
      %v6101 = vpack.c.b16 %v6085, %v6083
      %6118 = vmatpush.bf16.msra.mxu0 %v6100
      %6119 = vmatpush.bf16.msra.mxu0 %v6098
      %6120 = vmatpush.bf16.msra.mxu0 %v6096
      %6121 = vmatpush.bf16.msra.mxu0 %v6094
      %6122 = vmatpush.bf16.msra.mxu0 %v6092
      %6123 = vmatpush.bf16.msra.mxu0 %v6090
      %6124 = vmatpush.bf16.msra.mxu0 %v6088
      %6125 = vmatpush.bf16.msra.mxu0 %v6086
      %6126 = vmatmul.bf16.gmra.mxu0 %v6019
      %v6127 = vpop.f32.mrf.mxu0
      %v6128 = vadd.f32 0.0, %v6127
      %v6129 = vpop.f32.mrf.mxu0
      %v6130 = vadd.f32 0.0, %v6129
      %6131 = vmatmul.bf16.gmra.mxu0 %v6020
      %v6132 = vpop.f32.mrf.mxu0
      %v6133 = vadd.f32 0.0, %v6132
      %v6134 = vpop.f32.mrf.mxu0
      %v6135 = vadd.f32 0.0, %v6134
      %6136 = vdwg.mxu0
      %6137 = vmatpush.bf16.msra.mxu0 %v6101
      %6138 = vmatpush.bf16.msra.mxu0 %v6099
      %6139 = vmatpush.bf16.msra.mxu0 %v6097
      %6140 = vmatpush.bf16.msra.mxu0 %v6095
      %6141 = vmatpush.bf16.msra.mxu0 %v6093
      %6142 = vmatpush.bf16.msra.mxu0 %v6091
      %6143 = vmatpush.bf16.msra.mxu0 %v6089
      %6144 = vmatpush.bf16.msra.mxu0 %v6087
      %6145 = vmatmul.bf16.gmra.mxu0 %v6019
      %v6146 = vpop.f32.mrf.mxu0
      %v6147 = vadd.f32 0.0, %v6146
      %v6148 = vpop.f32.mrf.mxu0
      %v6149 = vadd.f32 0.0, %v6148
      %6150 = vmatmul.bf16.gmra.mxu0 %v6020
      %v6151 = vpop.f32.mrf.mxu0
      %v6152 = vadd.f32 0.0, %v6151
      %v6153 = vpop.f32.mrf.mxu0
      %v6154 = vadd.f32 0.0, %v6153
      %6155 = vdwg.mxu0
      %s6156 = scalar_lea.vmem %s6, 2
      %v6157 = vld [vmem:[%s6156] sm:$0x3]
      %v6159 = vperm.slane %v6157, 0
      %v6160 = vperm.slane %v6157, 1
      %v6163 = vmul.f32 %v6128, %v6159
      %v6164 = vmul.f32 %v6147, %v6160
      %v6165 = vmul.f32 %v6130, %v6159
      %v6166 = vmul.f32 %v6149, %v6160
      %v6167 = vmul.f32 %v6133, %v6159
      %v6168 = vmul.f32 %v6152, %v6160
      %v6169 = vmul.f32 %v6135, %v6159
      %v6170 = vmul.f32 %v6154, %v6160
      %s6171 = scalar_lea.vmem %s7, 2
      %v6172 = vld [vmem:[%s6171] sm:$0x3]
      %v6174 = vperm.slane %v6172, 0
      %v6175 = vperm.slane %v6172, 1
      %v6178 = vadd.f32 %v6163, %v6174
      %v6179 = vadd.f32 %v6164, %v6175
      %v6180 = vadd.f32 %v6165, %v6174
      %v6181 = vadd.f32 %v6166, %v6175
      %v6182 = vadd.f32 %v6167, %v6174
      %v6183 = vadd.f32 %v6168, %v6175
      %v6184 = vadd.f32 %v6169, %v6174
      %v6185 = vadd.f32 %v6170, %v6175
      %v6186 = vmax.f32 %v6179, 0.0
      %v6187 = vmax.f32 %v6181, 0.0
      %v6188 = vmax.f32 %v6183, 0.0
      %v6189 = vmax.f32 %v6185, 0.0
      %v6190 = vpack.c.bf16 %v6187, %v6186
      %v6191 = vpack.c.bf16 %v6189, %v6188
      %6192 = vmatpush.bf16.msra.mxu0 0
      %6193 = vmatpush.bf16.msra.mxu0 0
      %6194 = vmatpush.bf16.msra.mxu0 0
      %6195 = vmatpush.bf16.msra.mxu0 0
      %6196 = vmatpush.bf16.msra.mxu0 0
      %6197 = vmatpush.bf16.msra.mxu0 0
      %6198 = vmatpush.bf16.msra.mxu0 %v6191
      %6199 = vmatpush.bf16.msra.mxu0 %v6190
      %6200 = vmatmul.bf16.gmra.mxu0 %v5106
      %v6201 = vpop.f32.mrf.mxu0
      %v6202 = vadd.f32 0.0, %v6201
      %v6203 = vpop.f32.mrf.mxu0
      %v6204 = vadd.f32 0.0, %v6203
      %6205 = vmatmul.bf16.gmra.mxu0 %v5109
      %v6206 = vpop.f32.mrf.mxu0
      %v6207 = vadd.f32 0.0, %v6206
      %v6208 = vpop.f32.mrf.mxu0
      %v6209 = vadd.f32 0.0, %v6208
      %6210 = vmatmul.bf16.gmra.mxu0 %v5112
      %v6211 = vpop.f32.mrf.mxu0
      %v6212 = vadd.f32 0.0, %v6211
      %v6213 = vpop.f32.mrf.mxu0
      %v6214 = vadd.f32 0.0, %v6213
      %6215 = vmatmul.bf16.gmra.mxu0 %v5115
      %v6216 = vpop.f32.mrf.mxu0
      %v6217 = vadd.f32 0.0, %v6216
      %v6218 = vpop.f32.mrf.mxu0
      %v6219 = vadd.f32 0.0, %v6218
      %6220 = vmatmul.bf16.gmra.mxu0 %v5118
      %v6221 = vpop.f32.mrf.mxu0
      %v6222 = vadd.f32 0.0, %v6221
      %v6223 = vpop.f32.mrf.mxu0
      %v6224 = vadd.f32 0.0, %v6223
      %6225 = vmatmul.bf16.gmra.mxu0 %v5121
      %v6226 = vpop.f32.mrf.mxu0
      %v6227 = vadd.f32 0.0, %v6226
      %v6228 = vpop.f32.mrf.mxu0
      %v6229 = vadd.f32 0.0, %v6228
      %6230 = vmatmul.bf16.gmra.mxu0 %v5124
      %v6231 = vpop.f32.mrf.mxu0
      %v6232 = vadd.f32 0.0, %v6231
      %v6233 = vpop.f32.mrf.mxu0
      %v6234 = vadd.f32 0.0, %v6233
      %6235 = vmatmul.bf16.gmra.mxu0 %v5127
      %v6236 = vpop.f32.mrf.mxu0
      %v6237 = vadd.f32 0.0, %v6236
      %v6238 = vpop.f32.mrf.mxu0
      %v6239 = vadd.f32 0.0, %v6238
      %6240 = vmatmul.bf16.gmra.mxu0 %v5130
      %v6241 = vpop.f32.mrf.mxu0
      %v6242 = vadd.f32 0.0, %v6241
      %v6243 = vpop.f32.mrf.mxu0
      %v6244 = vadd.f32 0.0, %v6243
      %6245 = vmatmul.bf16.gmra.mxu0 %v5133
      %v6246 = vpop.f32.mrf.mxu0
      %v6247 = vadd.f32 0.0, %v6246
      %v6248 = vpop.f32.mrf.mxu0
      %v6249 = vadd.f32 0.0, %v6248
      %6250 = vmatmul.bf16.gmra.mxu0 %v5136
      %v6251 = vpop.f32.mrf.mxu0
      %v6252 = vadd.f32 0.0, %v6251
      %v6253 = vpop.f32.mrf.mxu0
      %v6254 = vadd.f32 0.0, %v6253
      %6255 = vmatmul.bf16.gmra.mxu0 %v5139
      %v6256 = vpop.f32.mrf.mxu0
      %v6257 = vadd.f32 0.0, %v6256
      %v6258 = vpop.f32.mrf.mxu0
      %v6259 = vadd.f32 0.0, %v6258
      %6260 = vmatmul.bf16.gmra.mxu0 %v5142
      %v6261 = vpop.f32.mrf.mxu0
      %v6262 = vadd.f32 0.0, %v6261
      %v6263 = vpop.f32.mrf.mxu0
      %v6264 = vadd.f32 0.0, %v6263
      %6265 = vmatmul.bf16.gmra.mxu0 %v5145
      %v6266 = vpop.f32.mrf.mxu0
      %v6267 = vadd.f32 0.0, %v6266
      %v6268 = vpop.f32.mrf.mxu0
      %v6269 = vadd.f32 0.0, %v6268
      %6270 = vmatmul.bf16.gmra.mxu0 %v5148
      %v6271 = vpop.f32.mrf.mxu0
      %v6272 = vadd.f32 0.0, %v6271
      %v6273 = vpop.f32.mrf.mxu0
      %v6274 = vadd.f32 0.0, %v6273
      %6275 = vmatmul.bf16.gmra.mxu0 %v5151
      %v6276 = vpop.f32.mrf.mxu0
      %v6277 = vadd.f32 0.0, %v6276
      %v6278 = vpop.f32.mrf.mxu0
      %v6279 = vadd.f32 0.0, %v6278
      %6280 = vmatmul.bf16.gmra.mxu0 %v5154
      %v6281 = vpop.f32.mrf.mxu0
      %v6282 = vadd.f32 0.0, %v6281
      %v6283 = vpop.f32.mrf.mxu0
      %v6284 = vadd.f32 0.0, %v6283
      %6285 = vmatmul.bf16.gmra.mxu0 %v5157
      %v6286 = vpop.f32.mrf.mxu0
      %v6287 = vadd.f32 0.0, %v6286
      %v6288 = vpop.f32.mrf.mxu0
      %v6289 = vadd.f32 0.0, %v6288
      %6290 = vmatmul.bf16.gmra.mxu0 %v5160
      %v6291 = vpop.f32.mrf.mxu0
      %v6292 = vadd.f32 0.0, %v6291
      %v6293 = vpop.f32.mrf.mxu0
      %v6294 = vadd.f32 0.0, %v6293
      %6295 = vmatmul.bf16.gmra.mxu0 %v5163
      %v6296 = vpop.f32.mrf.mxu0
      %v6297 = vadd.f32 0.0, %v6296
      %v6298 = vpop.f32.mrf.mxu0
      %v6299 = vadd.f32 0.0, %v6298
      %6300 = vmatmul.bf16.gmra.mxu0 %v5166
      %v6301 = vpop.f32.mrf.mxu0
      %v6302 = vadd.f32 0.0, %v6301
      %v6303 = vpop.f32.mrf.mxu0
      %v6304 = vadd.f32 0.0, %v6303
      %6305 = vmatmul.bf16.gmra.mxu0 %v5169
      %v6306 = vpop.f32.mrf.mxu0
      %v6307 = vadd.f32 0.0, %v6306
      %v6308 = vpop.f32.mrf.mxu0
      %v6309 = vadd.f32 0.0, %v6308
      %6310 = vmatmul.bf16.gmra.mxu0 %v5172
      %v6311 = vpop.f32.mrf.mxu0
      %v6312 = vadd.f32 0.0, %v6311
      %v6313 = vpop.f32.mrf.mxu0
      %v6314 = vadd.f32 0.0, %v6313
      %6315 = vmatmul.bf16.gmra.mxu0 %v5175
      %v6316 = vpop.f32.mrf.mxu0
      %v6317 = vadd.f32 0.0, %v6316
      %v6318 = vpop.f32.mrf.mxu0
      %v6319 = vadd.f32 0.0, %v6318
      %6320 = vmatmul.bf16.gmra.mxu0 %v5178
      %v6321 = vpop.f32.mrf.mxu0
      %v6322 = vadd.f32 0.0, %v6321
      %v6323 = vpop.f32.mrf.mxu0
      %v6324 = vadd.f32 0.0, %v6323
      %6325 = vmatmul.bf16.gmra.mxu0 %v5181
      %v6326 = vpop.f32.mrf.mxu0
      %v6327 = vadd.f32 0.0, %v6326
      %v6328 = vpop.f32.mrf.mxu0
      %v6329 = vadd.f32 0.0, %v6328
      %6330 = vmatmul.bf16.gmra.mxu0 %v5184
      %v6331 = vpop.f32.mrf.mxu0
      %v6332 = vadd.f32 0.0, %v6331
      %v6333 = vpop.f32.mrf.mxu0
      %v6334 = vadd.f32 0.0, %v6333
      %6335 = vmatmul.bf16.gmra.mxu0 %v5187
      %v6336 = vpop.f32.mrf.mxu0
      %v6337 = vadd.f32 0.0, %v6336
      %v6338 = vpop.f32.mrf.mxu0
      %v6339 = vadd.f32 0.0, %v6338
      %6340 = vmatmul.bf16.gmra.mxu0 %v5190
      %v6341 = vpop.f32.mrf.mxu0
      %v6342 = vadd.f32 0.0, %v6341
      %v6343 = vpop.f32.mrf.mxu0
      %v6344 = vadd.f32 0.0, %v6343
      %6345 = vmatmul.bf16.gmra.mxu0 %v5193
      %v6346 = vpop.f32.mrf.mxu0
      %v6347 = vadd.f32 0.0, %v6346
      %v6348 = vpop.f32.mrf.mxu0
      %v6349 = vadd.f32 0.0, %v6348
      %6350 = vmatmul.bf16.gmra.mxu0 %v5196
      %v6351 = vpop.f32.mrf.mxu0
      %v6352 = vadd.f32 0.0, %v6351
      %v6353 = vpop.f32.mrf.mxu0
      %v6354 = vadd.f32 0.0, %v6353
      %6355 = vmatmul.bf16.gmra.mxu0 %v5199
      %v6356 = vpop.f32.mrf.mxu0
      %v6357 = vadd.f32 0.0, %v6356
      %v6358 = vpop.f32.mrf.mxu0
      %v6359 = vadd.f32 0.0, %v6358
      %6360 = vmatmul.bf16.gmra.mxu0 %v5202
      %v6361 = vpop.f32.mrf.mxu0
      %v6362 = vadd.f32 0.0, %v6361
      %v6363 = vpop.f32.mrf.mxu0
      %v6364 = vadd.f32 0.0, %v6363
      %6365 = vmatmul.bf16.gmra.mxu0 %v5205
      %v6366 = vpop.f32.mrf.mxu0
      %v6367 = vadd.f32 0.0, %v6366
      %v6368 = vpop.f32.mrf.mxu0
      %v6369 = vadd.f32 0.0, %v6368
      %6370 = vmatmul.bf16.gmra.mxu0 %v5208
      %v6371 = vpop.f32.mrf.mxu0
      %v6372 = vadd.f32 0.0, %v6371
      %v6373 = vpop.f32.mrf.mxu0
      %v6374 = vadd.f32 0.0, %v6373
      %6375 = vmatmul.bf16.gmra.mxu0 %v5211
      %v6376 = vpop.f32.mrf.mxu0
      %v6377 = vadd.f32 0.0, %v6376
      %v6378 = vpop.f32.mrf.mxu0
      %v6379 = vadd.f32 0.0, %v6378
      %6380 = vmatmul.bf16.gmra.mxu0 %v5214
      %v6381 = vpop.f32.mrf.mxu0
      %v6382 = vadd.f32 0.0, %v6381
      %v6383 = vpop.f32.mrf.mxu0
      %v6384 = vadd.f32 0.0, %v6383
      %6385 = vmatmul.bf16.gmra.mxu0 %v5217
      %v6386 = vpop.f32.mrf.mxu0
      %v6387 = vadd.f32 0.0, %v6386
      %v6388 = vpop.f32.mrf.mxu0
      %v6389 = vadd.f32 0.0, %v6388
      %6390 = vmatmul.bf16.gmra.mxu0 %v5220
      %v6391 = vpop.f32.mrf.mxu0
      %v6392 = vadd.f32 0.0, %v6391
      %v6393 = vpop.f32.mrf.mxu0
      %v6394 = vadd.f32 0.0, %v6393
      %6395 = vmatmul.bf16.gmra.mxu0 %v5223
      %v6396 = vpop.f32.mrf.mxu0
      %v6397 = vadd.f32 0.0, %v6396
      %v6398 = vpop.f32.mrf.mxu0
      %v6399 = vadd.f32 0.0, %v6398
      %6400 = vmatmul.bf16.gmra.mxu0 %v5226
      %v6401 = vpop.f32.mrf.mxu0
      %v6402 = vadd.f32 0.0, %v6401
      %v6403 = vpop.f32.mrf.mxu0
      %v6404 = vadd.f32 0.0, %v6403
      %6405 = vmatmul.bf16.gmra.mxu0 %v5229
      %v6406 = vpop.f32.mrf.mxu0
      %v6407 = vadd.f32 0.0, %v6406
      %v6408 = vpop.f32.mrf.mxu0
      %v6409 = vadd.f32 0.0, %v6408
      %6410 = vmatmul.bf16.gmra.mxu0 %v5232
      %v6411 = vpop.f32.mrf.mxu0
      %v6412 = vadd.f32 0.0, %v6411
      %v6413 = vpop.f32.mrf.mxu0
      %v6414 = vadd.f32 0.0, %v6413
      %6415 = vmatmul.bf16.gmra.mxu0 %v5235
      %v6416 = vpop.f32.mrf.mxu0
      %v6417 = vadd.f32 0.0, %v6416
      %v6418 = vpop.f32.mrf.mxu0
      %v6419 = vadd.f32 0.0, %v6418
      %6420 = vmatmul.bf16.gmra.mxu0 %v5238
      %v6421 = vpop.f32.mrf.mxu0
      %v6422 = vadd.f32 0.0, %v6421
      %v6423 = vpop.f32.mrf.mxu0
      %v6424 = vadd.f32 0.0, %v6423
      %6425 = vmatmul.bf16.gmra.mxu0 %v5241
      %v6426 = vpop.f32.mrf.mxu0
      %v6427 = vadd.f32 0.0, %v6426
      %v6428 = vpop.f32.mrf.mxu0
      %v6429 = vadd.f32 0.0, %v6428
      %6430 = vmatmul.bf16.gmra.mxu0 %v5244
      %v6431 = vpop.f32.mrf.mxu0
      %v6432 = vadd.f32 0.0, %v6431
      %v6433 = vpop.f32.mrf.mxu0
      %v6434 = vadd.f32 0.0, %v6433
      %6435 = vmatmul.bf16.gmra.mxu0 %v5247
      %v6436 = vpop.f32.mrf.mxu0
      %v6437 = vadd.f32 0.0, %v6436
      %v6438 = vpop.f32.mrf.mxu0
      %v6439 = vadd.f32 0.0, %v6438
      %6440 = vmatmul.bf16.gmra.mxu0 %v5250
      %v6441 = vpop.f32.mrf.mxu0
      %v6442 = vadd.f32 0.0, %v6441
      %v6443 = vpop.f32.mrf.mxu0
      %v6444 = vadd.f32 0.0, %v6443
      %6445 = vmatmul.bf16.gmra.mxu0 %v5253
      %v6446 = vpop.f32.mrf.mxu0
      %v6447 = vadd.f32 0.0, %v6446
      %v6448 = vpop.f32.mrf.mxu0
      %v6449 = vadd.f32 0.0, %v6448
      %6450 = vmatmul.bf16.gmra.mxu0 %v5256
      %v6451 = vpop.f32.mrf.mxu0
      %v6452 = vadd.f32 0.0, %v6451
      %v6453 = vpop.f32.mrf.mxu0
      %v6454 = vadd.f32 0.0, %v6453
      %6455 = vmatmul.bf16.gmra.mxu0 %v5259
      %v6456 = vpop.f32.mrf.mxu0
      %v6457 = vadd.f32 0.0, %v6456
      %v6458 = vpop.f32.mrf.mxu0
      %v6459 = vadd.f32 0.0, %v6458
      %6460 = vmatmul.bf16.gmra.mxu0 %v5262
      %v6461 = vpop.f32.mrf.mxu0
      %v6462 = vadd.f32 0.0, %v6461
      %v6463 = vpop.f32.mrf.mxu0
      %v6464 = vadd.f32 0.0, %v6463
      %6465 = vmatmul.bf16.gmra.mxu0 %v5265
      %v6466 = vpop.f32.mrf.mxu0
      %v6467 = vadd.f32 0.0, %v6466
      %v6468 = vpop.f32.mrf.mxu0
      %v6469 = vadd.f32 0.0, %v6468
      %6470 = vdwg.mxu0
      %s6471 = scalar_lea.vmem %s9, 32
      %v6472 = vld [vmem:[%s6471] sm:$0xff]
      %v6473 = vld [vmem:[%s6471 + $0x8] sm:$0xff]
      %v6474 = vld [vmem:[%s6471 + $0x10] sm:$0xff]
      %v6475 = vld [vmem:[%s6471 + $0x18] sm:$0x7]
      %v6480 = vrot.slane %v6472, 1
      %v6481 = vrot.slane %v6472, 2
      %v6482 = vrot.slane %v6472, 3
      %v6483 = vrot.slane %v6472, 4
      %v6484 = vrot.slane %v6472, 5
      %v6485 = vrot.slane %v6472, 6
      %v6486 = vrot.slane %v6472, 7
      %v6487 = vrot.slane %v6473, 1
      %v6488 = vrot.slane %v6473, 2
      %v6489 = vrot.slane %v6473, 3
      %v6490 = vrot.slane %v6473, 4
      %v6491 = vrot.slane %v6473, 5
      %v6492 = vrot.slane %v6473, 6
      %v6493 = vrot.slane %v6473, 7
      %v6494 = vrot.slane %v6474, 1
      %v6495 = vrot.slane %v6474, 2
      %v6496 = vrot.slane %v6474, 3
      %v6497 = vrot.slane %v6474, 4
      %v6498 = vrot.slane %v6474, 5
      %v6499 = vrot.slane %v6474, 6
      %v6500 = vrot.slane %v6474, 7
      %v6501 = vrot.slane %v6475, 1
      %v6502 = vrot.slane %v6475, 2
      %v6503 = vperm.slane %v6472, 0
      %v6504 = vperm.slane %v6480, 0
      %v6505 = vperm.slane %v6481, 0
      %v6506 = vperm.slane %v6482, 0
      %v6507 = vperm.slane %v6483, 0
      %v6508 = vperm.slane %v6484, 0
      %v6509 = vperm.slane %v6485, 0
      %v6510 = vperm.slane %v6486, 0
      %v6511 = vperm.slane %v6473, 0
      %v6512 = vperm.slane %v6487, 0
      %v6513 = vperm.slane %v6488, 0
      %v6514 = vperm.slane %v6489, 0
      %v6515 = vperm.slane %v6490, 0
      %v6516 = vperm.slane %v6491, 0
      %v6517 = vperm.slane %v6492, 0
      %v6518 = vperm.slane %v6493, 0
      %v6519 = vperm.slane %v6474, 0
      %v6520 = vperm.slane %v6494, 0
      %v6521 = vperm.slane %v6495, 0
      %v6522 = vperm.slane %v6496, 0
      %v6523 = vperm.slane %v6497, 0
      %v6524 = vperm.slane %v6498, 0
      %v6525 = vperm.slane %v6499, 0
      %v6526 = vperm.slane %v6500, 0
      %v6527 = vperm.slane %v6475, 0
      %v6528 = vperm.slane %v6501, 0
      %v6529 = vperm.slane %v6502, 0
      %v6557 = vmul.f32 %v6202, %v6503
      %v6558 = vmul.f32 %v6204, %v6503
      %v6559 = vmul.f32 %v6207, %v6503
      %v6560 = vmul.f32 %v6209, %v6503
      %v6561 = vmul.f32 %v6212, %v6504
      %v6562 = vmul.f32 %v6214, %v6504
      %v6563 = vmul.f32 %v6217, %v6504
      %v6564 = vmul.f32 %v6219, %v6504
      %v6565 = vmul.f32 %v6222, %v6505
      %v6566 = vmul.f32 %v6224, %v6505
      %v6567 = vmul.f32 %v6227, %v6505
      %v6568 = vmul.f32 %v6229, %v6505
      %v6569 = vmul.f32 %v6232, %v6506
      %v6570 = vmul.f32 %v6234, %v6506
      %v6571 = vmul.f32 %v6237, %v6506
      %v6572 = vmul.f32 %v6239, %v6506
      %v6573 = vmul.f32 %v6242, %v6507
      %v6574 = vmul.f32 %v6244, %v6507
      %v6575 = vmul.f32 %v6247, %v6507
      %v6576 = vmul.f32 %v6249, %v6507
      %v6577 = vmul.f32 %v6252, %v6508
      %v6578 = vmul.f32 %v6254, %v6508
      %v6579 = vmul.f32 %v6257, %v6508
      %v6580 = vmul.f32 %v6259, %v6508
      %v6581 = vmul.f32 %v6262, %v6509
      %v6582 = vmul.f32 %v6264, %v6509
      %v6583 = vmul.f32 %v6267, %v6509
      %v6584 = vmul.f32 %v6269, %v6509
      %v6585 = vmul.f32 %v6272, %v6510
      %v6586 = vmul.f32 %v6274, %v6510
      %v6587 = vmul.f32 %v6277, %v6510
      %v6588 = vmul.f32 %v6279, %v6510
      %v6589 = vmul.f32 %v6282, %v6511
      %v6590 = vmul.f32 %v6284, %v6511
      %v6591 = vmul.f32 %v6287, %v6511
      %v6592 = vmul.f32 %v6289, %v6511
      %v6593 = vmul.f32 %v6292, %v6512
      %v6594 = vmul.f32 %v6294, %v6512
      %v6595 = vmul.f32 %v6297, %v6512
      %v6596 = vmul.f32 %v6299, %v6512
      %v6597 = vmul.f32 %v6302, %v6513
      %v6598 = vmul.f32 %v6304, %v6513
      %v6599 = vmul.f32 %v6307, %v6513
      %v6600 = vmul.f32 %v6309, %v6513
      %v6601 = vmul.f32 %v6312, %v6514
      %v6602 = vmul.f32 %v6314, %v6514
      %v6603 = vmul.f32 %v6317, %v6514
      %v6604 = vmul.f32 %v6319, %v6514
      %v6605 = vmul.f32 %v6322, %v6515
      %v6606 = vmul.f32 %v6324, %v6515
      %v6607 = vmul.f32 %v6327, %v6515
      %v6608 = vmul.f32 %v6329, %v6515
      %v6609 = vmul.f32 %v6332, %v6516
      %v6610 = vmul.f32 %v6334, %v6516
      %v6611 = vmul.f32 %v6337, %v6516
      %v6612 = vmul.f32 %v6339, %v6516
      %v6613 = vmul.f32 %v6342, %v6517
      %v6614 = vmul.f32 %v6344, %v6517
      %v6615 = vmul.f32 %v6347, %v6517
      %v6616 = vmul.f32 %v6349, %v6517
      %v6617 = vmul.f32 %v6352, %v6518
      %v6618 = vmul.f32 %v6354, %v6518
      %v6619 = vmul.f32 %v6357, %v6518
      %v6620 = vmul.f32 %v6359, %v6518
      %v6621 = vmul.f32 %v6362, %v6519
      %v6622 = vmul.f32 %v6364, %v6519
      %v6623 = vmul.f32 %v6367, %v6519
      %v6624 = vmul.f32 %v6369, %v6519
      %v6625 = vmul.f32 %v6372, %v6520
      %v6626 = vmul.f32 %v6374, %v6520
      %v6627 = vmul.f32 %v6377, %v6520
      %v6628 = vmul.f32 %v6379, %v6520
      %v6629 = vmul.f32 %v6382, %v6521
      %v6630 = vmul.f32 %v6384, %v6521
      %v6631 = vmul.f32 %v6387, %v6521
      %v6632 = vmul.f32 %v6389, %v6521
      %v6633 = vmul.f32 %v6392, %v6522
      %v6634 = vmul.f32 %v6394, %v6522
      %v6635 = vmul.f32 %v6397, %v6522
      %v6636 = vmul.f32 %v6399, %v6522
      %v6637 = vmul.f32 %v6402, %v6523
      %v6638 = vmul.f32 %v6404, %v6523
      %v6639 = vmul.f32 %v6407, %v6523
      %v6640 = vmul.f32 %v6409, %v6523
      %v6641 = vmul.f32 %v6412, %v6524
      %v6642 = vmul.f32 %v6414, %v6524
      %v6643 = vmul.f32 %v6417, %v6524
      %v6644 = vmul.f32 %v6419, %v6524
      %v6645 = vmul.f32 %v6422, %v6525
      %v6646 = vmul.f32 %v6424, %v6525
      %v6647 = vmul.f32 %v6427, %v6525
      %v6648 = vmul.f32 %v6429, %v6525
      %v6649 = vmul.f32 %v6432, %v6526
      %v6650 = vmul.f32 %v6434, %v6526
      %v6651 = vmul.f32 %v6437, %v6526
      %v6652 = vmul.f32 %v6439, %v6526
      %v6653 = vmul.f32 %v6442, %v6527
      %v6654 = vmul.f32 %v6444, %v6527
      %v6655 = vmul.f32 %v6447, %v6527
      %v6656 = vmul.f32 %v6449, %v6527
      %v6657 = vmul.f32 %v6452, %v6528
      %v6658 = vmul.f32 %v6454, %v6528
      %v6659 = vmul.f32 %v6457, %v6528
      %v6660 = vmul.f32 %v6459, %v6528
      %v6661 = vmul.f32 %v6462, %v6529
      %v6662 = vmul.f32 %v6464, %v6529
      %v6663 = vmul.f32 %v6467, %v6529
      %v6664 = vmul.f32 %v6469, %v6529
      %v6665 = vsel %vm5739, %v6557, 0.0
      %v6666 = vsel %vm5739, %v6561, 0.0
      %v6667 = vadd.f32 %v6665, %v6666
      %v6668 = vsel %vm5739, %v6565, 0.0
      %v6669 = vadd.f32 %v6667, %v6668
      %v6670 = vsel %vm5739, %v6569, 0.0
      %v6671 = vadd.f32 %v6669, %v6670
      %v6672 = vsel %vm5739, %v6573, 0.0
      %v6673 = vadd.f32 %v6671, %v6672
      %v6674 = vsel %vm5739, %v6577, 0.0
      %v6675 = vadd.f32 %v6673, %v6674
      %v6676 = vsel %vm5739, %v6581, 0.0
      %v6677 = vadd.f32 %v6675, %v6676
      %v6678 = vsel %vm5739, %v6585, 0.0
      %v6679 = vadd.f32 %v6677, %v6678
      %v6680 = vsel %vm5739, %v6589, 0.0
      %v6681 = vadd.f32 %v6679, %v6680
      %v6682 = vsel %vm5739, %v6593, 0.0
      %v6683 = vadd.f32 %v6681, %v6682
      %v6684 = vsel %vm5739, %v6597, 0.0
      %v6685 = vadd.f32 %v6683, %v6684
      %v6686 = vsel %vm5739, %v6601, 0.0
      %v6687 = vadd.f32 %v6685, %v6686
      %v6688 = vsel %vm5739, %v6605, 0.0
      %v6689 = vadd.f32 %v6687, %v6688
      %v6690 = vsel %vm5739, %v6609, 0.0
      %v6691 = vadd.f32 %v6689, %v6690
      %v6692 = vsel %vm5739, %v6613, 0.0
      %v6693 = vadd.f32 %v6691, %v6692
      %v6694 = vsel %vm5739, %v6617, 0.0
      %v6695 = vadd.f32 %v6693, %v6694
      %v6696 = vsel %vm5739, %v6621, 0.0
      %v6697 = vadd.f32 %v6695, %v6696
      %v6698 = vsel %vm5739, %v6625, 0.0
      %v6699 = vadd.f32 %v6697, %v6698
      %v6700 = vsel %vm5739, %v6629, 0.0
      %v6701 = vadd.f32 %v6699, %v6700
      %v6702 = vsel %vm5739, %v6633, 0.0
      %v6703 = vadd.f32 %v6701, %v6702
      %v6704 = vsel %vm5739, %v6637, 0.0
      %v6705 = vadd.f32 %v6703, %v6704
      %v6706 = vsel %vm5739, %v6641, 0.0
      %v6707 = vadd.f32 %v6705, %v6706
      %v6708 = vsel %vm5739, %v6645, 0.0
      %v6709 = vadd.f32 %v6707, %v6708
      %v6710 = vsel %vm5739, %v6649, 0.0
      %v6711 = vadd.f32 %v6709, %v6710
      %v6712 = vsel %vm5739, %v6653, 0.0
      %v6713 = vadd.f32 %v6711, %v6712
      %v6714 = vsel %vm5739, %v6657, 0.0
      %v6715 = vadd.f32 %v6713, %v6714
      %v6716 = vsel %vm5739, %v6661, 0.0
      %v6717 = vadd.f32 %v6715, %v6716
      %v6718 = vsel %vm5739, %v6558, 0.0
      %v6719 = vsel %vm5739, %v6562, 0.0
      %v6720 = vadd.f32 %v6718, %v6719
      %v6721 = vsel %vm5739, %v6566, 0.0
      %v6722 = vadd.f32 %v6720, %v6721
      %v6723 = vsel %vm5739, %v6570, 0.0
      %v6724 = vadd.f32 %v6722, %v6723
      %v6725 = vsel %vm5739, %v6574, 0.0
      %v6726 = vadd.f32 %v6724, %v6725
      %v6727 = vsel %vm5739, %v6578, 0.0
      %v6728 = vadd.f32 %v6726, %v6727
      %v6729 = vsel %vm5739, %v6582, 0.0
      %v6730 = vadd.f32 %v6728, %v6729
      %v6731 = vsel %vm5739, %v6586, 0.0
      %v6732 = vadd.f32 %v6730, %v6731
      %v6733 = vsel %vm5739, %v6590, 0.0
      %v6734 = vadd.f32 %v6732, %v6733
      %v6735 = vsel %vm5739, %v6594, 0.0
      %v6736 = vadd.f32 %v6734, %v6735
      %v6737 = vsel %vm5739, %v6598, 0.0
      %v6738 = vadd.f32 %v6736, %v6737
      %v6739 = vsel %vm5739, %v6602, 0.0
      %v6740 = vadd.f32 %v6738, %v6739
      %v6741 = vsel %vm5739, %v6606, 0.0
      %v6742 = vadd.f32 %v6740, %v6741
      %v6743 = vsel %vm5739, %v6610, 0.0
      %v6744 = vadd.f32 %v6742, %v6743
      %v6745 = vsel %vm5739, %v6614, 0.0
      %v6746 = vadd.f32 %v6744, %v6745
      %v6747 = vsel %vm5739, %v6618, 0.0
      %v6748 = vadd.f32 %v6746, %v6747
      %v6749 = vsel %vm5739, %v6622, 0.0
      %v6750 = vadd.f32 %v6748, %v6749
      %v6751 = vsel %vm5739, %v6626, 0.0
      %v6752 = vadd.f32 %v6750, %v6751
      %v6753 = vsel %vm5739, %v6630, 0.0
      %v6754 = vadd.f32 %v6752, %v6753
      %v6755 = vsel %vm5739, %v6634, 0.0
      %v6756 = vadd.f32 %v6754, %v6755
      %v6757 = vsel %vm5739, %v6638, 0.0
      %v6758 = vadd.f32 %v6756, %v6757
      %v6759 = vsel %vm5739, %v6642, 0.0
      %v6760 = vadd.f32 %v6758, %v6759
      %v6761 = vsel %vm5739, %v6646, 0.0
      %v6762 = vadd.f32 %v6760, %v6761
      %v6763 = vsel %vm5739, %v6650, 0.0
      %v6764 = vadd.f32 %v6762, %v6763
      %v6765 = vsel %vm5739, %v6654, 0.0
      %v6766 = vadd.f32 %v6764, %v6765
      %v6767 = vsel %vm5739, %v6658, 0.0
      %v6768 = vadd.f32 %v6766, %v6767
      %v6769 = vsel %vm5739, %v6662, 0.0
      %v6770 = vadd.f32 %v6768, %v6769
      %v6771 = vsel %vm5739, %v6559, 0.0
      %v6772 = vsel %vm5739, %v6563, 0.0
      %v6773 = vadd.f32 %v6771, %v6772
      %v6774 = vsel %vm5739, %v6567, 0.0
      %v6775 = vadd.f32 %v6773, %v6774
      %v6776 = vsel %vm5739, %v6571, 0.0
      %v6777 = vadd.f32 %v6775, %v6776
      %v6778 = vsel %vm5739, %v6575, 0.0
      %v6779 = vadd.f32 %v6777, %v6778
      %v6780 = vsel %vm5739, %v6579, 0.0
      %v6781 = vadd.f32 %v6779, %v6780
      %v6782 = vsel %vm5739, %v6583, 0.0
      %v6783 = vadd.f32 %v6781, %v6782
      %v6784 = vsel %vm5739, %v6587, 0.0
      %v6785 = vadd.f32 %v6783, %v6784
      %v6786 = vsel %vm5739, %v6591, 0.0
      %v6787 = vadd.f32 %v6785, %v6786
      %v6788 = vsel %vm5739, %v6595, 0.0
      %v6789 = vadd.f32 %v6787, %v6788
      %v6790 = vsel %vm5739, %v6599, 0.0
      %v6791 = vadd.f32 %v6789, %v6790
      %v6792 = vsel %vm5739, %v6603, 0.0
      %v6793 = vadd.f32 %v6791, %v6792
      %v6794 = vsel %vm5739, %v6607, 0.0
      %v6795 = vadd.f32 %v6793, %v6794
      %v6796 = vsel %vm5739, %v6611, 0.0
      %v6797 = vadd.f32 %v6795, %v6796
      %v6798 = vsel %vm5739, %v6615, 0.0
      %v6799 = vadd.f32 %v6797, %v6798
      %v6800 = vsel %vm5739, %v6619, 0.0
      %v6801 = vadd.f32 %v6799, %v6800
      %v6802 = vsel %vm5739, %v6623, 0.0
      %v6803 = vadd.f32 %v6801, %v6802
      %v6804 = vsel %vm5739, %v6627, 0.0
      %v6805 = vadd.f32 %v6803, %v6804
      %v6806 = vsel %vm5739, %v6631, 0.0
      %v6807 = vadd.f32 %v6805, %v6806
      %v6808 = vsel %vm5739, %v6635, 0.0
      %v6809 = vadd.f32 %v6807, %v6808
      %v6810 = vsel %vm5739, %v6639, 0.0
      %v6811 = vadd.f32 %v6809, %v6810
      %v6812 = vsel %vm5739, %v6643, 0.0
      %v6813 = vadd.f32 %v6811, %v6812
      %v6814 = vsel %vm5739, %v6647, 0.0
      %v6815 = vadd.f32 %v6813, %v6814
      %v6816 = vsel %vm5739, %v6651, 0.0
      %v6817 = vadd.f32 %v6815, %v6816
      %v6818 = vsel %vm5739, %v6655, 0.0
      %v6819 = vadd.f32 %v6817, %v6818
      %v6820 = vsel %vm5739, %v6659, 0.0
      %v6821 = vadd.f32 %v6819, %v6820
      %v6822 = vsel %vm5739, %v6663, 0.0
      %v6823 = vadd.f32 %v6821, %v6822
      %v6824 = vsel %vm5739, %v6560, 0.0
      %v6825 = vsel %vm5739, %v6564, 0.0
      %v6826 = vadd.f32 %v6824, %v6825
      %v6827 = vsel %vm5739, %v6568, 0.0
      %v6828 = vadd.f32 %v6826, %v6827
      %v6829 = vsel %vm5739, %v6572, 0.0
      %v6830 = vadd.f32 %v6828, %v6829
      %v6831 = vsel %vm5739, %v6576, 0.0
      %v6832 = vadd.f32 %v6830, %v6831
      %v6833 = vsel %vm5739, %v6580, 0.0
      %v6834 = vadd.f32 %v6832, %v6833
      %v6835 = vsel %vm5739, %v6584, 0.0
      %v6836 = vadd.f32 %v6834, %v6835
      %v6837 = vsel %vm5739, %v6588, 0.0
      %v6838 = vadd.f32 %v6836, %v6837
      %v6839 = vsel %vm5739, %v6592, 0.0
      %v6840 = vadd.f32 %v6838, %v6839
      %v6841 = vsel %vm5739, %v6596, 0.0
      %v6842 = vadd.f32 %v6840, %v6841
      %v6843 = vsel %vm5739, %v6600, 0.0
      %v6844 = vadd.f32 %v6842, %v6843
      %v6845 = vsel %vm5739, %v6604, 0.0
      %v6846 = vadd.f32 %v6844, %v6845
      %v6847 = vsel %vm5739, %v6608, 0.0
      %v6848 = vadd.f32 %v6846, %v6847
      %v6849 = vsel %vm5739, %v6612, 0.0
      %v6850 = vadd.f32 %v6848, %v6849
      %v6851 = vsel %vm5739, %v6616, 0.0
      %v6852 = vadd.f32 %v6850, %v6851
      %v6853 = vsel %vm5739, %v6620, 0.0
      %v6854 = vadd.f32 %v6852, %v6853
      %v6855 = vsel %vm5739, %v6624, 0.0
      %v6856 = vadd.f32 %v6854, %v6855
      %v6857 = vsel %vm5739, %v6628, 0.0
      %v6858 = vadd.f32 %v6856, %v6857
      %v6859 = vsel %vm5739, %v6632, 0.0
      %v6860 = vadd.f32 %v6858, %v6859
      %v6861 = vsel %vm5739, %v6636, 0.0
      %v6862 = vadd.f32 %v6860, %v6861
      %v6863 = vsel %vm5739, %v6640, 0.0
      %v6864 = vadd.f32 %v6862, %v6863
      %v6865 = vsel %vm5739, %v6644, 0.0
      %v6866 = vadd.f32 %v6864, %v6865
      %v6867 = vsel %vm5739, %v6648, 0.0
      %v6868 = vadd.f32 %v6866, %v6867
      %v6869 = vsel %vm5739, %v6652, 0.0
      %v6870 = vadd.f32 %v6868, %v6869
      %v6871 = vsel %vm5739, %v6656, 0.0
      %v6872 = vadd.f32 %v6870, %v6871
      %v6873 = vsel %vm5739, %v6660, 0.0
      %v6874 = vadd.f32 %v6872, %v6873
      %v6875 = vsel %vm5739, %v6664, 0.0
      %v6876 = vadd.f32 %v6874, %v6875
      %s6877 = scalar_lea.vmem %s10, 1
      %v6878 = vld [vmem:[%s6877] sm:$0x1]
      %v6880 = vperm.slane %v6878, 0
      %v6882 = vadd.f32 %v6717, %v6880
      %v6883 = vadd.f32 %v6770, %v6880
      %v6884 = vadd.f32 %v6823, %v6880
      %v6885 = vadd.f32 %v6876, %v6880
      %v6886 = vpack.c.bf16 %v6883, %v6882
      %v6887 = vpack.c.bf16 %v6885, %v6884
      %s6888 = scalar_lea.vmem %s11, 32
      %v6889 = vld [vmem:[%s6888] sm:$0xf]
      %v6890 = vld [vmem:[%s6888 + $0x4] sm:$0xf]
      %v6891 = vld [vmem:[%s6888 + $0x8] sm:$0xf]
      %v6892 = vld [vmem:[%s6888 + $0xc] sm:$0xf]
      %v6893 = vld [vmem:[%s6888 + $0x10] sm:$0xf]
      %v6894 = vld [vmem:[%s6888 + $0x14] sm:$0xf]
      %v6895 = vld [vmem:[%s6888 + $0x18] sm:$0xf]
      %v6896 = vld [vmem:[%s6888 + $0x1c] sm:$0xf]
      %v6905 = vunpack.c.l.b16 %v6889
      %v6906 = vunpack.c.l.b16 %v6890
      %v6907 = vunpack.c.l.b16 %v6891
      %v6908 = vunpack.c.l.b16 %v6892
      %v6909 = vunpack.c.l.b16 %v6893
      %v6910 = vunpack.c.l.b16 %v6894
      %v6911 = vunpack.c.l.b16 %v6895
      %v6912 = vunpack.c.l.b16 %v6896
      %v6913 = vpack.c.b16 %v6906, %v6905
      %v6914 = vpack.c.b16 %v6908, %v6907
      %v6915 = vpack.c.b16 %v6910, %v6909
      %v6916 = vpack.c.b16 %v6912, %v6911
      %v6922 = vsel %vm5739, %v6886, 0
      %v6925 = vsel %vm5739, %v6887, 0
      %6927 = vmatpush.bf16.msra.mxu0 0
      %6928 = vmatpush.bf16.msra.mxu0 0
      %6929 = vmatpush.bf16.msra.mxu0 0
      %6930 = vmatpush.bf16.msra.mxu0 0
      %6931 = vmatpush.bf16.msra.mxu0 %v6916
      %6932 = vmatpush.bf16.msra.mxu0 %v6915
      %6933 = vmatpush.bf16.msra.mxu0 %v6914
      %6934 = vmatpush.bf16.msra.mxu0 %v6913
      %6935 = vmatmul.bf16.gmra.mxu0 %v6922
      %v6936 = vpop.f32.mrf.mxu0
      %v6937 = vadd.f32 %v6178, %v6936
      %v6938 = vpop.f32.mrf.mxu0
      %v6939 = vadd.f32 %v6180, %v6938
      %6940 = vmatmul.bf16.gmra.mxu0 %v6925
      %v6941 = vpop.f32.mrf.mxu0
      %v6942 = vadd.f32 %v6182, %v6941
      %v6943 = vpop.f32.mrf.mxu0
      %v6944 = vadd.f32 %v6184, %v6943
      %6945 = vdwg.mxu0
      %v6946 = vpack.c.bf16 %v6939, %v6937
      %v6947 = vpack.c.bf16 %v6944, %v6942
      %s6948 = scalar_lea.vmem %s5, 256
      %v6949 = vld [vmem:[%s6948] sm:$0xff]
      %v6950 = vld [vmem:[%s6948 + $0x8] sm:$0xff]
      %v6951 = vld [vmem:[%s6948 + $0x10] sm:$0xff]
      %v6952 = vld [vmem:[%s6948 + $0x18] sm:$0xff]
      %v6953 = vld [vmem:[%s6948 + $0x20] sm:$0xff]
      %v6954 = vld [vmem:[%s6948 + $0x28] sm:$0xff]
      %v6955 = vld [vmem:[%s6948 + $0x30] sm:$0xff]
      %v6956 = vld [vmem:[%s6948 + $0x38] sm:$0xff]
      %v6957 = vld [vmem:[%s6948 + $0x40] sm:$0xff]
      %v6958 = vld [vmem:[%s6948 + $0x48] sm:$0xff]
      %v6959 = vld [vmem:[%s6948 + $0x50] sm:$0xff]
      %v6960 = vld [vmem:[%s6948 + $0x58] sm:$0xff]
      %v6961 = vld [vmem:[%s6948 + $0x60] sm:$0xff]
      %v6962 = vld [vmem:[%s6948 + $0x68] sm:$0xff]
      %v6963 = vld [vmem:[%s6948 + $0x70] sm:$0xff]
      %v6964 = vld [vmem:[%s6948 + $0x78] sm:$0xff]
      %v6981 = vunpack.c.l.b16 %v6949
      %v6982 = vunpack.c.h.b16 %v6949
      %v6983 = vunpack.c.l.b16 %v6950
      %v6984 = vunpack.c.h.b16 %v6950
      %v6985 = vunpack.c.l.b16 %v6951
      %v6986 = vunpack.c.h.b16 %v6951
      %v6987 = vunpack.c.l.b16 %v6952
      %v6988 = vunpack.c.h.b16 %v6952
      %v6989 = vunpack.c.l.b16 %v6953
      %v6990 = vunpack.c.h.b16 %v6953
      %v6991 = vunpack.c.l.b16 %v6954
      %v6992 = vunpack.c.h.b16 %v6954
      %v6993 = vunpack.c.l.b16 %v6955
      %v6994 = vunpack.c.h.b16 %v6955
      %v6995 = vunpack.c.l.b16 %v6956
      %v6996 = vunpack.c.h.b16 %v6956
      %v6997 = vunpack.c.l.b16 %v6957
      %v6998 = vunpack.c.h.b16 %v6957
      %v6999 = vunpack.c.l.b16 %v6958
      %v7000 = vunpack.c.h.b16 %v6958
      %v7001 = vunpack.c.l.b16 %v6959
      %v7002 = vunpack.c.h.b16 %v6959
      %v7003 = vunpack.c.l.b16 %v6960
      %v7004 = vunpack.c.h.b16 %v6960
      %v7005 = vunpack.c.l.b16 %v6961
      %v7006 = vunpack.c.h.b16 %v6961
      %v7007 = vunpack.c.l.b16 %v6962
      %v7008 = vunpack.c.h.b16 %v6962
      %v7009 = vunpack.c.l.b16 %v6963
      %v7010 = vunpack.c.h.b16 %v6963
      %v7011 = vunpack.c.l.b16 %v6964
      %v7012 = vunpack.c.h.b16 %v6964
      %v7013 = vpack.c.b16 %v6983, %v6981
      %v7014 = vpack.c.b16 %v6984, %v6982
      %v7015 = vpack.c.b16 %v6987, %v6985
      %v7016 = vpack.c.b16 %v6988, %v6986
      %v7017 = vpack.c.b16 %v6991, %v6989
      %v7018 = vpack.c.b16 %v6992, %v6990
      %v7019 = vpack.c.b16 %v6995, %v6993
      %v7020 = vpack.c.b16 %v6996, %v6994
      %v7021 = vpack.c.b16 %v6999, %v6997
      %v7022 = vpack.c.b16 %v7000, %v6998
      %v7023 = vpack.c.b16 %v7003, %v7001
      %v7024 = vpack.c.b16 %v7004, %v7002
      %v7025 = vpack.c.b16 %v7007, %v7005
      %v7026 = vpack.c.b16 %v7008, %v7006
      %v7027 = vpack.c.b16 %v7011, %v7009
      %v7028 = vpack.c.b16 %v7012, %v7010
      %7045 = vmatpush.bf16.msra.mxu0 %v7027
      %7046 = vmatpush.bf16.msra.mxu0 %v7025
      %7047 = vmatpush.bf16.msra.mxu0 %v7023
      %7048 = vmatpush.bf16.msra.mxu0 %v7021
      %7049 = vmatpush.bf16.msra.mxu0 %v7019
      %7050 = vmatpush.bf16.msra.mxu0 %v7017
      %7051 = vmatpush.bf16.msra.mxu0 %v7015
      %7052 = vmatpush.bf16.msra.mxu0 %v7013
      %7053 = vmatmul.bf16.gmra.mxu0 %v6946
      %v7054 = vpop.f32.mrf.mxu0
      %v7055 = vadd.f32 0.0, %v7054
      %v7056 = vpop.f32.mrf.mxu0
      %v7057 = vadd.f32 0.0, %v7056
      %7058 = vmatmul.bf16.gmra.mxu0 %v6947
      %v7059 = vpop.f32.mrf.mxu0
      %v7060 = vadd.f32 0.0, %v7059
      %v7061 = vpop.f32.mrf.mxu0
      %v7062 = vadd.f32 0.0, %v7061
      %7063 = vdwg.mxu0
      %7064 = vmatpush.bf16.msra.mxu0 %v7028
      %7065 = vmatpush.bf16.msra.mxu0 %v7026
      %7066 = vmatpush.bf16.msra.mxu0 %v7024
      %7067 = vmatpush.bf16.msra.mxu0 %v7022
      %7068 = vmatpush.bf16.msra.mxu0 %v7020
      %7069 = vmatpush.bf16.msra.mxu0 %v7018
      %7070 = vmatpush.bf16.msra.mxu0 %v7016
      %7071 = vmatpush.bf16.msra.mxu0 %v7014
      %7072 = vmatmul.bf16.gmra.mxu0 %v6946
      %v7073 = vpop.f32.mrf.mxu0
      %v7074 = vadd.f32 0.0, %v7073
      %v7075 = vpop.f32.mrf.mxu0
      %v7076 = vadd.f32 0.0, %v7075
      %7077 = vmatmul.bf16.gmra.mxu0 %v6947
      %v7078 = vpop.f32.mrf.mxu0
      %v7079 = vadd.f32 0.0, %v7078
      %v7080 = vpop.f32.mrf.mxu0
      %v7081 = vadd.f32 0.0, %v7080
      %7082 = vdwg.mxu0
      %s7083 = scalar_lea.vmem %s6, 4
      %v7084 = vld [vmem:[%s7083] sm:$0x3]
      %v7086 = vperm.slane %v7084, 0
      %v7087 = vperm.slane %v7084, 1
      %v7090 = vmul.f32 %v7055, %v7086
      %v7091 = vmul.f32 %v7074, %v7087
      %v7092 = vmul.f32 %v7057, %v7086
      %v7093 = vmul.f32 %v7076, %v7087
      %v7094 = vmul.f32 %v7060, %v7086
      %v7095 = vmul.f32 %v7079, %v7087
      %v7096 = vmul.f32 %v7062, %v7086
      %v7097 = vmul.f32 %v7081, %v7087
      %s7098 = scalar_lea.vmem %s7, 4
      %v7099 = vld [vmem:[%s7098] sm:$0x3]
      %v7101 = vperm.slane %v7099, 0
      %v7102 = vperm.slane %v7099, 1
      %v7105 = vadd.f32 %v7090, %v7101
      %v7106 = vadd.f32 %v7091, %v7102
      %v7107 = vadd.f32 %v7092, %v7101
      %v7108 = vadd.f32 %v7093, %v7102
      %v7109 = vadd.f32 %v7094, %v7101
      %v7110 = vadd.f32 %v7095, %v7102
      %v7111 = vadd.f32 %v7096, %v7101
      %v7112 = vadd.f32 %v7097, %v7102
      %v7113 = vmax.f32 %v7106, 0.0
      %v7114 = vmax.f32 %v7108, 0.0
      %v7115 = vmax.f32 %v7110, 0.0
      %v7116 = vmax.f32 %v7112, 0.0
      %v7117 = vpack.c.bf16 %v7114, %v7113
      %v7118 = vpack.c.bf16 %v7116, %v7115
      %7119 = vmatpush.bf16.msra.mxu0 0
      %7120 = vmatpush.bf16.msra.mxu0 0
      %7121 = vmatpush.bf16.msra.mxu0 0
      %7122 = vmatpush.bf16.msra.mxu0 0
      %7123 = vmatpush.bf16.msra.mxu0 0
      %7124 = vmatpush.bf16.msra.mxu0 0
      %7125 = vmatpush.bf16.msra.mxu0 %v7118
      %7126 = vmatpush.bf16.msra.mxu0 %v7117
      %7127 = vmatmul.bf16.gmra.mxu0 %v5106
      %v7128 = vpop.f32.mrf.mxu0
      %v7129 = vadd.f32 0.0, %v7128
      %v7130 = vpop.f32.mrf.mxu0
      %v7131 = vadd.f32 0.0, %v7130
      %7132 = vmatmul.bf16.gmra.mxu0 %v5109
      %v7133 = vpop.f32.mrf.mxu0
      %v7134 = vadd.f32 0.0, %v7133
      %v7135 = vpop.f32.mrf.mxu0
      %v7136 = vadd.f32 0.0, %v7135
      %7137 = vmatmul.bf16.gmra.mxu0 %v5112
      %v7138 = vpop.f32.mrf.mxu0
      %v7139 = vadd.f32 0.0, %v7138
      %v7140 = vpop.f32.mrf.mxu0
      %v7141 = vadd.f32 0.0, %v7140
      %7142 = vmatmul.bf16.gmra.mxu0 %v5115
      %v7143 = vpop.f32.mrf.mxu0
      %v7144 = vadd.f32 0.0, %v7143
      %v7145 = vpop.f32.mrf.mxu0
      %v7146 = vadd.f32 0.0, %v7145
      %7147 = vmatmul.bf16.gmra.mxu0 %v5118
      %v7148 = vpop.f32.mrf.mxu0
      %v7149 = vadd.f32 0.0, %v7148
      %v7150 = vpop.f32.mrf.mxu0
      %v7151 = vadd.f32 0.0, %v7150
      %7152 = vmatmul.bf16.gmra.mxu0 %v5121
      %v7153 = vpop.f32.mrf.mxu0
      %v7154 = vadd.f32 0.0, %v7153
      %v7155 = vpop.f32.mrf.mxu0
      %v7156 = vadd.f32 0.0, %v7155
      %7157 = vmatmul.bf16.gmra.mxu0 %v5124
      %v7158 = vpop.f32.mrf.mxu0
      %v7159 = vadd.f32 0.0, %v7158
      %v7160 = vpop.f32.mrf.mxu0
      %v7161 = vadd.f32 0.0, %v7160
      %7162 = vmatmul.bf16.gmra.mxu0 %v5127
      %v7163 = vpop.f32.mrf.mxu0
      %v7164 = vadd.f32 0.0, %v7163
      %v7165 = vpop.f32.mrf.mxu0
      %v7166 = vadd.f32 0.0, %v7165
      %7167 = vmatmul.bf16.gmra.mxu0 %v5130
      %v7168 = vpop.f32.mrf.mxu0
      %v7169 = vadd.f32 0.0, %v7168
      %v7170 = vpop.f32.mrf.mxu0
      %v7171 = vadd.f32 0.0, %v7170
      %7172 = vmatmul.bf16.gmra.mxu0 %v5133
      %v7173 = vpop.f32.mrf.mxu0
      %v7174 = vadd.f32 0.0, %v7173
      %v7175 = vpop.f32.mrf.mxu0
      %v7176 = vadd.f32 0.0, %v7175
      %7177 = vmatmul.bf16.gmra.mxu0 %v5136
      %v7178 = vpop.f32.mrf.mxu0
      %v7179 = vadd.f32 0.0, %v7178
      %v7180 = vpop.f32.mrf.mxu0
      %v7181 = vadd.f32 0.0, %v7180
      %7182 = vmatmul.bf16.gmra.mxu0 %v5139
      %v7183 = vpop.f32.mrf.mxu0
      %v7184 = vadd.f32 0.0, %v7183
      %v7185 = vpop.f32.mrf.mxu0
      %v7186 = vadd.f32 0.0, %v7185
      %7187 = vmatmul.bf16.gmra.mxu0 %v5142
      %v7188 = vpop.f32.mrf.mxu0
      %v7189 = vadd.f32 0.0, %v7188
      %v7190 = vpop.f32.mrf.mxu0
      %v7191 = vadd.f32 0.0, %v7190
      %7192 = vmatmul.bf16.gmra.mxu0 %v5145
      %v7193 = vpop.f32.mrf.mxu0
      %v7194 = vadd.f32 0.0, %v7193
      %v7195 = vpop.f32.mrf.mxu0
      %v7196 = vadd.f32 0.0, %v7195
      %7197 = vmatmul.bf16.gmra.mxu0 %v5148
      %v7198 = vpop.f32.mrf.mxu0
      %v7199 = vadd.f32 0.0, %v7198
      %v7200 = vpop.f32.mrf.mxu0
      %v7201 = vadd.f32 0.0, %v7200
      %7202 = vmatmul.bf16.gmra.mxu0 %v5151
      %v7203 = vpop.f32.mrf.mxu0
      %v7204 = vadd.f32 0.0, %v7203
      %v7205 = vpop.f32.mrf.mxu0
      %v7206 = vadd.f32 0.0, %v7205
      %7207 = vmatmul.bf16.gmra.mxu0 %v5154
      %v7208 = vpop.f32.mrf.mxu0
      %v7209 = vadd.f32 0.0, %v7208
      %v7210 = vpop.f32.mrf.mxu0
      %v7211 = vadd.f32 0.0, %v7210
      %7212 = vmatmul.bf16.gmra.mxu0 %v5157
      %v7213 = vpop.f32.mrf.mxu0
      %v7214 = vadd.f32 0.0, %v7213
      %v7215 = vpop.f32.mrf.mxu0
      %v7216 = vadd.f32 0.0, %v7215
      %7217 = vmatmul.bf16.gmra.mxu0 %v5160
      %v7218 = vpop.f32.mrf.mxu0
      %v7219 = vadd.f32 0.0, %v7218
      %v7220 = vpop.f32.mrf.mxu0
      %v7221 = vadd.f32 0.0, %v7220
      %7222 = vmatmul.bf16.gmra.mxu0 %v5163
      %v7223 = vpop.f32.mrf.mxu0
      %v7224 = vadd.f32 0.0, %v7223
      %v7225 = vpop.f32.mrf.mxu0
      %v7226 = vadd.f32 0.0, %v7225
      %7227 = vmatmul.bf16.gmra.mxu0 %v5166
      %v7228 = vpop.f32.mrf.mxu0
      %v7229 = vadd.f32 0.0, %v7228
      %v7230 = vpop.f32.mrf.mxu0
      %v7231 = vadd.f32 0.0, %v7230
      %7232 = vmatmul.bf16.gmra.mxu0 %v5169
      %v7233 = vpop.f32.mrf.mxu0
      %v7234 = vadd.f32 0.0, %v7233
      %v7235 = vpop.f32.mrf.mxu0
      %v7236 = vadd.f32 0.0, %v7235
      %7237 = vmatmul.bf16.gmra.mxu0 %v5172
      %v7238 = vpop.f32.mrf.mxu0
      %v7239 = vadd.f32 0.0, %v7238
      %v7240 = vpop.f32.mrf.mxu0
      %v7241 = vadd.f32 0.0, %v7240
      %7242 = vmatmul.bf16.gmra.mxu0 %v5175
      %v7243 = vpop.f32.mrf.mxu0
      %v7244 = vadd.f32 0.0, %v7243
      %v7245 = vpop.f32.mrf.mxu0
      %v7246 = vadd.f32 0.0, %v7245
      %7247 = vmatmul.bf16.gmra.mxu0 %v5178
      %v7248 = vpop.f32.mrf.mxu0
      %v7249 = vadd.f32 0.0, %v7248
      %v7250 = vpop.f32.mrf.mxu0
      %v7251 = vadd.f32 0.0, %v7250
      %7252 = vmatmul.bf16.gmra.mxu0 %v5181
      %v7253 = vpop.f32.mrf.mxu0
      %v7254 = vadd.f32 0.0, %v7253
      %v7255 = vpop.f32.mrf.mxu0
      %v7256 = vadd.f32 0.0, %v7255
      %7257 = vmatmul.bf16.gmra.mxu0 %v5184
      %v7258 = vpop.f32.mrf.mxu0
      %v7259 = vadd.f32 0.0, %v7258
      %v7260 = vpop.f32.mrf.mxu0
      %v7261 = vadd.f32 0.0, %v7260
      %7262 = vmatmul.bf16.gmra.mxu0 %v5187
      %v7263 = vpop.f32.mrf.mxu0
      %v7264 = vadd.f32 0.0, %v7263
      %v7265 = vpop.f32.mrf.mxu0
      %v7266 = vadd.f32 0.0, %v7265
      %7267 = vmatmul.bf16.gmra.mxu0 %v5190
      %v7268 = vpop.f32.mrf.mxu0
      %v7269 = vadd.f32 0.0, %v7268
      %v7270 = vpop.f32.mrf.mxu0
      %v7271 = vadd.f32 0.0, %v7270
      %7272 = vmatmul.bf16.gmra.mxu0 %v5193
      %v7273 = vpop.f32.mrf.mxu0
      %v7274 = vadd.f32 0.0, %v7273
      %v7275 = vpop.f32.mrf.mxu0
      %v7276 = vadd.f32 0.0, %v7275
      %7277 = vmatmul.bf16.gmra.mxu0 %v5196
      %v7278 = vpop.f32.mrf.mxu0
      %v7279 = vadd.f32 0.0, %v7278
      %v7280 = vpop.f32.mrf.mxu0
      %v7281 = vadd.f32 0.0, %v7280
      %7282 = vmatmul.bf16.gmra.mxu0 %v5199
      %v7283 = vpop.f32.mrf.mxu0
      %v7284 = vadd.f32 0.0, %v7283
      %v7285 = vpop.f32.mrf.mxu0
      %v7286 = vadd.f32 0.0, %v7285
      %7287 = vmatmul.bf16.gmra.mxu0 %v5202
      %v7288 = vpop.f32.mrf.mxu0
      %v7289 = vadd.f32 0.0, %v7288
      %v7290 = vpop.f32.mrf.mxu0
      %v7291 = vadd.f32 0.0, %v7290
      %7292 = vmatmul.bf16.gmra.mxu0 %v5205
      %v7293 = vpop.f32.mrf.mxu0
      %v7294 = vadd.f32 0.0, %v7293
      %v7295 = vpop.f32.mrf.mxu0
      %v7296 = vadd.f32 0.0, %v7295
      %7297 = vmatmul.bf16.gmra.mxu0 %v5208
      %v7298 = vpop.f32.mrf.mxu0
      %v7299 = vadd.f32 0.0, %v7298
      %v7300 = vpop.f32.mrf.mxu0
      %v7301 = vadd.f32 0.0, %v7300
      %7302 = vmatmul.bf16.gmra.mxu0 %v5211
      %v7303 = vpop.f32.mrf.mxu0
      %v7304 = vadd.f32 0.0, %v7303
      %v7305 = vpop.f32.mrf.mxu0
      %v7306 = vadd.f32 0.0, %v7305
      %7307 = vmatmul.bf16.gmra.mxu0 %v5214
      %v7308 = vpop.f32.mrf.mxu0
      %v7309 = vadd.f32 0.0, %v7308
      %v7310 = vpop.f32.mrf.mxu0
      %v7311 = vadd.f32 0.0, %v7310
      %7312 = vmatmul.bf16.gmra.mxu0 %v5217
      %v7313 = vpop.f32.mrf.mxu0
      %v7314 = vadd.f32 0.0, %v7313
      %v7315 = vpop.f32.mrf.mxu0
      %v7316 = vadd.f32 0.0, %v7315
      %7317 = vmatmul.bf16.gmra.mxu0 %v5220
      %v7318 = vpop.f32.mrf.mxu0
      %v7319 = vadd.f32 0.0, %v7318
      %v7320 = vpop.f32.mrf.mxu0
      %v7321 = vadd.f32 0.0, %v7320
      %7322 = vmatmul.bf16.gmra.mxu0 %v5223
      %v7323 = vpop.f32.mrf.mxu0
      %v7324 = vadd.f32 0.0, %v7323
      %v7325 = vpop.f32.mrf.mxu0
      %v7326 = vadd.f32 0.0, %v7325
      %7327 = vmatmul.bf16.gmra.mxu0 %v5226
      %v7328 = vpop.f32.mrf.mxu0
      %v7329 = vadd.f32 0.0, %v7328
      %v7330 = vpop.f32.mrf.mxu0
      %v7331 = vadd.f32 0.0, %v7330
      %7332 = vmatmul.bf16.gmra.mxu0 %v5229
      %v7333 = vpop.f32.mrf.mxu0
      %v7334 = vadd.f32 0.0, %v7333
      %v7335 = vpop.f32.mrf.mxu0
      %v7336 = vadd.f32 0.0, %v7335
      %7337 = vmatmul.bf16.gmra.mxu0 %v5232
      %v7338 = vpop.f32.mrf.mxu0
      %v7339 = vadd.f32 0.0, %v7338
      %v7340 = vpop.f32.mrf.mxu0
      %v7341 = vadd.f32 0.0, %v7340
      %7342 = vmatmul.bf16.gmra.mxu0 %v5235
      %v7343 = vpop.f32.mrf.mxu0
      %v7344 = vadd.f32 0.0, %v7343
      %v7345 = vpop.f32.mrf.mxu0
      %v7346 = vadd.f32 0.0, %v7345
      %7347 = vmatmul.bf16.gmra.mxu0 %v5238
      %v7348 = vpop.f32.mrf.mxu0
      %v7349 = vadd.f32 0.0, %v7348
      %v7350 = vpop.f32.mrf.mxu0
      %v7351 = vadd.f32 0.0, %v7350
      %7352 = vmatmul.bf16.gmra.mxu0 %v5241
      %v7353 = vpop.f32.mrf.mxu0
      %v7354 = vadd.f32 0.0, %v7353
      %v7355 = vpop.f32.mrf.mxu0
      %v7356 = vadd.f32 0.0, %v7355
      %7357 = vmatmul.bf16.gmra.mxu0 %v5244
      %v7358 = vpop.f32.mrf.mxu0
      %v7359 = vadd.f32 0.0, %v7358
      %v7360 = vpop.f32.mrf.mxu0
      %v7361 = vadd.f32 0.0, %v7360
      %7362 = vmatmul.bf16.gmra.mxu0 %v5247
      %v7363 = vpop.f32.mrf.mxu0
      %v7364 = vadd.f32 0.0, %v7363
      %v7365 = vpop.f32.mrf.mxu0
      %v7366 = vadd.f32 0.0, %v7365
      %7367 = vmatmul.bf16.gmra.mxu0 %v5250
      %v7368 = vpop.f32.mrf.mxu0
      %v7369 = vadd.f32 0.0, %v7368
      %v7370 = vpop.f32.mrf.mxu0
      %v7371 = vadd.f32 0.0, %v7370
      %7372 = vmatmul.bf16.gmra.mxu0 %v5253
      %v7373 = vpop.f32.mrf.mxu0
      %v7374 = vadd.f32 0.0, %v7373
      %v7375 = vpop.f32.mrf.mxu0
      %v7376 = vadd.f32 0.0, %v7375
      %7377 = vmatmul.bf16.gmra.mxu0 %v5256
      %v7378 = vpop.f32.mrf.mxu0
      %v7379 = vadd.f32 0.0, %v7378
      %v7380 = vpop.f32.mrf.mxu0
      %v7381 = vadd.f32 0.0, %v7380
      %7382 = vmatmul.bf16.gmra.mxu0 %v5259
      %v7383 = vpop.f32.mrf.mxu0
      %v7384 = vadd.f32 0.0, %v7383
      %v7385 = vpop.f32.mrf.mxu0
      %v7386 = vadd.f32 0.0, %v7385
      %7387 = vmatmul.bf16.gmra.mxu0 %v5262
      %v7388 = vpop.f32.mrf.mxu0
      %v7389 = vadd.f32 0.0, %v7388
      %v7390 = vpop.f32.mrf.mxu0
      %v7391 = vadd.f32 0.0, %v7390
      %7392 = vmatmul.bf16.gmra.mxu0 %v5265
      %v7393 = vpop.f32.mrf.mxu0
      %v7394 = vadd.f32 0.0, %v7393
      %v7395 = vpop.f32.mrf.mxu0
      %v7396 = vadd.f32 0.0, %v7395
      %7397 = vdwg.mxu0
      %s7398 = scalar_lea.vmem %s9, 64
      %v7399 = vld [vmem:[%s7398] sm:$0xff]
      %v7400 = vld [vmem:[%s7398 + $0x8] sm:$0xff]
      %v7401 = vld [vmem:[%s7398 + $0x10] sm:$0xff]
      %v7402 = vld [vmem:[%s7398 + $0x18] sm:$0x7]
      %v7407 = vrot.slane %v7399, 1
      %v7408 = vrot.slane %v7399, 2
      %v7409 = vrot.slane %v7399, 3
      %v7410 = vrot.slane %v7399, 4
      %v7411 = vrot.slane %v7399, 5
      %v7412 = vrot.slane %v7399, 6
      %v7413 = vrot.slane %v7399, 7
      %v7414 = vrot.slane %v7400, 1
      %v7415 = vrot.slane %v7400, 2
      %v7416 = vrot.slane %v7400, 3
      %v7417 = vrot.slane %v7400, 4
      %v7418 = vrot.slane %v7400, 5
      %v7419 = vrot.slane %v7400, 6
      %v7420 = vrot.slane %v7400, 7
      %v7421 = vrot.slane %v7401, 1
      %v7422 = vrot.slane %v7401, 2
      %v7423 = vrot.slane %v7401, 3
      %v7424 = vrot.slane %v7401, 4
      %v7425 = vrot.slane %v7401, 5
      %v7426 = vrot.slane %v7401, 6
      %v7427 = vrot.slane %v7401, 7
      %v7428 = vrot.slane %v7402, 1
      %v7429 = vrot.slane %v7402, 2
      %v7430 = vperm.slane %v7399, 0
      %v7431 = vperm.slane %v7407, 0
      %v7432 = vperm.slane %v7408, 0
      %v7433 = vperm.slane %v7409, 0
      %v7434 = vperm.slane %v7410, 0
      %v7435 = vperm.slane %v7411, 0
      %v7436 = vperm.slane %v7412, 0
      %v7437 = vperm.slane %v7413, 0
      %v7438 = vperm.slane %v7400, 0
      %v7439 = vperm.slane %v7414, 0
      %v7440 = vperm.slane %v7415, 0
      %v7441 = vperm.slane %v7416, 0
      %v7442 = vperm.slane %v7417, 0
      %v7443 = vperm.slane %v7418, 0
      %v7444 = vperm.slane %v7419, 0
      %v7445 = vperm.slane %v7420, 0
      %v7446 = vperm.slane %v7401, 0
      %v7447 = vperm.slane %v7421, 0
      %v7448 = vperm.slane %v7422, 0
      %v7449 = vperm.slane %v7423, 0
      %v7450 = vperm.slane %v7424, 0
      %v7451 = vperm.slane %v7425, 0
      %v7452 = vperm.slane %v7426, 0
      %v7453 = vperm.slane %v7427, 0
      %v7454 = vperm.slane %v7402, 0
      %v7455 = vperm.slane %v7428, 0
      %v7456 = vperm.slane %v7429, 0
      %v7484 = vmul.f32 %v7129, %v7430
      %v7485 = vmul.f32 %v7131, %v7430
      %v7486 = vmul.f32 %v7134, %v7430
      %v7487 = vmul.f32 %v7136, %v7430
      %v7488 = vmul.f32 %v7139, %v7431
      %v7489 = vmul.f32 %v7141, %v7431
      %v7490 = vmul.f32 %v7144, %v7431
      %v7491 = vmul.f32 %v7146, %v7431
      %v7492 = vmul.f32 %v7149, %v7432
      %v7493 = vmul.f32 %v7151, %v7432
      %v7494 = vmul.f32 %v7154, %v7432
      %v7495 = vmul.f32 %v7156, %v7432
      %v7496 = vmul.f32 %v7159, %v7433
      %v7497 = vmul.f32 %v7161, %v7433
      %v7498 = vmul.f32 %v7164, %v7433
      %v7499 = vmul.f32 %v7166, %v7433
      %v7500 = vmul.f32 %v7169, %v7434
      %v7501 = vmul.f32 %v7171, %v7434
      %v7502 = vmul.f32 %v7174, %v7434
      %v7503 = vmul.f32 %v7176, %v7434
      %v7504 = vmul.f32 %v7179, %v7435
      %v7505 = vmul.f32 %v7181, %v7435
      %v7506 = vmul.f32 %v7184, %v7435
      %v7507 = vmul.f32 %v7186, %v7435
      %v7508 = vmul.f32 %v7189, %v7436
      %v7509 = vmul.f32 %v7191, %v7436
      %v7510 = vmul.f32 %v7194, %v7436
      %v7511 = vmul.f32 %v7196, %v7436
      %v7512 = vmul.f32 %v7199, %v7437
      %v7513 = vmul.f32 %v7201, %v7437
      %v7514 = vmul.f32 %v7204, %v7437
      %v7515 = vmul.f32 %v7206, %v7437
      %v7516 = vmul.f32 %v7209, %v7438
      %v7517 = vmul.f32 %v7211, %v7438
      %v7518 = vmul.f32 %v7214, %v7438
      %v7519 = vmul.f32 %v7216, %v7438
      %v7520 = vmul.f32 %v7219, %v7439
      %v7521 = vmul.f32 %v7221, %v7439
      %v7522 = vmul.f32 %v7224, %v7439
      %v7523 = vmul.f32 %v7226, %v7439
      %v7524 = vmul.f32 %v7229, %v7440
      %v7525 = vmul.f32 %v7231, %v7440
      %v7526 = vmul.f32 %v7234, %v7440
      %v7527 = vmul.f32 %v7236, %v7440
      %v7528 = vmul.f32 %v7239, %v7441
      %v7529 = vmul.f32 %v7241, %v7441
      %v7530 = vmul.f32 %v7244, %v7441
      %v7531 = vmul.f32 %v7246, %v7441
      %v7532 = vmul.f32 %v7249, %v7442
      %v7533 = vmul.f32 %v7251, %v7442
      %v7534 = vmul.f32 %v7254, %v7442
      %v7535 = vmul.f32 %v7256, %v7442
      %v7536 = vmul.f32 %v7259, %v7443
      %v7537 = vmul.f32 %v7261, %v7443
      %v7538 = vmul.f32 %v7264, %v7443
      %v7539 = vmul.f32 %v7266, %v7443
      %v7540 = vmul.f32 %v7269, %v7444
      %v7541 = vmul.f32 %v7271, %v7444
      %v7542 = vmul.f32 %v7274, %v7444
      %v7543 = vmul.f32 %v7276, %v7444
      %v7544 = vmul.f32 %v7279, %v7445
      %v7545 = vmul.f32 %v7281, %v7445
      %v7546 = vmul.f32 %v7284, %v7445
      %v7547 = vmul.f32 %v7286, %v7445
      %v7548 = vmul.f32 %v7289, %v7446
      %v7549 = vmul.f32 %v7291, %v7446
      %v7550 = vmul.f32 %v7294, %v7446
      %v7551 = vmul.f32 %v7296, %v7446
      %v7552 = vmul.f32 %v7299, %v7447
      %v7553 = vmul.f32 %v7301, %v7447
      %v7554 = vmul.f32 %v7304, %v7447
      %v7555 = vmul.f32 %v7306, %v7447
      %v7556 = vmul.f32 %v7309, %v7448
      %v7557 = vmul.f32 %v7311, %v7448
      %v7558 = vmul.f32 %v7314, %v7448
      %v7559 = vmul.f32 %v7316, %v7448
      %v7560 = vmul.f32 %v7319, %v7449
      %v7561 = vmul.f32 %v7321, %v7449
      %v7562 = vmul.f32 %v7324, %v7449
      %v7563 = vmul.f32 %v7326, %v7449
      %v7564 = vmul.f32 %v7329, %v7450
      %v7565 = vmul.f32 %v7331, %v7450
      %v7566 = vmul.f32 %v7334, %v7450
      %v7567 = vmul.f32 %v7336, %v7450
      %v7568 = vmul.f32 %v7339, %v7451
      %v7569 = vmul.f32 %v7341, %v7451
      %v7570 = vmul.f32 %v7344, %v7451
      %v7571 = vmul.f32 %v7346, %v7451
      %v7572 = vmul.f32 %v7349, %v7452
      %v7573 = vmul.f32 %v7351, %v7452
      %v7574 = vmul.f32 %v7354, %v7452
      %v7575 = vmul.f32 %v7356, %v7452
      %v7576 = vmul.f32 %v7359, %v7453
      %v7577 = vmul.f32 %v7361, %v7453
      %v7578 = vmul.f32 %v7364, %v7453
      %v7579 = vmul.f32 %v7366, %v7453
      %v7580 = vmul.f32 %v7369, %v7454
      %v7581 = vmul.f32 %v7371, %v7454
      %v7582 = vmul.f32 %v7374, %v7454
      %v7583 = vmul.f32 %v7376, %v7454
      %v7584 = vmul.f32 %v7379, %v7455
      %v7585 = vmul.f32 %v7381, %v7455
      %v7586 = vmul.f32 %v7384, %v7455
      %v7587 = vmul.f32 %v7386, %v7455
      %v7588 = vmul.f32 %v7389, %v7456
      %v7589 = vmul.f32 %v7391, %v7456
      %v7590 = vmul.f32 %v7394, %v7456
      %v7591 = vmul.f32 %v7396, %v7456
      %v7592 = vsel %vm5739, %v7484, 0.0
      %v7593 = vsel %vm5739, %v7488, 0.0
      %v7594 = vadd.f32 %v7592, %v7593
      %v7595 = vsel %vm5739, %v7492, 0.0
      %v7596 = vadd.f32 %v7594, %v7595
      %v7597 = vsel %vm5739, %v7496, 0.0
      %v7598 = vadd.f32 %v7596, %v7597
      %v7599 = vsel %vm5739, %v7500, 0.0
      %v7600 = vadd.f32 %v7598, %v7599
      %v7601 = vsel %vm5739, %v7504, 0.0
      %v7602 = vadd.f32 %v7600, %v7601
      %v7603 = vsel %vm5739, %v7508, 0.0
      %v7604 = vadd.f32 %v7602, %v7603
      %v7605 = vsel %vm5739, %v7512, 0.0
      %v7606 = vadd.f32 %v7604, %v7605
      %v7607 = vsel %vm5739, %v7516, 0.0
      %v7608 = vadd.f32 %v7606, %v7607
      %v7609 = vsel %vm5739, %v7520, 0.0
      %v7610 = vadd.f32 %v7608, %v7609
      %v7611 = vsel %vm5739, %v7524, 0.0
      %v7612 = vadd.f32 %v7610, %v7611
      %v7613 = vsel %vm5739, %v7528, 0.0
      %v7614 = vadd.f32 %v7612, %v7613
      %v7615 = vsel %vm5739, %v7532, 0.0
      %v7616 = vadd.f32 %v7614, %v7615
      %v7617 = vsel %vm5739, %v7536, 0.0
      %v7618 = vadd.f32 %v7616, %v7617
      %v7619 = vsel %vm5739, %v7540, 0.0
      %v7620 = vadd.f32 %v7618, %v7619
      %v7621 = vsel %vm5739, %v7544, 0.0
      %v7622 = vadd.f32 %v7620, %v7621
      %v7623 = vsel %vm5739, %v7548, 0.0
      %v7624 = vadd.f32 %v7622, %v7623
      %v7625 = vsel %vm5739, %v7552, 0.0
      %v7626 = vadd.f32 %v7624, %v7625
      %v7627 = vsel %vm5739, %v7556, 0.0
      %v7628 = vadd.f32 %v7626, %v7627
      %v7629 = vsel %vm5739, %v7560, 0.0
      %v7630 = vadd.f32 %v7628, %v7629
      %v7631 = vsel %vm5739, %v7564, 0.0
      %v7632 = vadd.f32 %v7630, %v7631
      %v7633 = vsel %vm5739, %v7568, 0.0
      %v7634 = vadd.f32 %v7632, %v7633
      %v7635 = vsel %vm5739, %v7572, 0.0
      %v7636 = vadd.f32 %v7634, %v7635
      %v7637 = vsel %vm5739, %v7576, 0.0
      %v7638 = vadd.f32 %v7636, %v7637
      %v7639 = vsel %vm5739, %v7580, 0.0
      %v7640 = vadd.f32 %v7638, %v7639
      %v7641 = vsel %vm5739, %v7584, 0.0
      %v7642 = vadd.f32 %v7640, %v7641
      %v7643 = vsel %vm5739, %v7588, 0.0
      %v7644 = vadd.f32 %v7642, %v7643
      %v7645 = vsel %vm5739, %v7485, 0.0
      %v7646 = vsel %vm5739, %v7489, 0.0
      %v7647 = vadd.f32 %v7645, %v7646
      %v7648 = vsel %vm5739, %v7493, 0.0
      %v7649 = vadd.f32 %v7647, %v7648
      %v7650 = vsel %vm5739, %v7497, 0.0
      %v7651 = vadd.f32 %v7649, %v7650
      %v7652 = vsel %vm5739, %v7501, 0.0
      %v7653 = vadd.f32 %v7651, %v7652
      %v7654 = vsel %vm5739, %v7505, 0.0
      %v7655 = vadd.f32 %v7653, %v7654
      %v7656 = vsel %vm5739, %v7509, 0.0
      %v7657 = vadd.f32 %v7655, %v7656
      %v7658 = vsel %vm5739, %v7513, 0.0
      %v7659 = vadd.f32 %v7657, %v7658
      %v7660 = vsel %vm5739, %v7517, 0.0
      %v7661 = vadd.f32 %v7659, %v7660
      %v7662 = vsel %vm5739, %v7521, 0.0
      %v7663 = vadd.f32 %v7661, %v7662
      %v7664 = vsel %vm5739, %v7525, 0.0
      %v7665 = vadd.f32 %v7663, %v7664
      %v7666 = vsel %vm5739, %v7529, 0.0
      %v7667 = vadd.f32 %v7665, %v7666
      %v7668 = vsel %vm5739, %v7533, 0.0
      %v7669 = vadd.f32 %v7667, %v7668
      %v7670 = vsel %vm5739, %v7537, 0.0
      %v7671 = vadd.f32 %v7669, %v7670
      %v7672 = vsel %vm5739, %v7541, 0.0
      %v7673 = vadd.f32 %v7671, %v7672
      %v7674 = vsel %vm5739, %v7545, 0.0
      %v7675 = vadd.f32 %v7673, %v7674
      %v7676 = vsel %vm5739, %v7549, 0.0
      %v7677 = vadd.f32 %v7675, %v7676
      %v7678 = vsel %vm5739, %v7553, 0.0
      %v7679 = vadd.f32 %v7677, %v7678
      %v7680 = vsel %vm5739, %v7557, 0.0
      %v7681 = vadd.f32 %v7679, %v7680
      %v7682 = vsel %vm5739, %v7561, 0.0
      %v7683 = vadd.f32 %v7681, %v7682
      %v7684 = vsel %vm5739, %v7565, 0.0
      %v7685 = vadd.f32 %v7683, %v7684
      %v7686 = vsel %vm5739, %v7569, 0.0
      %v7687 = vadd.f32 %v7685, %v7686
      %v7688 = vsel %vm5739, %v7573, 0.0
      %v7689 = vadd.f32 %v7687, %v7688
      %v7690 = vsel %vm5739, %v7577, 0.0
      %v7691 = vadd.f32 %v7689, %v7690
      %v7692 = vsel %vm5739, %v7581, 0.0
      %v7693 = vadd.f32 %v7691, %v7692
      %v7694 = vsel %vm5739, %v7585, 0.0
      %v7695 = vadd.f32 %v7693, %v7694
      %v7696 = vsel %vm5739, %v7589, 0.0
      %v7697 = vadd.f32 %v7695, %v7696
      %v7698 = vsel %vm5739, %v7486, 0.0
      %v7699 = vsel %vm5739, %v7490, 0.0
      %v7700 = vadd.f32 %v7698, %v7699
      %v7701 = vsel %vm5739, %v7494, 0.0
      %v7702 = vadd.f32 %v7700, %v7701
      %v7703 = vsel %vm5739, %v7498, 0.0
      %v7704 = vadd.f32 %v7702, %v7703
      %v7705 = vsel %vm5739, %v7502, 0.0
      %v7706 = vadd.f32 %v7704, %v7705
      %v7707 = vsel %vm5739, %v7506, 0.0
      %v7708 = vadd.f32 %v7706, %v7707
      %v7709 = vsel %vm5739, %v7510, 0.0
      %v7710 = vadd.f32 %v7708, %v7709
      %v7711 = vsel %vm5739, %v7514, 0.0
      %v7712 = vadd.f32 %v7710, %v7711
      %v7713 = vsel %vm5739, %v7518, 0.0
      %v7714 = vadd.f32 %v7712, %v7713
      %v7715 = vsel %vm5739, %v7522, 0.0
      %v7716 = vadd.f32 %v7714, %v7715
      %v7717 = vsel %vm5739, %v7526, 0.0
      %v7718 = vadd.f32 %v7716, %v7717
      %v7719 = vsel %vm5739, %v7530, 0.0
      %v7720 = vadd.f32 %v7718, %v7719
      %v7721 = vsel %vm5739, %v7534, 0.0
      %v7722 = vadd.f32 %v7720, %v7721
      %v7723 = vsel %vm5739, %v7538, 0.0
      %v7724 = vadd.f32 %v7722, %v7723
      %v7725 = vsel %vm5739, %v7542, 0.0
      %v7726 = vadd.f32 %v7724, %v7725
      %v7727 = vsel %vm5739, %v7546, 0.0
      %v7728 = vadd.f32 %v7726, %v7727
      %v7729 = vsel %vm5739, %v7550, 0.0
      %v7730 = vadd.f32 %v7728, %v7729
      %v7731 = vsel %vm5739, %v7554, 0.0
      %v7732 = vadd.f32 %v7730, %v7731
      %v7733 = vsel %vm5739, %v7558, 0.0
      %v7734 = vadd.f32 %v7732, %v7733
      %v7735 = vsel %vm5739, %v7562, 0.0
      %v7736 = vadd.f32 %v7734, %v7735
      %v7737 = vsel %vm5739, %v7566, 0.0
      %v7738 = vadd.f32 %v7736, %v7737
      %v7739 = vsel %vm5739, %v7570, 0.0
      %v7740 = vadd.f32 %v7738, %v7739
      %v7741 = vsel %vm5739, %v7574, 0.0
      %v7742 = vadd.f32 %v7740, %v7741
      %v7743 = vsel %vm5739, %v7578, 0.0
      %v7744 = vadd.f32 %v7742, %v7743
      %v7745 = vsel %vm5739, %v7582, 0.0
      %v7746 = vadd.f32 %v7744, %v7745
      %v7747 = vsel %vm5739, %v7586, 0.0
      %v7748 = vadd.f32 %v7746, %v7747
      %v7749 = vsel %vm5739, %v7590, 0.0
      %v7750 = vadd.f32 %v7748, %v7749
      %v7751 = vsel %vm5739, %v7487, 0.0
      %v7752 = vsel %vm5739, %v7491, 0.0
      %v7753 = vadd.f32 %v7751, %v7752
      %v7754 = vsel %vm5739, %v7495, 0.0
      %v7755 = vadd.f32 %v7753, %v7754
      %v7756 = vsel %vm5739, %v7499, 0.0
      %v7757 = vadd.f32 %v7755, %v7756
      %v7758 = vsel %vm5739, %v7503, 0.0
      %v7759 = vadd.f32 %v7757, %v7758
      %v7760 = vsel %vm5739, %v7507, 0.0
      %v7761 = vadd.f32 %v7759, %v7760
      %v7762 = vsel %vm5739, %v7511, 0.0
      %v7763 = vadd.f32 %v7761, %v7762
      %v7764 = vsel %vm5739, %v7515, 0.0
      %v7765 = vadd.f32 %v7763, %v7764
      %v7766 = vsel %vm5739, %v7519, 0.0
      %v7767 = vadd.f32 %v7765, %v7766
      %v7768 = vsel %vm5739, %v7523, 0.0
      %v7769 = vadd.f32 %v7767, %v7768
      %v7770 = vsel %vm5739, %v7527, 0.0
      %v7771 = vadd.f32 %v7769, %v7770
      %v7772 = vsel %vm5739, %v7531, 0.0
      %v7773 = vadd.f32 %v7771, %v7772
      %v7774 = vsel %vm5739, %v7535, 0.0
      %v7775 = vadd.f32 %v7773, %v7774
      %v7776 = vsel %vm5739, %v7539, 0.0
      %v7777 = vadd.f32 %v7775, %v7776
      %v7778 = vsel %vm5739, %v7543, 0.0
      %v7779 = vadd.f32 %v7777, %v7778
      %v7780 = vsel %vm5739, %v7547, 0.0
      %v7781 = vadd.f32 %v7779, %v7780
      %v7782 = vsel %vm5739, %v7551, 0.0
      %v7783 = vadd.f32 %v7781, %v7782
      %v7784 = vsel %vm5739, %v7555, 0.0
      %v7785 = vadd.f32 %v7783, %v7784
      %v7786 = vsel %vm5739, %v7559, 0.0
      %v7787 = vadd.f32 %v7785, %v7786
      %v7788 = vsel %vm5739, %v7563, 0.0
      %v7789 = vadd.f32 %v7787, %v7788
      %v7790 = vsel %vm5739, %v7567, 0.0
      %v7791 = vadd.f32 %v7789, %v7790
      %v7792 = vsel %vm5739, %v7571, 0.0
      %v7793 = vadd.f32 %v7791, %v7792
      %v7794 = vsel %vm5739, %v7575, 0.0
      %v7795 = vadd.f32 %v7793, %v7794
      %v7796 = vsel %vm5739, %v7579, 0.0
      %v7797 = vadd.f32 %v7795, %v7796
      %v7798 = vsel %vm5739, %v7583, 0.0
      %v7799 = vadd.f32 %v7797, %v7798
      %v7800 = vsel %vm5739, %v7587, 0.0
      %v7801 = vadd.f32 %v7799, %v7800
      %v7802 = vsel %vm5739, %v7591, 0.0
      %v7803 = vadd.f32 %v7801, %v7802
      %s7804 = scalar_lea.vmem %s10, 2
      %v7805 = vld [vmem:[%s7804] sm:$0x1]
      %v7807 = vperm.slane %v7805, 0
      %v7809 = vadd.f32 %v7644, %v7807
      %v7810 = vadd.f32 %v7697, %v7807
      %v7811 = vadd.f32 %v7750, %v7807
      %v7812 = vadd.f32 %v7803, %v7807
      %v7813 = vpack.c.bf16 %v7810, %v7809
      %v7814 = vpack.c.bf16 %v7812, %v7811
      %s7815 = scalar_lea.vmem %s11, 64
      %v7816 = vld [vmem:[%s7815] sm:$0xf]
      %v7817 = vld [vmem:[%s7815 + $0x4] sm:$0xf]
      %v7818 = vld [vmem:[%s7815 + $0x8] sm:$0xf]
      %v7819 = vld [vmem:[%s7815 + $0xc] sm:$0xf]
      %v7820 = vld [vmem:[%s7815 + $0x10] sm:$0xf]
      %v7821 = vld [vmem:[%s7815 + $0x14] sm:$0xf]
      %v7822 = vld [vmem:[%s7815 + $0x18] sm:$0xf]
      %v7823 = vld [vmem:[%s7815 + $0x1c] sm:$0xf]
      %v7832 = vunpack.c.l.b16 %v7816
      %v7833 = vunpack.c.l.b16 %v7817
      %v7834 = vunpack.c.l.b16 %v7818
      %v7835 = vunpack.c.l.b16 %v7819
      %v7836 = vunpack.c.l.b16 %v7820
      %v7837 = vunpack.c.l.b16 %v7821
      %v7838 = vunpack.c.l.b16 %v7822
      %v7839 = vunpack.c.l.b16 %v7823
      %v7840 = vpack.c.b16 %v7833, %v7832
      %v7841 = vpack.c.b16 %v7835, %v7834
      %v7842 = vpack.c.b16 %v7837, %v7836
      %v7843 = vpack.c.b16 %v7839, %v7838
      %v7849 = vsel %vm5739, %v7813, 0
      %v7852 = vsel %vm5739, %v7814, 0
      %7854 = vmatpush.bf16.msra.mxu0 0
      %7855 = vmatpush.bf16.msra.mxu0 0
      %7856 = vmatpush.bf16.msra.mxu0 0
      %7857 = vmatpush.bf16.msra.mxu0 0
      %7858 = vmatpush.bf16.msra.mxu0 %v7843
      %7859 = vmatpush.bf16.msra.mxu0 %v7842
      %7860 = vmatpush.bf16.msra.mxu0 %v7841
      %7861 = vmatpush.bf16.msra.mxu0 %v7840
      %7862 = vmatmul.bf16.gmra.mxu0 %v7849
      %v7863 = vpop.f32.mrf.mxu0
      %v7864 = vadd.f32 %v7105, %v7863
      %v7865 = vpop.f32.mrf.mxu0
      %v7866 = vadd.f32 %v7107, %v7865
      %7867 = vmatmul.bf16.gmra.mxu0 %v7852
      %v7868 = vpop.f32.mrf.mxu0
      %v7869 = vadd.f32 %v7109, %v7868
      %v7870 = vpop.f32.mrf.mxu0
      %v7871 = vadd.f32 %v7111, %v7870
      %7872 = vdwg.mxu0
      %v7873 = vlaneseq
      %v7874 = vshrl.u32 %v7873, 7
      %v7875 = vadd.s32 %v7874, 8
      %v7876 = vadd.s32 %v7874, 16
      %v7877 = vadd.s32 %v7874, 24
      %vm7878 = vcmp.lt.s32.totalorder %v7874, 27
      %vm7879 = vcmp.lt.s32.totalorder %v7875, 27
      %vm7880 = vcmp.lt.s32.totalorder %v7876, 27
      %vm7881 = vcmp.lt.s32.totalorder %v7877, 27
      %v7882 = vsel %vm7878, 1, 0
      %v7883 = vsel %vm7879, 1, 0
      %v7884 = vsel %vm7880, 1, 0
      %v7885 = vsel %vm7881, 1, 0
      %v7886 = vcvt.s32.f32 %v7882
      %v7887 = vcvt.s32.f32 %v7883
      %v7888 = vcvt.s32.f32 %v7884
      %v7889 = vcvt.s32.f32 %v7885
      %v7890 = vmul.f32 %v7864, %v7886
      %v7891 = vmul.f32 %v7866, %v7887
      %v7892 = vmul.f32 %v7869, %v7888
      %v7893 = vmul.f32 %v7871, %v7889
      %v7894 = vadd.f32 %v7890, %v7891
      %v7895 = vadd.f32 %v7894, %v7892
      %v7896 = vadd.f32 %v7895, %v7893
      %v7897 = vrot.slane %v7896, 4
      %v7898 = vadd.f32 %v7896, %v7897
      %v7899 = vrot.slane %v7898, 2
      %v7900 = vadd.f32 %v7898, %v7899
      %v7901 = vrot.slane %v7900, 1
      %v7902 = vadd.f32 %v7900, %v7901
      %v7903 = vmul.f32 %v7902, 0.037037037
      %v7904 = vld [vmem:[%s12] sm:$0xff]
      %v7905 = vld [vmem:[%s12 + $0x8] sm:$0xff]
      %v7906 = vld [vmem:[%s12 + $0x10] sm:$0xff]
      %v7907 = vld [vmem:[%s12 + $0x18] sm:$0xff]
      %v7908 = vld [vmem:[%s12 + $0x20] sm:$0xff]
      %v7909 = vld [vmem:[%s12 + $0x28] sm:$0xff]
      %v7910 = vld [vmem:[%s12 + $0x30] sm:$0xff]
      %v7911 = vld [vmem:[%s12 + $0x38] sm:$0xff]
      %v7912 = vld [vmem:[%s12 + $0x40] sm:$0xff]
      %v7913 = vld [vmem:[%s12 + $0x48] sm:$0xff]
      %v7914 = vld [vmem:[%s12 + $0x50] sm:$0xff]
      %v7915 = vld [vmem:[%s12 + $0x58] sm:$0xff]
      %v7916 = vld [vmem:[%s12 + $0x60] sm:$0xff]
      %v7917 = vld [vmem:[%s12 + $0x68] sm:$0xff]
      %v7918 = vld [vmem:[%s12 + $0x70] sm:$0xff]
      %v7919 = vld [vmem:[%s12 + $0x78] sm:$0xff]
      %v7920 = vld [vmem:[%s13] sm:$0x1]
      %7921 = vmatpush.msra.mxu0 %v7919
      %7922 = vmatpush.msra.mxu0 %v7918
      %7923 = vmatpush.msra.mxu0 %v7917
      %7924 = vmatpush.msra.mxu0 %v7916
      %7925 = vmatpush.msra.mxu0 %v7915
      %7926 = vmatpush.msra.mxu0 %v7914
      %7927 = vmatpush.msra.mxu0 %v7913
      %7928 = vmatpush.msra.mxu0 %v7912
      %7929 = vmatpush.msra.mxu0 %v7911
      %7930 = vmatpush.msra.mxu0 %v7910
      %7931 = vmatpush.msra.mxu0 %v7909
      %7932 = vmatpush.msra.mxu0 %v7908
      %7933 = vmatpush.msra.mxu0 %v7907
      %7934 = vmatpush.msra.mxu0 %v7906
      %7935 = vmatpush.msra.mxu0 %v7905
      %7936 = vmatpush.msra.mxu0 %v7904
      %7937 = vmatmul.f32.gmra.mxu0 %v7903
      %v7938 = vpop.f32.mrf.mxu0
      %v7939 = vadd.f32 %v7920, %v7938
      %7940 = vdwg.mxu0
      %vm7941 = vcmp.gt.f32.partialorder %v7939, 0.0
      %v7942 = vmul.f32 %v7939, 0.01
      %v7943 = vsel %vm7941, %v7939, %v7942
      %v7944 = vld [vmem:[%s14] sm:$0xff]
      %v7945 = vld [vmem:[%s15] sm:$0x1]
      %vm7946 = vcmask 64512
      %v7948 = vsel %vm7946, %v7943, 0
      %7950 = vmatpush.msra.mxu0 0.0
      %7951 = vmatpush.msra.mxu0 0.0
      %7952 = vmatpush.msra.mxu0 0.0
      %7953 = vmatpush.msra.mxu0 0.0
      %7954 = vmatpush.msra.mxu0 0.0
      %7955 = vmatpush.msra.mxu0 0.0
      %7956 = vmatpush.msra.mxu0 0.0
      %7957 = vmatpush.msra.mxu0 0.0
      %7958 = vmatpush.msra.mxu0 0.0
      %7959 = vmatpush.msra.mxu0 0.0
      %7960 = vmatpush.msra.mxu0 0.0
      %7961 = vmatpush.msra.mxu0 0.0
      %7962 = vmatpush.msra.mxu0 0.0
      %7963 = vmatpush.msra.mxu0 0.0
      %7964 = vmatpush.msra.mxu0 0.0
      %7965 = vmatpush.msra.mxu0 %v7944
      %7966 = vmatmul.f32.gmra.mxu0 %v7948
      %v7967 = vpop.f32.mrf.mxu0
      %v7968 = vadd.f32 %v7945, %v7967
      %7969 = vdwg.mxu0
      %v7970 = vxor.u32 %v7968, 2147483648
      %v7971 = vmul.f32 %v7970, 1.442695
      %v7972 = vpow.pop %v7971
      %v7973 = vadd.f32 %v7972, 1.0
      %v7974 = vrcp.pop %v7973
      %v7975 = vmul.f32 %v7973, %v7974
      %v7976 = vsub.f32 1.0, %v7975
      %v7977 = vmul.f32 %v7974, %v7976
      %v7978 = vadd.f32 %v7974, %v7977
      %vm7979 = vweird.f32 %v7973
      %vm7980 = vweird.f32 %v7974
      %vm7981 = vmor %vm7979, %vm7980
      %v7982 = vsel %vm7981, %v7974, %v7978
      %v7983 = vand.u32 2147483647, %v7973
      %vm7984 = vcmp.eq.f32.partialorder %v7983, 8.507059e+37
      %v7985 = vand.u32 %v7973, 2147483648
      %v7986 = vor.u32 1.1754944e-38, %v7985
      %v7987 = vsel %vm7984, %v7986, %v7982
      %v7988 = vmul.f32 1.0, %v7987
      %v7989 = vperm.slane %v7988, 0
      %v7990 = vmul.f32 %v7864, %v7989
      %v7991 = vmul.f32 %v7866, %v7989
      %v7992 = vmul.f32 %v7869, %v7989
      %v7993 = vmul.f32 %v7871, %v7989
      %7994 = vst [vmem:[%s521] sm:$0xff] %v7990
      %7995 = vst [vmem:[%s521 + $0x8] sm:$0xff] %v7991
      %7996 = vst [vmem:[%s521 + $0x10] sm:$0xff] %v7992
      %7997 = vst [vmem:[%s521 + $0x18] sm:$0xff] %v7993
      %p7998 = scmp.lt.s32.totalorder %s27, 1
      %s7999 = scalar_select %p7998, %s27, 1
      %s8000 = smul.addr %s7999, 4
      %s8001 = smul.addr %s8000, 8
      %s8002 = scalar_lea.vmem %s16, %s8001
      // Predicated region
      $region85: #{hyperdnet_forward.1} parent=83 // pred_check
        %p8003 = pneg %p386
      $region86: #{hyperdnet_forward.1} parent=83 // pred_check_branch
        %8005 = sbr.rel (%p8003) target = $region88
      $region87: #{hyperdnet_forward.1} parent=83 // pred_region
        _
      $region88: #{hyperdnet_forward.1} parent=83 // pred_fallthru
        _
    $region84: #{hyperdnet_forward.1} parent=5 // pred_fallthru
      _
    %p8006 = scmp.le.s32.totalorder 2, %s22
    // Predicated region
    $region89: #{hyperdnet_forward.1} parent=5 // pred_check
      %p8007 = pneg %p8006
    $region90: #{hyperdnet_forward.1} parent=5 // pred_check_branch
      %8009 = sbr.rel (%p8007) target = $region92
    $region91: #{hyperdnet_forward.1} parent=5 // pred_region
      %s8010 = ssub.s32 %s22, 2
      // Predicated region
      $region93: #{hyperdnet_forward.1} parent=91 // pred_check
        %p8011 = pneg %p392
      $region94: #{hyperdnet_forward.1} parent=91 // pred_check_branch
        %8013 = sbr.rel (%p8011) target = $region96
      $region95: #{hyperdnet_forward.1} parent=91 // pred_region
        %p8014 = scmp.lt.s32.totalorder %s28, 1
        %s8015 = scalar_select %p8014, %s28, 1
        %s8016 = smul.addr %s8015, 4
        %s8017 = smul.addr %s8016, 8
        %s8018 = scalar_lea.vmem %s16, %s8017
      $region96: #{hyperdnet_forward.1} parent=91 // pred_fallthru
        _
    $region92: #{hyperdnet_forward.1} parent=5 // pred_fallthru
      _
  $region6: #{hyperdnet_forward.1} parent=0 // loop_footer
    %s26 = sadd.s32 1, %s22
  $region7: #{hyperdnet_forward.1} parent=0 // loop_footer_branch
    %21 = sbr.rel target = $region3
  $region8: #{hyperdnet_forward.1} parent=0 // loop_exit
    _

</llo_original>
